<compile_context>
chip_gen: v7x
topology: tpu7x:2x2x1
jax: 0.10.0
libtpu: 0.0.40
codegen_flags: <defaults>
</compile_context>

<pallas_src>
import functools

import jax
import jax.numpy as jnp
from jax.experimental import pallas as pl
from jax.experimental.pallas import tpu as pltpu

EXPANSION = 4


def _round_up(x, m):
    return (x + m - 1) // m * m


def _cdiv(a, b):
    return (a + b - 1) // b


@functools.lru_cache(maxsize=None)
def _vmem_budget_bytes():
    """Generation-aware scoped-VMEM budget (v5e/v6e: 96 MiB, v7x: 48 MiB)."""
    cap = 64 * 1024 * 1024  # conservative fallback = v7x physical VMEM per TC
    try:
        info = pltpu.get_tpu_info()
        cap = int(getattr(info, "vmem_capacity_bytes", 0)
                  or getattr(info, "vmem_size_bytes", 0) or cap)
    except Exception:
        pass
    return min(96 * 1024 * 1024, (cap * 3) // 4)


def _pick_tile_m(M, per_row_bytes, resident_bytes, cap=1024):
    """Largest M tile that fits the VMEM budget; >=2 grid steps when M allows."""
    budget = int(_vmem_budget_bytes() * 0.8) - resident_bytes
    tm = budget // max(per_row_bytes, 1)
    tm = max(8, min(tm, cap))
    if M >= 16:
        # keep at least 2 parallel grid steps so megacore / v7x 2-TC chips
        # never run a degenerate single-step grid.
        tm = min(tm, _round_up(_cdiv(M, 2), 8))
    tm = (tm // 8) * 8
    if tm <= 0 or tm >= M:
        return M
    return tm


# -------------------------------------------------------------------------
# Pallas kernel 1: fused multi-tap conv-as-matmul tile.
#   taps[t] (tm, C) bf16 | w (n_taps, C, tn) bf16 (resident) | bias (1, tn) f32
#   [short (tm, tn) bf16] -> out (tm, tn) bf16
# -------------------------------------------------------------------------
def _make_matmul_kernel(n_taps, relu, has_short):
    def kernel(*refs):
        tap_refs = refs[:n_taps]
        w_ref = refs[n_taps]          # (n_taps, C, tn), VMEM-resident
        b_ref = refs[n_taps + 1]      # (1, tn) folded-BN bias, f32
        short_ref = refs[n_taps + 2] if has_short else None
        o_ref = refs[-1]

        acc = jnp.dot(tap_refs[0][...], w_ref[0],
                      preferred_element_type=jnp.float32)
        for t in range(1, n_taps):
            acc = acc + jnp.dot(tap_refs[t][...], w_ref[t],
                                preferred_element_type=jnp.float32)
        y = acc + b_ref[...]
        if has_short:
            y = y + short_ref[...].astype(jnp.float32)
        if relu:
            y = jnp.maximum(y, 0.0)
        o_ref[...] = y.astype(o_ref.dtype)
    return kernel


def fused_matmul_bn_act(taps, w, bias, *, relu, shortcut=None):
    """sum_t taps[t](M,C) @ w[t](C,N) + bias (+shortcut) (+ReLU); bf16 I/O, f32 acc."""
    taps = [t.astype(jnp.bfloat16) for t in taps]
    n_taps = len(taps)
    M, C = taps[0].shape
    K_total, N = w.shape
    assert K_total == n_taps * C
    has_short = shortcut is not None

    # VMEM budgeting: resident weights + double-buffered streamed operands.
    resident = K_total * N * 2 + N * 4 + (64 << 10)
    per_row = 2 * 2 * (n_taps * C) + 2 * 2 * N + (2 * 2 * N if has_short else 0)
    tm = _pick_tile_m(M, per_row, resident, cap=1024)
    gm = _cdiv(M, tm)

    # Weights fully resident (tn = N); split N only when M is too small to
    # give the second TensorCore any work.
    if gm == 1 and N >= 256:
        tn = _round_up(_cdiv(N, 2), 128)
    else:
        tn = N
    grid = (gm, _cdiv(N, tn))

    w3 = w.reshape(n_taps, C, N).astype(jnp.bfloat16)
    b2 = bias.reshape(1, N).astype(jnp.float32)

    in_specs = [pl.BlockSpec((tm, C), lambda i, j: (i, 0)) for _ in range(n_taps)]
    in_specs.append(pl.BlockSpec((n_taps, C, tn), lambda i, j: (0, 0, j)))
    in_specs.append(pl.BlockSpec((1, tn), lambda i, j: (0, j)))
    args = list(taps) + [w3, b2]
    if has_short:
        in_specs.append(pl.BlockSpec((tm, tn), lambda i, j: (i, j)))
        args.append(shortcut.astype(jnp.bfloat16))

    return pl.pallas_call(
        _make_matmul_kernel(n_taps, relu, has_short),
        out_shape=jax.ShapeDtypeStruct((M, N), jnp.bfloat16),
        grid_spec=pltpu.PrefetchScalarGridSpec(
            num_scalar_prefetch=0,
            grid=grid,
            in_specs=in_specs,
            out_specs=pl.BlockSpec((tm, tn), lambda i, j: (i, j)),
        ),
        compiler_params=pltpu.CompilerParams(
            dimension_semantics=("parallel", "parallel"),
            vmem_limit_bytes=_vmem_budget_bytes()),
    )(*args)


# -------------------------------------------------------------------------
# Pallas kernel 2: max over 9 pooling taps, lane-dense (R, Wo*C) bf16 operands.
# -------------------------------------------------------------------------
def _maxpool_kernel(*refs):
    o_ref = refs[-1]
    r = refs[0][...]
    for t in range(1, len(refs) - 1):
        r = jnp.maximum(r, refs[t][...])
    o_ref[...] = r


# -------------------------------------------------------------------------
# Glue: per-tap window extraction (NHWC), conv wrappers, maxpool wrapper.
# -------------------------------------------------------------------------
def _extract_taps(x, ksize, stride, padding, dilation, pad_value=0.0):
    N, H, W, C = x.shape
    xp = jnp.pad(x, ((0, 0), (padding, padding), (padding, padding), (0, 0)),
                 constant_values=pad_value)
    Hp, Wp = H + 2 * padding, W + 2 * padding
    eff = dilation * (ksize - 1) + 1
    Ho = (Hp - eff) // stride + 1
    Wo = (Wp - eff) // stride + 1
    taps = []
    for dy in range(ksize):
        for dx in range(ksize):
            taps.append(
                xp[:,
                   dy * dilation: dy * dilation + (Ho - 1) * stride + 1: stride,
                   dx * dilation: dx * dilation + (Wo - 1) * stride + 1: stride,
                   :])
    return taps, Ho, Wo


def conv1x1_bn(x, p, *, stride=1, relu=True, shortcut=None):
    """1x1 conv + folded BN (+ fused residual add) (+ ReLU)."""
    if stride > 1:
        # TODO(synk): fold the stride into the A BlockSpec index_map instead of
        # materializing this strided gather (minor HBM saving, review item).
        x = x[:, ::stride, ::stride, :]
    N, H, W, C = x.shape
    a = x.reshape(N * H * W, C)
    sc = None if shortcut is None else shortcut.reshape(N * H * W, -1)
    y = fused_matmul_bn_act([a], p["w"], p["bias"], relu=relu, shortcut=sc)
    return y.reshape(N, H, W, -1)


def conv3x3_bn(x, p, *, stride=1, dilation=1, padding=None, relu=True):
    """3x3 conv + folded BN + ReLU as 9 shifted taps -> 9 accumulating dots."""
    # TODO(synk): a direct 3x3 path (stream padded rows once, in-VMEM dx/dy
    # shifts) would cut the remaining ~9x tap traffic to ~1x, but needs an
    # in-kernel (tr, Wo, C) -> (tr*Wo, C) relayout; kept the 9-separate-tap
    # form (review option (a)) for robust Mosaic lowering.
    if padding is None:
        padding = dilation
    taps, Ho, Wo = _extract_taps(x, 3, stride, padding, dilation, 0.0)
    Nb, C = x.shape[0], x.shape[-1]
    M = Nb * Ho * Wo
    taps2d = [t.reshape(M, C) for t in taps]
    y = fused_matmul_bn_act(taps2d, p["w"], p["bias"], relu=relu)
    return y.reshape(Nb, Ho, Wo, -1)


def maxpool_3x3_s2(x):
    """MaxPool2d(kernel=3, stride=2, padding=1) on NHWC bf16."""
    taps, Ho, Wo = _extract_taps(x, 3, 2, 1, 1, pad_value=-jnp.inf)
    N, C = x.shape[0], x.shape[-1]
    R, WC = N * Ho, Wo * C
    taps2d = [t.reshape(R, WC) for t in taps]        # lane-dense, no stack
    per_row = (2 * 9 + 2) * WC * 2
    tr = _pick_tile_m(R, per_row, 64 << 10, cap=1024)
    out = pl.pallas_call(
        _maxpool_kernel,
        out_shape=jax.ShapeDtypeStruct((R, WC), x.dtype),
        grid_spec=pltpu.PrefetchScalarGridSpec(
            num_scalar_prefetch=0,
            grid=(pl.cdiv(R, tr),),
            in_specs=[pl.BlockSpec((tr, WC), lambda i: (i, 0)) for _ in range(9)],
            out_specs=pl.BlockSpec((tr, WC), lambda i: (i, 0)),
        ),
        compiler_params=pltpu.CompilerParams(
            dimension_semantics=("parallel",),
            vmem_limit_bytes=_vmem_budget_bytes()),
    )(*taps2d)
    return out.reshape(N, Ho, Wo, C)


# -------------------------------------------------------------------------
# Deterministic parameter construction (synthetic weights; BN folded).
# -------------------------------------------------------------------------
def _init_conv_bn(key, ksize, cin, cout):
    fan_in = ksize * ksize * cin
    w = (jax.random.normal(key, (fan_in, cout), jnp.float32)
         / jnp.sqrt(jnp.float32(fan_in)))
    eps = 1e-5
    gamma = jnp.ones((cout,), jnp.float32)
    beta = jnp.zeros((cout,), jnp.float32)
    mean = jnp.zeros((cout,), jnp.float32)
    var = jnp.ones((cout,), jnp.float32)
    scale = gamma / jnp.sqrt(var + eps)
    bias = beta - mean * scale
    # Fold BN scale into the weight columns (in f32, then cast) so the kernel
    # epilogue is a single bias add.
    w = (w * scale[None, :]).astype(jnp.bfloat16)
    return {"w": w, "bias": bias}


def _init_bottleneck(key, cin, mid, stride, dilation, iden_mapping):
    ks = jax.random.split(key, 4)
    p = {
        "conv1": _init_conv_bn(ks[0], 1, cin, mid),
        "conv2": _init_conv_bn(ks[1], 3, mid, mid),
        "conv3": _init_conv_bn(ks[2], 1, mid, mid * EXPANSION),
        "stride": stride, "dilation": dilation, "iden": iden_mapping,
    }
    if not iden_mapping:
        p["down"] = _init_conv_bn(ks[3], 1, cin, mid * EXPANSION)
    return p


def make_ndnet_params(key, in_channels, conv1_out, mid_comb, depth_comb,
                      out_stride=32):
    assert out_stride in (8, 16, 32)
    if out_stride == 8:
        last_two_stride, last_two_dilation = [1, 1], [2, 4]
    elif out_stride == 16:
        last_two_stride, last_two_dilation = [2, 1], [1, 2]
    else:
        last_two_stride, last_two_dilation = [2, 2], [1, 1]

    keys = jax.random.split(key, 1 + sum(depth_comb))
    ki = iter(keys)
    params = {"conv1": _init_conv_bn(next(ki), 3, in_channels, conv1_out)}

    strides = [2, last_two_stride[0], last_two_stride[1]]
    dilations = [1, last_two_dilation[0], last_two_dilation[1]]
    in_ch = conv1_out
    blocks = []
    for b in range(3):
        mid, depth = mid_comb[b], depth_comb[b]
        stride, dilation = strides[b], dilations[b]
        iden = not (stride > 1 or dilation > 1)
        layers = [_init_bottleneck(next(ki), in_ch, mid, stride, dilation, iden)]
        in_ch = mid * EXPANSION
        for _ in range(1, depth):
            layers.append(_init_bottleneck(next(ki), in_ch, mid, 1, dilation, True))
        blocks.append(layers)
    params["blocks"] = blocks
    return params


# -------------------------------------------------------------------------
# Forward pass (matches NDNet.forward: returns [block3, block4, block5]).
# -------------------------------------------------------------------------
def bottleneck_forward(x, p):
    stride, dilation = p["stride"], p["dilation"]
    out = conv1x1_bn(x, p["conv1"], relu=True)
    out = conv3x3_bn(out, p["conv2"], stride=stride, dilation=dilation, relu=True)
    if p["iden"]:
        short = x
    else:
        short = conv1x1_bn(x, p["down"], stride=stride, relu=False)
    # conv3 + BN + residual add + ReLU, all fused into one matmul epilogue.
    return conv1x1_bn(out, p["conv3"], relu=True, shortcut=short)


def ndnet_forward(x_nchw, params):
    x = jnp.transpose(x_nchw, (0, 2, 3, 1)).astype(jnp.bfloat16)  # NCHW -> NHWC
    x = conv3x3_bn(x, params["conv1"], stride=2, dilation=1, padding=1, relu=True)
    x = maxpool_3x3_s2(x)
    outs = []
    for layers in params["blocks"]:
        for lp in layers:
            x = bottleneck_forward(x, lp)
        outs.append(jnp.transpose(x, (0, 3, 1, 2)).astype(jnp.float32))
    return outs


if __name__ == "__main__":
    key = jax.random.PRNGKey(0)
    kx, kp = jax.random.split(key)

    # small config: in_channels=3, conv1_out=8, mid=(8,16,32), depth=(2,2,2)
    x = jax.random.normal(kx, (2, 3, 32, 32), jnp.float32)
    params = make_ndnet_params(kp, in_channels=3, conv1_out=8,
                               mid_comb=(8, 16, 32), depth_comb=(2, 2, 2),
                               out_stride=32)

    fwd = jax.jit(lambda inp: ndnet_forward(inp, params))
    blocks = fwd(x)
    blocks = [jax.block_until_ready(b) for b in blocks]

    expected = [(2, 32, 4, 4), (2, 64, 2, 2), (2, 128, 1, 1)]
    for b, e in zip(blocks, expected):
        assert b.shape == e, (b.shape, e)
        assert bool(jnp.all(jnp.isfinite(b)))
    print("KERNEL_OK")
</pallas_src>

<mosaic_0001>
module attributes {stable_mosaic.version = 11 : i64} {
  func.func @kernel(%arg0: i32, %arg1: i32, %arg2: memref<256x3xbf16, #tpu.memory_space<vmem>>, %arg3: memref<256x3xbf16, #tpu.memory_space<vmem>>, %arg4: memref<256x3xbf16, #tpu.memory_space<vmem>>, %arg5: memref<256x3xbf16, #tpu.memory_space<vmem>>, %arg6: memref<256x3xbf16, #tpu.memory_space<vmem>>, %arg7: memref<256x3xbf16, #tpu.memory_space<vmem>>, %arg8: memref<256x3xbf16, #tpu.memory_space<vmem>>, %arg9: memref<256x3xbf16, #tpu.memory_space<vmem>>, %arg10: memref<256x3xbf16, #tpu.memory_space<vmem>>, %arg11: memref<9x3x8xbf16, #tpu.memory_space<vmem>>, %arg12: memref<1x8xf32, #tpu.memory_space<vmem>>, %arg13: memref<256x8xbf16, #tpu.memory_space<vmem>>) attributes {dimension_semantics = [#tpu.dimension_semantics<parallel>, #tpu.dimension_semantics<parallel>], iteration_bounds = array<i64: 2, 1>, scalar_prefetch = 0 : i64, scratch_operands = 0 : i64, tpu.core_type = #tpu.core_type<tc>, window_params = [{transform_indices = @transform_0, window_bounds = array<i64: 256, 3>}, {transform_indices = @transform_1, window_bounds = array<i64: 256, 3>}, {transform_indices = @transform_2, window_bounds = array<i64: 256, 3>}, {transform_indices = @transform_3, window_bounds = array<i64: 256, 3>}, {transform_indices = @transform_4, window_bounds = array<i64: 256, 3>}, {transform_indices = @transform_5, window_bounds = array<i64: 256, 3>}, {transform_indices = @transform_6, window_bounds = array<i64: 256, 3>}, {transform_indices = @transform_7, window_bounds = array<i64: 256, 3>}, {transform_indices = @transform_8, window_bounds = array<i64: 256, 3>}, {transform_indices = @transform_9, window_bounds = array<i64: 9, 3, 8>}, {transform_indices = @transform_10, window_bounds = array<i64: 1, 8>}, {transform_indices = @transform_11, window_bounds = array<i64: 256, 8>}]} {
    %c0 = arith.constant 0 : index
    %c0_0 = arith.constant 0 : index
    %0 = vector.load %arg2[%c0, %c0_0] : memref<256x3xbf16, #tpu.memory_space<vmem>>, vector<256x3xbf16>
    %c0_1 = arith.constant 0 : index
    %c0_2 = arith.constant 0 : index
    %c0_3 = arith.constant 0 : index
    %1 = vector.load %arg11[%c0_1, %c0_2, %c0_3] : memref<9x3x8xbf16, #tpu.memory_space<vmem>>, vector<1x3x8xbf16>
    %2 = vector.shape_cast %1 : vector<1x3x8xbf16> to vector<3x8xbf16>
    %cst = arith.constant dense<0.000000e+00> : vector<256x8xf32>
    %3 = tpu.matmul %0, %2, %cst {dimension_numbers = #tpu.dot_dimension_numbers<[1], [0], [0], [1], [0, 0, 1, 1], [], []>} : vector<256x3xbf16>, vector<3x8xbf16>, vector<256x8xf32> -> vector<256x8xf32>
    %c0_4 = arith.constant 0 : index
    %c0_5 = arith.constant 0 : index
    %4 = vector.load %arg3[%c0_4, %c0_5] : memref<256x3xbf16, #tpu.memory_space<vmem>>, vector<256x3xbf16>
    %c1 = arith.constant 1 : index
    %c0_6 = arith.constant 0 : index
    %c0_7 = arith.constant 0 : index
    %5 = vector.load %arg11[%c1, %c0_6, %c0_7] : memref<9x3x8xbf16, #tpu.memory_space<vmem>>, vector<1x3x8xbf16>
    %6 = vector.shape_cast %5 : vector<1x3x8xbf16> to vector<3x8xbf16>
    %cst_8 = arith.constant dense<0.000000e+00> : vector<256x8xf32>
    %7 = tpu.matmul %4, %6, %cst_8 {dimension_numbers = #tpu.dot_dimension_numbers<[1], [0], [0], [1], [0, 0, 1, 1], [], []>} : vector<256x3xbf16>, vector<3x8xbf16>, vector<256x8xf32> -> vector<256x8xf32>
    %8 = arith.addf %3, %7 : vector<256x8xf32>
    %c0_9 = arith.constant 0 : index
    %c0_10 = arith.constant 0 : index
    %9 = vector.load %arg4[%c0_9, %c0_10] : memref<256x3xbf16, #tpu.memory_space<vmem>>, vector<256x3xbf16>
    %c2 = arith.constant 2 : index
    %c0_11 = arith.constant 0 : index
    %c0_12 = arith.constant 0 : index
    %10 = vector.load %arg11[%c2, %c0_11, %c0_12] : memref<9x3x8xbf16, #tpu.memory_space<vmem>>, vector<1x3x8xbf16>
    %11 = vector.shape_cast %10 : vector<1x3x8xbf16> to vector<3x8xbf16>
    %cst_13 = arith.constant dense<0.000000e+00> : vector<256x8xf32>
    %12 = tpu.matmul %9, %11, %cst_13 {dimension_numbers = #tpu.dot_dimension_numbers<[1], [0], [0], [1], [0, 0, 1, 1], [], []>} : vector<256x3xbf16>, vector<3x8xbf16>, vector<256x8xf32> -> vector<256x8xf32>
    %13 = arith.addf %8, %12 : vector<256x8xf32>
    %c0_14 = arith.constant 0 : index
    %c0_15 = arith.constant 0 : index
    %14 = vector.load %arg5[%c0_14, %c0_15] : memref<256x3xbf16, #tpu.memory_space<vmem>>, vector<256x3xbf16>
    %c3 = arith.constant 3 : index
    %c0_16 = arith.constant 0 : index
    %c0_17 = arith.constant 0 : index
    %15 = vector.load %arg11[%c3, %c0_16, %c0_17] : memref<9x3x8xbf16, #tpu.memory_space<vmem>>, vector<1x3x8xbf16>
    %16 = vector.shape_cast %15 : vector<1x3x8xbf16> to vector<3x8xbf16>
    %cst_18 = arith.constant dense<0.000000e+00> : vector<256x8xf32>
    %17 = tpu.matmul %14, %16, %cst_18 {dimension_numbers = #tpu.dot_dimension_numbers<[1], [0], [0], [1], [0, 0, 1, 1], [], []>} : vector<256x3xbf16>, vector<3x8xbf16>, vector<256x8xf32> -> vector<256x8xf32>
    %18 = arith.addf %13, %17 : vector<256x8xf32>
    %c0_19 = arith.constant 0 : index
    %c0_20 = arith.constant 0 : index
    %19 = vector.load %arg6[%c0_19, %c0_20] : memref<256x3xbf16, #tpu.memory_space<vmem>>, vector<256x3xbf16>
    %c4 = arith.constant 4 : index
    %c0_21 = arith.constant 0 : index
    %c0_22 = arith.constant 0 : index
    %20 = vector.load %arg11[%c4, %c0_21, %c0_22] : memref<9x3x8xbf16, #tpu.memory_space<vmem>>, vector<1x3x8xbf16>
    %21 = vector.shape_cast %20 : vector<1x3x8xbf16> to vector<3x8xbf16>
    %cst_23 = arith.constant dense<0.000000e+00> : vector<256x8xf32>
    %22 = tpu.matmul %19, %21, %cst_23 {dimension_numbers = #tpu.dot_dimension_numbers<[1], [0], [0], [1], [0, 0, 1, 1], [], []>} : vector<256x3xbf16>, vector<3x8xbf16>, vector<256x8xf32> -> vector<256x8xf32>
    %23 = arith.addf %18, %22 : vector<256x8xf32>
    %c0_24 = arith.constant 0 : index
    %c0_25 = arith.constant 0 : index
    %24 = vector.load %arg7[%c0_24, %c0_25] : memref<256x3xbf16, #tpu.memory_space<vmem>>, vector<256x3xbf16>
    %c5 = arith.constant 5 : index
    %c0_26 = arith.constant 0 : index
    %c0_27 = arith.constant 0 : index
    %25 = vector.load %arg11[%c5, %c0_26, %c0_27] : memref<9x3x8xbf16, #tpu.memory_space<vmem>>, vector<1x3x8xbf16>
    %26 = vector.shape_cast %25 : vector<1x3x8xbf16> to vector<3x8xbf16>
    %cst_28 = arith.constant dense<0.000000e+00> : vector<256x8xf32>
    %27 = tpu.matmul %24, %26, %cst_28 {dimension_numbers = #tpu.dot_dimension_numbers<[1], [0], [0], [1], [0, 0, 1, 1], [], []>} : vector<256x3xbf16>, vector<3x8xbf16>, vector<256x8xf32> -> vector<256x8xf32>
    %28 = arith.addf %23, %27 : vector<256x8xf32>
    %c0_29 = arith.constant 0 : index
    %c0_30 = arith.constant 0 : index
    %29 = vector.load %arg8[%c0_29, %c0_30] : memref<256x3xbf16, #tpu.memory_space<vmem>>, vector<256x3xbf16>
    %c6 = arith.constant 6 : index
    %c0_31 = arith.constant 0 : index
    %c0_32 = arith.constant 0 : index
    %30 = vector.load %arg11[%c6, %c0_31, %c0_32] : memref<9x3x8xbf16, #tpu.memory_space<vmem>>, vector<1x3x8xbf16>
    %31 = vector.shape_cast %30 : vector<1x3x8xbf16> to vector<3x8xbf16>
    %cst_33 = arith.constant dense<0.000000e+00> : vector<256x8xf32>
    %32 = tpu.matmul %29, %31, %cst_33 {dimension_numbers = #tpu.dot_dimension_numbers<[1], [0], [0], [1], [0, 0, 1, 1], [], []>} : vector<256x3xbf16>, vector<3x8xbf16>, vector<256x8xf32> -> vector<256x8xf32>
    %33 = arith.addf %28, %32 : vector<256x8xf32>
    %c0_34 = arith.constant 0 : index
    %c0_35 = arith.constant 0 : index
    %34 = vector.load %arg9[%c0_34, %c0_35] : memref<256x3xbf16, #tpu.memory_space<vmem>>, vector<256x3xbf16>
    %c7 = arith.constant 7 : index
    %c0_36 = arith.constant 0 : index
    %c0_37 = arith.constant 0 : index
    %35 = vector.load %arg11[%c7, %c0_36, %c0_37] : memref<9x3x8xbf16, #tpu.memory_space<vmem>>, vector<1x3x8xbf16>
    %36 = vector.shape_cast %35 : vector<1x3x8xbf16> to vector<3x8xbf16>
    %cst_38 = arith.constant dense<0.000000e+00> : vector<256x8xf32>
    %37 = tpu.matmul %34, %36, %cst_38 {dimension_numbers = #tpu.dot_dimension_numbers<[1], [0], [0], [1], [0, 0, 1, 1], [], []>} : vector<256x3xbf16>, vector<3x8xbf16>, vector<256x8xf32> -> vector<256x8xf32>
    %38 = arith.addf %33, %37 : vector<256x8xf32>
    %c0_39 = arith.constant 0 : index
    %c0_40 = arith.constant 0 : index
    %39 = vector.load %arg10[%c0_39, %c0_40] : memref<256x3xbf16, #tpu.memory_space<vmem>>, vector<256x3xbf16>
    %c8 = arith.constant 8 : index
    %c0_41 = arith.constant 0 : index
    %c0_42 = arith.constant 0 : index
    %40 = vector.load %arg11[%c8, %c0_41, %c0_42] : memref<9x3x8xbf16, #tpu.memory_space<vmem>>, vector<1x3x8xbf16>
    %41 = vector.shape_cast %40 : vector<1x3x8xbf16> to vector<3x8xbf16>
    %cst_43 = arith.constant dense<0.000000e+00> : vector<256x8xf32>
    %42 = tpu.matmul %39, %41, %cst_43 {dimension_numbers = #tpu.dot_dimension_numbers<[1], [0], [0], [1], [0, 0, 1, 1], [], []>} : vector<256x3xbf16>, vector<3x8xbf16>, vector<256x8xf32> -> vector<256x8xf32>
    %43 = arith.addf %38, %42 : vector<256x8xf32>
    %c0_44 = arith.constant 0 : index
    %c0_45 = arith.constant 0 : index
    %44 = vector.load %arg12[%c0_44, %c0_45] : memref<1x8xf32, #tpu.memory_space<vmem>>, vector<1x8xf32>
    %45 = vector.broadcast %44 : vector<1x8xf32> to vector<256x8xf32>
    %46 = arith.addf %43, %45 : vector<256x8xf32>
    %cst_46 = arith.constant 0.000000e+00 : f32
    %47 = vector.broadcast %cst_46 : f32 to vector<256x8xf32>
    %48 = arith.maximumf %46, %47 : vector<256x8xf32>
    %49 = arith.truncf %48 : vector<256x8xf32> to vector<256x8xbf16>
    %c0_47 = arith.constant 0 : index
    %c0_48 = arith.constant 0 : index
    %50 = vector.load %arg13[%c0_47, %c0_48] : memref<256x8xbf16, #tpu.memory_space<vmem>>, vector<256x8xbf16>
    tpu.vector_store %arg13[%c0_47, %c0_48], %49 {strides = array<i32>} : memref<256x8xbf16, #tpu.memory_space<vmem>>, vector<256x8xbf16>,
    return
  }
  func.func @transform_0(%arg0: i32, %arg1: i32) -> (i32, i32) {
    %c0_i32 = arith.constant 0 : i32
    %c0_i32_0 = arith.constant 0 : i32
    return %arg0, %c0_i32 : i32, i32
  }
  func.func @transform_1(%arg0: i32, %arg1: i32) -> (i32, i32) {
    %c0_i32 = arith.constant 0 : i32
    %c0_i32_0 = arith.constant 0 : i32
    return %arg0, %c0_i32 : i32, i32
  }
  func.func @transform_2(%arg0: i32, %arg1: i32) -> (i32, i32) {
    %c0_i32 = arith.constant 0 : i32
    %c0_i32_0 = arith.constant 0 : i32
    return %arg0, %c0_i32 : i32, i32
  }
  func.func @transform_3(%arg0: i32, %arg1: i32) -> (i32, i32) {
    %c0_i32 = arith.constant 0 : i32
    %c0_i32_0 = arith.constant 0 : i32
    return %arg0, %c0_i32 : i32, i32
  }
  func.func @transform_4(%arg0: i32, %arg1: i32) -> (i32, i32) {
    %c0_i32 = arith.constant 0 : i32
    %c0_i32_0 = arith.constant 0 : i32
    return %arg0, %c0_i32 : i32, i32
  }
  func.func @transform_5(%arg0: i32, %arg1: i32) -> (i32, i32) {
    %c0_i32 = arith.constant 0 : i32
    %c0_i32_0 = arith.constant 0 : i32
    return %arg0, %c0_i32 : i32, i32
  }
  func.func @transform_6(%arg0: i32, %arg1: i32) -> (i32, i32) {
    %c0_i32 = arith.constant 0 : i32
    %c0_i32_0 = arith.constant 0 : i32
    return %arg0, %c0_i32 : i32, i32
  }
  func.func @transform_7(%arg0: i32, %arg1: i32) -> (i32, i32) {
    %c0_i32 = arith.constant 0 : i32
    %c0_i32_0 = arith.constant 0 : i32
    return %arg0, %c0_i32 : i32, i32
  }
  func.func @transform_8(%arg0: i32, %arg1: i32) -> (i32, i32) {
    %c0_i32 = arith.constant 0 : i32
    %c0_i32_0 = arith.constant 0 : i32
    return %arg0, %c0_i32 : i32, i32
  }
  func.func @transform_9(%arg0: i32, %arg1: i32) -> (i32, i32, i32) {
    %c0_i32 = arith.constant 0 : i32
    %c0_i32_0 = arith.constant 0 : i32
    %c0_i32_1 = arith.constant 0 : i32
    return %c0_i32, %c0_i32_0, %arg1 : i32, i32, i32
  }
  func.func @transform_10(%arg0: i32, %arg1: i32) -> (i32, i32) {
    %c0_i32 = arith.constant 0 : i32
    %c0_i32_0 = arith.constant 0 : i32
    return %c0_i32, %arg1 : i32, i32
  }
  func.func @transform_11(%arg0: i32, %arg1: i32) -> (i32, i32) {
    %c0_i32 = arith.constant 0 : i32
    return %arg0, %arg1 : i32, i32
  }
}

module attributes {stable_mosaic.version = 11 : i64} {
  func.func @kernel(%arg0: i32, %arg1: i32, %arg2: memref<64x8xbf16, #tpu.memory_space<vmem>>, %arg3: memref<1x8x8xbf16, #tpu.memory_space<vmem>>, %arg4: memref<1x8xf32, #tpu.memory_space<vmem>>, %arg5: memref<64x8xbf16, #tpu.memory_space<vmem>>) attributes {dimension_semantics = [#tpu.dimension_semantics<parallel>, #tpu.dimension_semantics<parallel>], iteration_bounds = array<i64: 2, 1>, scalar_prefetch = 0 : i64, scratch_operands = 0 : i64, tpu.core_type = #tpu.core_type<tc>, window_params = [{transform_indices = @transform_0, window_bounds = array<i64: 64, 8>}, {transform_indices = @transform_1, window_bounds = array<i64: 1, 8, 8>}, {transform_indices = @transform_2, window_bounds = array<i64: 1, 8>}, {transform_indices = @transform_3, window_bounds = array<i64: 64, 8>}]} {
    %c0 = arith.constant 0 : index
    %c0_0 = arith.constant 0 : index
    %0 = vector.load %arg2[%c0, %c0_0] : memref<64x8xbf16, #tpu.memory_space<vmem>>, vector<64x8xbf16>
    %c0_1 = arith.constant 0 : index
    %c0_2 = arith.constant 0 : index
    %c0_3 = arith.constant 0 : index
    %1 = vector.load %arg3[%c0_1, %c0_2, %c0_3] : memref<1x8x8xbf16, #tpu.memory_space<vmem>>, vector<1x8x8xbf16>
    %2 = vector.shape_cast %1 : vector<1x8x8xbf16> to vector<8x8xbf16>
    %cst = arith.constant dense<0.000000e+00> : vector<64x8xf32>
    %3 = tpu.matmul %0, %2, %cst {dimension_numbers = #tpu.dot_dimension_numbers<[1], [0], [0], [1], [0, 0, 1, 1], [], []>} : vector<64x8xbf16>, vector<8x8xbf16>, vector<64x8xf32> -> vector<64x8xf32>
    %c0_4 = arith.constant 0 : index
    %c0_5 = arith.constant 0 : index
    %4 = vector.load %arg4[%c0_4, %c0_5] : memref<1x8xf32, #tpu.memory_space<vmem>>, vector<1x8xf32>
    %5 = vector.broadcast %4 : vector<1x8xf32> to vector<64x8xf32>
    %6 = arith.addf %3, %5 : vector<64x8xf32>
    %cst_6 = arith.constant 0.000000e+00 : f32
    %7 = vector.broadcast %cst_6 : f32 to vector<64x8xf32>
    %8 = arith.maximumf %6, %7 : vector<64x8xf32>
    %9 = arith.truncf %8 : vector<64x8xf32> to vector<64x8xbf16>
    %c0_7 = arith.constant 0 : index
    %c0_8 = arith.constant 0 : index
    %10 = vector.load %arg5[%c0_7, %c0_8] : memref<64x8xbf16, #tpu.memory_space<vmem>>, vector<64x8xbf16>
    tpu.vector_store %arg5[%c0_7, %c0_8], %9 {strides = array<i32>} : memref<64x8xbf16, #tpu.memory_space<vmem>>, vector<64x8xbf16>,
    return
  }
  func.func @transform_0(%arg0: i32, %arg1: i32) -> (i32, i32) {
    %c0_i32 = arith.constant 0 : i32
    %c0_i32_0 = arith.constant 0 : i32
    return %arg0, %c0_i32 : i32, i32
  }
  func.func @transform_1(%arg0: i32, %arg1: i32) -> (i32, i32, i32) {
    %c0_i32 = arith.constant 0 : i32
    %c0_i32_0 = arith.constant 0 : i32
    %c0_i32_1 = arith.constant 0 : i32
    return %c0_i32, %c0_i32_0, %arg1 : i32, i32, i32
  }
  func.func @transform_2(%arg0: i32, %arg1: i32) -> (i32, i32) {
    %c0_i32 = arith.constant 0 : i32
    %c0_i32_0 = arith.constant 0 : i32
    return %c0_i32, %arg1 : i32, i32
  }
  func.func @transform_3(%arg0: i32, %arg1: i32) -> (i32, i32) {
    %c0_i32 = arith.constant 0 : i32
    return %arg0, %arg1 : i32, i32
  }
}

module attributes {stable_mosaic.version = 11 : i64} {
  func.func @_maxpool_kernel(%arg0: i32, %arg1: memref<8x64xbf16, #tpu.memory_space<vmem>>, %arg2: memref<8x64xbf16, #tpu.memory_space<vmem>>, %arg3: memref<8x64xbf16, #tpu.memory_space<vmem>>, %arg4: memref<8x64xbf16, #tpu.memory_space<vmem>>, %arg5: memref<8x64xbf16, #tpu.memory_space<vmem>>, %arg6: memref<8x64xbf16, #tpu.memory_space<vmem>>, %arg7: memref<8x64xbf16, #tpu.memory_space<vmem>>, %arg8: memref<8x64xbf16, #tpu.memory_space<vmem>>, %arg9: memref<8x64xbf16, #tpu.memory_space<vmem>>, %arg10: memref<8x64xbf16, #tpu.memory_space<vmem>>) attributes {dimension_semantics = [#tpu.dimension_semantics<parallel>], iteration_bounds = array<i64: 2>, scalar_prefetch = 0 : i64, scratch_operands = 0 : i64, tpu.core_type = #tpu.core_type<tc>, window_params = [{transform_indices = @transform_0, window_bounds = array<i64: 8, 64>}, {transform_indices = @transform_1, window_bounds = array<i64: 8, 64>}, {transform_indices = @transform_2, window_bounds = array<i64: 8, 64>}, {transform_indices = @transform_3, window_bounds = array<i64: 8, 64>}, {transform_indices = @transform_4, window_bounds = array<i64: 8, 64>}, {transform_indices = @transform_5, window_bounds = array<i64: 8, 64>}, {transform_indices = @transform_6, window_bounds = array<i64: 8, 64>}, {transform_indices = @transform_7, window_bounds = array<i64: 8, 64>}, {transform_indices = @transform_8, window_bounds = array<i64: 8, 64>}, {transform_indices = @transform_9, window_bounds = array<i64: 8, 64>}]} {
    %c0 = arith.constant 0 : index
    %c0_0 = arith.constant 0 : index
    %0 = vector.load %arg1[%c0, %c0_0] : memref<8x64xbf16, #tpu.memory_space<vmem>>, vector<8x64xbf16>
    %c0_1 = arith.constant 0 : index
    %c0_2 = arith.constant 0 : index
    %1 = vector.load %arg2[%c0_1, %c0_2] : memref<8x64xbf16, #tpu.memory_space<vmem>>, vector<8x64xbf16>
    %2 = arith.maximumf %0, %1 : vector<8x64xbf16>
    %c0_3 = arith.constant 0 : index
    %c0_4 = arith.constant 0 : index
    %3 = vector.load %arg3[%c0_3, %c0_4] : memref<8x64xbf16, #tpu.memory_space<vmem>>, vector<8x64xbf16>
    %4 = arith.maximumf %2, %3 : vector<8x64xbf16>
    %c0_5 = arith.constant 0 : index
    %c0_6 = arith.constant 0 : index
    %5 = vector.load %arg4[%c0_5, %c0_6] : memref<8x64xbf16, #tpu.memory_space<vmem>>, vector<8x64xbf16>
    %6 = arith.maximumf %4, %5 : vector<8x64xbf16>
    %c0_7 = arith.constant 0 : index
    %c0_8 = arith.constant 0 : index
    %7 = vector.load %arg5[%c0_7, %c0_8] : memref<8x64xbf16, #tpu.memory_space<vmem>>, vector<8x64xbf16>
    %8 = arith.maximumf %6, %7 : vector<8x64xbf16>
    %c0_9 = arith.constant 0 : index
    %c0_10 = arith.constant 0 : index
    %9 = vector.load %arg6[%c0_9, %c0_10] : memref<8x64xbf16, #tpu.memory_space<vmem>>, vector<8x64xbf16>
    %10 = arith.maximumf %8, %9 : vector<8x64xbf16>
    %c0_11 = arith.constant 0 : index
    %c0_12 = arith.constant 0 : index
    %11 = vector.load %arg7[%c0_11, %c0_12] : memref<8x64xbf16, #tpu.memory_space<vmem>>, vector<8x64xbf16>
    %12 = arith.maximumf %10, %11 : vector<8x64xbf16>
    %c0_13 = arith.constant 0 : index
    %c0_14 = arith.constant 0 : index
    %13 = vector.load %arg8[%c0_13, %c0_14] : memref<8x64xbf16, #tpu.memory_space<vmem>>, vector<8x64xbf16>
    %14 = arith.maximumf %12, %13 : vector<8x64xbf16>
    %c0_15 = arith.constant 0 : index
    %c0_16 = arith.constant 0 : index
    %15 = vector.load %arg9[%c0_15, %c0_16] : memref<8x64xbf16, #tpu.memory_space<vmem>>, vector<8x64xbf16>
    %16 = arith.maximumf %14, %15 : vector<8x64xbf16>
    %c0_17 = arith.constant 0 : index
    %c0_18 = arith.constant 0 : index
    %17 = vector.load %arg10[%c0_17, %c0_18] : memref<8x64xbf16, #tpu.memory_space<vmem>>, vector<8x64xbf16>
    tpu.vector_store %arg10[%c0_17, %c0_18], %16 {strides = array<i32>} : memref<8x64xbf16, #tpu.memory_space<vmem>>, vector<8x64xbf16>,
    return
  }
  func.func @transform_0(%arg0: i32) -> (i32, i32) {
    %c0_i32 = arith.constant 0 : i32
    %c0_i32_0 = arith.constant 0 : i32
    return %arg0, %c0_i32 : i32, i32
  }
  func.func @transform_1(%arg0: i32) -> (i32, i32) {
    %c0_i32 = arith.constant 0 : i32
    %c0_i32_0 = arith.constant 0 : i32
    return %arg0, %c0_i32 : i32, i32
  }
  func.func @transform_2(%arg0: i32) -> (i32, i32) {
    %c0_i32 = arith.constant 0 : i32
    %c0_i32_0 = arith.constant 0 : i32
    return %arg0, %c0_i32 : i32, i32
  }
  func.func @transform_3(%arg0: i32) -> (i32, i32) {
    %c0_i32 = arith.constant 0 : i32
    %c0_i32_0 = arith.constant 0 : i32
    return %arg0, %c0_i32 : i32, i32
  }
  func.func @transform_4(%arg0: i32) -> (i32, i32) {
    %c0_i32 = arith.constant 0 : i32
    %c0_i32_0 = arith.constant 0 : i32
    return %arg0, %c0_i32 : i32, i32
  }
  func.func @transform_5(%arg0: i32) -> (i32, i32) {
    %c0_i32 = arith.constant 0 : i32
    %c0_i32_0 = arith.constant 0 : i32
    return %arg0, %c0_i32 : i32, i32
  }
  func.func @transform_6(%arg0: i32) -> (i32, i32) {
    %c0_i32 = arith.constant 0 : i32
    %c0_i32_0 = arith.constant 0 : i32
    return %arg0, %c0_i32 : i32, i32
  }
  func.func @transform_7(%arg0: i32) -> (i32, i32) {
    %c0_i32 = arith.constant 0 : i32
    %c0_i32_0 = arith.constant 0 : i32
    return %arg0, %c0_i32 : i32, i32
  }
  func.func @transform_8(%arg0: i32) -> (i32, i32) {
    %c0_i32 = arith.constant 0 : i32
    %c0_i32_0 = arith.constant 0 : i32
    return %arg0, %c0_i32 : i32, i32
  }
  func.func @transform_9(%arg0: i32) -> (i32, i32) {
    %c0_i32 = arith.constant 0 : i32
    %c0_i32_0 = arith.constant 0 : i32
    return %arg0, %c0_i32 : i32, i32
  }
}

module attributes {stable_mosaic.version = 11 : i64} {
  func.func @kernel(%arg0: i32, %arg1: i32, %arg2: memref<16x8xbf16, #tpu.memory_space<vmem>>, %arg3: memref<16x8xbf16, #tpu.memory_space<vmem>>, %arg4: memref<16x8xbf16, #tpu.memory_space<vmem>>, %arg5: memref<16x8xbf16, #tpu.memory_space<vmem>>, %arg6: memref<16x8xbf16, #tpu.memory_space<vmem>>, %arg7: memref<16x8xbf16, #tpu.memory_space<vmem>>, %arg8: memref<16x8xbf16, #tpu.memory_space<vmem>>, %arg9: memref<16x8xbf16, #tpu.memory_space<vmem>>, %arg10: memref<16x8xbf16, #tpu.memory_space<vmem>>, %arg11: memref<9x8x8xbf16, #tpu.memory_space<vmem>>, %arg12: memref<1x8xf32, #tpu.memory_space<vmem>>, %arg13: memref<16x8xbf16, #tpu.memory_space<vmem>>) attributes {dimension_semantics = [#tpu.dimension_semantics<parallel>, #tpu.dimension_semantics<parallel>], iteration_bounds = array<i64: 2, 1>, scalar_prefetch = 0 : i64, scratch_operands = 0 : i64, tpu.core_type = #tpu.core_type<tc>, window_params = [{transform_indices = @transform_0, window_bounds = array<i64: 16, 8>}, {transform_indices = @transform_1, window_bounds = array<i64: 16, 8>}, {transform_indices = @transform_2, window_bounds = array<i64: 16, 8>}, {transform_indices = @transform_3, window_bounds = array<i64: 16, 8>}, {transform_indices = @transform_4, window_bounds = array<i64: 16, 8>}, {transform_indices = @transform_5, window_bounds = array<i64: 16, 8>}, {transform_indices = @transform_6, window_bounds = array<i64: 16, 8>}, {transform_indices = @transform_7, window_bounds = array<i64: 16, 8>}, {transform_indices = @transform_8, window_bounds = array<i64: 16, 8>}, {transform_indices = @transform_9, window_bounds = array<i64: 9, 8, 8>}, {transform_indices = @transform_10, window_bounds = array<i64: 1, 8>}, {transform_indices = @transform_11, window_bounds = array<i64: 16, 8>}]} {
    %c0 = arith.constant 0 : index
    %c0_0 = arith.constant 0 : index
    %0 = vector.load %arg2[%c0, %c0_0] : memref<16x8xbf16, #tpu.memory_space<vmem>>, vector<16x8xbf16>
    %c0_1 = arith.constant 0 : index
    %c0_2 = arith.constant 0 : index
    %c0_3 = arith.constant 0 : index
    %1 = vector.load %arg11[%c0_1, %c0_2, %c0_3] : memref<9x8x8xbf16, #tpu.memory_space<vmem>>, vector<1x8x8xbf16>
    %2 = vector.shape_cast %1 : vector<1x8x8xbf16> to vector<8x8xbf16>
    %cst = arith.constant dense<0.000000e+00> : vector<16x8xf32>
    %3 = tpu.matmul %0, %2, %cst {dimension_numbers = #tpu.dot_dimension_numbers<[1], [0], [0], [1], [0, 0, 1, 1], [], []>} : vector<16x8xbf16>, vector<8x8xbf16>, vector<16x8xf32> -> vector<16x8xf32>
    %c0_4 = arith.constant 0 : index
    %c0_5 = arith.constant 0 : index
    %4 = vector.load %arg3[%c0_4, %c0_5] : memref<16x8xbf16, #tpu.memory_space<vmem>>, vector<16x8xbf16>
    %c1 = arith.constant 1 : index
    %c0_6 = arith.constant 0 : index
    %c0_7 = arith.constant 0 : index
    %5 = vector.load %arg11[%c1, %c0_6, %c0_7] : memref<9x8x8xbf16, #tpu.memory_space<vmem>>, vector<1x8x8xbf16>
    %6 = vector.shape_cast %5 : vector<1x8x8xbf16> to vector<8x8xbf16>
    %cst_8 = arith.constant dense<0.000000e+00> : vector<16x8xf32>
    %7 = tpu.matmul %4, %6, %cst_8 {dimension_numbers = #tpu.dot_dimension_numbers<[1], [0], [0], [1], [0, 0, 1, 1], [], []>} : vector<16x8xbf16>, vector<8x8xbf16>, vector<16x8xf32> -> vector<16x8xf32>
    %8 = arith.addf %3, %7 : vector<16x8xf32>
    %c0_9 = arith.constant 0 : index
    %c0_10 = arith.constant 0 : index
    %9 = vector.load %arg4[%c0_9, %c0_10] : memref<16x8xbf16, #tpu.memory_space<vmem>>, vector<16x8xbf16>
    %c2 = arith.constant 2 : index
    %c0_11 = arith.constant 0 : index
    %c0_12 = arith.constant 0 : index
    %10 = vector.load %arg11[%c2, %c0_11, %c0_12] : memref<9x8x8xbf16, #tpu.memory_space<vmem>>, vector<1x8x8xbf16>
    %11 = vector.shape_cast %10 : vector<1x8x8xbf16> to vector<8x8xbf16>
    %cst_13 = arith.constant dense<0.000000e+00> : vector<16x8xf32>
    %12 = tpu.matmul %9, %11, %cst_13 {dimension_numbers = #tpu.dot_dimension_numbers<[1], [0], [0], [1], [0, 0, 1, 1], [], []>} : vector<16x8xbf16>, vector<8x8xbf16>, vector<16x8xf32> -> vector<16x8xf32>
    %13 = arith.addf %8, %12 : vector<16x8xf32>
    %c0_14 = arith.constant 0 : index
    %c0_15 = arith.constant 0 : index
    %14 = vector.load %arg5[%c0_14, %c0_15] : memref<16x8xbf16, #tpu.memory_space<vmem>>, vector<16x8xbf16>
    %c3 = arith.constant 3 : index
    %c0_16 = arith.constant 0 : index
    %c0_17 = arith.constant 0 : index
    %15 = vector.load %arg11[%c3, %c0_16, %c0_17] : memref<9x8x8xbf16, #tpu.memory_space<vmem>>, vector<1x8x8xbf16>
    %16 = vector.shape_cast %15 : vector<1x8x8xbf16> to vector<8x8xbf16>
    %cst_18 = arith.constant dense<0.000000e+00> : vector<16x8xf32>
    %17 = tpu.matmul %14, %16, %cst_18 {dimension_numbers = #tpu.dot_dimension_numbers<[1], [0], [0], [1], [0, 0, 1, 1], [], []>} : vector<16x8xbf16>, vector<8x8xbf16>, vector<16x8xf32> -> vector<16x8xf32>
    %18 = arith.addf %13, %17 : vector<16x8xf32>
    %c0_19 = arith.constant 0 : index
    %c0_20 = arith.constant 0 : index
    %19 = vector.load %arg6[%c0_19, %c0_20] : memref<16x8xbf16, #tpu.memory_space<vmem>>, vector<16x8xbf16>
    %c4 = arith.constant 4 : index
    %c0_21 = arith.constant 0 : index
    %c0_22 = arith.constant 0 : index
    %20 = vector.load %arg11[%c4, %c0_21, %c0_22] : memref<9x8x8xbf16, #tpu.memory_space<vmem>>, vector<1x8x8xbf16>
    %21 = vector.shape_cast %20 : vector<1x8x8xbf16> to vector<8x8xbf16>
    %cst_23 = arith.constant dense<0.000000e+00> : vector<16x8xf32>
    %22 = tpu.matmul %19, %21, %cst_23 {dimension_numbers = #tpu.dot_dimension_numbers<[1], [0], [0], [1], [0, 0, 1, 1], [], []>} : vector<16x8xbf16>, vector<8x8xbf16>, vector<16x8xf32> -> vector<16x8xf32>
    %23 = arith.addf %18, %22 : vector<16x8xf32>
    %c0_24 = arith.constant 0 : index
    %c0_25 = arith.constant 0 : index
    %24 = vector.load %arg7[%c0_24, %c0_25] : memref<16x8xbf16, #tpu.memory_space<vmem>>, vector<16x8xbf16>
    %c5 = arith.constant 5 : index
    %c0_26 = arith.constant 0 : index
    %c0_27 = arith.constant 0 : index
    %25 = vector.load %arg11[%c5, %c0_26, %c0_27] : memref<9x8x8xbf16, #tpu.memory_space<vmem>>, vector<1x8x8xbf16>
    %26 = vector.shape_cast %25 : vector<1x8x8xbf16> to vector<8x8xbf16>
    %cst_28 = arith.constant dense<0.000000e+00> : vector<16x8xf32>
    %27 = tpu.matmul %24, %26, %cst_28 {dimension_numbers = #tpu.dot_dimension_numbers<[1], [0], [0], [1], [0, 0, 1, 1], [], []>} : vector<16x8xbf16>, vector<8x8xbf16>, vector<16x8xf32> -> vector<16x8xf32>
    %28 = arith.addf %23, %27 : vector<16x8xf32>
    %c0_29 = arith.constant 0 : index
    %c0_30 = arith.constant 0 : index
    %29 = vector.load %arg8[%c0_29, %c0_30] : memref<16x8xbf16, #tpu.memory_space<vmem>>, vector<16x8xbf16>
    %c6 = arith.constant 6 : index
    %c0_31 = arith.constant 0 : index
    %c0_32 = arith.constant 0 : index
    %30 = vector.load %arg11[%c6, %c0_31, %c0_32] : memref<9x8x8xbf16, #tpu.memory_space<vmem>>, vector<1x8x8xbf16>
    %31 = vector.shape_cast %30 : vector<1x8x8xbf16> to vector<8x8xbf16>
    %cst_33 = arith.constant dense<0.000000e+00> : vector<16x8xf32>
    %32 = tpu.matmul %29, %31, %cst_33 {dimension_numbers = #tpu.dot_dimension_numbers<[1], [0], [0], [1], [0, 0, 1, 1], [], []>} : vector<16x8xbf16>, vector<8x8xbf16>, vector<16x8xf32> -> vector<16x8xf32>
    %33 = arith.addf %28, %32 : vector<16x8xf32>
    %c0_34 = arith.constant 0 : index
    %c0_35 = arith.constant 0 : index
    %34 = vector.load %arg9[%c0_34, %c0_35] : memref<16x8xbf16, #tpu.memory_space<vmem>>, vector<16x8xbf16>
    %c7 = arith.constant 7 : index
    %c0_36 = arith.constant 0 : index
    %c0_37 = arith.constant 0 : index
    %35 = vector.load %arg11[%c7, %c0_36, %c0_37] : memref<9x8x8xbf16, #tpu.memory_space<vmem>>, vector<1x8x8xbf16>
    %36 = vector.shape_cast %35 : vector<1x8x8xbf16> to vector<8x8xbf16>
    %cst_38 = arith.constant dense<0.000000e+00> : vector<16x8xf32>
    %37 = tpu.matmul %34, %36, %cst_38 {dimension_numbers = #tpu.dot_dimension_numbers<[1], [0], [0], [1], [0, 0, 1, 1], [], []>} : vector<16x8xbf16>, vector<8x8xbf16>, vector<16x8xf32> -> vector<16x8xf32>
    %38 = arith.addf %33, %37 : vector<16x8xf32>
    %c0_39 = arith.constant 0 : index
    %c0_40 = arith.constant 0 : index
    %39 = vector.load %arg10[%c0_39, %c0_40] : memref<16x8xbf16, #tpu.memory_space<vmem>>, vector<16x8xbf16>
    %c8 = arith.constant 8 : index
    %c0_41 = arith.constant 0 : index
    %c0_42 = arith.constant 0 : index
    %40 = vector.load %arg11[%c8, %c0_41, %c0_42] : memref<9x8x8xbf16, #tpu.memory_space<vmem>>, vector<1x8x8xbf16>
    %41 = vector.shape_cast %40 : vector<1x8x8xbf16> to vector<8x8xbf16>
    %cst_43 = arith.constant dense<0.000000e+00> : vector<16x8xf32>
    %42 = tpu.matmul %39, %41, %cst_43 {dimension_numbers = #tpu.dot_dimension_numbers<[1], [0], [0], [1], [0, 0, 1, 1], [], []>} : vector<16x8xbf16>, vector<8x8xbf16>, vector<16x8xf32> -> vector<16x8xf32>
    %43 = arith.addf %38, %42 : vector<16x8xf32>
    %c0_44 = arith.constant 0 : index
    %c0_45 = arith.constant 0 : index
    %44 = vector.load %arg12[%c0_44, %c0_45] : memref<1x8xf32, #tpu.memory_space<vmem>>, vector<1x8xf32>
    %45 = vector.broadcast %44 : vector<1x8xf32> to vector<16x8xf32>
    %46 = arith.addf %43, %45 : vector<16x8xf32>
    %cst_46 = arith.constant 0.000000e+00 : f32
    %47 = vector.broadcast %cst_46 : f32 to vector<16x8xf32>
    %48 = arith.maximumf %46, %47 : vector<16x8xf32>
    %49 = arith.truncf %48 : vector<16x8xf32> to vector<16x8xbf16>
    %c0_47 = arith.constant 0 : index
    %c0_48 = arith.constant 0 : index
    %50 = vector.load %arg13[%c0_47, %c0_48] : memref<16x8xbf16, #tpu.memory_space<vmem>>, vector<16x8xbf16>
    tpu.vector_store %arg13[%c0_47, %c0_48], %49 {strides = array<i32>} : memref<16x8xbf16, #tpu.memory_space<vmem>>, vector<16x8xbf16>,
    return
  }
  func.func @transform_0(%arg0: i32, %arg1: i32) -> (i32, i32) {
    %c0_i32 = arith.constant 0 : i32
    %c0_i32_0 = arith.constant 0 : i32
    return %arg0, %c0_i32 : i32, i32
  }
  func.func @transform_1(%arg0: i32, %arg1: i32) -> (i32, i32) {
    %c0_i32 = arith.constant 0 : i32
    %c0_i32_0 = arith.constant 0 : i32
    return %arg0, %c0_i32 : i32, i32
  }
  func.func @transform_2(%arg0: i32, %arg1: i32) -> (i32, i32) {
    %c0_i32 = arith.constant 0 : i32
    %c0_i32_0 = arith.constant 0 : i32
    return %arg0, %c0_i32 : i32, i32
  }
  func.func @transform_3(%arg0: i32, %arg1: i32) -> (i32, i32) {
    %c0_i32 = arith.constant 0 : i32
    %c0_i32_0 = arith.constant 0 : i32
    return %arg0, %c0_i32 : i32, i32
  }
  func.func @transform_4(%arg0: i32, %arg1: i32) -> (i32, i32) {
    %c0_i32 = arith.constant 0 : i32
    %c0_i32_0 = arith.constant 0 : i32
    return %arg0, %c0_i32 : i32, i32
  }
  func.func @transform_5(%arg0: i32, %arg1: i32) -> (i32, i32) {
    %c0_i32 = arith.constant 0 : i32
    %c0_i32_0 = arith.constant 0 : i32
    return %arg0, %c0_i32 : i32, i32
  }
  func.func @transform_6(%arg0: i32, %arg1: i32) -> (i32, i32) {
    %c0_i32 = arith.constant 0 : i32
    %c0_i32_0 = arith.constant 0 : i32
    return %arg0, %c0_i32 : i32, i32
  }
  func.func @transform_7(%arg0: i32, %arg1: i32) -> (i32, i32) {
    %c0_i32 = arith.constant 0 : i32
    %c0_i32_0 = arith.constant 0 : i32
    return %arg0, %c0_i32 : i32, i32
  }
  func.func @transform_8(%arg0: i32, %arg1: i32) -> (i32, i32) {
    %c0_i32 = arith.constant 0 : i32
    %c0_i32_0 = arith.constant 0 : i32
    return %arg0, %c0_i32 : i32, i32
  }
  func.func @transform_9(%arg0: i32, %arg1: i32) -> (i32, i32, i32) {
    %c0_i32 = arith.constant 0 : i32
    %c0_i32_0 = arith.constant 0 : i32
    %c0_i32_1 = arith.constant 0 : i32
    return %c0_i32, %c0_i32_0, %arg1 : i32, i32, i32
  }
  func.func @transform_10(%arg0: i32, %arg1: i32) -> (i32, i32) {
    %c0_i32 = arith.constant 0 : i32
    %c0_i32_0 = arith.constant 0 : i32
    return %c0_i32, %arg1 : i32, i32
  }
  func.func @transform_11(%arg0: i32, %arg1: i32) -> (i32, i32) {
    %c0_i32 = arith.constant 0 : i32
    return %arg0, %arg1 : i32, i32
  }
}

module attributes {stable_mosaic.version = 11 : i64} {
  func.func @kernel(%arg0: i32, %arg1: i32, %arg2: memref<16x8xbf16, #tpu.memory_space<vmem>>, %arg3: memref<1x8x32xbf16, #tpu.memory_space<vmem>>, %arg4: memref<1x32xf32, #tpu.memory_space<vmem>>, %arg5: memref<16x32xbf16, #tpu.memory_space<vmem>>) attributes {dimension_semantics = [#tpu.dimension_semantics<parallel>, #tpu.dimension_semantics<parallel>], iteration_bounds = array<i64: 2, 1>, scalar_prefetch = 0 : i64, scratch_operands = 0 : i64, tpu.core_type = #tpu.core_type<tc>, window_params = [{transform_indices = @transform_0, window_bounds = array<i64: 16, 8>}, {transform_indices = @transform_1, window_bounds = array<i64: 1, 8, 32>}, {transform_indices = @transform_2, window_bounds = array<i64: 1, 32>}, {transform_indices = @transform_3, window_bounds = array<i64: 16, 32>}]} {
    %c0 = arith.constant 0 : index
    %c0_0 = arith.constant 0 : index
    %0 = vector.load %arg2[%c0, %c0_0] : memref<16x8xbf16, #tpu.memory_space<vmem>>, vector<16x8xbf16>
    %c0_1 = arith.constant 0 : index
    %c0_2 = arith.constant 0 : index
    %c0_3 = arith.constant 0 : index
    %1 = vector.load %arg3[%c0_1, %c0_2, %c0_3] : memref<1x8x32xbf16, #tpu.memory_space<vmem>>, vector<1x8x32xbf16>
    %2 = vector.shape_cast %1 : vector<1x8x32xbf16> to vector<8x32xbf16>
    %cst = arith.constant dense<0.000000e+00> : vector<16x32xf32>
    %3 = tpu.matmul %0, %2, %cst {dimension_numbers = #tpu.dot_dimension_numbers<[1], [0], [0], [1], [0, 0, 1, 1], [], []>} : vector<16x8xbf16>, vector<8x32xbf16>, vector<16x32xf32> -> vector<16x32xf32>
    %c0_4 = arith.constant 0 : index
    %c0_5 = arith.constant 0 : index
    %4 = vector.load %arg4[%c0_4, %c0_5] : memref<1x32xf32, #tpu.memory_space<vmem>>, vector<1x32xf32>
    %5 = vector.broadcast %4 : vector<1x32xf32> to vector<16x32xf32>
    %6 = arith.addf %3, %5 : vector<16x32xf32>
    %7 = arith.truncf %6 : vector<16x32xf32> to vector<16x32xbf16>
    %c0_6 = arith.constant 0 : index
    %c0_7 = arith.constant 0 : index
    %8 = vector.load %arg5[%c0_6, %c0_7] : memref<16x32xbf16, #tpu.memory_space<vmem>>, vector<16x32xbf16>
    tpu.vector_store %arg5[%c0_6, %c0_7], %7 {strides = array<i32>} : memref<16x32xbf16, #tpu.memory_space<vmem>>, vector<16x32xbf16>,
    return
  }
  func.func @transform_0(%arg0: i32, %arg1: i32) -> (i32, i32) {
    %c0_i32 = arith.constant 0 : i32
    %c0_i32_0 = arith.constant 0 : i32
    return %arg0, %c0_i32 : i32, i32
  }
  func.func @transform_1(%arg0: i32, %arg1: i32) -> (i32, i32, i32) {
    %c0_i32 = arith.constant 0 : i32
    %c0_i32_0 = arith.constant 0 : i32
    %c0_i32_1 = arith.constant 0 : i32
    return %c0_i32, %c0_i32_0, %arg1 : i32, i32, i32
  }
  func.func @transform_2(%arg0: i32, %arg1: i32) -> (i32, i32) {
    %c0_i32 = arith.constant 0 : i32
    %c0_i32_0 = arith.constant 0 : i32
    return %c0_i32, %arg1 : i32, i32
  }
  func.func @transform_3(%arg0: i32, %arg1: i32) -> (i32, i32) {
    %c0_i32 = arith.constant 0 : i32
    return %arg0, %arg1 : i32, i32
  }
}

module attributes {stable_mosaic.version = 11 : i64} {
  func.func @kernel(%arg0: i32, %arg1: i32, %arg2: memref<16x8xbf16, #tpu.memory_space<vmem>>, %arg3: memref<1x8x32xbf16, #tpu.memory_space<vmem>>, %arg4: memref<1x32xf32, #tpu.memory_space<vmem>>, %arg5: memref<16x32xbf16, #tpu.memory_space<vmem>>, %arg6: memref<16x32xbf16, #tpu.memory_space<vmem>>) attributes {dimension_semantics = [#tpu.dimension_semantics<parallel>, #tpu.dimension_semantics<parallel>], iteration_bounds = array<i64: 2, 1>, scalar_prefetch = 0 : i64, scratch_operands = 0 : i64, tpu.core_type = #tpu.core_type<tc>, window_params = [{transform_indices = @transform_0, window_bounds = array<i64: 16, 8>}, {transform_indices = @transform_1, window_bounds = array<i64: 1, 8, 32>}, {transform_indices = @transform_2, window_bounds = array<i64: 1, 32>}, {transform_indices = @transform_3, window_bounds = array<i64: 16, 32>}, {transform_indices = @transform_4, window_bounds = array<i64: 16, 32>}]} {
    %c0 = arith.constant 0 : index
    %c0_0 = arith.constant 0 : index
    %0 = vector.load %arg2[%c0, %c0_0] : memref<16x8xbf16, #tpu.memory_space<vmem>>, vector<16x8xbf16>
    %c0_1 = arith.constant 0 : index
    %c0_2 = arith.constant 0 : index
    %c0_3 = arith.constant 0 : index
    %1 = vector.load %arg3[%c0_1, %c0_2, %c0_3] : memref<1x8x32xbf16, #tpu.memory_space<vmem>>, vector<1x8x32xbf16>
    %2 = vector.shape_cast %1 : vector<1x8x32xbf16> to vector<8x32xbf16>
    %cst = arith.constant dense<0.000000e+00> : vector<16x32xf32>
    %3 = tpu.matmul %0, %2, %cst {dimension_numbers = #tpu.dot_dimension_numbers<[1], [0], [0], [1], [0, 0, 1, 1], [], []>} : vector<16x8xbf16>, vector<8x32xbf16>, vector<16x32xf32> -> vector<16x32xf32>
    %c0_4 = arith.constant 0 : index
    %c0_5 = arith.constant 0 : index
    %4 = vector.load %arg4[%c0_4, %c0_5] : memref<1x32xf32, #tpu.memory_space<vmem>>, vector<1x32xf32>
    %5 = vector.broadcast %4 : vector<1x32xf32> to vector<16x32xf32>
    %6 = arith.addf %3, %5 : vector<16x32xf32>
    %c0_6 = arith.constant 0 : index
    %c0_7 = arith.constant 0 : index
    %7 = vector.load %arg5[%c0_6, %c0_7] : memref<16x32xbf16, #tpu.memory_space<vmem>>, vector<16x32xbf16>
    %8 = arith.extf %7 : vector<16x32xbf16> to vector<16x32xf32>
    %9 = arith.addf %6, %8 : vector<16x32xf32>
    %cst_8 = arith.constant 0.000000e+00 : f32
    %10 = vector.broadcast %cst_8 : f32 to vector<16x32xf32>
    %11 = arith.maximumf %9, %10 : vector<16x32xf32>
    %12 = arith.truncf %11 : vector<16x32xf32> to vector<16x32xbf16>
    %c0_9 = arith.constant 0 : index
    %c0_10 = arith.constant 0 : index
    %13 = vector.load %arg6[%c0_9, %c0_10] : memref<16x32xbf16, #tpu.memory_space<vmem>>, vector<16x32xbf16>
    tpu.vector_store %arg6[%c0_9, %c0_10], %12 {strides = array<i32>} : memref<16x32xbf16, #tpu.memory_space<vmem>>, vector<16x32xbf16>,
    return
  }
  func.func @transform_0(%arg0: i32, %arg1: i32) -> (i32, i32) {
    %c0_i32 = arith.constant 0 : i32
    %c0_i32_0 = arith.constant 0 : i32
    return %arg0, %c0_i32 : i32, i32
  }
  func.func @transform_1(%arg0: i32, %arg1: i32) -> (i32, i32, i32) {
    %c0_i32 = arith.constant 0 : i32
    %c0_i32_0 = arith.constant 0 : i32
    %c0_i32_1 = arith.constant 0 : i32
    return %c0_i32, %c0_i32_0, %arg1 : i32, i32, i32
  }
  func.func @transform_2(%arg0: i32, %arg1: i32) -> (i32, i32) {
    %c0_i32 = arith.constant 0 : i32
    %c0_i32_0 = arith.constant 0 : i32
    return %c0_i32, %arg1 : i32, i32
  }
  func.func @transform_3(%arg0: i32, %arg1: i32) -> (i32, i32) {
    %c0_i32 = arith.constant 0 : i32
    return %arg0, %arg1 : i32, i32
  }
  func.func @transform_4(%arg0: i32, %arg1: i32) -> (i32, i32) {
    %c0_i32 = arith.constant 0 : i32
    return %arg0, %arg1 : i32, i32
  }
}

module attributes {stable_mosaic.version = 11 : i64} {
  func.func @kernel(%arg0: i32, %arg1: i32, %arg2: memref<16x32xbf16, #tpu.memory_space<vmem>>, %arg3: memref<1x32x8xbf16, #tpu.memory_space<vmem>>, %arg4: memref<1x8xf32, #tpu.memory_space<vmem>>, %arg5: memref<16x8xbf16, #tpu.memory_space<vmem>>) attributes {dimension_semantics = [#tpu.dimension_semantics<parallel>, #tpu.dimension_semantics<parallel>], iteration_bounds = array<i64: 2, 1>, scalar_prefetch = 0 : i64, scratch_operands = 0 : i64, tpu.core_type = #tpu.core_type<tc>, window_params = [{transform_indices = @transform_0, window_bounds = array<i64: 16, 32>}, {transform_indices = @transform_1, window_bounds = array<i64: 1, 32, 8>}, {transform_indices = @transform_2, window_bounds = array<i64: 1, 8>}, {transform_indices = @transform_3, window_bounds = array<i64: 16, 8>}]} {
    %c0 = arith.constant 0 : index
    %c0_0 = arith.constant 0 : index
    %0 = vector.load %arg2[%c0, %c0_0] : memref<16x32xbf16, #tpu.memory_space<vmem>>, vector<16x32xbf16>
    %c0_1 = arith.constant 0 : index
    %c0_2 = arith.constant 0 : index
    %c0_3 = arith.constant 0 : index
    %1 = vector.load %arg3[%c0_1, %c0_2, %c0_3] : memref<1x32x8xbf16, #tpu.memory_space<vmem>>, vector<1x32x8xbf16>
    %2 = vector.shape_cast %1 : vector<1x32x8xbf16> to vector<32x8xbf16>
    %cst = arith.constant dense<0.000000e+00> : vector<16x8xf32>
    %3 = tpu.matmul %0, %2, %cst {dimension_numbers = #tpu.dot_dimension_numbers<[1], [0], [0], [1], [0, 0, 1, 1], [], []>} : vector<16x32xbf16>, vector<32x8xbf16>, vector<16x8xf32> -> vector<16x8xf32>
    %c0_4 = arith.constant 0 : index
    %c0_5 = arith.constant 0 : index
    %4 = vector.load %arg4[%c0_4, %c0_5] : memref<1x8xf32, #tpu.memory_space<vmem>>, vector<1x8xf32>
    %5 = vector.broadcast %4 : vector<1x8xf32> to vector<16x8xf32>
    %6 = arith.addf %3, %5 : vector<16x8xf32>
    %cst_6 = arith.constant 0.000000e+00 : f32
    %7 = vector.broadcast %cst_6 : f32 to vector<16x8xf32>
    %8 = arith.maximumf %6, %7 : vector<16x8xf32>
    %9 = arith.truncf %8 : vector<16x8xf32> to vector<16x8xbf16>
    %c0_7 = arith.constant 0 : index
    %c0_8 = arith.constant 0 : index
    %10 = vector.load %arg5[%c0_7, %c0_8] : memref<16x8xbf16, #tpu.memory_space<vmem>>, vector<16x8xbf16>
    tpu.vector_store %arg5[%c0_7, %c0_8], %9 {strides = array<i32>} : memref<16x8xbf16, #tpu.memory_space<vmem>>, vector<16x8xbf16>,
    return
  }
  func.func @transform_0(%arg0: i32, %arg1: i32) -> (i32, i32) {
    %c0_i32 = arith.constant 0 : i32
    %c0_i32_0 = arith.constant 0 : i32
    return %arg0, %c0_i32 : i32, i32
  }
  func.func @transform_1(%arg0: i32, %arg1: i32) -> (i32, i32, i32) {
    %c0_i32 = arith.constant 0 : i32
    %c0_i32_0 = arith.constant 0 : i32
    %c0_i32_1 = arith.constant 0 : i32
    return %c0_i32, %c0_i32_0, %arg1 : i32, i32, i32
  }
  func.func @transform_2(%arg0: i32, %arg1: i32) -> (i32, i32) {
    %c0_i32 = arith.constant 0 : i32
    %c0_i32_0 = arith.constant 0 : i32
    return %c0_i32, %arg1 : i32, i32
  }
  func.func @transform_3(%arg0: i32, %arg1: i32) -> (i32, i32) {
    %c0_i32 = arith.constant 0 : i32
    return %arg0, %arg1 : i32, i32
  }
}

module attributes {stable_mosaic.version = 11 : i64} {
  func.func @kernel(%arg0: i32, %arg1: i32, %arg2: memref<16x32xbf16, #tpu.memory_space<vmem>>, %arg3: memref<1x32x16xbf16, #tpu.memory_space<vmem>>, %arg4: memref<1x16xf32, #tpu.memory_space<vmem>>, %arg5: memref<16x16xbf16, #tpu.memory_space<vmem>>) attributes {dimension_semantics = [#tpu.dimension_semantics<parallel>, #tpu.dimension_semantics<parallel>], iteration_bounds = array<i64: 2, 1>, scalar_prefetch = 0 : i64, scratch_operands = 0 : i64, tpu.core_type = #tpu.core_type<tc>, window_params = [{transform_indices = @transform_0, window_bounds = array<i64: 16, 32>}, {transform_indices = @transform_1, window_bounds = array<i64: 1, 32, 16>}, {transform_indices = @transform_2, window_bounds = array<i64: 1, 16>}, {transform_indices = @transform_3, window_bounds = array<i64: 16, 16>}]} {
    %c0 = arith.constant 0 : index
    %c0_0 = arith.constant 0 : index
    %0 = vector.load %arg2[%c0, %c0_0] : memref<16x32xbf16, #tpu.memory_space<vmem>>, vector<16x32xbf16>
    %c0_1 = arith.constant 0 : index
    %c0_2 = arith.constant 0 : index
    %c0_3 = arith.constant 0 : index
    %1 = vector.load %arg3[%c0_1, %c0_2, %c0_3] : memref<1x32x16xbf16, #tpu.memory_space<vmem>>, vector<1x32x16xbf16>
    %2 = vector.shape_cast %1 : vector<1x32x16xbf16> to vector<32x16xbf16>
    %cst = arith.constant dense<0.000000e+00> : vector<16x16xf32>
    %3 = tpu.matmul %0, %2, %cst {dimension_numbers = #tpu.dot_dimension_numbers<[1], [0], [0], [1], [0, 0, 1, 1], [], []>} : vector<16x32xbf16>, vector<32x16xbf16>, vector<16x16xf32> -> vector<16x16xf32>
    %c0_4 = arith.constant 0 : index
    %c0_5 = arith.constant 0 : index
    %4 = vector.load %arg4[%c0_4, %c0_5] : memref<1x16xf32, #tpu.memory_space<vmem>>, vector<1x16xf32>
    %5 = vector.broadcast %4 : vector<1x16xf32> to vector<16x16xf32>
    %6 = arith.addf %3, %5 : vector<16x16xf32>
    %cst_6 = arith.constant 0.000000e+00 : f32
    %7 = vector.broadcast %cst_6 : f32 to vector<16x16xf32>
    %8 = arith.maximumf %6, %7 : vector<16x16xf32>
    %9 = arith.truncf %8 : vector<16x16xf32> to vector<16x16xbf16>
    %c0_7 = arith.constant 0 : index
    %c0_8 = arith.constant 0 : index
    %10 = vector.load %arg5[%c0_7, %c0_8] : memref<16x16xbf16, #tpu.memory_space<vmem>>, vector<16x16xbf16>
    tpu.vector_store %arg5[%c0_7, %c0_8], %9 {strides = array<i32>} : memref<16x16xbf16, #tpu.memory_space<vmem>>, vector<16x16xbf16>,
    return
  }
  func.func @transform_0(%arg0: i32, %arg1: i32) -> (i32, i32) {
    %c0_i32 = arith.constant 0 : i32
    %c0_i32_0 = arith.constant 0 : i32
    return %arg0, %c0_i32 : i32, i32
  }
  func.func @transform_1(%arg0: i32, %arg1: i32) -> (i32, i32, i32) {
    %c0_i32 = arith.constant 0 : i32
    %c0_i32_0 = arith.constant 0 : i32
    %c0_i32_1 = arith.constant 0 : i32
    return %c0_i32, %c0_i32_0, %arg1 : i32, i32, i32
  }
  func.func @transform_2(%arg0: i32, %arg1: i32) -> (i32, i32) {
    %c0_i32 = arith.constant 0 : i32
    %c0_i32_0 = arith.constant 0 : i32
    return %c0_i32, %arg1 : i32, i32
  }
  func.func @transform_3(%arg0: i32, %arg1: i32) -> (i32, i32) {
    %c0_i32 = arith.constant 0 : i32
    return %arg0, %arg1 : i32, i32
  }
}

module attributes {stable_mosaic.version = 11 : i64} {
  func.func @kernel(%arg0: i32, %arg1: i32, %arg2: memref<8x32xbf16, #tpu.memory_space<vmem>>, %arg3: memref<1x32x64xbf16, #tpu.memory_space<vmem>>, %arg4: memref<1x64xf32, #tpu.memory_space<vmem>>, %arg5: memref<8x64xbf16, #tpu.memory_space<vmem>>) attributes {dimension_semantics = [#tpu.dimension_semantics<parallel>, #tpu.dimension_semantics<parallel>], iteration_bounds = array<i64: 1, 1>, scalar_prefetch = 0 : i64, scratch_operands = 0 : i64, tpu.core_type = #tpu.core_type<tc>, window_params = [{transform_indices = @transform_0, window_bounds = array<i64: 8, 32>}, {transform_indices = @transform_1, window_bounds = array<i64: 1, 32, 64>}, {transform_indices = @transform_2, window_bounds = array<i64: 1, 64>}, {transform_indices = @transform_3, window_bounds = array<i64: 8, 64>}]} {
    %c0 = arith.constant 0 : index
    %c0_0 = arith.constant 0 : index
    %0 = vector.load %arg2[%c0, %c0_0] : memref<8x32xbf16, #tpu.memory_space<vmem>>, vector<8x32xbf16>
    %c0_1 = arith.constant 0 : index
    %c0_2 = arith.constant 0 : index
    %c0_3 = arith.constant 0 : index
    %1 = vector.load %arg3[%c0_1, %c0_2, %c0_3] : memref<1x32x64xbf16, #tpu.memory_space<vmem>>, vector<1x32x64xbf16>
    %2 = vector.shape_cast %1 : vector<1x32x64xbf16> to vector<32x64xbf16>
    %cst = arith.constant dense<0.000000e+00> : vector<8x64xf32>
    %3 = tpu.matmul %0, %2, %cst {dimension_numbers = #tpu.dot_dimension_numbers<[1], [0], [0], [1], [0, 0, 1, 1], [], []>} : vector<8x32xbf16>, vector<32x64xbf16>, vector<8x64xf32> -> vector<8x64xf32>
    %c0_4 = arith.constant 0 : index
    %c0_5 = arith.constant 0 : index
    %4 = vector.load %arg4[%c0_4, %c0_5] : memref<1x64xf32, #tpu.memory_space<vmem>>, vector<1x64xf32>
    %5 = vector.broadcast %4 : vector<1x64xf32> to vector<8x64xf32>
    %6 = arith.addf %3, %5 : vector<8x64xf32>
    %7 = arith.truncf %6 : vector<8x64xf32> to vector<8x64xbf16>
    %c0_6 = arith.constant 0 : index
    %c0_7 = arith.constant 0 : index
    %8 = vector.load %arg5[%c0_6, %c0_7] : memref<8x64xbf16, #tpu.memory_space<vmem>>, vector<8x64xbf16>
    tpu.vector_store %arg5[%c0_6, %c0_7], %7 {strides = array<i32>} : memref<8x64xbf16, #tpu.memory_space<vmem>>, vector<8x64xbf16>,
    return
  }
  func.func @transform_0(%arg0: i32, %arg1: i32) -> (i32, i32) {
    %c0_i32 = arith.constant 0 : i32
    %c0_i32_0 = arith.constant 0 : i32
    return %arg0, %c0_i32 : i32, i32
  }
  func.func @transform_1(%arg0: i32, %arg1: i32) -> (i32, i32, i32) {
    %c0_i32 = arith.constant 0 : i32
    %c0_i32_0 = arith.constant 0 : i32
    %c0_i32_1 = arith.constant 0 : i32
    return %c0_i32, %c0_i32_0, %arg1 : i32, i32, i32
  }
  func.func @transform_2(%arg0: i32, %arg1: i32) -> (i32, i32) {
    %c0_i32 = arith.constant 0 : i32
    %c0_i32_0 = arith.constant 0 : i32
    return %c0_i32, %arg1 : i32, i32
  }
  func.func @transform_3(%arg0: i32, %arg1: i32) -> (i32, i32) {
    %c0_i32 = arith.constant 0 : i32
    return %arg0, %arg1 : i32, i32
  }
}

module attributes {stable_mosaic.version = 11 : i64} {
  func.func @kernel(%arg0: i32, %arg1: i32, %arg2: memref<8x16xbf16, #tpu.memory_space<vmem>>, %arg3: memref<8x16xbf16, #tpu.memory_space<vmem>>, %arg4: memref<8x16xbf16, #tpu.memory_space<vmem>>, %arg5: memref<8x16xbf16, #tpu.memory_space<vmem>>, %arg6: memref<8x16xbf16, #tpu.memory_space<vmem>>, %arg7: memref<8x16xbf16, #tpu.memory_space<vmem>>, %arg8: memref<8x16xbf16, #tpu.memory_space<vmem>>, %arg9: memref<8x16xbf16, #tpu.memory_space<vmem>>, %arg10: memref<8x16xbf16, #tpu.memory_space<vmem>>, %arg11: memref<9x16x16xbf16, #tpu.memory_space<vmem>>, %arg12: memref<1x16xf32, #tpu.memory_space<vmem>>, %arg13: memref<8x16xbf16, #tpu.memory_space<vmem>>) attributes {dimension_semantics = [#tpu.dimension_semantics<parallel>, #tpu.dimension_semantics<parallel>], iteration_bounds = array<i64: 1, 1>, scalar_prefetch = 0 : i64, scratch_operands = 0 : i64, tpu.core_type = #tpu.core_type<tc>, window_params = [{transform_indices = @transform_0, window_bounds = array<i64: 8, 16>}, {transform_indices = @transform_1, window_bounds = array<i64: 8, 16>}, {transform_indices = @transform_2, window_bounds = array<i64: 8, 16>}, {transform_indices = @transform_3, window_bounds = array<i64: 8, 16>}, {transform_indices = @transform_4, window_bounds = array<i64: 8, 16>}, {transform_indices = @transform_5, window_bounds = array<i64: 8, 16>}, {transform_indices = @transform_6, window_bounds = array<i64: 8, 16>}, {transform_indices = @transform_7, window_bounds = array<i64: 8, 16>}, {transform_indices = @transform_8, window_bounds = array<i64: 8, 16>}, {transform_indices = @transform_9, window_bounds = array<i64: 9, 16, 16>}, {transform_indices = @transform_10, window_bounds = array<i64: 1, 16>}, {transform_indices = @transform_11, window_bounds = array<i64: 8, 16>}]} {
    %c0 = arith.constant 0 : index
    %c0_0 = arith.constant 0 : index
    %0 = vector.load %arg2[%c0, %c0_0] : memref<8x16xbf16, #tpu.memory_space<vmem>>, vector<8x16xbf16>
    %c0_1 = arith.constant 0 : index
    %c0_2 = arith.constant 0 : index
    %c0_3 = arith.constant 0 : index
    %1 = vector.load %arg11[%c0_1, %c0_2, %c0_3] : memref<9x16x16xbf16, #tpu.memory_space<vmem>>, vector<1x16x16xbf16>
    %2 = vector.shape_cast %1 : vector<1x16x16xbf16> to vector<16x16xbf16>
    %cst = arith.constant dense<0.000000e+00> : vector<8x16xf32>
    %3 = tpu.matmul %0, %2, %cst {dimension_numbers = #tpu.dot_dimension_numbers<[1], [0], [0], [1], [0, 0, 1, 1], [], []>} : vector<8x16xbf16>, vector<16x16xbf16>, vector<8x16xf32> -> vector<8x16xf32>
    %c0_4 = arith.constant 0 : index
    %c0_5 = arith.constant 0 : index
    %4 = vector.load %arg3[%c0_4, %c0_5] : memref<8x16xbf16, #tpu.memory_space<vmem>>, vector<8x16xbf16>
    %c1 = arith.constant 1 : index
    %c0_6 = arith.constant 0 : index
    %c0_7 = arith.constant 0 : index
    %5 = vector.load %arg11[%c1, %c0_6, %c0_7] : memref<9x16x16xbf16, #tpu.memory_space<vmem>>, vector<1x16x16xbf16>
    %6 = vector.shape_cast %5 : vector<1x16x16xbf16> to vector<16x16xbf16>
    %cst_8 = arith.constant dense<0.000000e+00> : vector<8x16xf32>
    %7 = tpu.matmul %4, %6, %cst_8 {dimension_numbers = #tpu.dot_dimension_numbers<[1], [0], [0], [1], [0, 0, 1, 1], [], []>} : vector<8x16xbf16>, vector<16x16xbf16>, vector<8x16xf32> -> vector<8x16xf32>
    %8 = arith.addf %3, %7 : vector<8x16xf32>
    %c0_9 = arith.constant 0 : index
    %c0_10 = arith.constant 0 : index
    %9 = vector.load %arg4[%c0_9, %c0_10] : memref<8x16xbf16, #tpu.memory_space<vmem>>, vector<8x16xbf16>
    %c2 = arith.constant 2 : index
    %c0_11 = arith.constant 0 : index
    %c0_12 = arith.constant 0 : index
    %10 = vector.load %arg11[%c2, %c0_11, %c0_12] : memref<9x16x16xbf16, #tpu.memory_space<vmem>>, vector<1x16x16xbf16>
    %11 = vector.shape_cast %10 : vector<1x16x16xbf16> to vector<16x16xbf16>
    %cst_13 = arith.constant dense<0.000000e+00> : vector<8x16xf32>
    %12 = tpu.matmul %9, %11, %cst_13 {dimension_numbers = #tpu.dot_dimension_numbers<[1], [0], [0], [1], [0, 0, 1, 1], [], []>} : vector<8x16xbf16>, vector<16x16xbf16>, vector<8x16xf32> -> vector<8x16xf32>
    %13 = arith.addf %8, %12 : vector<8x16xf32>
    %c0_14 = arith.constant 0 : index
    %c0_15 = arith.constant 0 : index
    %14 = vector.load %arg5[%c0_14, %c0_15] : memref<8x16xbf16, #tpu.memory_space<vmem>>, vector<8x16xbf16>
    %c3 = arith.constant 3 : index
    %c0_16 = arith.constant 0 : index
    %c0_17 = arith.constant 0 : index
    %15 = vector.load %arg11[%c3, %c0_16, %c0_17] : memref<9x16x16xbf16, #tpu.memory_space<vmem>>, vector<1x16x16xbf16>
    %16 = vector.shape_cast %15 : vector<1x16x16xbf16> to vector<16x16xbf16>
    %cst_18 = arith.constant dense<0.000000e+00> : vector<8x16xf32>
    %17 = tpu.matmul %14, %16, %cst_18 {dimension_numbers = #tpu.dot_dimension_numbers<[1], [0], [0], [1], [0, 0, 1, 1], [], []>} : vector<8x16xbf16>, vector<16x16xbf16>, vector<8x16xf32> -> vector<8x16xf32>
    %18 = arith.addf %13, %17 : vector<8x16xf32>
    %c0_19 = arith.constant 0 : index
    %c0_20 = arith.constant 0 : index
    %19 = vector.load %arg6[%c0_19, %c0_20] : memref<8x16xbf16, #tpu.memory_space<vmem>>, vector<8x16xbf16>
    %c4 = arith.constant 4 : index
    %c0_21 = arith.constant 0 : index
    %c0_22 = arith.constant 0 : index
    %20 = vector.load %arg11[%c4, %c0_21, %c0_22] : memref<9x16x16xbf16, #tpu.memory_space<vmem>>, vector<1x16x16xbf16>
    %21 = vector.shape_cast %20 : vector<1x16x16xbf16> to vector<16x16xbf16>
    %cst_23 = arith.constant dense<0.000000e+00> : vector<8x16xf32>
    %22 = tpu.matmul %19, %21, %cst_23 {dimension_numbers = #tpu.dot_dimension_numbers<[1], [0], [0], [1], [0, 0, 1, 1], [], []>} : vector<8x16xbf16>, vector<16x16xbf16>, vector<8x16xf32> -> vector<8x16xf32>
    %23 = arith.addf %18, %22 : vector<8x16xf32>
    %c0_24 = arith.constant 0 : index
    %c0_25 = arith.constant 0 : index
    %24 = vector.load %arg7[%c0_24, %c0_25] : memref<8x16xbf16, #tpu.memory_space<vmem>>, vector<8x16xbf16>
    %c5 = arith.constant 5 : index
    %c0_26 = arith.constant 0 : index
    %c0_27 = arith.constant 0 : index
    %25 = vector.load %arg11[%c5, %c0_26, %c0_27] : memref<9x16x16xbf16, #tpu.memory_space<vmem>>, vector<1x16x16xbf16>
    %26 = vector.shape_cast %25 : vector<1x16x16xbf16> to vector<16x16xbf16>
    %cst_28 = arith.constant dense<0.000000e+00> : vector<8x16xf32>
    %27 = tpu.matmul %24, %26, %cst_28 {dimension_numbers = #tpu.dot_dimension_numbers<[1], [0], [0], [1], [0, 0, 1, 1], [], []>} : vector<8x16xbf16>, vector<16x16xbf16>, vector<8x16xf32> -> vector<8x16xf32>
    %28 = arith.addf %23, %27 : vector<8x16xf32>
    %c0_29 = arith.constant 0 : index
    %c0_30 = arith.constant 0 : index
    %29 = vector.load %arg8[%c0_29, %c0_30] : memref<8x16xbf16, #tpu.memory_space<vmem>>, vector<8x16xbf16>
    %c6 = arith.constant 6 : index
    %c0_31 = arith.constant 0 : index
    %c0_32 = arith.constant 0 : index
    %30 = vector.load %arg11[%c6, %c0_31, %c0_32] : memref<9x16x16xbf16, #tpu.memory_space<vmem>>, vector<1x16x16xbf16>
    %31 = vector.shape_cast %30 : vector<1x16x16xbf16> to vector<16x16xbf16>
    %cst_33 = arith.constant dense<0.000000e+00> : vector<8x16xf32>
    %32 = tpu.matmul %29, %31, %cst_33 {dimension_numbers = #tpu.dot_dimension_numbers<[1], [0], [0], [1], [0, 0, 1, 1], [], []>} : vector<8x16xbf16>, vector<16x16xbf16>, vector<8x16xf32> -> vector<8x16xf32>
    %33 = arith.addf %28, %32 : vector<8x16xf32>
    %c0_34 = arith.constant 0 : index
    %c0_35 = arith.constant 0 : index
    %34 = vector.load %arg9[%c0_34, %c0_35] : memref<8x16xbf16, #tpu.memory_space<vmem>>, vector<8x16xbf16>
    %c7 = arith.constant 7 : index
    %c0_36 = arith.constant 0 : index
    %c0_37 = arith.constant 0 : index
    %35 = vector.load %arg11[%c7, %c0_36, %c0_37] : memref<9x16x16xbf16, #tpu.memory_space<vmem>>, vector<1x16x16xbf16>
    %36 = vector.shape_cast %35 : vector<1x16x16xbf16> to vector<16x16xbf16>
    %cst_38 = arith.constant dense<0.000000e+00> : vector<8x16xf32>
    %37 = tpu.matmul %34, %36, %cst_38 {dimension_numbers = #tpu.dot_dimension_numbers<[1], [0], [0], [1], [0, 0, 1, 1], [], []>} : vector<8x16xbf16>, vector<16x16xbf16>, vector<8x16xf32> -> vector<8x16xf32>
    %38 = arith.addf %33, %37 : vector<8x16xf32>
    %c0_39 = arith.constant 0 : index
    %c0_40 = arith.constant 0 : index
    %39 = vector.load %arg10[%c0_39, %c0_40] : memref<8x16xbf16, #tpu.memory_space<vmem>>, vector<8x16xbf16>
    %c8 = arith.constant 8 : index
    %c0_41 = arith.constant 0 : index
    %c0_42 = arith.constant 0 : index
    %40 = vector.load %arg11[%c8, %c0_41, %c0_42] : memref<9x16x16xbf16, #tpu.memory_space<vmem>>, vector<1x16x16xbf16>
    %41 = vector.shape_cast %40 : vector<1x16x16xbf16> to vector<16x16xbf16>
    %cst_43 = arith.constant dense<0.000000e+00> : vector<8x16xf32>
    %42 = tpu.matmul %39, %41, %cst_43 {dimension_numbers = #tpu.dot_dimension_numbers<[1], [0], [0], [1], [0, 0, 1, 1], [], []>} : vector<8x16xbf16>, vector<16x16xbf16>, vector<8x16xf32> -> vector<8x16xf32>
    %43 = arith.addf %38, %42 : vector<8x16xf32>
    %c0_44 = arith.constant 0 : index
    %c0_45 = arith.constant 0 : index
    %44 = vector.load %arg12[%c0_44, %c0_45] : memref<1x16xf32, #tpu.memory_space<vmem>>, vector<1x16xf32>
    %45 = vector.broadcast %44 : vector<1x16xf32> to vector<8x16xf32>
    %46 = arith.addf %43, %45 : vector<8x16xf32>
    %cst_46 = arith.constant 0.000000e+00 : f32
    %47 = vector.broadcast %cst_46 : f32 to vector<8x16xf32>
    %48 = arith.maximumf %46, %47 : vector<8x16xf32>
    %49 = arith.truncf %48 : vector<8x16xf32> to vector<8x16xbf16>
    %c0_47 = arith.constant 0 : index
    %c0_48 = arith.constant 0 : index
    %50 = vector.load %arg13[%c0_47, %c0_48] : memref<8x16xbf16, #tpu.memory_space<vmem>>, vector<8x16xbf16>
    tpu.vector_store %arg13[%c0_47, %c0_48], %49 {strides = array<i32>} : memref<8x16xbf16, #tpu.memory_space<vmem>>, vector<8x16xbf16>,
    return
  }
  func.func @transform_0(%arg0: i32, %arg1: i32) -> (i32, i32) {
    %c0_i32 = arith.constant 0 : i32
    %c0_i32_0 = arith.constant 0 : i32
    return %arg0, %c0_i32 : i32, i32
  }
  func.func @transform_1(%arg0: i32, %arg1: i32) -> (i32, i32) {
    %c0_i32 = arith.constant 0 : i32
    %c0_i32_0 = arith.constant 0 : i32
    return %arg0, %c0_i32 : i32, i32
  }
  func.func @transform_2(%arg0: i32, %arg1: i32) -> (i32, i32) {
    %c0_i32 = arith.constant 0 : i32
    %c0_i32_0 = arith.constant 0 : i32
    return %arg0, %c0_i32 : i32, i32
  }
  func.func @transform_3(%arg0: i32, %arg1: i32) -> (i32, i32) {
    %c0_i32 = arith.constant 0 : i32
    %c0_i32_0 = arith.constant 0 : i32
    return %arg0, %c0_i32 : i32, i32
  }
  func.func @transform_4(%arg0: i32, %arg1: i32) -> (i32, i32) {
    %c0_i32 = arith.constant 0 : i32
    %c0_i32_0 = arith.constant 0 : i32
    return %arg0, %c0_i32 : i32, i32
  }
  func.func @transform_5(%arg0: i32, %arg1: i32) -> (i32, i32) {
    %c0_i32 = arith.constant 0 : i32
    %c0_i32_0 = arith.constant 0 : i32
    return %arg0, %c0_i32 : i32, i32
  }
  func.func @transform_6(%arg0: i32, %arg1: i32) -> (i32, i32) {
    %c0_i32 = arith.constant 0 : i32
    %c0_i32_0 = arith.constant 0 : i32
    return %arg0, %c0_i32 : i32, i32
  }
  func.func @transform_7(%arg0: i32, %arg1: i32) -> (i32, i32) {
    %c0_i32 = arith.constant 0 : i32
    %c0_i32_0 = arith.constant 0 : i32
    return %arg0, %c0_i32 : i32, i32
  }
  func.func @transform_8(%arg0: i32, %arg1: i32) -> (i32, i32) {
    %c0_i32 = arith.constant 0 : i32
    %c0_i32_0 = arith.constant 0 : i32
    return %arg0, %c0_i32 : i32, i32
  }
  func.func @transform_9(%arg0: i32, %arg1: i32) -> (i32, i32, i32) {
    %c0_i32 = arith.constant 0 : i32
    %c0_i32_0 = arith.constant 0 : i32
    %c0_i32_1 = arith.constant 0 : i32
    return %c0_i32, %c0_i32_0, %arg1 : i32, i32, i32
  }
  func.func @transform_10(%arg0: i32, %arg1: i32) -> (i32, i32) {
    %c0_i32 = arith.constant 0 : i32
    %c0_i32_0 = arith.constant 0 : i32
    return %c0_i32, %arg1 : i32, i32
  }
  func.func @transform_11(%arg0: i32, %arg1: i32) -> (i32, i32) {
    %c0_i32 = arith.constant 0 : i32
    return %arg0, %arg1 : i32, i32
  }
}

module attributes {stable_mosaic.version = 11 : i64} {
  func.func @kernel(%arg0: i32, %arg1: i32, %arg2: memref<8x64xbf16, #tpu.memory_space<vmem>>, %arg3: memref<1x64x16xbf16, #tpu.memory_space<vmem>>, %arg4: memref<1x16xf32, #tpu.memory_space<vmem>>, %arg5: memref<8x16xbf16, #tpu.memory_space<vmem>>) attributes {dimension_semantics = [#tpu.dimension_semantics<parallel>, #tpu.dimension_semantics<parallel>], iteration_bounds = array<i64: 1, 1>, scalar_prefetch = 0 : i64, scratch_operands = 0 : i64, tpu.core_type = #tpu.core_type<tc>, window_params = [{transform_indices = @transform_0, window_bounds = array<i64: 8, 64>}, {transform_indices = @transform_1, window_bounds = array<i64: 1, 64, 16>}, {transform_indices = @transform_2, window_bounds = array<i64: 1, 16>}, {transform_indices = @transform_3, window_bounds = array<i64: 8, 16>}]} {
    %c0 = arith.constant 0 : index
    %c0_0 = arith.constant 0 : index
    %0 = vector.load %arg2[%c0, %c0_0] : memref<8x64xbf16, #tpu.memory_space<vmem>>, vector<8x64xbf16>
    %c0_1 = arith.constant 0 : index
    %c0_2 = arith.constant 0 : index
    %c0_3 = arith.constant 0 : index
    %1 = vector.load %arg3[%c0_1, %c0_2, %c0_3] : memref<1x64x16xbf16, #tpu.memory_space<vmem>>, vector<1x64x16xbf16>
    %2 = vector.shape_cast %1 : vector<1x64x16xbf16> to vector<64x16xbf16>
    %cst = arith.constant dense<0.000000e+00> : vector<8x16xf32>
    %3 = tpu.matmul %0, %2, %cst {dimension_numbers = #tpu.dot_dimension_numbers<[1], [0], [0], [1], [0, 0, 1, 1], [], []>} : vector<8x64xbf16>, vector<64x16xbf16>, vector<8x16xf32> -> vector<8x16xf32>
    %c0_4 = arith.constant 0 : index
    %c0_5 = arith.constant 0 : index
    %4 = vector.load %arg4[%c0_4, %c0_5] : memref<1x16xf32, #tpu.memory_space<vmem>>, vector<1x16xf32>
    %5 = vector.broadcast %4 : vector<1x16xf32> to vector<8x16xf32>
    %6 = arith.addf %3, %5 : vector<8x16xf32>
    %cst_6 = arith.constant 0.000000e+00 : f32
    %7 = vector.broadcast %cst_6 : f32 to vector<8x16xf32>
    %8 = arith.maximumf %6, %7 : vector<8x16xf32>
    %9 = arith.truncf %8 : vector<8x16xf32> to vector<8x16xbf16>
    %c0_7 = arith.constant 0 : index
    %c0_8 = arith.constant 0 : index
    %10 = vector.load %arg5[%c0_7, %c0_8] : memref<8x16xbf16, #tpu.memory_space<vmem>>, vector<8x16xbf16>
    tpu.vector_store %arg5[%c0_7, %c0_8], %9 {strides = array<i32>} : memref<8x16xbf16, #tpu.memory_space<vmem>>, vector<8x16xbf16>,
    return
  }
  func.func @transform_0(%arg0: i32, %arg1: i32) -> (i32, i32) {
    %c0_i32 = arith.constant 0 : i32
    %c0_i32_0 = arith.constant 0 : i32
    return %arg0, %c0_i32 : i32, i32
  }
  func.func @transform_1(%arg0: i32, %arg1: i32) -> (i32, i32, i32) {
    %c0_i32 = arith.constant 0 : i32
    %c0_i32_0 = arith.constant 0 : i32
    %c0_i32_1 = arith.constant 0 : i32
    return %c0_i32, %c0_i32_0, %arg1 : i32, i32, i32
  }
  func.func @transform_2(%arg0: i32, %arg1: i32) -> (i32, i32) {
    %c0_i32 = arith.constant 0 : i32
    %c0_i32_0 = arith.constant 0 : i32
    return %c0_i32, %arg1 : i32, i32
  }
  func.func @transform_3(%arg0: i32, %arg1: i32) -> (i32, i32) {
    %c0_i32 = arith.constant 0 : i32
    return %arg0, %arg1 : i32, i32
  }
}

module attributes {stable_mosaic.version = 11 : i64} {
  func.func @kernel(%arg0: i32, %arg1: i32, %arg2: memref<8x16xbf16, #tpu.memory_space<vmem>>, %arg3: memref<1x16x64xbf16, #tpu.memory_space<vmem>>, %arg4: memref<1x64xf32, #tpu.memory_space<vmem>>, %arg5: memref<8x64xbf16, #tpu.memory_space<vmem>>, %arg6: memref<8x64xbf16, #tpu.memory_space<vmem>>) attributes {dimension_semantics = [#tpu.dimension_semantics<parallel>, #tpu.dimension_semantics<parallel>], iteration_bounds = array<i64: 1, 1>, scalar_prefetch = 0 : i64, scratch_operands = 0 : i64, tpu.core_type = #tpu.core_type<tc>, window_params = [{transform_indices = @transform_0, window_bounds = array<i64: 8, 16>}, {transform_indices = @transform_1, window_bounds = array<i64: 1, 16, 64>}, {transform_indices = @transform_2, window_bounds = array<i64: 1, 64>}, {transform_indices = @transform_3, window_bounds = array<i64: 8, 64>}, {transform_indices = @transform_4, window_bounds = array<i64: 8, 64>}]} {
    %c0 = arith.constant 0 : index
    %c0_0 = arith.constant 0 : index
    %0 = vector.load %arg2[%c0, %c0_0] : memref<8x16xbf16, #tpu.memory_space<vmem>>, vector<8x16xbf16>
    %c0_1 = arith.constant 0 : index
    %c0_2 = arith.constant 0 : index
    %c0_3 = arith.constant 0 : index
    %1 = vector.load %arg3[%c0_1, %c0_2, %c0_3] : memref<1x16x64xbf16, #tpu.memory_space<vmem>>, vector<1x16x64xbf16>
    %2 = vector.shape_cast %1 : vector<1x16x64xbf16> to vector<16x64xbf16>
    %cst = arith.constant dense<0.000000e+00> : vector<8x64xf32>
    %3 = tpu.matmul %0, %2, %cst {dimension_numbers = #tpu.dot_dimension_numbers<[1], [0], [0], [1], [0, 0, 1, 1], [], []>} : vector<8x16xbf16>, vector<16x64xbf16>, vector<8x64xf32> -> vector<8x64xf32>
    %c0_4 = arith.constant 0 : index
    %c0_5 = arith.constant 0 : index
    %4 = vector.load %arg4[%c0_4, %c0_5] : memref<1x64xf32, #tpu.memory_space<vmem>>, vector<1x64xf32>
    %5 = vector.broadcast %4 : vector<1x64xf32> to vector<8x64xf32>
    %6 = arith.addf %3, %5 : vector<8x64xf32>
    %c0_6 = arith.constant 0 : index
    %c0_7 = arith.constant 0 : index
    %7 = vector.load %arg5[%c0_6, %c0_7] : memref<8x64xbf16, #tpu.memory_space<vmem>>, vector<8x64xbf16>
    %8 = arith.extf %7 : vector<8x64xbf16> to vector<8x64xf32>
    %9 = arith.addf %6, %8 : vector<8x64xf32>
    %cst_8 = arith.constant 0.000000e+00 : f32
    %10 = vector.broadcast %cst_8 : f32 to vector<8x64xf32>
    %11 = arith.maximumf %9, %10 : vector<8x64xf32>
    %12 = arith.truncf %11 : vector<8x64xf32> to vector<8x64xbf16>
    %c0_9 = arith.constant 0 : index
    %c0_10 = arith.constant 0 : index
    %13 = vector.load %arg6[%c0_9, %c0_10] : memref<8x64xbf16, #tpu.memory_space<vmem>>, vector<8x64xbf16>
    tpu.vector_store %arg6[%c0_9, %c0_10], %12 {strides = array<i32>} : memref<8x64xbf16, #tpu.memory_space<vmem>>, vector<8x64xbf16>,
    return
  }
  func.func @transform_0(%arg0: i32, %arg1: i32) -> (i32, i32) {
    %c0_i32 = arith.constant 0 : i32
    %c0_i32_0 = arith.constant 0 : i32
    return %arg0, %c0_i32 : i32, i32
  }
  func.func @transform_1(%arg0: i32, %arg1: i32) -> (i32, i32, i32) {
    %c0_i32 = arith.constant 0 : i32
    %c0_i32_0 = arith.constant 0 : i32
    %c0_i32_1 = arith.constant 0 : i32
    return %c0_i32, %c0_i32_0, %arg1 : i32, i32, i32
  }
  func.func @transform_2(%arg0: i32, %arg1: i32) -> (i32, i32) {
    %c0_i32 = arith.constant 0 : i32
    %c0_i32_0 = arith.constant 0 : i32
    return %c0_i32, %arg1 : i32, i32
  }
  func.func @transform_3(%arg0: i32, %arg1: i32) -> (i32, i32) {
    %c0_i32 = arith.constant 0 : i32
    return %arg0, %arg1 : i32, i32
  }
  func.func @transform_4(%arg0: i32, %arg1: i32) -> (i32, i32) {
    %c0_i32 = arith.constant 0 : i32
    return %arg0, %arg1 : i32, i32
  }
}

module attributes {stable_mosaic.version = 11 : i64} {
  func.func @kernel(%arg0: i32, %arg1: i32, %arg2: memref<8x64xbf16, #tpu.memory_space<vmem>>, %arg3: memref<1x64x32xbf16, #tpu.memory_space<vmem>>, %arg4: memref<1x32xf32, #tpu.memory_space<vmem>>, %arg5: memref<8x32xbf16, #tpu.memory_space<vmem>>) attributes {dimension_semantics = [#tpu.dimension_semantics<parallel>, #tpu.dimension_semantics<parallel>], iteration_bounds = array<i64: 1, 1>, scalar_prefetch = 0 : i64, scratch_operands = 0 : i64, tpu.core_type = #tpu.core_type<tc>, window_params = [{transform_indices = @transform_0, window_bounds = array<i64: 8, 64>}, {transform_indices = @transform_1, window_bounds = array<i64: 1, 64, 32>}, {transform_indices = @transform_2, window_bounds = array<i64: 1, 32>}, {transform_indices = @transform_3, window_bounds = array<i64: 8, 32>}]} {
    %c0 = arith.constant 0 : index
    %c0_0 = arith.constant 0 : index
    %0 = vector.load %arg2[%c0, %c0_0] : memref<8x64xbf16, #tpu.memory_space<vmem>>, vector<8x64xbf16>
    %c0_1 = arith.constant 0 : index
    %c0_2 = arith.constant 0 : index
    %c0_3 = arith.constant 0 : index
    %1 = vector.load %arg3[%c0_1, %c0_2, %c0_3] : memref<1x64x32xbf16, #tpu.memory_space<vmem>>, vector<1x64x32xbf16>
    %2 = vector.shape_cast %1 : vector<1x64x32xbf16> to vector<64x32xbf16>
    %cst = arith.constant dense<0.000000e+00> : vector<8x32xf32>
    %3 = tpu.matmul %0, %2, %cst {dimension_numbers = #tpu.dot_dimension_numbers<[1], [0], [0], [1], [0, 0, 1, 1], [], []>} : vector<8x64xbf16>, vector<64x32xbf16>, vector<8x32xf32> -> vector<8x32xf32>
    %c0_4 = arith.constant 0 : index
    %c0_5 = arith.constant 0 : index
    %4 = vector.load %arg4[%c0_4, %c0_5] : memref<1x32xf32, #tpu.memory_space<vmem>>, vector<1x32xf32>
    %5 = vector.broadcast %4 : vector<1x32xf32> to vector<8x32xf32>
    %6 = arith.addf %3, %5 : vector<8x32xf32>
    %cst_6 = arith.constant 0.000000e+00 : f32
    %7 = vector.broadcast %cst_6 : f32 to vector<8x32xf32>
    %8 = arith.maximumf %6, %7 : vector<8x32xf32>
    %9 = arith.truncf %8 : vector<8x32xf32> to vector<8x32xbf16>
    %c0_7 = arith.constant 0 : index
    %c0_8 = arith.constant 0 : index
    %10 = vector.load %arg5[%c0_7, %c0_8] : memref<8x32xbf16, #tpu.memory_space<vmem>>, vector<8x32xbf16>
    tpu.vector_store %arg5[%c0_7, %c0_8], %9 {strides = array<i32>} : memref<8x32xbf16, #tpu.memory_space<vmem>>, vector<8x32xbf16>,
    return
  }
  func.func @transform_0(%arg0: i32, %arg1: i32) -> (i32, i32) {
    %c0_i32 = arith.constant 0 : i32
    %c0_i32_0 = arith.constant 0 : i32
    return %arg0, %c0_i32 : i32, i32
  }
  func.func @transform_1(%arg0: i32, %arg1: i32) -> (i32, i32, i32) {
    %c0_i32 = arith.constant 0 : i32
    %c0_i32_0 = arith.constant 0 : i32
    %c0_i32_1 = arith.constant 0 : i32
    return %c0_i32, %c0_i32_0, %arg1 : i32, i32, i32
  }
  func.func @transform_2(%arg0: i32, %arg1: i32) -> (i32, i32) {
    %c0_i32 = arith.constant 0 : i32
    %c0_i32_0 = arith.constant 0 : i32
    return %c0_i32, %arg1 : i32, i32
  }
  func.func @transform_3(%arg0: i32, %arg1: i32) -> (i32, i32) {
    %c0_i32 = arith.constant 0 : i32
    return %arg0, %arg1 : i32, i32
  }
}

module attributes {stable_mosaic.version = 11 : i64} {
  func.func @kernel(%arg0: i32, %arg1: i32, %arg2: memref<2x64xbf16, #tpu.memory_space<vmem>>, %arg3: memref<1x64x128xbf16, #tpu.memory_space<vmem>>, %arg4: memref<1x128xf32, #tpu.memory_space<vmem>>, %arg5: memref<2x128xbf16, #tpu.memory_space<vmem>>) attributes {dimension_semantics = [#tpu.dimension_semantics<parallel>, #tpu.dimension_semantics<parallel>], iteration_bounds = array<i64: 1, 1>, scalar_prefetch = 0 : i64, scratch_operands = 0 : i64, tpu.core_type = #tpu.core_type<tc>, window_params = [{transform_indices = @transform_0, window_bounds = array<i64: 2, 64>}, {transform_indices = @transform_1, window_bounds = array<i64: 1, 64, 128>}, {transform_indices = @transform_2, window_bounds = array<i64: 1, 128>}, {transform_indices = @transform_3, window_bounds = array<i64: 2, 128>}]} {
    %c0 = arith.constant 0 : index
    %c0_0 = arith.constant 0 : index
    %0 = vector.load %arg2[%c0, %c0_0] : memref<2x64xbf16, #tpu.memory_space<vmem>>, vector<2x64xbf16>
    %c0_1 = arith.constant 0 : index
    %c0_2 = arith.constant 0 : index
    %c0_3 = arith.constant 0 : index
    %1 = vector.load %arg3[%c0_1, %c0_2, %c0_3] : memref<1x64x128xbf16, #tpu.memory_space<vmem>>, vector<1x64x128xbf16>
    %2 = vector.shape_cast %1 : vector<1x64x128xbf16> to vector<64x128xbf16>
    %cst = arith.constant dense<0.000000e+00> : vector<2x128xf32>
    %3 = tpu.matmul %0, %2, %cst {dimension_numbers = #tpu.dot_dimension_numbers<[1], [0], [0], [1], [0, 0, 1, 1], [], []>} : vector<2x64xbf16>, vector<64x128xbf16>, vector<2x128xf32> -> vector<2x128xf32>
    %c0_4 = arith.constant 0 : index
    %c0_5 = arith.constant 0 : index
    %4 = vector.load %arg4[%c0_4, %c0_5] : memref<1x128xf32, #tpu.memory_space<vmem>>, vector<1x128xf32>
    %5 = vector.broadcast %4 : vector<1x128xf32> to vector<2x128xf32>
    %6 = arith.addf %3, %5 : vector<2x128xf32>
    %7 = arith.truncf %6 : vector<2x128xf32> to vector<2x128xbf16>
    %c0_6 = arith.constant 0 : index
    %c0_7 = arith.constant 0 : index
    %8 = vector.load %arg5[%c0_6, %c0_7] : memref<2x128xbf16, #tpu.memory_space<vmem>>, vector<2x128xbf16>
    tpu.vector_store %arg5[%c0_6, %c0_7], %7 {strides = array<i32>} : memref<2x128xbf16, #tpu.memory_space<vmem>>, vector<2x128xbf16>,
    return
  }
  func.func @transform_0(%arg0: i32, %arg1: i32) -> (i32, i32) {
    %c0_i32 = arith.constant 0 : i32
    %c0_i32_0 = arith.constant 0 : i32
    return %arg0, %c0_i32 : i32, i32
  }
  func.func @transform_1(%arg0: i32, %arg1: i32) -> (i32, i32, i32) {
    %c0_i32 = arith.constant 0 : i32
    %c0_i32_0 = arith.constant 0 : i32
    %c0_i32_1 = arith.constant 0 : i32
    return %c0_i32, %c0_i32_0, %arg1 : i32, i32, i32
  }
  func.func @transform_2(%arg0: i32, %arg1: i32) -> (i32, i32) {
    %c0_i32 = arith.constant 0 : i32
    %c0_i32_0 = arith.constant 0 : i32
    return %c0_i32, %arg1 : i32, i32
  }
  func.func @transform_3(%arg0: i32, %arg1: i32) -> (i32, i32) {
    %c0_i32 = arith.constant 0 : i32
    return %arg0, %arg1 : i32, i32
  }
}

module attributes {stable_mosaic.version = 11 : i64} {
  func.func @kernel(%arg0: i32, %arg1: i32, %arg2: memref<2x32xbf16, #tpu.memory_space<vmem>>, %arg3: memref<2x32xbf16, #tpu.memory_space<vmem>>, %arg4: memref<2x32xbf16, #tpu.memory_space<vmem>>, %arg5: memref<2x32xbf16, #tpu.memory_space<vmem>>, %arg6: memref<2x32xbf16, #tpu.memory_space<vmem>>, %arg7: memref<2x32xbf16, #tpu.memory_space<vmem>>, %arg8: memref<2x32xbf16, #tpu.memory_space<vmem>>, %arg9: memref<2x32xbf16, #tpu.memory_space<vmem>>, %arg10: memref<2x32xbf16, #tpu.memory_space<vmem>>, %arg11: memref<9x32x32xbf16, #tpu.memory_space<vmem>>, %arg12: memref<1x32xf32, #tpu.memory_space<vmem>>, %arg13: memref<2x32xbf16, #tpu.memory_space<vmem>>) attributes {dimension_semantics = [#tpu.dimension_semantics<parallel>, #tpu.dimension_semantics<parallel>], iteration_bounds = array<i64: 1, 1>, scalar_prefetch = 0 : i64, scratch_operands = 0 : i64, tpu.core_type = #tpu.core_type<tc>, window_params = [{transform_indices = @transform_0, window_bounds = array<i64: 2, 32>}, {transform_indices = @transform_1, window_bounds = array<i64: 2, 32>}, {transform_indices = @transform_2, window_bounds = array<i64: 2, 32>}, {transform_indices = @transform_3, window_bounds = array<i64: 2, 32>}, {transform_indices = @transform_4, window_bounds = array<i64: 2, 32>}, {transform_indices = @transform_5, window_bounds = array<i64: 2, 32>}, {transform_indices = @transform_6, window_bounds = array<i64: 2, 32>}, {transform_indices = @transform_7, window_bounds = array<i64: 2, 32>}, {transform_indices = @transform_8, window_bounds = array<i64: 2, 32>}, {transform_indices = @transform_9, window_bounds = array<i64: 9, 32, 32>}, {transform_indices = @transform_10, window_bounds = array<i64: 1, 32>}, {transform_indices = @transform_11, window_bounds = array<i64: 2, 32>}]} {
    %c0 = arith.constant 0 : index
    %c0_0 = arith.constant 0 : index
    %0 = vector.load %arg2[%c0, %c0_0] : memref<2x32xbf16, #tpu.memory_space<vmem>>, vector<2x32xbf16>
    %c0_1 = arith.constant 0 : index
    %c0_2 = arith.constant 0 : index
    %c0_3 = arith.constant 0 : index
    %1 = vector.load %arg11[%c0_1, %c0_2, %c0_3] : memref<9x32x32xbf16, #tpu.memory_space<vmem>>, vector<1x32x32xbf16>
    %2 = vector.shape_cast %1 : vector<1x32x32xbf16> to vector<32x32xbf16>
    %cst = arith.constant dense<0.000000e+00> : vector<2x32xf32>
    %3 = tpu.matmul %0, %2, %cst {dimension_numbers = #tpu.dot_dimension_numbers<[1], [0], [0], [1], [0, 0, 1, 1], [], []>} : vector<2x32xbf16>, vector<32x32xbf16>, vector<2x32xf32> -> vector<2x32xf32>
    %c0_4 = arith.constant 0 : index
    %c0_5 = arith.constant 0 : index
    %4 = vector.load %arg3[%c0_4, %c0_5] : memref<2x32xbf16, #tpu.memory_space<vmem>>, vector<2x32xbf16>
    %c1 = arith.constant 1 : index
    %c0_6 = arith.constant 0 : index
    %c0_7 = arith.constant 0 : index
    %5 = vector.load %arg11[%c1, %c0_6, %c0_7] : memref<9x32x32xbf16, #tpu.memory_space<vmem>>, vector<1x32x32xbf16>
    %6 = vector.shape_cast %5 : vector<1x32x32xbf16> to vector<32x32xbf16>
    %cst_8 = arith.constant dense<0.000000e+00> : vector<2x32xf32>
    %7 = tpu.matmul %4, %6, %cst_8 {dimension_numbers = #tpu.dot_dimension_numbers<[1], [0], [0], [1], [0, 0, 1, 1], [], []>} : vector<2x32xbf16>, vector<32x32xbf16>, vector<2x32xf32> -> vector<2x32xf32>
    %8 = arith.addf %3, %7 : vector<2x32xf32>
    %c0_9 = arith.constant 0 : index
    %c0_10 = arith.constant 0 : index
    %9 = vector.load %arg4[%c0_9, %c0_10] : memref<2x32xbf16, #tpu.memory_space<vmem>>, vector<2x32xbf16>
    %c2 = arith.constant 2 : index
    %c0_11 = arith.constant 0 : index
    %c0_12 = arith.constant 0 : index
    %10 = vector.load %arg11[%c2, %c0_11, %c0_12] : memref<9x32x32xbf16, #tpu.memory_space<vmem>>, vector<1x32x32xbf16>
    %11 = vector.shape_cast %10 : vector<1x32x32xbf16> to vector<32x32xbf16>
    %cst_13 = arith.constant dense<0.000000e+00> : vector<2x32xf32>
    %12 = tpu.matmul %9, %11, %cst_13 {dimension_numbers = #tpu.dot_dimension_numbers<[1], [0], [0], [1], [0, 0, 1, 1], [], []>} : vector<2x32xbf16>, vector<32x32xbf16>, vector<2x32xf32> -> vector<2x32xf32>
    %13 = arith.addf %8, %12 : vector<2x32xf32>
    %c0_14 = arith.constant 0 : index
    %c0_15 = arith.constant 0 : index
    %14 = vector.load %arg5[%c0_14, %c0_15] : memref<2x32xbf16, #tpu.memory_space<vmem>>, vector<2x32xbf16>
    %c3 = arith.constant 3 : index
    %c0_16 = arith.constant 0 : index
    %c0_17 = arith.constant 0 : index
    %15 = vector.load %arg11[%c3, %c0_16, %c0_17] : memref<9x32x32xbf16, #tpu.memory_space<vmem>>, vector<1x32x32xbf16>
    %16 = vector.shape_cast %15 : vector<1x32x32xbf16> to vector<32x32xbf16>
    %cst_18 = arith.constant dense<0.000000e+00> : vector<2x32xf32>
    %17 = tpu.matmul %14, %16, %cst_18 {dimension_numbers = #tpu.dot_dimension_numbers<[1], [0], [0], [1], [0, 0, 1, 1], [], []>} : vector<2x32xbf16>, vector<32x32xbf16>, vector<2x32xf32> -> vector<2x32xf32>
    %18 = arith.addf %13, %17 : vector<2x32xf32>
    %c0_19 = arith.constant 0 : index
    %c0_20 = arith.constant 0 : index
    %19 = vector.load %arg6[%c0_19, %c0_20] : memref<2x32xbf16, #tpu.memory_space<vmem>>, vector<2x32xbf16>
    %c4 = arith.constant 4 : index
    %c0_21 = arith.constant 0 : index
    %c0_22 = arith.constant 0 : index
    %20 = vector.load %arg11[%c4, %c0_21, %c0_22] : memref<9x32x32xbf16, #tpu.memory_space<vmem>>, vector<1x32x32xbf16>
    %21 = vector.shape_cast %20 : vector<1x32x32xbf16> to vector<32x32xbf16>
    %cst_23 = arith.constant dense<0.000000e+00> : vector<2x32xf32>
    %22 = tpu.matmul %19, %21, %cst_23 {dimension_numbers = #tpu.dot_dimension_numbers<[1], [0], [0], [1], [0, 0, 1, 1], [], []>} : vector<2x32xbf16>, vector<32x32xbf16>, vector<2x32xf32> -> vector<2x32xf32>
    %23 = arith.addf %18, %22 : vector<2x32xf32>
    %c0_24 = arith.constant 0 : index
    %c0_25 = arith.constant 0 : index
    %24 = vector.load %arg7[%c0_24, %c0_25] : memref<2x32xbf16, #tpu.memory_space<vmem>>, vector<2x32xbf16>
    %c5 = arith.constant 5 : index
    %c0_26 = arith.constant 0 : index
    %c0_27 = arith.constant 0 : index
    %25 = vector.load %arg11[%c5, %c0_26, %c0_27] : memref<9x32x32xbf16, #tpu.memory_space<vmem>>, vector<1x32x32xbf16>
    %26 = vector.shape_cast %25 : vector<1x32x32xbf16> to vector<32x32xbf16>
    %cst_28 = arith.constant dense<0.000000e+00> : vector<2x32xf32>
    %27 = tpu.matmul %24, %26, %cst_28 {dimension_numbers = #tpu.dot_dimension_numbers<[1], [0], [0], [1], [0, 0, 1, 1], [], []>} : vector<2x32xbf16>, vector<32x32xbf16>, vector<2x32xf32> -> vector<2x32xf32>
    %28 = arith.addf %23, %27 : vector<2x32xf32>
    %c0_29 = arith.constant 0 : index
    %c0_30 = arith.constant 0 : index
    %29 = vector.load %arg8[%c0_29, %c0_30] : memref<2x32xbf16, #tpu.memory_space<vmem>>, vector<2x32xbf16>
    %c6 = arith.constant 6 : index
    %c0_31 = arith.constant 0 : index
    %c0_32 = arith.constant 0 : index
    %30 = vector.load %arg11[%c6, %c0_31, %c0_32] : memref<9x32x32xbf16, #tpu.memory_space<vmem>>, vector<1x32x32xbf16>
    %31 = vector.shape_cast %30 : vector<1x32x32xbf16> to vector<32x32xbf16>
    %cst_33 = arith.constant dense<0.000000e+00> : vector<2x32xf32>
    %32 = tpu.matmul %29, %31, %cst_33 {dimension_numbers = #tpu.dot_dimension_numbers<[1], [0], [0], [1], [0, 0, 1, 1], [], []>} : vector<2x32xbf16>, vector<32x32xbf16>, vector<2x32xf32> -> vector<2x32xf32>
    %33 = arith.addf %28, %32 : vector<2x32xf32>
    %c0_34 = arith.constant 0 : index
    %c0_35 = arith.constant 0 : index
    %34 = vector.load %arg9[%c0_34, %c0_35] : memref<2x32xbf16, #tpu.memory_space<vmem>>, vector<2x32xbf16>
    %c7 = arith.constant 7 : index
    %c0_36 = arith.constant 0 : index
    %c0_37 = arith.constant 0 : index
    %35 = vector.load %arg11[%c7, %c0_36, %c0_37] : memref<9x32x32xbf16, #tpu.memory_space<vmem>>, vector<1x32x32xbf16>
    %36 = vector.shape_cast %35 : vector<1x32x32xbf16> to vector<32x32xbf16>
    %cst_38 = arith.constant dense<0.000000e+00> : vector<2x32xf32>
    %37 = tpu.matmul %34, %36, %cst_38 {dimension_numbers = #tpu.dot_dimension_numbers<[1], [0], [0], [1], [0, 0, 1, 1], [], []>} : vector<2x32xbf16>, vector<32x32xbf16>, vector<2x32xf32> -> vector<2x32xf32>
    %38 = arith.addf %33, %37 : vector<2x32xf32>
    %c0_39 = arith.constant 0 : index
    %c0_40 = arith.constant 0 : index
    %39 = vector.load %arg10[%c0_39, %c0_40] : memref<2x32xbf16, #tpu.memory_space<vmem>>, vector<2x32xbf16>
    %c8 = arith.constant 8 : index
    %c0_41 = arith.constant 0 : index
    %c0_42 = arith.constant 0 : index
    %40 = vector.load %arg11[%c8, %c0_41, %c0_42] : memref<9x32x32xbf16, #tpu.memory_space<vmem>>, vector<1x32x32xbf16>
    %41 = vector.shape_cast %40 : vector<1x32x32xbf16> to vector<32x32xbf16>
    %cst_43 = arith.constant dense<0.000000e+00> : vector<2x32xf32>
    %42 = tpu.matmul %39, %41, %cst_43 {dimension_numbers = #tpu.dot_dimension_numbers<[1], [0], [0], [1], [0, 0, 1, 1], [], []>} : vector<2x32xbf16>, vector<32x32xbf16>, vector<2x32xf32> -> vector<2x32xf32>
    %43 = arith.addf %38, %42 : vector<2x32xf32>
    %c0_44 = arith.constant 0 : index
    %c0_45 = arith.constant 0 : index
    %44 = vector.load %arg12[%c0_44, %c0_45] : memref<1x32xf32, #tpu.memory_space<vmem>>, vector<1x32xf32>
    %45 = vector.broadcast %44 : vector<1x32xf32> to vector<2x32xf32>
    %46 = arith.addf %43, %45 : vector<2x32xf32>
    %cst_46 = arith.constant 0.000000e+00 : f32
    %47 = vector.broadcast %cst_46 : f32 to vector<2x32xf32>
    %48 = arith.maximumf %46, %47 : vector<2x32xf32>
    %49 = arith.truncf %48 : vector<2x32xf32> to vector<2x32xbf16>
    %c0_47 = arith.constant 0 : index
    %c0_48 = arith.constant 0 : index
    %50 = vector.load %arg13[%c0_47, %c0_48] : memref<2x32xbf16, #tpu.memory_space<vmem>>, vector<2x32xbf16>
    tpu.vector_store %arg13[%c0_47, %c0_48], %49 {strides = array<i32>} : memref<2x32xbf16, #tpu.memory_space<vmem>>, vector<2x32xbf16>,
    return
  }
  func.func @transform_0(%arg0: i32, %arg1: i32) -> (i32, i32) {
    %c0_i32 = arith.constant 0 : i32
    %c0_i32_0 = arith.constant 0 : i32
    return %arg0, %c0_i32 : i32, i32
  }
  func.func @transform_1(%arg0: i32, %arg1: i32) -> (i32, i32) {
    %c0_i32 = arith.constant 0 : i32
    %c0_i32_0 = arith.constant 0 : i32
    return %arg0, %c0_i32 : i32, i32
  }
  func.func @transform_2(%arg0: i32, %arg1: i32) -> (i32, i32) {
    %c0_i32 = arith.constant 0 : i32
    %c0_i32_0 = arith.constant 0 : i32
    return %arg0, %c0_i32 : i32, i32
  }
  func.func @transform_3(%arg0: i32, %arg1: i32) -> (i32, i32) {
    %c0_i32 = arith.constant 0 : i32
    %c0_i32_0 = arith.constant 0 : i32
    return %arg0, %c0_i32 : i32, i32
  }
  func.func @transform_4(%arg0: i32, %arg1: i32) -> (i32, i32) {
    %c0_i32 = arith.constant 0 : i32
    %c0_i32_0 = arith.constant 0 : i32
    return %arg0, %c0_i32 : i32, i32
  }
  func.func @transform_5(%arg0: i32, %arg1: i32) -> (i32, i32) {
    %c0_i32 = arith.constant 0 : i32
    %c0_i32_0 = arith.constant 0 : i32
    return %arg0, %c0_i32 : i32, i32
  }
  func.func @transform_6(%arg0: i32, %arg1: i32) -> (i32, i32) {
    %c0_i32 = arith.constant 0 : i32
    %c0_i32_0 = arith.constant 0 : i32
    return %arg0, %c0_i32 : i32, i32
  }
  func.func @transform_7(%arg0: i32, %arg1: i32) -> (i32, i32) {
    %c0_i32 = arith.constant 0 : i32
    %c0_i32_0 = arith.constant 0 : i32
    return %arg0, %c0_i32 : i32, i32
  }
  func.func @transform_8(%arg0: i32, %arg1: i32) -> (i32, i32) {
    %c0_i32 = arith.constant 0 : i32
    %c0_i32_0 = arith.constant 0 : i32
    return %arg0, %c0_i32 : i32, i32
  }
  func.func @transform_9(%arg0: i32, %arg1: i32) -> (i32, i32, i32) {
    %c0_i32 = arith.constant 0 : i32
    %c0_i32_0 = arith.constant 0 : i32
    %c0_i32_1 = arith.constant 0 : i32
    return %c0_i32, %c0_i32_0, %arg1 : i32, i32, i32
  }
  func.func @transform_10(%arg0: i32, %arg1: i32) -> (i32, i32) {
    %c0_i32 = arith.constant 0 : i32
    %c0_i32_0 = arith.constant 0 : i32
    return %c0_i32, %arg1 : i32, i32
  }
  func.func @transform_11(%arg0: i32, %arg1: i32) -> (i32, i32) {
    %c0_i32 = arith.constant 0 : i32
    return %arg0, %arg1 : i32, i32
  }
}

module attributes {stable_mosaic.version = 11 : i64} {
  func.func @kernel(%arg0: i32, %arg1: i32, %arg2: memref<2x32xbf16, #tpu.memory_space<vmem>>, %arg3: memref<1x32x128xbf16, #tpu.memory_space<vmem>>, %arg4: memref<1x128xf32, #tpu.memory_space<vmem>>, %arg5: memref<2x128xbf16, #tpu.memory_space<vmem>>, %arg6: memref<2x128xbf16, #tpu.memory_space<vmem>>) attributes {dimension_semantics = [#tpu.dimension_semantics<parallel>, #tpu.dimension_semantics<parallel>], iteration_bounds = array<i64: 1, 1>, scalar_prefetch = 0 : i64, scratch_operands = 0 : i64, tpu.core_type = #tpu.core_type<tc>, window_params = [{transform_indices = @transform_0, window_bounds = array<i64: 2, 32>}, {transform_indices = @transform_1, window_bounds = array<i64: 1, 32, 128>}, {transform_indices = @transform_2, window_bounds = array<i64: 1, 128>}, {transform_indices = @transform_3, window_bounds = array<i64: 2, 128>}, {transform_indices = @transform_4, window_bounds = array<i64: 2, 128>}]} {
    %c0 = arith.constant 0 : index
    %c0_0 = arith.constant 0 : index
    %0 = vector.load %arg2[%c0, %c0_0] : memref<2x32xbf16, #tpu.memory_space<vmem>>, vector<2x32xbf16>
    %c0_1 = arith.constant 0 : index
    %c0_2 = arith.constant 0 : index
    %c0_3 = arith.constant 0 : index
    %1 = vector.load %arg3[%c0_1, %c0_2, %c0_3] : memref<1x32x128xbf16, #tpu.memory_space<vmem>>, vector<1x32x128xbf16>
    %2 = vector.shape_cast %1 : vector<1x32x128xbf16> to vector<32x128xbf16>
    %cst = arith.constant dense<0.000000e+00> : vector<2x128xf32>
    %3 = tpu.matmul %0, %2, %cst {dimension_numbers = #tpu.dot_dimension_numbers<[1], [0], [0], [1], [0, 0, 1, 1], [], []>} : vector<2x32xbf16>, vector<32x128xbf16>, vector<2x128xf32> -> vector<2x128xf32>
    %c0_4 = arith.constant 0 : index
    %c0_5 = arith.constant 0 : index
    %4 = vector.load %arg4[%c0_4, %c0_5] : memref<1x128xf32, #tpu.memory_space<vmem>>, vector<1x128xf32>
    %5 = vector.broadcast %4 : vector<1x128xf32> to vector<2x128xf32>
    %6 = arith.addf %3, %5 : vector<2x128xf32>
    %c0_6 = arith.constant 0 : index
    %c0_7 = arith.constant 0 : index
    %7 = vector.load %arg5[%c0_6, %c0_7] : memref<2x128xbf16, #tpu.memory_space<vmem>>, vector<2x128xbf16>
    %8 = arith.extf %7 : vector<2x128xbf16> to vector<2x128xf32>
    %9 = arith.addf %6, %8 : vector<2x128xf32>
    %cst_8 = arith.constant 0.000000e+00 : f32
    %10 = vector.broadcast %cst_8 : f32 to vector<2x128xf32>
    %11 = arith.maximumf %9, %10 : vector<2x128xf32>
    %12 = arith.truncf %11 : vector<2x128xf32> to vector<2x128xbf16>
    %c0_9 = arith.constant 0 : index
    %c0_10 = arith.constant 0 : index
    %13 = vector.load %arg6[%c0_9, %c0_10] : memref<2x128xbf16, #tpu.memory_space<vmem>>, vector<2x128xbf16>
    tpu.vector_store %arg6[%c0_9, %c0_10], %12 {strides = array<i32>} : memref<2x128xbf16, #tpu.memory_space<vmem>>, vector<2x128xbf16>,
    return
  }
  func.func @transform_0(%arg0: i32, %arg1: i32) -> (i32, i32) {
    %c0_i32 = arith.constant 0 : i32
    %c0_i32_0 = arith.constant 0 : i32
    return %arg0, %c0_i32 : i32, i32
  }
  func.func @transform_1(%arg0: i32, %arg1: i32) -> (i32, i32, i32) {
    %c0_i32 = arith.constant 0 : i32
    %c0_i32_0 = arith.constant 0 : i32
    %c0_i32_1 = arith.constant 0 : i32
    return %c0_i32, %c0_i32_0, %arg1 : i32, i32, i32
  }
  func.func @transform_2(%arg0: i32, %arg1: i32) -> (i32, i32) {
    %c0_i32 = arith.constant 0 : i32
    %c0_i32_0 = arith.constant 0 : i32
    return %c0_i32, %arg1 : i32, i32
  }
  func.func @transform_3(%arg0: i32, %arg1: i32) -> (i32, i32) {
    %c0_i32 = arith.constant 0 : i32
    return %arg0, %arg1 : i32, i32
  }
  func.func @transform_4(%arg0: i32, %arg1: i32) -> (i32, i32) {
    %c0_i32 = arith.constant 0 : i32
    return %arg0, %arg1 : i32, i32
  }
}

module attributes {stable_mosaic.version = 11 : i64} {
  func.func @kernel(%arg0: i32, %arg1: i32, %arg2: memref<2x128xbf16, #tpu.memory_space<vmem>>, %arg3: memref<1x128x32xbf16, #tpu.memory_space<vmem>>, %arg4: memref<1x32xf32, #tpu.memory_space<vmem>>, %arg5: memref<2x32xbf16, #tpu.memory_space<vmem>>) attributes {dimension_semantics = [#tpu.dimension_semantics<parallel>, #tpu.dimension_semantics<parallel>], iteration_bounds = array<i64: 1, 1>, scalar_prefetch = 0 : i64, scratch_operands = 0 : i64, tpu.core_type = #tpu.core_type<tc>, window_params = [{transform_indices = @transform_0, window_bounds = array<i64: 2, 128>}, {transform_indices = @transform_1, window_bounds = array<i64: 1, 128, 32>}, {transform_indices = @transform_2, window_bounds = array<i64: 1, 32>}, {transform_indices = @transform_3, window_bounds = array<i64: 2, 32>}]} {
    %c0 = arith.constant 0 : index
    %c0_0 = arith.constant 0 : index
    %0 = vector.load %arg2[%c0, %c0_0] : memref<2x128xbf16, #tpu.memory_space<vmem>>, vector<2x128xbf16>
    %c0_1 = arith.constant 0 : index
    %c0_2 = arith.constant 0 : index
    %c0_3 = arith.constant 0 : index
    %1 = vector.load %arg3[%c0_1, %c0_2, %c0_3] : memref<1x128x32xbf16, #tpu.memory_space<vmem>>, vector<1x128x32xbf16>
    %2 = vector.shape_cast %1 : vector<1x128x32xbf16> to vector<128x32xbf16>
    %cst = arith.constant dense<0.000000e+00> : vector<2x32xf32>
    %3 = tpu.matmul %0, %2, %cst {dimension_numbers = #tpu.dot_dimension_numbers<[1], [0], [0], [1], [0, 0, 1, 1], [], []>} : vector<2x128xbf16>, vector<128x32xbf16>, vector<2x32xf32> -> vector<2x32xf32>
    %c0_4 = arith.constant 0 : index
    %c0_5 = arith.constant 0 : index
    %4 = vector.load %arg4[%c0_4, %c0_5] : memref<1x32xf32, #tpu.memory_space<vmem>>, vector<1x32xf32>
    %5 = vector.broadcast %4 : vector<1x32xf32> to vector<2x32xf32>
    %6 = arith.addf %3, %5 : vector<2x32xf32>
    %cst_6 = arith.constant 0.000000e+00 : f32
    %7 = vector.broadcast %cst_6 : f32 to vector<2x32xf32>
    %8 = arith.maximumf %6, %7 : vector<2x32xf32>
    %9 = arith.truncf %8 : vector<2x32xf32> to vector<2x32xbf16>
    %c0_7 = arith.constant 0 : index
    %c0_8 = arith.constant 0 : index
    %10 = vector.load %arg5[%c0_7, %c0_8] : memref<2x32xbf16, #tpu.memory_space<vmem>>, vector<2x32xbf16>
    tpu.vector_store %arg5[%c0_7, %c0_8], %9 {strides = array<i32>} : memref<2x32xbf16, #tpu.memory_space<vmem>>, vector<2x32xbf16>,
    return
  }
  func.func @transform_0(%arg0: i32, %arg1: i32) -> (i32, i32) {
    %c0_i32 = arith.constant 0 : i32
    %c0_i32_0 = arith.constant 0 : i32
    return %arg0, %c0_i32 : i32, i32
  }
  func.func @transform_1(%arg0: i32, %arg1: i32) -> (i32, i32, i32) {
    %c0_i32 = arith.constant 0 : i32
    %c0_i32_0 = arith.constant 0 : i32
    %c0_i32_1 = arith.constant 0 : i32
    return %c0_i32, %c0_i32_0, %arg1 : i32, i32, i32
  }
  func.func @transform_2(%arg0: i32, %arg1: i32) -> (i32, i32) {
    %c0_i32 = arith.constant 0 : i32
    %c0_i32_0 = arith.constant 0 : i32
    return %c0_i32, %arg1 : i32, i32
  }
  func.func @transform_3(%arg0: i32, %arg1: i32) -> (i32, i32) {
    %c0_i32 = arith.constant 0 : i32
    return %arg0, %arg1 : i32, i32
  }
}

</mosaic_0001>

<llo_original>
// kernel: _lambda_.24
$region0: #{_lambda_.24}
  #allocation0 [shape = 'u32[]', space=smem, size = 0x4, offset = 0x4, fixed_abs, tag = 'smem constant byte address 0x4 - core index']
  #allocation1 [shape = 'u32[144,128]{1,0:T(1,128)}', space=vmem, size = 0x12000, scoped, tag = 'internal scratch']
  %s0 = inlined_call_operand.vmem [shape: bf16[16,64], index: 0, kind: input, shape index: {}]
  %s1 = inlined_call_operand.vmem [shape: bf16[16,64], index: 1, kind: input, shape index: {}]
  %s2 = inlined_call_operand.vmem [shape: bf16[16,64], index: 2, kind: input, shape index: {}]
  %s3 = inlined_call_operand.vmem [shape: bf16[16,64], index: 3, kind: input, shape index: {}]
  %s4 = inlined_call_operand.vmem [shape: bf16[16,64], index: 4, kind: input, shape index: {}]
  %s5 = inlined_call_operand.vmem [shape: bf16[16,64], index: 5, kind: input, shape index: {}]
  %s6 = inlined_call_operand.vmem [shape: bf16[16,64], index: 6, kind: input, shape index: {}]
  %s7 = inlined_call_operand.vmem [shape: bf16[16,64], index: 7, kind: input, shape index: {}]
  %s8 = inlined_call_operand.vmem [shape: bf16[16,64], index: 8, kind: input, shape index: {}]
  %s9 = inlined_call_operand.vmem [shape: bf16[16,64], index: 9, kind: output, shape index: {}]
  %s10 = sld [smem:[#allocation0]]
  $region69: #{_lambda_.24} parent=0
    _
  %s12 = ssub.s32 1, %s10
  %s13 = scalar_select 0, %s12, %s10
  loop: start=0, step=1, limit=4
  $region2: #{_lambda_.24} parent=0 // loop_pre_header
    _
  $region3: #{_lambda_.24} parent=0 // loop_header
    %s15 = sphi 0, %s19
    %p16 = scmp.ge.s32.totalorder %s15, 4
    %s25 = sphi 0, %s27
    %s28 = sphi 0, %s25
    %s29 = sphi 0, %s28
    %s45 = sphi 0, %s29
    %s51 = sphi 0, %s53
    %s54 = sphi 0, %s51
    %s55 = sphi 0, %s54
    %s71 = sphi 0, %s55
    %s77 = sphi 0, %s79
    %s80 = sphi 0, %s77
    %s81 = sphi 0, %s80
    %s97 = sphi 0, %s81
    %s103 = sphi 0, %s105
    %s106 = sphi 0, %s103
    %s107 = sphi 0, %s106
    %s123 = sphi 0, %s107
    %s129 = sphi 0, %s131
    %s132 = sphi 0, %s129
    %s133 = sphi 0, %s132
    %s149 = sphi 0, %s133
    %s155 = sphi 0, %s157
    %s158 = sphi 0, %s155
    %s159 = sphi 0, %s158
    %s175 = sphi 0, %s159
    %s181 = sphi 0, %s183
    %s184 = sphi 0, %s181
    %s185 = sphi 0, %s184
    %s201 = sphi 0, %s185
    %s207 = sphi 0, %s209
    %s210 = sphi 0, %s207
    %s211 = sphi 0, %s210
    %s227 = sphi 0, %s211
    %s233 = sphi 0, %s235
    %s236 = sphi 0, %s233
    %s237 = sphi 0, %s236
    %s253 = sphi 0, %s237
    %s259 = sphi 0, %s261
    %s262 = sphi 0, %s259
    %s263 = sphi 0, %s262
    %s279 = sphi 0, %s263
  $region4: #{_lambda_.24} parent=0 // loop_header_branch
    %18 = sbr.rel (%p16) target = $region8
  $region5: #{_lambda_.24} parent=0 // loop_body
    %s20 = ssub.s32 %s15, 1
    %s21 = ssub.s32 %s15, 2
    %s22 = sadd.s32 %s15, 1
    %s23 = ssub.s32 %s15, %s22
    %p24 = scmp.eq.s32.totalorder %s23, 0
    %s26 = sadd.s32 %s25, 1
    %s27 = scalar_select %p24, %s25, %s26
    %p30 = pneg %p24
    %p31 = scmp.eq.s32.totalorder %s15, 1
    %p32 = por %p30, %p31
    %p33 = scmp.ne.s32.totalorder %s25, %s28
    %p34 = scmp.eq.s32.totalorder %s15, 0
    %p35 = por %p33, %p34
    %p36 = scmp.ne.s32.totalorder %s25, %s28
    %p37 = scmp.eq.s32.totalorder %s20, 1
    %p38 = por %p36, %p37
    %p39 = scmp.ne.s32.totalorder %s28, %s29
    %p40 = scmp.eq.s32.totalorder %s20, 0
    %p41 = por %p39, %p40
    %p42 = scmp.ne.s32.totalorder %s28, %s29
    %p43 = scmp.eq.s32.totalorder %s21, 1
    %p44 = por %p42, %p43
    %p46 = scmp.ne.s32.totalorder %s29, %s45
    %p47 = scmp.eq.s32.totalorder %s21, 0
    %p48 = por %p46, %p47
    %s49 = ssub.s32 %s15, %s22
    %p50 = scmp.eq.s32.totalorder %s49, 0
    %s52 = sadd.s32 %s51, 1
    %s53 = scalar_select %p50, %s51, %s52
    %p56 = pneg %p50
    %p57 = scmp.eq.s32.totalorder %s15, 1
    %p58 = por %p56, %p57
    %p59 = scmp.ne.s32.totalorder %s51, %s54
    %p60 = scmp.eq.s32.totalorder %s15, 0
    %p61 = por %p59, %p60
    %p62 = scmp.ne.s32.totalorder %s51, %s54
    %p63 = scmp.eq.s32.totalorder %s20, 1
    %p64 = por %p62, %p63
    %p65 = scmp.ne.s32.totalorder %s54, %s55
    %p66 = scmp.eq.s32.totalorder %s20, 0
    %p67 = por %p65, %p66
    %p68 = scmp.ne.s32.totalorder %s54, %s55
    %p69 = scmp.eq.s32.totalorder %s21, 1
    %p70 = por %p68, %p69
    %p72 = scmp.ne.s32.totalorder %s55, %s71
    %p73 = scmp.eq.s32.totalorder %s21, 0
    %p74 = por %p72, %p73
    %s75 = ssub.s32 %s15, %s22
    %p76 = scmp.eq.s32.totalorder %s75, 0
    %s78 = sadd.s32 %s77, 1
    %s79 = scalar_select %p76, %s77, %s78
    %p82 = pneg %p76
    %p83 = scmp.eq.s32.totalorder %s15, 1
    %p84 = por %p82, %p83
    %p85 = scmp.ne.s32.totalorder %s77, %s80
    %p86 = scmp.eq.s32.totalorder %s15, 0
    %p87 = por %p85, %p86
    %p88 = scmp.ne.s32.totalorder %s77, %s80
    %p89 = scmp.eq.s32.totalorder %s20, 1
    %p90 = por %p88, %p89
    %p91 = scmp.ne.s32.totalorder %s80, %s81
    %p92 = scmp.eq.s32.totalorder %s20, 0
    %p93 = por %p91, %p92
    %p94 = scmp.ne.s32.totalorder %s80, %s81
    %p95 = scmp.eq.s32.totalorder %s21, 1
    %p96 = por %p94, %p95
    %p98 = scmp.ne.s32.totalorder %s81, %s97
    %p99 = scmp.eq.s32.totalorder %s21, 0
    %p100 = por %p98, %p99
    %s101 = ssub.s32 %s15, %s22
    %p102 = scmp.eq.s32.totalorder %s101, 0
    %s104 = sadd.s32 %s103, 1
    %s105 = scalar_select %p102, %s103, %s104
    %p108 = pneg %p102
    %p109 = scmp.eq.s32.totalorder %s15, 1
    %p110 = por %p108, %p109
    %p111 = scmp.ne.s32.totalorder %s103, %s106
    %p112 = scmp.eq.s32.totalorder %s15, 0
    %p113 = por %p111, %p112
    %p114 = scmp.ne.s32.totalorder %s103, %s106
    %p115 = scmp.eq.s32.totalorder %s20, 1
    %p116 = por %p114, %p115
    %p117 = scmp.ne.s32.totalorder %s106, %s107
    %p118 = scmp.eq.s32.totalorder %s20, 0
    %p119 = por %p117, %p118
    %p120 = scmp.ne.s32.totalorder %s106, %s107
    %p121 = scmp.eq.s32.totalorder %s21, 1
    %p122 = por %p120, %p121
    %p124 = scmp.ne.s32.totalorder %s107, %s123
    %p125 = scmp.eq.s32.totalorder %s21, 0
    %p126 = por %p124, %p125
    %s127 = ssub.s32 %s15, %s22
    %p128 = scmp.eq.s32.totalorder %s127, 0
    %s130 = sadd.s32 %s129, 1
    %s131 = scalar_select %p128, %s129, %s130
    %p134 = pneg %p128
    %p135 = scmp.eq.s32.totalorder %s15, 1
    %p136 = por %p134, %p135
    %p137 = scmp.ne.s32.totalorder %s129, %s132
    %p138 = scmp.eq.s32.totalorder %s15, 0
    %p139 = por %p137, %p138
    %p140 = scmp.ne.s32.totalorder %s129, %s132
    %p141 = scmp.eq.s32.totalorder %s20, 1
    %p142 = por %p140, %p141
    %p143 = scmp.ne.s32.totalorder %s132, %s133
    %p144 = scmp.eq.s32.totalorder %s20, 0
    %p145 = por %p143, %p144
    %p146 = scmp.ne.s32.totalorder %s132, %s133
    %p147 = scmp.eq.s32.totalorder %s21, 1
    %p148 = por %p146, %p147
    %p150 = scmp.ne.s32.totalorder %s133, %s149
    %p151 = scmp.eq.s32.totalorder %s21, 0
    %p152 = por %p150, %p151
    %s153 = ssub.s32 %s15, %s22
    %p154 = scmp.eq.s32.totalorder %s153, 0
    %s156 = sadd.s32 %s155, 1
    %s157 = scalar_select %p154, %s155, %s156
    %p160 = pneg %p154
    %p161 = scmp.eq.s32.totalorder %s15, 1
    %p162 = por %p160, %p161
    %p163 = scmp.ne.s32.totalorder %s155, %s158
    %p164 = scmp.eq.s32.totalorder %s15, 0
    %p165 = por %p163, %p164
    %p166 = scmp.ne.s32.totalorder %s155, %s158
    %p167 = scmp.eq.s32.totalorder %s20, 1
    %p168 = por %p166, %p167
    %p169 = scmp.ne.s32.totalorder %s158, %s159
    %p170 = scmp.eq.s32.totalorder %s20, 0
    %p171 = por %p169, %p170
    %p172 = scmp.ne.s32.totalorder %s158, %s159
    %p173 = scmp.eq.s32.totalorder %s21, 1
    %p174 = por %p172, %p173
    %p176 = scmp.ne.s32.totalorder %s159, %s175
    %p177 = scmp.eq.s32.totalorder %s21, 0
    %p178 = por %p176, %p177
    %s179 = ssub.s32 %s15, %s22
    %p180 = scmp.eq.s32.totalorder %s179, 0
    %s182 = sadd.s32 %s181, 1
    %s183 = scalar_select %p180, %s181, %s182
    %p186 = pneg %p180
    %p187 = scmp.eq.s32.totalorder %s15, 1
    %p188 = por %p186, %p187
    %p189 = scmp.ne.s32.totalorder %s181, %s184
    %p190 = scmp.eq.s32.totalorder %s15, 0
    %p191 = por %p189, %p190
    %p192 = scmp.ne.s32.totalorder %s181, %s184
    %p193 = scmp.eq.s32.totalorder %s20, 1
    %p194 = por %p192, %p193
    %p195 = scmp.ne.s32.totalorder %s184, %s185
    %p196 = scmp.eq.s32.totalorder %s20, 0
    %p197 = por %p195, %p196
    %p198 = scmp.ne.s32.totalorder %s184, %s185
    %p199 = scmp.eq.s32.totalorder %s21, 1
    %p200 = por %p198, %p199
    %p202 = scmp.ne.s32.totalorder %s185, %s201
    %p203 = scmp.eq.s32.totalorder %s21, 0
    %p204 = por %p202, %p203
    %s205 = ssub.s32 %s15, %s22
    %p206 = scmp.eq.s32.totalorder %s205, 0
    %s208 = sadd.s32 %s207, 1
    %s209 = scalar_select %p206, %s207, %s208
    %p212 = pneg %p206
    %p213 = scmp.eq.s32.totalorder %s15, 1
    %p214 = por %p212, %p213
    %p215 = scmp.ne.s32.totalorder %s207, %s210
    %p216 = scmp.eq.s32.totalorder %s15, 0
    %p217 = por %p215, %p216
    %p218 = scmp.ne.s32.totalorder %s207, %s210
    %p219 = scmp.eq.s32.totalorder %s20, 1
    %p220 = por %p218, %p219
    %p221 = scmp.ne.s32.totalorder %s210, %s211
    %p222 = scmp.eq.s32.totalorder %s20, 0
    %p223 = por %p221, %p222
    %p224 = scmp.ne.s32.totalorder %s210, %s211
    %p225 = scmp.eq.s32.totalorder %s21, 1
    %p226 = por %p224, %p225
    %p228 = scmp.ne.s32.totalorder %s211, %s227
    %p229 = scmp.eq.s32.totalorder %s21, 0
    %p230 = por %p228, %p229
    %s231 = ssub.s32 %s15, %s22
    %p232 = scmp.eq.s32.totalorder %s231, 0
    %s234 = sadd.s32 %s233, 1
    %s235 = scalar_select %p232, %s233, %s234
    %p238 = pneg %p232
    %p239 = scmp.eq.s32.totalorder %s15, 1
    %p240 = por %p238, %p239
    %p241 = scmp.ne.s32.totalorder %s233, %s236
    %p242 = scmp.eq.s32.totalorder %s15, 0
    %p243 = por %p241, %p242
    %p244 = scmp.ne.s32.totalorder %s233, %s236
    %p245 = scmp.eq.s32.totalorder %s20, 1
    %p246 = por %p244, %p245
    %p247 = scmp.ne.s32.totalorder %s236, %s237
    %p248 = scmp.eq.s32.totalorder %s20, 0
    %p249 = por %p247, %p248
    %p250 = scmp.ne.s32.totalorder %s236, %s237
    %p251 = scmp.eq.s32.totalorder %s21, 1
    %p252 = por %p250, %p251
    %p254 = scmp.ne.s32.totalorder %s237, %s253
    %p255 = scmp.eq.s32.totalorder %s21, 0
    %p256 = por %p254, %p255
    %s257 = ssub.s32 %s15, %s22
    %p258 = scmp.eq.s32.totalorder %s257, 0
    %s260 = sadd.s32 %s259, 1
    %s261 = scalar_select %p258, %s259, %s260
    %p264 = pneg %p258
    %p265 = scmp.eq.s32.totalorder %s15, 1
    %p266 = por %p264, %p265
    %p267 = scmp.ne.s32.totalorder %s259, %s262
    %p268 = scmp.eq.s32.totalorder %s15, 0
    %p269 = por %p267, %p268
    %p270 = scmp.ne.s32.totalorder %s259, %s262
    %p271 = scmp.eq.s32.totalorder %s20, 1
    %p272 = por %p270, %p271
    %p273 = scmp.ne.s32.totalorder %s262, %s263
    %p274 = scmp.eq.s32.totalorder %s20, 0
    %p275 = por %p273, %p274
    %p276 = scmp.ne.s32.totalorder %s262, %s263
    %p277 = scmp.eq.s32.totalorder %s21, 1
    %p278 = por %p276, %p277
    %p280 = scmp.ne.s32.totalorder %s263, %s279
    %p281 = scmp.eq.s32.totalorder %s21, 0
    %p282 = por %p280, %p281
    %p283 = scmp.le.s32.totalorder 1, %s15
    %p284 = scmp.lt.s32.totalorder %s15, 3
    %p285 = pnand %p283, %p284
    %p286 = pneg %p285
    // Predicated region
    $region9: #{_lambda_.24} parent=5 // pred_check
      _
    $region10: #{_lambda_.24} parent=5 // pred_check_branch
      %288 = sbr.rel (%p285) target = $region12
    $region11: #{_lambda_.24} parent=5 // pred_region
      %s289 = ssub.s32 %s15, 1
    $region12: #{_lambda_.24} parent=5 // pred_fallthru
      _
    %p290 = scmp.lt.s32.totalorder %s15, 2
    // Predicated region
    $region13: #{_lambda_.24} parent=5 // pred_check
      %p291 = pneg %p290
    $region14: #{_lambda_.24} parent=5 // pred_check_branch
      %293 = sbr.rel (%p291) target = $region16
    $region15: #{_lambda_.24} parent=5 // pred_region
      // Predicated region
      $region17: #{_lambda_.24} parent=15 // pred_check
        %p294 = pneg %p35
      $region18: #{_lambda_.24} parent=15 // pred_check_branch
        %296 = sbr.rel (%p294) target = $region20
      $region19: #{_lambda_.24} parent=15 // pred_region
        %p297 = scmp.lt.s32.totalorder %s15, 1
        %s298 = scalar_select %p297, %s15, 1
        %s299 = smul.addr %s298, 4
        %s300 = scalar_lea.vmem %s0, %s299
      $region20: #{_lambda_.24} parent=15 // pred_fallthru
        _
      // Predicated region
      $region21: #{_lambda_.24} parent=15 // pred_check
        %p301 = pneg %p61
      $region22: #{_lambda_.24} parent=15 // pred_check_branch
        %303 = sbr.rel (%p301) target = $region24
      $region23: #{_lambda_.24} parent=15 // pred_region
        %p304 = scmp.lt.s32.totalorder %s15, 1
        %s305 = scalar_select %p304, %s15, 1
        %s306 = smul.addr %s305, 4
        %s307 = scalar_lea.vmem %s1, %s306
      $region24: #{_lambda_.24} parent=15 // pred_fallthru
        _
      // Predicated region
      $region25: #{_lambda_.24} parent=15 // pred_check
        %p308 = pneg %p87
      $region26: #{_lambda_.24} parent=15 // pred_check_branch
        %310 = sbr.rel (%p308) target = $region28
      $region27: #{_lambda_.24} parent=15 // pred_region
        %p311 = scmp.lt.s32.totalorder %s15, 1
        %s312 = scalar_select %p311, %s15, 1
        %s313 = smul.addr %s312, 4
        %s314 = scalar_lea.vmem %s2, %s313
      $region28: #{_lambda_.24} parent=15 // pred_fallthru
        _
      // Predicated region
      $region29: #{_lambda_.24} parent=15 // pred_check
        %p315 = pneg %p113
      $region30: #{_lambda_.24} parent=15 // pred_check_branch
        %317 = sbr.rel (%p315) target = $region32
      $region31: #{_lambda_.24} parent=15 // pred_region
        %p318 = scmp.lt.s32.totalorder %s15, 1
        %s319 = scalar_select %p318, %s15, 1
        %s320 = smul.addr %s319, 4
        %s321 = scalar_lea.vmem %s3, %s320
      $region32: #{_lambda_.24} parent=15 // pred_fallthru
        _
      // Predicated region
      $region33: #{_lambda_.24} parent=15 // pred_check
        %p322 = pneg %p139
      $region34: #{_lambda_.24} parent=15 // pred_check_branch
        %324 = sbr.rel (%p322) target = $region36
      $region35: #{_lambda_.24} parent=15 // pred_region
        %p325 = scmp.lt.s32.totalorder %s15, 1
        %s326 = scalar_select %p325, %s15, 1
        %s327 = smul.addr %s326, 4
        %s328 = scalar_lea.vmem %s4, %s327
      $region36: #{_lambda_.24} parent=15 // pred_fallthru
        _
      // Predicated region
      $region37: #{_lambda_.24} parent=15 // pred_check
        %p329 = pneg %p165
      $region38: #{_lambda_.24} parent=15 // pred_check_branch
        %331 = sbr.rel (%p329) target = $region40
      $region39: #{_lambda_.24} parent=15 // pred_region
        %p332 = scmp.lt.s32.totalorder %s15, 1
        %s333 = scalar_select %p332, %s15, 1
        %s334 = smul.addr %s333, 4
        %s335 = scalar_lea.vmem %s5, %s334
      $region40: #{_lambda_.24} parent=15 // pred_fallthru
        _
      // Predicated region
      $region41: #{_lambda_.24} parent=15 // pred_check
        %p336 = pneg %p191
      $region42: #{_lambda_.24} parent=15 // pred_check_branch
        %338 = sbr.rel (%p336) target = $region44
      $region43: #{_lambda_.24} parent=15 // pred_region
        %p339 = scmp.lt.s32.totalorder %s15, 1
        %s340 = scalar_select %p339, %s15, 1
        %s341 = smul.addr %s340, 4
        %s342 = scalar_lea.vmem %s6, %s341
      $region44: #{_lambda_.24} parent=15 // pred_fallthru
        _
      // Predicated region
      $region45: #{_lambda_.24} parent=15 // pred_check
        %p343 = pneg %p217
      $region46: #{_lambda_.24} parent=15 // pred_check_branch
        %345 = sbr.rel (%p343) target = $region48
      $region47: #{_lambda_.24} parent=15 // pred_region
        %p346 = scmp.lt.s32.totalorder %s15, 1
        %s347 = scalar_select %p346, %s15, 1
        %s348 = smul.addr %s347, 4
        %s349 = scalar_lea.vmem %s7, %s348
      $region48: #{_lambda_.24} parent=15 // pred_fallthru
        _
      // Predicated region
      $region49: #{_lambda_.24} parent=15 // pred_check
        %p350 = pneg %p243
      $region50: #{_lambda_.24} parent=15 // pred_check_branch
        %352 = sbr.rel (%p350) target = $region52
      $region51: #{_lambda_.24} parent=15 // pred_region
        %p353 = scmp.lt.s32.totalorder %s15, 1
        %s354 = scalar_select %p353, %s15, 1
        %s355 = smul.addr %s354, 4
        %s356 = scalar_lea.vmem %s8, %s355
      $region52: #{_lambda_.24} parent=15 // pred_fallthru
        _
    $region16: #{_lambda_.24} parent=5 // pred_fallthru
      _
    %p357 = scmp.le.s32.totalorder 1, %s15
    %p358 = scmp.lt.s32.totalorder %s15, 3
    %p359 = pnand %p357, %p358
    %p360 = pneg %p359
    // Predicated region
    $region53: #{_lambda_.24} parent=5 // pred_check
      _
    $region54: #{_lambda_.24} parent=5 // pred_check_branch
      %362 = sbr.rel (%p359) target = $region56
    $region55: #{_lambda_.24} parent=5 // pred_region
      %s363 = ssub.s32 %s15, 1
      %p364 = scmp.lt.s32.totalorder %s20, 1
      %s365 = scalar_select %p364, %s20, 1
      %s366 = smul.addr %s365, 4
      %s367 = scalar_lea.vmem %s0, %s366
      %p368 = pneg %p41
      %p369 = pneg %p38
      %p370 = scmp.lt.s32.totalorder %s20, 1
      %s371 = scalar_select %p370, %s20, 1
      %s372 = smul.addr %s371, 4
      %s373 = scalar_lea.vmem %s1, %s372
      %p374 = pneg %p67
      %p375 = pneg %p64
      %p376 = scmp.lt.s32.totalorder %s20, 1
      %s377 = scalar_select %p376, %s20, 1
      %s378 = smul.addr %s377, 4
      %s379 = scalar_lea.vmem %s2, %s378
      %p380 = pneg %p93
      %p381 = pneg %p90
      %p382 = scmp.lt.s32.totalorder %s20, 1
      %s383 = scalar_select %p382, %s20, 1
      %s384 = smul.addr %s383, 4
      %s385 = scalar_lea.vmem %s3, %s384
      %p386 = pneg %p119
      %p387 = pneg %p116
      %p388 = scmp.lt.s32.totalorder %s20, 1
      %s389 = scalar_select %p388, %s20, 1
      %s390 = smul.addr %s389, 4
      %s391 = scalar_lea.vmem %s4, %s390
      %p392 = pneg %p145
      %p393 = pneg %p142
      %p394 = scmp.lt.s32.totalorder %s20, 1
      %s395 = scalar_select %p394, %s20, 1
      %s396 = smul.addr %s395, 4
      %s397 = scalar_lea.vmem %s5, %s396
      %p398 = pneg %p171
      %p399 = pneg %p168
      %p400 = scmp.lt.s32.totalorder %s20, 1
      %s401 = scalar_select %p400, %s20, 1
      %s402 = smul.addr %s401, 4
      %s403 = scalar_lea.vmem %s6, %s402
      %p404 = pneg %p197
      %p405 = pneg %p194
      %p406 = scmp.lt.s32.totalorder %s20, 1
      %s407 = scalar_select %p406, %s20, 1
      %s408 = smul.addr %s407, 4
      %s409 = scalar_lea.vmem %s7, %s408
      %p410 = pneg %p223
      %p411 = pneg %p220
      %p412 = scmp.lt.s32.totalorder %s20, 1
      %s413 = scalar_select %p412, %s20, 1
      %s414 = smul.addr %s413, 4
      %s415 = scalar_lea.vmem %s8, %s414
      %p416 = pneg %p249
      %p417 = pneg %p246
      %p418 = pneg %p275
      %p419 = pneg %p272
      %p420 = scmp.lt.s32.totalorder %s20, 1
      %s421 = scalar_select %p420, %s20, 1
      %s422 = smul.addr %s421, 4
      %s423 = scalar_lea.vmem %s9, %s422
      %p424 = scmp.lt.s32.totalorder %s20, 1
      %s425 = scalar_select %p424, %s20, 1
      %s426 = smul.addr %s425, 4
      %s427 = scalar_lea.vmem %s0, %s426
      %p428 = scmp.lt.s32.totalorder %s20, 1
      %s429 = scalar_select %p428, %s20, 1
      %s430 = smul.addr %s429, 4
      %s431 = scalar_lea.vmem %s1, %s430
      %p432 = scmp.lt.s32.totalorder %s20, 1
      %s433 = scalar_select %p432, %s20, 1
      %s434 = smul.addr %s433, 4
      %s435 = scalar_lea.vmem %s2, %s434
      %p436 = scmp.lt.s32.totalorder %s20, 1
      %s437 = scalar_select %p436, %s20, 1
      %s438 = smul.addr %s437, 4
      %s439 = scalar_lea.vmem %s3, %s438
      %p440 = scmp.lt.s32.totalorder %s20, 1
      %s441 = scalar_select %p440, %s20, 1
      %s442 = smul.addr %s441, 4
      %s443 = scalar_lea.vmem %s4, %s442
      %p444 = scmp.lt.s32.totalorder %s20, 1
      %s445 = scalar_select %p444, %s20, 1
      %s446 = smul.addr %s445, 4
      %s447 = scalar_lea.vmem %s5, %s446
      %p448 = scmp.lt.s32.totalorder %s20, 1
      %s449 = scalar_select %p448, %s20, 1
      %s450 = smul.addr %s449, 4
      %s451 = scalar_lea.vmem %s6, %s450
      %p452 = scmp.lt.s32.totalorder %s20, 1
      %s453 = scalar_select %p452, %s20, 1
      %s454 = smul.addr %s453, 4
      %s455 = scalar_lea.vmem %s7, %s454
      %p456 = scmp.lt.s32.totalorder %s20, 1
      %s457 = scalar_select %p456, %s20, 1
      %s458 = smul.addr %s457, 4
      %s459 = scalar_lea.vmem %s8, %s458
      %p460 = scmp.lt.s32.totalorder %s20, 1
      %s461 = scalar_select %p460, %s20, 1
      %s462 = smul.addr %s461, 4
      %s463 = scalar_lea.vmem %s9, %s462
      %v464 = vld [vmem:[%s427] sm:$0xf]
      %v465 = vld [vmem:[%s431] sm:$0xf]
      %v466 = vmax.bf16 %v464, %v465
      %v467 = vld [vmem:[%s435] sm:$0xf]
      %v468 = vmax.bf16 %v466, %v467
      %v469 = vld [vmem:[%s439] sm:$0xf]
      %v470 = vmax.bf16 %v468, %v469
      %v471 = vld [vmem:[%s443] sm:$0xf]
      %v472 = vmax.bf16 %v470, %v471
      %v473 = vld [vmem:[%s447] sm:$0xf]
      %v474 = vmax.bf16 %v472, %v473
      %v475 = vld [vmem:[%s451] sm:$0xf]
      %v476 = vmax.bf16 %v474, %v475
      %v477 = vld [vmem:[%s455] sm:$0xf]
      %v478 = vmax.bf16 %v476, %v477
      %v479 = vld [vmem:[%s459] sm:$0xf]
      %v480 = vmax.bf16 %v478, %v479
      %vm481 = vcmask 519168
      %482 = vst.msk [vmem:[%s463] sm:$0xf] %vm481, %v480
      %p483 = scmp.lt.s32.totalorder %s20, 1
      %s484 = scalar_select %p483, %s20, 1
      %s485 = smul.addr %s484, 4
      %s486 = scalar_lea.vmem %s9, %s485
      // Predicated region
      $region57: #{_lambda_.24} parent=55 // pred_check
        %p487 = pneg %p272
      $region58: #{_lambda_.24} parent=55 // pred_check_branch
        %489 = sbr.rel (%p487) target = $region60
      $region59: #{_lambda_.24} parent=55 // pred_region
        _
      $region60: #{_lambda_.24} parent=55 // pred_fallthru
        _
    $region56: #{_lambda_.24} parent=5 // pred_fallthru
      _
    %p490 = scmp.le.s32.totalorder 2, %s15
    // Predicated region
    $region61: #{_lambda_.24} parent=5 // pred_check
      %p491 = pneg %p490
    $region62: #{_lambda_.24} parent=5 // pred_check_branch
      %493 = sbr.rel (%p491) target = $region64
    $region63: #{_lambda_.24} parent=5 // pred_region
      %s494 = ssub.s32 %s15, 2
      // Predicated region
      $region65: #{_lambda_.24} parent=63 // pred_check
        %p495 = pneg %p278
      $region66: #{_lambda_.24} parent=63 // pred_check_branch
        %497 = sbr.rel (%p495) target = $region68
      $region67: #{_lambda_.24} parent=63 // pred_region
        %p498 = scmp.lt.s32.totalorder %s21, 1
        %s499 = scalar_select %p498, %s21, 1
        %s500 = smul.addr %s499, 4
        %s501 = scalar_lea.vmem %s9, %s500
      $region68: #{_lambda_.24} parent=63 // pred_fallthru
        _
    $region64: #{_lambda_.24} parent=5 // pred_fallthru
      _
  $region6: #{_lambda_.24} parent=0 // loop_footer
    %s19 = sadd.s32 1, %s15
  $region7: #{_lambda_.24} parent=0 // loop_footer_branch
    %14 = sbr.rel target = $region3
  $region8: #{_lambda_.24} parent=0 // loop_exit
    _

// kernel: _lambda_.25
$region0: #{_lambda_.25}
  #allocation0 [shape = 'u32[]', space=smem, size = 0x4, offset = 0x4, fixed_abs, tag = 'smem constant byte address 0x4 - core index']
  #allocation1 [shape = 'u32[144,128]{1,0:T(1,128)}', space=vmem, size = 0x12000, scoped, tag = 'internal scratch']
  %s0 = inlined_call_operand.vmem [shape: bf16[128,8], index: 0, kind: input, shape index: {}]
  %s1 = inlined_call_operand.vmem [shape: bf16[1,8,8], index: 1, kind: input, shape index: {}]
  %s2 = inlined_call_operand.vmem [shape: f32[1,8], index: 2, kind: input, shape index: {}]
  %s3 = inlined_call_operand.vmem [shape: bf16[128,8], index: 3, kind: output, shape index: {}]
  %s4 = sld [smem:[#allocation0]]
  $region45: #{_lambda_.25} parent=0
    _
  %s6 = ssub.s32 1, %s4
  %s7 = scalar_select 0, %s6, %s4
  loop: start=0, step=1, limit=4
  $region2: #{_lambda_.25} parent=0 // loop_pre_header
    _
  $region3: #{_lambda_.25} parent=0 // loop_header
    %s9 = sphi 0, %s13
    %p10 = scmp.ge.s32.totalorder %s9, 4
    %s16 = sphi 0, %s28
    %s17 = sphi 0, %s24
    %s18 = sphi 0, %s16
    %s19 = sphi 0, %s17
    %s20 = sphi 0, %s18
    %s21 = sphi 0, %s19
    %s31 = sphi 0, %s33
    %s34 = sphi 0, %s31
    %s35 = sphi 0, %s34
    %s51 = sphi 0, %s35
    %s57 = sphi 0, %s59
    %s60 = sphi 0, %s57
    %s61 = sphi 0, %s60
    %s77 = sphi 0, %s61
    %s83 = sphi 0, %s85
    %s86 = sphi 0, %s83
    %s87 = sphi 0, %s86
    %s103 = sphi 0, %s87
    %s111 = sphi 0, %s113
    %s114 = sphi 0, %s111
    %s115 = sphi 0, %s114
    %s131 = sphi 0, %s115
  $region4: #{_lambda_.25} parent=0 // loop_header_branch
    %12 = sbr.rel (%p10) target = $region8
  $region5: #{_lambda_.25} parent=0 // loop_body
    %s14 = ssub.s32 %s9, 1
    %s15 = ssub.s32 %s9, 2
    %s22 = sadd.s32 1, %s17
    %p23 = scmp.ge.s32.totalorder %s22, 1
    %s24 = scalar_select %p23, 0, %s22
    %s25 = sadd.s32 1, %s16
    %s26 = scalar_select %p23, %s25, %s16
    %p27 = scmp.ge.s32.totalorder %s26, 2
    %s28 = scalar_select %p27, 0, %s26
    %s29 = ssub.s32 %s16, %s28
    %p30 = scmp.eq.s32.totalorder %s29, 0
    %s32 = sadd.s32 %s31, 1
    %s33 = scalar_select %p30, %s31, %s32
    %p36 = pneg %p30
    %p37 = scmp.eq.s32.totalorder %s9, 1
    %p38 = por %p36, %p37
    %p39 = scmp.ne.s32.totalorder %s31, %s34
    %p40 = scmp.eq.s32.totalorder %s9, 0
    %p41 = por %p39, %p40
    %p42 = scmp.ne.s32.totalorder %s31, %s34
    %p43 = scmp.eq.s32.totalorder %s14, 1
    %p44 = por %p42, %p43
    %p45 = scmp.ne.s32.totalorder %s34, %s35
    %p46 = scmp.eq.s32.totalorder %s14, 0
    %p47 = por %p45, %p46
    %p48 = scmp.ne.s32.totalorder %s34, %s35
    %p49 = scmp.eq.s32.totalorder %s15, 1
    %p50 = por %p48, %p49
    %p52 = scmp.ne.s32.totalorder %s35, %s51
    %p53 = scmp.eq.s32.totalorder %s15, 0
    %p54 = por %p52, %p53
    %s55 = ssub.s32 %s17, %s24
    %p56 = scmp.eq.s32.totalorder %s55, 0
    %s58 = sadd.s32 %s57, 1
    %s59 = scalar_select %p56, %s57, %s58
    %p62 = pneg %p56
    %p63 = scmp.eq.s32.totalorder %s9, 1
    %p64 = por %p62, %p63
    %p65 = scmp.ne.s32.totalorder %s57, %s60
    %p66 = scmp.eq.s32.totalorder %s9, 0
    %p67 = por %p65, %p66
    %p68 = scmp.ne.s32.totalorder %s57, %s60
    %p69 = scmp.eq.s32.totalorder %s14, 1
    %p70 = por %p68, %p69
    %p71 = scmp.ne.s32.totalorder %s60, %s61
    %p72 = scmp.eq.s32.totalorder %s14, 0
    %p73 = por %p71, %p72
    %p74 = scmp.ne.s32.totalorder %s60, %s61
    %p75 = scmp.eq.s32.totalorder %s15, 1
    %p76 = por %p74, %p75
    %p78 = scmp.ne.s32.totalorder %s61, %s77
    %p79 = scmp.eq.s32.totalorder %s15, 0
    %p80 = por %p78, %p79
    %s81 = ssub.s32 %s17, %s24
    %p82 = scmp.eq.s32.totalorder %s81, 0
    %s84 = sadd.s32 %s83, 1
    %s85 = scalar_select %p82, %s83, %s84
    %p88 = pneg %p82
    %p89 = scmp.eq.s32.totalorder %s9, 1
    %p90 = por %p88, %p89
    %p91 = scmp.ne.s32.totalorder %s83, %s86
    %p92 = scmp.eq.s32.totalorder %s9, 0
    %p93 = por %p91, %p92
    %p94 = scmp.ne.s32.totalorder %s83, %s86
    %p95 = scmp.eq.s32.totalorder %s14, 1
    %p96 = por %p94, %p95
    %p97 = scmp.ne.s32.totalorder %s86, %s87
    %p98 = scmp.eq.s32.totalorder %s14, 0
    %p99 = por %p97, %p98
    %p100 = scmp.ne.s32.totalorder %s86, %s87
    %p101 = scmp.eq.s32.totalorder %s15, 1
    %p102 = por %p100, %p101
    %p104 = scmp.ne.s32.totalorder %s87, %s103
    %p105 = scmp.eq.s32.totalorder %s15, 0
    %p106 = por %p104, %p105
    %s107 = ssub.s32 %s16, %s28
    %s108 = ssub.s32 %s17, %s24
    %s109 = sor.u32 %s107, %s108
    %p110 = scmp.eq.s32.totalorder %s109, 0
    %s112 = sadd.s32 %s111, 1
    %s113 = scalar_select %p110, %s111, %s112
    %p116 = pneg %p110
    %p117 = scmp.eq.s32.totalorder %s9, 1
    %p118 = por %p116, %p117
    %p119 = scmp.ne.s32.totalorder %s111, %s114
    %p120 = scmp.eq.s32.totalorder %s9, 0
    %p121 = por %p119, %p120
    %p122 = scmp.ne.s32.totalorder %s111, %s114
    %p123 = scmp.eq.s32.totalorder %s14, 1
    %p124 = por %p122, %p123
    %p125 = scmp.ne.s32.totalorder %s114, %s115
    %p126 = scmp.eq.s32.totalorder %s14, 0
    %p127 = por %p125, %p126
    %p128 = scmp.ne.s32.totalorder %s114, %s115
    %p129 = scmp.eq.s32.totalorder %s15, 1
    %p130 = por %p128, %p129
    %p132 = scmp.ne.s32.totalorder %s115, %s131
    %p133 = scmp.eq.s32.totalorder %s15, 0
    %p134 = por %p132, %p133
    %p135 = scmp.le.s32.totalorder 1, %s9
    %p136 = scmp.lt.s32.totalorder %s9, 3
    %p137 = pnand %p135, %p136
    %p138 = pneg %p137
    // Predicated region
    $region9: #{_lambda_.25} parent=5 // pred_check
      _
    $region10: #{_lambda_.25} parent=5 // pred_check_branch
      %140 = sbr.rel (%p137) target = $region12
    $region11: #{_lambda_.25} parent=5 // pred_region
      %s141 = ssub.s32 %s9, 1
      // Predicated region
      $region13: #{_lambda_.25} parent=11 // pred_check
        %p142 = pneg %p73
      $region14: #{_lambda_.25} parent=11 // pred_check_branch
        %144 = sbr.rel (%p142) target = $region16
      $region15: #{_lambda_.25} parent=11 // pred_region
        %p145 = scmp.lt.s32.totalorder %s19, 0
        %s146 = scalar_select %p145, %s19, 0
        %s147 = smul.addr %s146, 4
        %s148 = scalar_lea.vmem %s1, %s147
      $region16: #{_lambda_.25} parent=11 // pred_fallthru
        _
      // Predicated region
      $region17: #{_lambda_.25} parent=11 // pred_check
        %p149 = pneg %p99
      $region18: #{_lambda_.25} parent=11 // pred_check_branch
        %151 = sbr.rel (%p149) target = $region20
      $region19: #{_lambda_.25} parent=11 // pred_region
        %p152 = scmp.lt.s32.totalorder %s19, 0
        %s153 = scalar_select %p152, %s19, 0
        %s154 = scalar_lea.vmem %s2, %s153
      $region20: #{_lambda_.25} parent=11 // pred_fallthru
        _
    $region12: #{_lambda_.25} parent=5 // pred_fallthru
      _
    %p155 = scmp.lt.s32.totalorder %s9, 2
    // Predicated region
    $region21: #{_lambda_.25} parent=5 // pred_check
      %p156 = pneg %p155
    $region22: #{_lambda_.25} parent=5 // pred_check_branch
      %158 = sbr.rel (%p156) target = $region24
    $region23: #{_lambda_.25} parent=5 // pred_region
      // Predicated region
      $region25: #{_lambda_.25} parent=23 // pred_check
        %p159 = pneg %p41
      $region26: #{_lambda_.25} parent=23 // pred_check_branch
        %161 = sbr.rel (%p159) target = $region28
      $region27: #{_lambda_.25} parent=23 // pred_region
        %s162 = smul.u32 8, %s16
        %p163 = scmp.lt.s32.totalorder %s162, 15
        %s164 = scalar_select %p163, %s162, 15
        %s165 = smul.addr %s164, 4
        %s166 = scalar_lea.vmem %s0, %s165
        %s167 = smul.u32 8, %s16
      $region28: #{_lambda_.25} parent=23 // pred_fallthru
        _
    $region24: #{_lambda_.25} parent=5 // pred_fallthru
      _
    %p168 = scmp.le.s32.totalorder 1, %s9
    %p169 = scmp.lt.s32.totalorder %s9, 3
    %p170 = pnand %p168, %p169
    %p171 = pneg %p170
    // Predicated region
    $region29: #{_lambda_.25} parent=5 // pred_check
      _
    $region30: #{_lambda_.25} parent=5 // pred_check_branch
      %173 = sbr.rel (%p170) target = $region32
    $region31: #{_lambda_.25} parent=5 // pred_region
      %s174 = ssub.s32 %s9, 1
      %s175 = smul.u32 8, %s18
      %p176 = scmp.lt.s32.totalorder %s175, 15
      %s177 = scalar_select %p176, %s175, 15
      %s178 = smul.addr %s177, 4
      %s179 = scalar_lea.vmem %s0, %s178
      %p180 = pneg %p47
      %p181 = pneg %p44
      %p182 = scmp.lt.s32.totalorder %s19, 0
      %s183 = scalar_select %p182, %s19, 0
      %s184 = smul.addr %s183, 4
      %s185 = scalar_lea.vmem %s1, %s184
      %p186 = pneg %p73
      %p187 = pneg %p70
      %p188 = scmp.lt.s32.totalorder %s19, 0
      %s189 = scalar_select %p188, %s19, 0
      %s190 = scalar_lea.vmem %s2, %s189
      %p191 = pneg %p99
      %p192 = pneg %p96
      %p193 = pneg %p127
      %p194 = pneg %p124
      %s195 = smul.u32 8, %s18
      %p196 = scmp.lt.s32.totalorder %s195, 15
      %s197 = scalar_select %p196, %s195, 15
      %p198 = scmp.lt.s32.totalorder %s19, 0
      %s199 = scalar_select %p198, %s19, 0
      %s200 = sadd.s32 %s199, %s197
      %s201 = smul.addr %s200, 4
      %s202 = scalar_lea.vmem %s3, %s201
      %s203 = smul.u32 8, %s18
      %p204 = scmp.lt.s32.totalorder %s203, 15
      %s205 = scalar_select %p204, %s203, 15
      %s206 = smul.addr %s205, 4
      %s207 = scalar_lea.vmem %s0, %s206
      %s208 = smul.u32 8, %s18
      %p209 = scmp.lt.s32.totalorder %s19, 0
      %s210 = scalar_select %p209, %s19, 0
      %s211 = smul.addr %s210, 4
      %s212 = scalar_lea.vmem %s1, %s211
      %p213 = scmp.lt.s32.totalorder %s19, 0
      %s214 = scalar_select %p213, %s19, 0
      %s215 = scalar_lea.vmem %s2, %s214
      %s216 = smul.u32 8, %s18
      %p217 = scmp.lt.s32.totalorder %s216, 15
      %s218 = scalar_select %p217, %s216, 15
      %p219 = scmp.lt.s32.totalorder %s19, 0
      %s220 = scalar_select %p219, %s19, 0
      %s221 = sadd.s32 %s220, %s218
      %s222 = smul.addr %s221, 4
      %s223 = scalar_lea.vmem %s3, %s222
      %s224 = smul.u32 8, %s18
      %v226 = vld [vmem:[%s207] sm:$0xf]
      %v227 = vld [vmem:[%s207 + $0x4] sm:$0xf]
      %v228 = vld [vmem:[%s207 + $0x8] sm:$0xf]
      %v229 = vld [vmem:[%s207 + $0xc] sm:$0xf]
      %v230 = vld [vmem:[%s207 + $0x10] sm:$0xf]
      %v231 = vld [vmem:[%s207 + $0x14] sm:$0xf]
      %v232 = vld [vmem:[%s207 + $0x18] sm:$0xf]
      %v233 = vld [vmem:[%s207 + $0x1c] sm:$0xf]
      %v234 = vld [vmem:[%s212] sm:$0xf]
      %v235 = vld [vmem:[%s215] sm:$0x1]
      %v237 = vlaneseq
      %v238 = vshrl.u32 %v237, 7
      %v239 = vsub.s32 0, %v238
      %v240 = vrot.slane %v235, %v239
      %v250 = vunpack.c.l.b16 %v226
      %v251 = vunpack.c.l.b16 %v227
      %v252 = vunpack.c.l.b16 %v228
      %v253 = vunpack.c.l.b16 %v229
      %v254 = vunpack.c.l.b16 %v230
      %v255 = vunpack.c.l.b16 %v231
      %v256 = vunpack.c.l.b16 %v232
      %v257 = vunpack.c.l.b16 %v233
      %v258 = vpack.c.b16 %v251, %v250
      %v259 = vpack.c.b16 %v253, %v252
      %v260 = vpack.c.b16 %v255, %v254
      %v261 = vpack.c.b16 %v257, %v256
      %vm262 = vcmask 64512
      %v264 = vsel %vm262, %v258, 0
      %v267 = vsel %vm262, %v259, 0
      %v270 = vsel %vm262, %v260, 0
      %v273 = vsel %vm262, %v261, 0
      %vm275 = vcmask 1043456
      %v277 = vsel %vm275, %v234, 0
      %279 = vmatprep.subr.bf16.mxu0 0
      %280 = vmatpush1.bf16.msra.mxu0 %v277
      %281 = vmatprep.subr.bf16.mxu0 0
      %282 = vmatpush1.bf16.msra.mxu0 0
      %283 = vmatprep.subr.bf16.mxu0 0
      %284 = vmatpush1.bf16.msra.mxu0 0
      %285 = vmatprep.subr.bf16.mxu0 0
      %286 = vmatpush1.bf16.msra.mxu0 0
      %287 = vmatprep.subr.bf16.mxu0 0
      %288 = vmatpush1.bf16.msra.mxu0 0
      %289 = vmatprep.subr.bf16.mxu0 0
      %290 = vmatpush1.bf16.msra.mxu0 0
      %291 = vmatprep.subr.bf16.mxu0 0
      %292 = vmatpush1.bf16.msra.mxu0 0
      %293 = vmatprep.subr.bf16.mxu0 0
      %294 = vmatpush1.bf16.msra.mxu0 0
      %295 = vmatprep.subr.bf16.mxu0 0
      %296 = vmatpush1.bf16.msra.mxu0 0
      %297 = vmatprep.subr.bf16.mxu0 0
      %298 = vmatpush1.bf16.msra.mxu0 0
      %299 = vmatprep.subr.bf16.mxu0 0
      %300 = vmatpush1.bf16.msra.mxu0 0
      %301 = vmatprep.subr.bf16.mxu0 0
      %302 = vmatpush1.bf16.msra.mxu0 0
      %303 = vmatprep.subr.bf16.mxu0 0
      %304 = vmatpush1.bf16.msra.mxu0 0
      %305 = vmatprep.subr.bf16.mxu0 0
      %306 = vmatpush1.bf16.msra.mxu0 0
      %307 = vmatprep.subr.bf16.mxu0 0
      %308 = vmatpush1.bf16.msra.mxu0 0
      %309 = vmatprep.subr.bf16.mxu0 0
      %310 = vmatpush1.bf16.msra.mxu0 0
      %311 = vmatprep.mubr.bf16.mxu0 0
      %312 = vmatmul.mubr.bf16.gmra.mrb[0].mxu0 %v264
      %v313 = vpop.f32.mrb[0].mxu0
      %v314 = vadd.f32 %v240, %v313
      %v315 = vpop.f32.mrb[0].mxu0
      %v316 = vpop.f32.mrb[0].mxu0
      %v317 = vadd.f32 %v240, %v316
      %v318 = vpop.f32.mrb[0].mxu0
      %319 = vmatprep.mubr.bf16.mxu0 0
      %320 = vmatmul.mubr.bf16.gmra.mrb[0].mxu0 %v267
      %v321 = vpop.f32.mrb[0].mxu0
      %v322 = vadd.f32 %v240, %v321
      %v323 = vpop.f32.mrb[0].mxu0
      %v324 = vpop.f32.mrb[0].mxu0
      %v325 = vadd.f32 %v240, %v324
      %v326 = vpop.f32.mrb[0].mxu0
      %327 = vmatprep.mubr.bf16.mxu0 0
      %328 = vmatmul.mubr.bf16.gmra.mrb[0].mxu0 %v270
      %v329 = vpop.f32.mrb[0].mxu0
      %v330 = vadd.f32 %v240, %v329
      %v331 = vpop.f32.mrb[0].mxu0
      %v332 = vpop.f32.mrb[0].mxu0
      %v333 = vadd.f32 %v240, %v332
      %v334 = vpop.f32.mrb[0].mxu0
      %335 = vmatprep.mubr.bf16.mxu0 0
      %336 = vmatmul.mubr.bf16.gmra.mrb[0].mxu0 %v273
      %v337 = vpop.f32.mrb[0].mxu0
      %v338 = vadd.f32 %v240, %v337
      %v339 = vpop.f32.mrb[0].mxu0
      %v340 = vpop.f32.mrb[0].mxu0
      %v341 = vadd.f32 %v240, %v340
      %v342 = vpop.f32.mrb[0].mxu0
      %343 = vdwg.mxu0
      %v344 = vmax.f32 %v314, 0.0
      %v345 = vmax.f32 %v317, 0.0
      %v346 = vmax.f32 %v322, 0.0
      %v347 = vmax.f32 %v325, 0.0
      %v348 = vmax.f32 %v330, 0.0
      %v349 = vmax.f32 %v333, 0.0
      %v350 = vmax.f32 %v338, 0.0
      %v351 = vmax.f32 %v341, 0.0
      %v352 = vpack.c.bf16 %v345, %v344
      %v353 = vpack.c.bf16 %v347, %v346
      %v354 = vpack.c.bf16 %v349, %v348
      %v355 = vpack.c.bf16 %v351, %v350
      %v360 = vunpack.c.l.b16 %v352
      %v361 = vunpack.c.h.b16 %v352
      %v362 = vunpack.c.l.b16 %v353
      %v363 = vunpack.c.h.b16 %v353
      %v364 = vunpack.c.l.b16 %v354
      %v365 = vunpack.c.h.b16 %v354
      %v366 = vunpack.c.l.b16 %v355
      %v367 = vunpack.c.h.b16 %v355
      %v368 = vpack.c.b16 %v360, %v360
      %v369 = vpack.c.b16 %v361, %v361
      %v370 = vpack.c.b16 %v362, %v362
      %v371 = vpack.c.b16 %v363, %v363
      %v372 = vpack.c.b16 %v364, %v364
      %v373 = vpack.c.b16 %v365, %v365
      %v374 = vpack.c.b16 %v366, %v366
      %v375 = vpack.c.b16 %v367, %v367
      %vm384 = vcmask 60416
      %385 = vst.msk [vmem:[%s223] sm:$0xf] %vm384, %v368
      %386 = vst.msk [vmem:[%s223 + $0x4] sm:$0xf] %vm384, %v369
      %387 = vst.msk [vmem:[%s223 + $0x8] sm:$0xf] %vm384, %v370
      %388 = vst.msk [vmem:[%s223 + $0xc] sm:$0xf] %vm384, %v371
      %389 = vst.msk [vmem:[%s223 + $0x10] sm:$0xf] %vm384, %v372
      %390 = vst.msk [vmem:[%s223 + $0x14] sm:$0xf] %vm384, %v373
      %391 = vst.msk [vmem:[%s223 + $0x18] sm:$0xf] %vm384, %v374
      %392 = vst.msk [vmem:[%s223 + $0x1c] sm:$0xf] %vm384, %v375
      %s393 = smul.u32 8, %s18
      %p394 = scmp.lt.s32.totalorder %s393, 15
      %s395 = scalar_select %p394, %s393, 15
      %p396 = scmp.lt.s32.totalorder %s19, 0
      %s397 = scalar_select %p396, %s19, 0
      %s398 = sadd.s32 %s397, %s395
      %s399 = smul.addr %s398, 4
      %s400 = scalar_lea.vmem %s3, %s399
      // Predicated region
      $region33: #{_lambda_.25} parent=31 // pred_check
        %p401 = pneg %p124
      $region34: #{_lambda_.25} parent=31 // pred_check_branch
        %403 = sbr.rel (%p401) target = $region36
      $region35: #{_lambda_.25} parent=31 // pred_region
        %s404 = smul.u32 8, %s18
      $region36: #{_lambda_.25} parent=31 // pred_fallthru
        _
    $region32: #{_lambda_.25} parent=5 // pred_fallthru
      _
    %p405 = scmp.le.s32.totalorder 2, %s9
    // Predicated region
    $region37: #{_lambda_.25} parent=5 // pred_check
      %p406 = pneg %p405
    $region38: #{_lambda_.25} parent=5 // pred_check_branch
      %408 = sbr.rel (%p406) target = $region40
    $region39: #{_lambda_.25} parent=5 // pred_region
      %s409 = ssub.s32 %s9, 2
      // Predicated region
      $region41: #{_lambda_.25} parent=39 // pred_check
        %p410 = pneg %p130
      $region42: #{_lambda_.25} parent=39 // pred_check_branch
        %412 = sbr.rel (%p410) target = $region44
      $region43: #{_lambda_.25} parent=39 // pred_region
        %s413 = smul.u32 8, %s20
        %p414 = scmp.lt.s32.totalorder %s413, 15
        %s415 = scalar_select %p414, %s413, 15
        %p416 = scmp.lt.s32.totalorder %s21, 0
        %s417 = scalar_select %p416, %s21, 0
        %s418 = sadd.s32 %s417, %s415
        %s419 = smul.addr %s418, 4
        %s420 = scalar_lea.vmem %s3, %s419
      $region44: #{_lambda_.25} parent=39 // pred_fallthru
        _
    $region40: #{_lambda_.25} parent=5 // pred_fallthru
      _
  $region6: #{_lambda_.25} parent=0 // loop_footer
    %s13 = sadd.s32 1, %s9
  $region7: #{_lambda_.25} parent=0 // loop_footer_branch
    %8 = sbr.rel target = $region3
  $region8: #{_lambda_.25} parent=0 // loop_exit
    _

// kernel: _lambda_.27
$region0: #{_lambda_.27}
  #allocation0 [shape = 'u32[]', space=smem, size = 0x4, offset = 0x4, fixed_abs, tag = 'smem constant byte address 0x4 - core index']
  #allocation1 [shape = 'u32[144,128]{1,0:T(1,128)}', space=vmem, size = 0x12000, scoped, tag = 'internal scratch']
  %s0 = inlined_call_operand.vmem [shape: bf16[32,8], index: 0, kind: input, shape index: {}]
  %s1 = inlined_call_operand.vmem [shape: bf16[1,8,32], index: 1, kind: input, shape index: {}]
  %s2 = inlined_call_operand.vmem [shape: f32[1,32], index: 2, kind: input, shape index: {}]
  %s3 = inlined_call_operand.vmem [shape: bf16[32,32], index: 3, kind: output, shape index: {}]
  %s4 = sld [smem:[#allocation0]]
  $region45: #{_lambda_.27} parent=0
    _
  %s6 = ssub.s32 1, %s4
  %s7 = scalar_select 0, %s6, %s4
  loop: start=0, step=1, limit=4
  $region2: #{_lambda_.27} parent=0 // loop_pre_header
    _
  $region3: #{_lambda_.27} parent=0 // loop_header
    %s9 = sphi 0, %s13
    %p10 = scmp.ge.s32.totalorder %s9, 4
    %s16 = sphi 0, %s28
    %s17 = sphi 0, %s24
    %s18 = sphi 0, %s16
    %s19 = sphi 0, %s17
    %s20 = sphi 0, %s18
    %s21 = sphi 0, %s19
    %s31 = sphi 0, %s33
    %s34 = sphi 0, %s31
    %s35 = sphi 0, %s34
    %s51 = sphi 0, %s35
    %s57 = sphi 0, %s59
    %s60 = sphi 0, %s57
    %s61 = sphi 0, %s60
    %s77 = sphi 0, %s61
    %s83 = sphi 0, %s85
    %s86 = sphi 0, %s83
    %s87 = sphi 0, %s86
    %s103 = sphi 0, %s87
    %s111 = sphi 0, %s113
    %s114 = sphi 0, %s111
    %s115 = sphi 0, %s114
    %s131 = sphi 0, %s115
  $region4: #{_lambda_.27} parent=0 // loop_header_branch
    %12 = sbr.rel (%p10) target = $region8
  $region5: #{_lambda_.27} parent=0 // loop_body
    %s14 = ssub.s32 %s9, 1
    %s15 = ssub.s32 %s9, 2
    %s22 = sadd.s32 1, %s17
    %p23 = scmp.ge.s32.totalorder %s22, 1
    %s24 = scalar_select %p23, 0, %s22
    %s25 = sadd.s32 1, %s16
    %s26 = scalar_select %p23, %s25, %s16
    %p27 = scmp.ge.s32.totalorder %s26, 2
    %s28 = scalar_select %p27, 0, %s26
    %s29 = ssub.s32 %s16, %s28
    %p30 = scmp.eq.s32.totalorder %s29, 0
    %s32 = sadd.s32 %s31, 1
    %s33 = scalar_select %p30, %s31, %s32
    %p36 = pneg %p30
    %p37 = scmp.eq.s32.totalorder %s9, 1
    %p38 = por %p36, %p37
    %p39 = scmp.ne.s32.totalorder %s31, %s34
    %p40 = scmp.eq.s32.totalorder %s9, 0
    %p41 = por %p39, %p40
    %p42 = scmp.ne.s32.totalorder %s31, %s34
    %p43 = scmp.eq.s32.totalorder %s14, 1
    %p44 = por %p42, %p43
    %p45 = scmp.ne.s32.totalorder %s34, %s35
    %p46 = scmp.eq.s32.totalorder %s14, 0
    %p47 = por %p45, %p46
    %p48 = scmp.ne.s32.totalorder %s34, %s35
    %p49 = scmp.eq.s32.totalorder %s15, 1
    %p50 = por %p48, %p49
    %p52 = scmp.ne.s32.totalorder %s35, %s51
    %p53 = scmp.eq.s32.totalorder %s15, 0
    %p54 = por %p52, %p53
    %s55 = ssub.s32 %s17, %s24
    %p56 = scmp.eq.s32.totalorder %s55, 0
    %s58 = sadd.s32 %s57, 1
    %s59 = scalar_select %p56, %s57, %s58
    %p62 = pneg %p56
    %p63 = scmp.eq.s32.totalorder %s9, 1
    %p64 = por %p62, %p63
    %p65 = scmp.ne.s32.totalorder %s57, %s60
    %p66 = scmp.eq.s32.totalorder %s9, 0
    %p67 = por %p65, %p66
    %p68 = scmp.ne.s32.totalorder %s57, %s60
    %p69 = scmp.eq.s32.totalorder %s14, 1
    %p70 = por %p68, %p69
    %p71 = scmp.ne.s32.totalorder %s60, %s61
    %p72 = scmp.eq.s32.totalorder %s14, 0
    %p73 = por %p71, %p72
    %p74 = scmp.ne.s32.totalorder %s60, %s61
    %p75 = scmp.eq.s32.totalorder %s15, 1
    %p76 = por %p74, %p75
    %p78 = scmp.ne.s32.totalorder %s61, %s77
    %p79 = scmp.eq.s32.totalorder %s15, 0
    %p80 = por %p78, %p79
    %s81 = ssub.s32 %s17, %s24
    %p82 = scmp.eq.s32.totalorder %s81, 0
    %s84 = sadd.s32 %s83, 1
    %s85 = scalar_select %p82, %s83, %s84
    %p88 = pneg %p82
    %p89 = scmp.eq.s32.totalorder %s9, 1
    %p90 = por %p88, %p89
    %p91 = scmp.ne.s32.totalorder %s83, %s86
    %p92 = scmp.eq.s32.totalorder %s9, 0
    %p93 = por %p91, %p92
    %p94 = scmp.ne.s32.totalorder %s83, %s86
    %p95 = scmp.eq.s32.totalorder %s14, 1
    %p96 = por %p94, %p95
    %p97 = scmp.ne.s32.totalorder %s86, %s87
    %p98 = scmp.eq.s32.totalorder %s14, 0
    %p99 = por %p97, %p98
    %p100 = scmp.ne.s32.totalorder %s86, %s87
    %p101 = scmp.eq.s32.totalorder %s15, 1
    %p102 = por %p100, %p101
    %p104 = scmp.ne.s32.totalorder %s87, %s103
    %p105 = scmp.eq.s32.totalorder %s15, 0
    %p106 = por %p104, %p105
    %s107 = ssub.s32 %s16, %s28
    %s108 = ssub.s32 %s17, %s24
    %s109 = sor.u32 %s107, %s108
    %p110 = scmp.eq.s32.totalorder %s109, 0
    %s112 = sadd.s32 %s111, 1
    %s113 = scalar_select %p110, %s111, %s112
    %p116 = pneg %p110
    %p117 = scmp.eq.s32.totalorder %s9, 1
    %p118 = por %p116, %p117
    %p119 = scmp.ne.s32.totalorder %s111, %s114
    %p120 = scmp.eq.s32.totalorder %s9, 0
    %p121 = por %p119, %p120
    %p122 = scmp.ne.s32.totalorder %s111, %s114
    %p123 = scmp.eq.s32.totalorder %s14, 1
    %p124 = por %p122, %p123
    %p125 = scmp.ne.s32.totalorder %s114, %s115
    %p126 = scmp.eq.s32.totalorder %s14, 0
    %p127 = por %p125, %p126
    %p128 = scmp.ne.s32.totalorder %s114, %s115
    %p129 = scmp.eq.s32.totalorder %s15, 1
    %p130 = por %p128, %p129
    %p132 = scmp.ne.s32.totalorder %s115, %s131
    %p133 = scmp.eq.s32.totalorder %s15, 0
    %p134 = por %p132, %p133
    %p135 = scmp.le.s32.totalorder 1, %s9
    %p136 = scmp.lt.s32.totalorder %s9, 3
    %p137 = pnand %p135, %p136
    %p138 = pneg %p137
    // Predicated region
    $region9: #{_lambda_.27} parent=5 // pred_check
      _
    $region10: #{_lambda_.27} parent=5 // pred_check_branch
      %140 = sbr.rel (%p137) target = $region12
    $region11: #{_lambda_.27} parent=5 // pred_region
      %s141 = ssub.s32 %s9, 1
      // Predicated region
      $region13: #{_lambda_.27} parent=11 // pred_check
        %p142 = pneg %p73
      $region14: #{_lambda_.27} parent=11 // pred_check_branch
        %144 = sbr.rel (%p142) target = $region16
      $region15: #{_lambda_.27} parent=11 // pred_region
        %p145 = scmp.lt.s32.totalorder %s19, 0
        %s146 = scalar_select %p145, %s19, 0
        %s147 = smul.addr %s146, 4
        %s148 = scalar_lea.vmem %s1, %s147
      $region16: #{_lambda_.27} parent=11 // pred_fallthru
        _
      // Predicated region
      $region17: #{_lambda_.27} parent=11 // pred_check
        %p149 = pneg %p99
      $region18: #{_lambda_.27} parent=11 // pred_check_branch
        %151 = sbr.rel (%p149) target = $region20
      $region19: #{_lambda_.27} parent=11 // pred_region
        %p152 = scmp.lt.s32.totalorder %s19, 0
        %s153 = scalar_select %p152, %s19, 0
        %s154 = scalar_lea.vmem %s2, %s153
      $region20: #{_lambda_.27} parent=11 // pred_fallthru
        _
    $region12: #{_lambda_.27} parent=5 // pred_fallthru
      _
    %p155 = scmp.lt.s32.totalorder %s9, 2
    // Predicated region
    $region21: #{_lambda_.27} parent=5 // pred_check
      %p156 = pneg %p155
    $region22: #{_lambda_.27} parent=5 // pred_check_branch
      %158 = sbr.rel (%p156) target = $region24
    $region23: #{_lambda_.27} parent=5 // pred_region
      // Predicated region
      $region25: #{_lambda_.27} parent=23 // pred_check
        %p159 = pneg %p41
      $region26: #{_lambda_.27} parent=23 // pred_check_branch
        %161 = sbr.rel (%p159) target = $region28
      $region27: #{_lambda_.27} parent=23 // pred_region
        %s162 = smul.u32 2, %s16
        %p163 = scmp.lt.s32.totalorder %s162, 3
        %s164 = scalar_select %p163, %s162, 3
        %s165 = smul.addr %s164, 4
        %s166 = scalar_lea.vmem %s0, %s165
        %s167 = smul.u32 2, %s16
      $region28: #{_lambda_.27} parent=23 // pred_fallthru
        _
    $region24: #{_lambda_.27} parent=5 // pred_fallthru
      _
    %p168 = scmp.le.s32.totalorder 1, %s9
    %p169 = scmp.lt.s32.totalorder %s9, 3
    %p170 = pnand %p168, %p169
    %p171 = pneg %p170
    // Predicated region
    $region29: #{_lambda_.27} parent=5 // pred_check
      _
    $region30: #{_lambda_.27} parent=5 // pred_check_branch
      %173 = sbr.rel (%p170) target = $region32
    $region31: #{_lambda_.27} parent=5 // pred_region
      %s174 = ssub.s32 %s9, 1
      %s175 = smul.u32 2, %s18
      %p176 = scmp.lt.s32.totalorder %s175, 3
      %s177 = scalar_select %p176, %s175, 3
      %s178 = smul.addr %s177, 4
      %s179 = scalar_lea.vmem %s0, %s178
      %p180 = pneg %p47
      %p181 = pneg %p44
      %p182 = scmp.lt.s32.totalorder %s19, 0
      %s183 = scalar_select %p182, %s19, 0
      %s184 = smul.addr %s183, 4
      %s185 = scalar_lea.vmem %s1, %s184
      %p186 = pneg %p73
      %p187 = pneg %p70
      %p188 = scmp.lt.s32.totalorder %s19, 0
      %s189 = scalar_select %p188, %s19, 0
      %s190 = scalar_lea.vmem %s2, %s189
      %p191 = pneg %p99
      %p192 = pneg %p96
      %p193 = pneg %p127
      %p194 = pneg %p124
      %s195 = smul.u32 2, %s18
      %p196 = scmp.lt.s32.totalorder %s195, 3
      %s197 = scalar_select %p196, %s195, 3
      %p198 = scmp.lt.s32.totalorder %s19, 0
      %s199 = scalar_select %p198, %s19, 0
      %s200 = sadd.s32 %s199, %s197
      %s201 = smul.addr %s200, 4
      %s202 = scalar_lea.vmem %s3, %s201
      %s203 = smul.u32 2, %s18
      %p204 = scmp.lt.s32.totalorder %s203, 3
      %s205 = scalar_select %p204, %s203, 3
      %s206 = smul.addr %s205, 4
      %s207 = scalar_lea.vmem %s0, %s206
      %s208 = smul.u32 2, %s18
      %p209 = scmp.lt.s32.totalorder %s19, 0
      %s210 = scalar_select %p209, %s19, 0
      %s211 = smul.addr %s210, 4
      %s212 = scalar_lea.vmem %s1, %s211
      %p213 = scmp.lt.s32.totalorder %s19, 0
      %s214 = scalar_select %p213, %s19, 0
      %s215 = scalar_lea.vmem %s2, %s214
      %s216 = smul.u32 2, %s18
      %p217 = scmp.lt.s32.totalorder %s216, 3
      %s218 = scalar_select %p217, %s216, 3
      %p219 = scmp.lt.s32.totalorder %s19, 0
      %s220 = scalar_select %p219, %s19, 0
      %s221 = sadd.s32 %s220, %s218
      %s222 = smul.addr %s221, 4
      %s223 = scalar_lea.vmem %s3, %s222
      %s224 = smul.u32 2, %s18
      %v226 = vld [vmem:[%s207] sm:$0xf]
      %v227 = vld [vmem:[%s207 + $0x4] sm:$0xf]
      %v228 = vld [vmem:[%s212] sm:$0xf]
      %v229 = vld [vmem:[%s215] sm:$0x1]
      %v231 = vlaneseq
      %v232 = vshrl.u32 %v231, 7
      %v233 = vsub.s32 0, %v232
      %v234 = vrot.slane %v229, %v233
      %v238 = vunpack.c.l.b16 %v226
      %v239 = vunpack.c.l.b16 %v227
      %v240 = vpack.c.b16 %v239, %v238
      %vm241 = vcmask 64512
      %v243 = vsel %vm241, %v240, 0
      %vm245 = vcmask 1043456
      %v247 = vsel %vm245, %v228, 0
      %249 = vmatprep.subr.bf16.mxu0 0
      %250 = vmatpush1.bf16.msra.mxu0 %v247
      %251 = vmatprep.subr.bf16.mxu0 0
      %252 = vmatpush1.bf16.msra.mxu0 0
      %253 = vmatprep.subr.bf16.mxu0 0
      %254 = vmatpush1.bf16.msra.mxu0 0
      %255 = vmatprep.subr.bf16.mxu0 0
      %256 = vmatpush1.bf16.msra.mxu0 0
      %257 = vmatprep.subr.bf16.mxu0 0
      %258 = vmatpush1.bf16.msra.mxu0 0
      %259 = vmatprep.subr.bf16.mxu0 0
      %260 = vmatpush1.bf16.msra.mxu0 0
      %261 = vmatprep.subr.bf16.mxu0 0
      %262 = vmatpush1.bf16.msra.mxu0 0
      %263 = vmatprep.subr.bf16.mxu0 0
      %264 = vmatpush1.bf16.msra.mxu0 0
      %265 = vmatprep.subr.bf16.mxu0 0
      %266 = vmatpush1.bf16.msra.mxu0 0
      %267 = vmatprep.subr.bf16.mxu0 0
      %268 = vmatpush1.bf16.msra.mxu0 0
      %269 = vmatprep.subr.bf16.mxu0 0
      %270 = vmatpush1.bf16.msra.mxu0 0
      %271 = vmatprep.subr.bf16.mxu0 0
      %272 = vmatpush1.bf16.msra.mxu0 0
      %273 = vmatprep.subr.bf16.mxu0 0
      %274 = vmatpush1.bf16.msra.mxu0 0
      %275 = vmatprep.subr.bf16.mxu0 0
      %276 = vmatpush1.bf16.msra.mxu0 0
      %277 = vmatprep.subr.bf16.mxu0 0
      %278 = vmatpush1.bf16.msra.mxu0 0
      %279 = vmatprep.subr.bf16.mxu0 0
      %280 = vmatpush1.bf16.msra.mxu0 0
      %281 = vmatprep.mubr.bf16.mxu0 0
      %282 = vmatmul.mubr.bf16.gmra.mrb[0].mxu0 %v243
      %v283 = vpop.f32.mrb[0].mxu0
      %v284 = vadd.f32 %v234, %v283
      %v285 = vpop.f32.mrb[0].mxu0
      %v286 = vpop.f32.mrb[0].mxu0
      %v287 = vadd.f32 %v234, %v286
      %v288 = vpop.f32.mrb[0].mxu0
      %289 = vdwg.mxu0
      %v290 = vpack.c.bf16 %v287, %v284
      %v292 = vunpack.c.l.b16 %v290
      %v293 = vunpack.c.h.b16 %v290
      %v294 = vpack.c.b16 %v292, %v292
      %v295 = vpack.c.b16 %v293, %v293
      %vm298 = vcmask 257024
      %299 = vst.msk [vmem:[%s223] sm:$0xf] %vm298, %v294
      %300 = vst.msk [vmem:[%s223 + $0x4] sm:$0xf] %vm298, %v295
      %s301 = smul.u32 2, %s18
      %p302 = scmp.lt.s32.totalorder %s301, 3
      %s303 = scalar_select %p302, %s301, 3
      %p304 = scmp.lt.s32.totalorder %s19, 0
      %s305 = scalar_select %p304, %s19, 0
      %s306 = sadd.s32 %s305, %s303
      %s307 = smul.addr %s306, 4
      %s308 = scalar_lea.vmem %s3, %s307
      // Predicated region
      $region33: #{_lambda_.27} parent=31 // pred_check
        %p309 = pneg %p124
      $region34: #{_lambda_.27} parent=31 // pred_check_branch
        %311 = sbr.rel (%p309) target = $region36
      $region35: #{_lambda_.27} parent=31 // pred_region
        %s312 = smul.u32 2, %s18
      $region36: #{_lambda_.27} parent=31 // pred_fallthru
        _
    $region32: #{_lambda_.27} parent=5 // pred_fallthru
      _
    %p313 = scmp.le.s32.totalorder 2, %s9
    // Predicated region
    $region37: #{_lambda_.27} parent=5 // pred_check
      %p314 = pneg %p313
    $region38: #{_lambda_.27} parent=5 // pred_check_branch
      %316 = sbr.rel (%p314) target = $region40
    $region39: #{_lambda_.27} parent=5 // pred_region
      %s317 = ssub.s32 %s9, 2
      // Predicated region
      $region41: #{_lambda_.27} parent=39 // pred_check
        %p318 = pneg %p130
      $region42: #{_lambda_.27} parent=39 // pred_check_branch
        %320 = sbr.rel (%p318) target = $region44
      $region43: #{_lambda_.27} parent=39 // pred_region
        %s321 = smul.u32 2, %s20
        %p322 = scmp.lt.s32.totalorder %s321, 3
        %s323 = scalar_select %p322, %s321, 3
        %p324 = scmp.lt.s32.totalorder %s21, 0
        %s325 = scalar_select %p324, %s21, 0
        %s326 = sadd.s32 %s325, %s323
        %s327 = smul.addr %s326, 4
        %s328 = scalar_lea.vmem %s3, %s327
      $region44: #{_lambda_.27} parent=39 // pred_fallthru
        _
    $region40: #{_lambda_.27} parent=5 // pred_fallthru
      _
  $region6: #{_lambda_.27} parent=0 // loop_footer
    %s13 = sadd.s32 1, %s9
  $region7: #{_lambda_.27} parent=0 // loop_footer_branch
    %8 = sbr.rel target = $region3
  $region8: #{_lambda_.27} parent=0 // loop_exit
    _

// kernel: _lambda_.28
$region0: #{_lambda_.28}
  #allocation0 [shape = 'u32[]', space=smem, size = 0x4, offset = 0x4, fixed_abs, tag = 'smem constant byte address 0x4 - core index']
  #allocation1 [shape = 'u32[144,128]{1,0:T(1,128)}', space=vmem, size = 0x12000, scoped, tag = 'internal scratch']
  %s0 = inlined_call_operand.vmem [shape: bf16[32,8], index: 0, kind: input, shape index: {}]
  %s1 = inlined_call_operand.vmem [shape: bf16[1,8,32], index: 1, kind: input, shape index: {}]
  %s2 = inlined_call_operand.vmem [shape: f32[1,32], index: 2, kind: input, shape index: {}]
  %s3 = inlined_call_operand.vmem [shape: bf16[32,32], index: 3, kind: input, shape index: {}]
  %s4 = inlined_call_operand.vmem [shape: bf16[32,32], index: 4, kind: output, shape index: {}]
  %s5 = sld [smem:[#allocation0]]
  $region49: #{_lambda_.28} parent=0
    _
  %s7 = ssub.s32 1, %s5
  %s8 = scalar_select 0, %s7, %s5
  loop: start=0, step=1, limit=4
  $region2: #{_lambda_.28} parent=0 // loop_pre_header
    _
  $region3: #{_lambda_.28} parent=0 // loop_header
    %s10 = sphi 0, %s14
    %p11 = scmp.ge.s32.totalorder %s10, 4
    %s17 = sphi 0, %s29
    %s18 = sphi 0, %s25
    %s19 = sphi 0, %s17
    %s20 = sphi 0, %s18
    %s21 = sphi 0, %s19
    %s22 = sphi 0, %s20
    %s32 = sphi 0, %s34
    %s35 = sphi 0, %s32
    %s36 = sphi 0, %s35
    %s52 = sphi 0, %s36
    %s58 = sphi 0, %s60
    %s61 = sphi 0, %s58
    %s62 = sphi 0, %s61
    %s78 = sphi 0, %s62
    %s84 = sphi 0, %s86
    %s87 = sphi 0, %s84
    %s88 = sphi 0, %s87
    %s104 = sphi 0, %s88
    %s112 = sphi 0, %s114
    %s115 = sphi 0, %s112
    %s116 = sphi 0, %s115
    %s132 = sphi 0, %s116
    %s140 = sphi 0, %s142
    %s143 = sphi 0, %s140
    %s144 = sphi 0, %s143
    %s160 = sphi 0, %s144
  $region4: #{_lambda_.28} parent=0 // loop_header_branch
    %13 = sbr.rel (%p11) target = $region8
  $region5: #{_lambda_.28} parent=0 // loop_body
    %s15 = ssub.s32 %s10, 1
    %s16 = ssub.s32 %s10, 2
    %s23 = sadd.s32 1, %s18
    %p24 = scmp.ge.s32.totalorder %s23, 1
    %s25 = scalar_select %p24, 0, %s23
    %s26 = sadd.s32 1, %s17
    %s27 = scalar_select %p24, %s26, %s17
    %p28 = scmp.ge.s32.totalorder %s27, 2
    %s29 = scalar_select %p28, 0, %s27
    %s30 = ssub.s32 %s17, %s29
    %p31 = scmp.eq.s32.totalorder %s30, 0
    %s33 = sadd.s32 %s32, 1
    %s34 = scalar_select %p31, %s32, %s33
    %p37 = pneg %p31
    %p38 = scmp.eq.s32.totalorder %s10, 1
    %p39 = por %p37, %p38
    %p40 = scmp.ne.s32.totalorder %s32, %s35
    %p41 = scmp.eq.s32.totalorder %s10, 0
    %p42 = por %p40, %p41
    %p43 = scmp.ne.s32.totalorder %s32, %s35
    %p44 = scmp.eq.s32.totalorder %s15, 1
    %p45 = por %p43, %p44
    %p46 = scmp.ne.s32.totalorder %s35, %s36
    %p47 = scmp.eq.s32.totalorder %s15, 0
    %p48 = por %p46, %p47
    %p49 = scmp.ne.s32.totalorder %s35, %s36
    %p50 = scmp.eq.s32.totalorder %s16, 1
    %p51 = por %p49, %p50
    %p53 = scmp.ne.s32.totalorder %s36, %s52
    %p54 = scmp.eq.s32.totalorder %s16, 0
    %p55 = por %p53, %p54
    %s56 = ssub.s32 %s18, %s25
    %p57 = scmp.eq.s32.totalorder %s56, 0
    %s59 = sadd.s32 %s58, 1
    %s60 = scalar_select %p57, %s58, %s59
    %p63 = pneg %p57
    %p64 = scmp.eq.s32.totalorder %s10, 1
    %p65 = por %p63, %p64
    %p66 = scmp.ne.s32.totalorder %s58, %s61
    %p67 = scmp.eq.s32.totalorder %s10, 0
    %p68 = por %p66, %p67
    %p69 = scmp.ne.s32.totalorder %s58, %s61
    %p70 = scmp.eq.s32.totalorder %s15, 1
    %p71 = por %p69, %p70
    %p72 = scmp.ne.s32.totalorder %s61, %s62
    %p73 = scmp.eq.s32.totalorder %s15, 0
    %p74 = por %p72, %p73
    %p75 = scmp.ne.s32.totalorder %s61, %s62
    %p76 = scmp.eq.s32.totalorder %s16, 1
    %p77 = por %p75, %p76
    %p79 = scmp.ne.s32.totalorder %s62, %s78
    %p80 = scmp.eq.s32.totalorder %s16, 0
    %p81 = por %p79, %p80
    %s82 = ssub.s32 %s18, %s25
    %p83 = scmp.eq.s32.totalorder %s82, 0
    %s85 = sadd.s32 %s84, 1
    %s86 = scalar_select %p83, %s84, %s85
    %p89 = pneg %p83
    %p90 = scmp.eq.s32.totalorder %s10, 1
    %p91 = por %p89, %p90
    %p92 = scmp.ne.s32.totalorder %s84, %s87
    %p93 = scmp.eq.s32.totalorder %s10, 0
    %p94 = por %p92, %p93
    %p95 = scmp.ne.s32.totalorder %s84, %s87
    %p96 = scmp.eq.s32.totalorder %s15, 1
    %p97 = por %p95, %p96
    %p98 = scmp.ne.s32.totalorder %s87, %s88
    %p99 = scmp.eq.s32.totalorder %s15, 0
    %p100 = por %p98, %p99
    %p101 = scmp.ne.s32.totalorder %s87, %s88
    %p102 = scmp.eq.s32.totalorder %s16, 1
    %p103 = por %p101, %p102
    %p105 = scmp.ne.s32.totalorder %s88, %s104
    %p106 = scmp.eq.s32.totalorder %s16, 0
    %p107 = por %p105, %p106
    %s108 = ssub.s32 %s17, %s29
    %s109 = ssub.s32 %s18, %s25
    %s110 = sor.u32 %s108, %s109
    %p111 = scmp.eq.s32.totalorder %s110, 0
    %s113 = sadd.s32 %s112, 1
    %s114 = scalar_select %p111, %s112, %s113
    %p117 = pneg %p111
    %p118 = scmp.eq.s32.totalorder %s10, 1
    %p119 = por %p117, %p118
    %p120 = scmp.ne.s32.totalorder %s112, %s115
    %p121 = scmp.eq.s32.totalorder %s10, 0
    %p122 = por %p120, %p121
    %p123 = scmp.ne.s32.totalorder %s112, %s115
    %p124 = scmp.eq.s32.totalorder %s15, 1
    %p125 = por %p123, %p124
    %p126 = scmp.ne.s32.totalorder %s115, %s116
    %p127 = scmp.eq.s32.totalorder %s15, 0
    %p128 = por %p126, %p127
    %p129 = scmp.ne.s32.totalorder %s115, %s116
    %p130 = scmp.eq.s32.totalorder %s16, 1
    %p131 = por %p129, %p130
    %p133 = scmp.ne.s32.totalorder %s116, %s132
    %p134 = scmp.eq.s32.totalorder %s16, 0
    %p135 = por %p133, %p134
    %s136 = ssub.s32 %s17, %s29
    %s137 = ssub.s32 %s18, %s25
    %s138 = sor.u32 %s136, %s137
    %p139 = scmp.eq.s32.totalorder %s138, 0
    %s141 = sadd.s32 %s140, 1
    %s142 = scalar_select %p139, %s140, %s141
    %p145 = pneg %p139
    %p146 = scmp.eq.s32.totalorder %s10, 1
    %p147 = por %p145, %p146
    %p148 = scmp.ne.s32.totalorder %s140, %s143
    %p149 = scmp.eq.s32.totalorder %s10, 0
    %p150 = por %p148, %p149
    %p151 = scmp.ne.s32.totalorder %s140, %s143
    %p152 = scmp.eq.s32.totalorder %s15, 1
    %p153 = por %p151, %p152
    %p154 = scmp.ne.s32.totalorder %s143, %s144
    %p155 = scmp.eq.s32.totalorder %s15, 0
    %p156 = por %p154, %p155
    %p157 = scmp.ne.s32.totalorder %s143, %s144
    %p158 = scmp.eq.s32.totalorder %s16, 1
    %p159 = por %p157, %p158
    %p161 = scmp.ne.s32.totalorder %s144, %s160
    %p162 = scmp.eq.s32.totalorder %s16, 0
    %p163 = por %p161, %p162
    %p164 = scmp.le.s32.totalorder 1, %s10
    %p165 = scmp.lt.s32.totalorder %s10, 3
    %p166 = pnand %p164, %p165
    %p167 = pneg %p166
    // Predicated region
    $region9: #{_lambda_.28} parent=5 // pred_check
      _
    $region10: #{_lambda_.28} parent=5 // pred_check_branch
      %169 = sbr.rel (%p166) target = $region12
    $region11: #{_lambda_.28} parent=5 // pred_region
      %s170 = ssub.s32 %s10, 1
      // Predicated region
      $region13: #{_lambda_.28} parent=11 // pred_check
        %p171 = pneg %p74
      $region14: #{_lambda_.28} parent=11 // pred_check_branch
        %173 = sbr.rel (%p171) target = $region16
      $region15: #{_lambda_.28} parent=11 // pred_region
        %p174 = scmp.lt.s32.totalorder %s20, 0
        %s175 = scalar_select %p174, %s20, 0
        %s176 = smul.addr %s175, 4
        %s177 = scalar_lea.vmem %s1, %s176
      $region16: #{_lambda_.28} parent=11 // pred_fallthru
        _
      // Predicated region
      $region17: #{_lambda_.28} parent=11 // pred_check
        %p178 = pneg %p100
      $region18: #{_lambda_.28} parent=11 // pred_check_branch
        %180 = sbr.rel (%p178) target = $region20
      $region19: #{_lambda_.28} parent=11 // pred_region
        %p181 = scmp.lt.s32.totalorder %s20, 0
        %s182 = scalar_select %p181, %s20, 0
        %s183 = scalar_lea.vmem %s2, %s182
      $region20: #{_lambda_.28} parent=11 // pred_fallthru
        _
    $region12: #{_lambda_.28} parent=5 // pred_fallthru
      _
    %p184 = scmp.lt.s32.totalorder %s10, 2
    // Predicated region
    $region21: #{_lambda_.28} parent=5 // pred_check
      %p185 = pneg %p184
    $region22: #{_lambda_.28} parent=5 // pred_check_branch
      %187 = sbr.rel (%p185) target = $region24
    $region23: #{_lambda_.28} parent=5 // pred_region
      // Predicated region
      $region25: #{_lambda_.28} parent=23 // pred_check
        %p188 = pneg %p42
      $region26: #{_lambda_.28} parent=23 // pred_check_branch
        %190 = sbr.rel (%p188) target = $region28
      $region27: #{_lambda_.28} parent=23 // pred_region
        %s191 = smul.u32 2, %s17
        %p192 = scmp.lt.s32.totalorder %s191, 3
        %s193 = scalar_select %p192, %s191, 3
        %s194 = smul.addr %s193, 4
        %s195 = scalar_lea.vmem %s0, %s194
        %s196 = smul.u32 2, %s17
      $region28: #{_lambda_.28} parent=23 // pred_fallthru
        _
      // Predicated region
      $region29: #{_lambda_.28} parent=23 // pred_check
        %p197 = pneg %p122
      $region30: #{_lambda_.28} parent=23 // pred_check_branch
        %199 = sbr.rel (%p197) target = $region32
      $region31: #{_lambda_.28} parent=23 // pred_region
        %s200 = smul.u32 2, %s17
        %p201 = scmp.lt.s32.totalorder %s200, 3
        %s202 = scalar_select %p201, %s200, 3
        %p203 = scmp.lt.s32.totalorder %s18, 0
        %s204 = scalar_select %p203, %s18, 0
        %s205 = sadd.s32 %s204, %s202
        %s206 = smul.addr %s205, 4
        %s207 = scalar_lea.vmem %s3, %s206
        %s208 = smul.u32 2, %s17
      $region32: #{_lambda_.28} parent=23 // pred_fallthru
        _
    $region24: #{_lambda_.28} parent=5 // pred_fallthru
      _
    %p209 = scmp.le.s32.totalorder 1, %s10
    %p210 = scmp.lt.s32.totalorder %s10, 3
    %p211 = pnand %p209, %p210
    %p212 = pneg %p211
    // Predicated region
    $region33: #{_lambda_.28} parent=5 // pred_check
      _
    $region34: #{_lambda_.28} parent=5 // pred_check_branch
      %214 = sbr.rel (%p211) target = $region36
    $region35: #{_lambda_.28} parent=5 // pred_region
      %s215 = ssub.s32 %s10, 1
      %s216 = smul.u32 2, %s19
      %p217 = scmp.lt.s32.totalorder %s216, 3
      %s218 = scalar_select %p217, %s216, 3
      %s219 = smul.addr %s218, 4
      %s220 = scalar_lea.vmem %s0, %s219
      %p221 = pneg %p48
      %p222 = pneg %p45
      %p223 = scmp.lt.s32.totalorder %s20, 0
      %s224 = scalar_select %p223, %s20, 0
      %s225 = smul.addr %s224, 4
      %s226 = scalar_lea.vmem %s1, %s225
      %p227 = pneg %p74
      %p228 = pneg %p71
      %p229 = scmp.lt.s32.totalorder %s20, 0
      %s230 = scalar_select %p229, %s20, 0
      %s231 = scalar_lea.vmem %s2, %s230
      %p232 = pneg %p100
      %p233 = pneg %p97
      %s234 = smul.u32 2, %s19
      %p235 = scmp.lt.s32.totalorder %s234, 3
      %s236 = scalar_select %p235, %s234, 3
      %p237 = scmp.lt.s32.totalorder %s20, 0
      %s238 = scalar_select %p237, %s20, 0
      %s239 = sadd.s32 %s238, %s236
      %s240 = smul.addr %s239, 4
      %s241 = scalar_lea.vmem %s3, %s240
      %p242 = pneg %p128
      %p243 = pneg %p125
      %p244 = pneg %p156
      %p245 = pneg %p153
      %s246 = smul.u32 2, %s19
      %p247 = scmp.lt.s32.totalorder %s246, 3
      %s248 = scalar_select %p247, %s246, 3
      %p249 = scmp.lt.s32.totalorder %s20, 0
      %s250 = scalar_select %p249, %s20, 0
      %s251 = sadd.s32 %s250, %s248
      %s252 = smul.addr %s251, 4
      %s253 = scalar_lea.vmem %s4, %s252
      %s254 = smul.u32 2, %s19
      %p255 = scmp.lt.s32.totalorder %s254, 3
      %s256 = scalar_select %p255, %s254, 3
      %s257 = smul.addr %s256, 4
      %s258 = scalar_lea.vmem %s0, %s257
      %s259 = smul.u32 2, %s19
      %p260 = scmp.lt.s32.totalorder %s20, 0
      %s261 = scalar_select %p260, %s20, 0
      %s262 = smul.addr %s261, 4
      %s263 = scalar_lea.vmem %s1, %s262
      %p264 = scmp.lt.s32.totalorder %s20, 0
      %s265 = scalar_select %p264, %s20, 0
      %s266 = scalar_lea.vmem %s2, %s265
      %s267 = smul.u32 2, %s19
      %p268 = scmp.lt.s32.totalorder %s267, 3
      %s269 = scalar_select %p268, %s267, 3
      %p270 = scmp.lt.s32.totalorder %s20, 0
      %s271 = scalar_select %p270, %s20, 0
      %s272 = sadd.s32 %s271, %s269
      %s273 = smul.addr %s272, 4
      %s274 = scalar_lea.vmem %s3, %s273
      %s275 = smul.u32 2, %s19
      %s276 = smul.u32 2, %s19
      %p277 = scmp.lt.s32.totalorder %s276, 3
      %s278 = scalar_select %p277, %s276, 3
      %p279 = scmp.lt.s32.totalorder %s20, 0
      %s280 = scalar_select %p279, %s20, 0
      %s281 = sadd.s32 %s280, %s278
      %s282 = smul.addr %s281, 4
      %s283 = scalar_lea.vmem %s4, %s282
      %s284 = smul.u32 2, %s19
      %v286 = vld [vmem:[%s258] sm:$0xf]
      %v287 = vld [vmem:[%s258 + $0x4] sm:$0xf]
      %v288 = vld [vmem:[%s263] sm:$0xf]
      %v289 = vld [vmem:[%s266] sm:$0x1]
      %v291 = vlaneseq
      %v292 = vshrl.u32 %v291, 7
      %v293 = vsub.s32 0, %v292
      %v294 = vrot.slane %v289, %v293
      %v298 = vunpack.c.l.b16 %v286
      %v299 = vunpack.c.l.b16 %v287
      %v300 = vpack.c.b16 %v299, %v298
      %vm301 = vcmask 64512
      %v303 = vsel %vm301, %v300, 0
      %vm305 = vcmask 1043456
      %v307 = vsel %vm305, %v288, 0
      %309 = vmatprep.subr.bf16.mxu0 0
      %310 = vmatpush1.bf16.msra.mxu0 %v307
      %311 = vmatprep.subr.bf16.mxu0 0
      %312 = vmatpush1.bf16.msra.mxu0 0
      %313 = vmatprep.subr.bf16.mxu0 0
      %314 = vmatpush1.bf16.msra.mxu0 0
      %315 = vmatprep.subr.bf16.mxu0 0
      %316 = vmatpush1.bf16.msra.mxu0 0
      %317 = vmatprep.subr.bf16.mxu0 0
      %318 = vmatpush1.bf16.msra.mxu0 0
      %319 = vmatprep.subr.bf16.mxu0 0
      %320 = vmatpush1.bf16.msra.mxu0 0
      %321 = vmatprep.subr.bf16.mxu0 0
      %322 = vmatpush1.bf16.msra.mxu0 0
      %323 = vmatprep.subr.bf16.mxu0 0
      %324 = vmatpush1.bf16.msra.mxu0 0
      %325 = vmatprep.subr.bf16.mxu0 0
      %326 = vmatpush1.bf16.msra.mxu0 0
      %327 = vmatprep.subr.bf16.mxu0 0
      %328 = vmatpush1.bf16.msra.mxu0 0
      %329 = vmatprep.subr.bf16.mxu0 0
      %330 = vmatpush1.bf16.msra.mxu0 0
      %331 = vmatprep.subr.bf16.mxu0 0
      %332 = vmatpush1.bf16.msra.mxu0 0
      %333 = vmatprep.subr.bf16.mxu0 0
      %334 = vmatpush1.bf16.msra.mxu0 0
      %335 = vmatprep.subr.bf16.mxu0 0
      %336 = vmatpush1.bf16.msra.mxu0 0
      %337 = vmatprep.subr.bf16.mxu0 0
      %338 = vmatpush1.bf16.msra.mxu0 0
      %339 = vmatprep.subr.bf16.mxu0 0
      %340 = vmatpush1.bf16.msra.mxu0 0
      %341 = vmatprep.mubr.bf16.mxu0 0
      %342 = vmatmul.mubr.bf16.gmra.mrb[0].mxu0 %v303
      %v343 = vpop.f32.mrb[0].mxu0
      %v344 = vadd.f32 %v294, %v343
      %v345 = vpop.f32.mrb[0].mxu0
      %v346 = vpop.f32.mrb[0].mxu0
      %v347 = vadd.f32 %v294, %v346
      %v348 = vpop.f32.mrb[0].mxu0
      %349 = vdwg.mxu0
      %v350 = vld [vmem:[%s274] sm:$0xf]
      %v351 = vld [vmem:[%s274 + $0x4] sm:$0xf]
      %v352 = vunpack.c.l.bf16 %v350
      %v353 = vunpack.c.l.bf16 %v351
      %v354 = vadd.f32 %v344, %v352
      %v355 = vadd.f32 %v347, %v353
      %v356 = vmax.f32 %v354, 0.0
      %v357 = vmax.f32 %v355, 0.0
      %v358 = vpack.c.bf16 %v357, %v356
      %v360 = vunpack.c.l.b16 %v358
      %v361 = vunpack.c.h.b16 %v358
      %v362 = vpack.c.b16 %v360, %v360
      %v363 = vpack.c.b16 %v361, %v361
      %vm366 = vcmask 257024
      %367 = vst.msk [vmem:[%s283] sm:$0xf] %vm366, %v362
      %368 = vst.msk [vmem:[%s283 + $0x4] sm:$0xf] %vm366, %v363
      %s369 = smul.u32 2, %s19
      %p370 = scmp.lt.s32.totalorder %s369, 3
      %s371 = scalar_select %p370, %s369, 3
      %p372 = scmp.lt.s32.totalorder %s20, 0
      %s373 = scalar_select %p372, %s20, 0
      %s374 = sadd.s32 %s373, %s371
      %s375 = smul.addr %s374, 4
      %s376 = scalar_lea.vmem %s4, %s375
      // Predicated region
      $region37: #{_lambda_.28} parent=35 // pred_check
        %p377 = pneg %p153
      $region38: #{_lambda_.28} parent=35 // pred_check_branch
        %379 = sbr.rel (%p377) target = $region40
      $region39: #{_lambda_.28} parent=35 // pred_region
        %s380 = smul.u32 2, %s19
      $region40: #{_lambda_.28} parent=35 // pred_fallthru
        _
    $region36: #{_lambda_.28} parent=5 // pred_fallthru
      _
    %p381 = scmp.le.s32.totalorder 2, %s10
    // Predicated region
    $region41: #{_lambda_.28} parent=5 // pred_check
      %p382 = pneg %p381
    $region42: #{_lambda_.28} parent=5 // pred_check_branch
      %384 = sbr.rel (%p382) target = $region44
    $region43: #{_lambda_.28} parent=5 // pred_region
      %s385 = ssub.s32 %s10, 2
      // Predicated region
      $region45: #{_lambda_.28} parent=43 // pred_check
        %p386 = pneg %p159
      $region46: #{_lambda_.28} parent=43 // pred_check_branch
        %388 = sbr.rel (%p386) target = $region48
      $region47: #{_lambda_.28} parent=43 // pred_region
        %s389 = smul.u32 2, %s21
        %p390 = scmp.lt.s32.totalorder %s389, 3
        %s391 = scalar_select %p390, %s389, 3
        %p392 = scmp.lt.s32.totalorder %s22, 0
        %s393 = scalar_select %p392, %s22, 0
        %s394 = sadd.s32 %s393, %s391
        %s395 = smul.addr %s394, 4
        %s396 = scalar_lea.vmem %s4, %s395
      $region48: #{_lambda_.28} parent=43 // pred_fallthru
        _
    $region44: #{_lambda_.28} parent=5 // pred_fallthru
      _
  $region6: #{_lambda_.28} parent=0 // loop_footer
    %s14 = sadd.s32 1, %s10
  $region7: #{_lambda_.28} parent=0 // loop_footer_branch
    %9 = sbr.rel target = $region3
  $region8: #{_lambda_.28} parent=0 // loop_exit
    _

// kernel: _lambda_.26
$region0: #{_lambda_.26}
  #allocation0 [shape = 'u32[]', space=smem, size = 0x4, offset = 0x4, fixed_abs, tag = 'smem constant byte address 0x4 - core index']
  #allocation1 [shape = 'u32[144,128]{1,0:T(1,128)}', space=vmem, size = 0x12000, scoped, tag = 'internal scratch']
  %s0 = inlined_call_operand.vmem [shape: bf16[32,8], index: 0, kind: input, shape index: {}]
  %s1 = inlined_call_operand.vmem [shape: bf16[32,8], index: 1, kind: input, shape index: {}]
  %s2 = inlined_call_operand.vmem [shape: bf16[32,8], index: 2, kind: input, shape index: {}]
  %s3 = inlined_call_operand.vmem [shape: bf16[32,8], index: 3, kind: input, shape index: {}]
  %s4 = inlined_call_operand.vmem [shape: bf16[32,8], index: 4, kind: input, shape index: {}]
  %s5 = inlined_call_operand.vmem [shape: bf16[32,8], index: 5, kind: input, shape index: {}]
  %s6 = inlined_call_operand.vmem [shape: bf16[32,8], index: 6, kind: input, shape index: {}]
  %s7 = inlined_call_operand.vmem [shape: bf16[32,8], index: 7, kind: input, shape index: {}]
  %s8 = inlined_call_operand.vmem [shape: bf16[32,8], index: 8, kind: input, shape index: {}]
  %s9 = inlined_call_operand.vmem [shape: bf16[9,8,8], index: 9, kind: input, shape index: {}]
  %s10 = inlined_call_operand.vmem [shape: f32[1,8], index: 10, kind: input, shape index: {}]
  %s11 = inlined_call_operand.vmem [shape: bf16[32,8], index: 11, kind: output, shape index: {}]
  %s12 = sld [smem:[#allocation0]]
  $region77: #{_lambda_.26} parent=0
    _
  %s14 = ssub.s32 1, %s12
  %s15 = scalar_select 0, %s14, %s12
  loop: start=0, step=1, limit=4
  $region2: #{_lambda_.26} parent=0 // loop_pre_header
    _
  $region3: #{_lambda_.26} parent=0 // loop_header
    %s17 = sphi 0, %s21
    %p18 = scmp.ge.s32.totalorder %s17, 4
    %s24 = sphi 0, %s36
    %s25 = sphi 0, %s32
    %s26 = sphi 0, %s24
    %s27 = sphi 0, %s25
    %s28 = sphi 0, %s26
    %s29 = sphi 0, %s27
    %s39 = sphi 0, %s41
    %s42 = sphi 0, %s39
    %s43 = sphi 0, %s42
    %s59 = sphi 0, %s43
    %s65 = sphi 0, %s67
    %s68 = sphi 0, %s65
    %s69 = sphi 0, %s68
    %s85 = sphi 0, %s69
    %s91 = sphi 0, %s93
    %s94 = sphi 0, %s91
    %s95 = sphi 0, %s94
    %s111 = sphi 0, %s95
    %s117 = sphi 0, %s119
    %s120 = sphi 0, %s117
    %s121 = sphi 0, %s120
    %s137 = sphi 0, %s121
    %s143 = sphi 0, %s145
    %s146 = sphi 0, %s143
    %s147 = sphi 0, %s146
    %s163 = sphi 0, %s147
    %s169 = sphi 0, %s171
    %s172 = sphi 0, %s169
    %s173 = sphi 0, %s172
    %s189 = sphi 0, %s173
    %s195 = sphi 0, %s197
    %s198 = sphi 0, %s195
    %s199 = sphi 0, %s198
    %s215 = sphi 0, %s199
    %s221 = sphi 0, %s223
    %s224 = sphi 0, %s221
    %s225 = sphi 0, %s224
    %s241 = sphi 0, %s225
    %s247 = sphi 0, %s249
    %s250 = sphi 0, %s247
    %s251 = sphi 0, %s250
    %s267 = sphi 0, %s251
    %s273 = sphi 0, %s275
    %s276 = sphi 0, %s273
    %s277 = sphi 0, %s276
    %s293 = sphi 0, %s277
    %s299 = sphi 0, %s301
    %s302 = sphi 0, %s299
    %s303 = sphi 0, %s302
    %s319 = sphi 0, %s303
    %s327 = sphi 0, %s329
    %s330 = sphi 0, %s327
    %s331 = sphi 0, %s330
    %s347 = sphi 0, %s331
  $region4: #{_lambda_.26} parent=0 // loop_header_branch
    %20 = sbr.rel (%p18) target = $region8
  $region5: #{_lambda_.26} parent=0 // loop_body
    %s22 = ssub.s32 %s17, 1
    %s23 = ssub.s32 %s17, 2
    %s30 = sadd.s32 1, %s25
    %p31 = scmp.ge.s32.totalorder %s30, 1
    %s32 = scalar_select %p31, 0, %s30
    %s33 = sadd.s32 1, %s24
    %s34 = scalar_select %p31, %s33, %s24
    %p35 = scmp.ge.s32.totalorder %s34, 2
    %s36 = scalar_select %p35, 0, %s34
    %s37 = ssub.s32 %s24, %s36
    %p38 = scmp.eq.s32.totalorder %s37, 0
    %s40 = sadd.s32 %s39, 1
    %s41 = scalar_select %p38, %s39, %s40
    %p44 = pneg %p38
    %p45 = scmp.eq.s32.totalorder %s17, 1
    %p46 = por %p44, %p45
    %p47 = scmp.ne.s32.totalorder %s39, %s42
    %p48 = scmp.eq.s32.totalorder %s17, 0
    %p49 = por %p47, %p48
    %p50 = scmp.ne.s32.totalorder %s39, %s42
    %p51 = scmp.eq.s32.totalorder %s22, 1
    %p52 = por %p50, %p51
    %p53 = scmp.ne.s32.totalorder %s42, %s43
    %p54 = scmp.eq.s32.totalorder %s22, 0
    %p55 = por %p53, %p54
    %p56 = scmp.ne.s32.totalorder %s42, %s43
    %p57 = scmp.eq.s32.totalorder %s23, 1
    %p58 = por %p56, %p57
    %p60 = scmp.ne.s32.totalorder %s43, %s59
    %p61 = scmp.eq.s32.totalorder %s23, 0
    %p62 = por %p60, %p61
    %s63 = ssub.s32 %s24, %s36
    %p64 = scmp.eq.s32.totalorder %s63, 0
    %s66 = sadd.s32 %s65, 1
    %s67 = scalar_select %p64, %s65, %s66
    %p70 = pneg %p64
    %p71 = scmp.eq.s32.totalorder %s17, 1
    %p72 = por %p70, %p71
    %p73 = scmp.ne.s32.totalorder %s65, %s68
    %p74 = scmp.eq.s32.totalorder %s17, 0
    %p75 = por %p73, %p74
    %p76 = scmp.ne.s32.totalorder %s65, %s68
    %p77 = scmp.eq.s32.totalorder %s22, 1
    %p78 = por %p76, %p77
    %p79 = scmp.ne.s32.totalorder %s68, %s69
    %p80 = scmp.eq.s32.totalorder %s22, 0
    %p81 = por %p79, %p80
    %p82 = scmp.ne.s32.totalorder %s68, %s69
    %p83 = scmp.eq.s32.totalorder %s23, 1
    %p84 = por %p82, %p83
    %p86 = scmp.ne.s32.totalorder %s69, %s85
    %p87 = scmp.eq.s32.totalorder %s23, 0
    %p88 = por %p86, %p87
    %s89 = ssub.s32 %s24, %s36
    %p90 = scmp.eq.s32.totalorder %s89, 0
    %s92 = sadd.s32 %s91, 1
    %s93 = scalar_select %p90, %s91, %s92
    %p96 = pneg %p90
    %p97 = scmp.eq.s32.totalorder %s17, 1
    %p98 = por %p96, %p97
    %p99 = scmp.ne.s32.totalorder %s91, %s94
    %p100 = scmp.eq.s32.totalorder %s17, 0
    %p101 = por %p99, %p100
    %p102 = scmp.ne.s32.totalorder %s91, %s94
    %p103 = scmp.eq.s32.totalorder %s22, 1
    %p104 = por %p102, %p103
    %p105 = scmp.ne.s32.totalorder %s94, %s95
    %p106 = scmp.eq.s32.totalorder %s22, 0
    %p107 = por %p105, %p106
    %p108 = scmp.ne.s32.totalorder %s94, %s95
    %p109 = scmp.eq.s32.totalorder %s23, 1
    %p110 = por %p108, %p109
    %p112 = scmp.ne.s32.totalorder %s95, %s111
    %p113 = scmp.eq.s32.totalorder %s23, 0
    %p114 = por %p112, %p113
    %s115 = ssub.s32 %s24, %s36
    %p116 = scmp.eq.s32.totalorder %s115, 0
    %s118 = sadd.s32 %s117, 1
    %s119 = scalar_select %p116, %s117, %s118
    %p122 = pneg %p116
    %p123 = scmp.eq.s32.totalorder %s17, 1
    %p124 = por %p122, %p123
    %p125 = scmp.ne.s32.totalorder %s117, %s120
    %p126 = scmp.eq.s32.totalorder %s17, 0
    %p127 = por %p125, %p126
    %p128 = scmp.ne.s32.totalorder %s117, %s120
    %p129 = scmp.eq.s32.totalorder %s22, 1
    %p130 = por %p128, %p129
    %p131 = scmp.ne.s32.totalorder %s120, %s121
    %p132 = scmp.eq.s32.totalorder %s22, 0
    %p133 = por %p131, %p132
    %p134 = scmp.ne.s32.totalorder %s120, %s121
    %p135 = scmp.eq.s32.totalorder %s23, 1
    %p136 = por %p134, %p135
    %p138 = scmp.ne.s32.totalorder %s121, %s137
    %p139 = scmp.eq.s32.totalorder %s23, 0
    %p140 = por %p138, %p139
    %s141 = ssub.s32 %s24, %s36
    %p142 = scmp.eq.s32.totalorder %s141, 0
    %s144 = sadd.s32 %s143, 1
    %s145 = scalar_select %p142, %s143, %s144
    %p148 = pneg %p142
    %p149 = scmp.eq.s32.totalorder %s17, 1
    %p150 = por %p148, %p149
    %p151 = scmp.ne.s32.totalorder %s143, %s146
    %p152 = scmp.eq.s32.totalorder %s17, 0
    %p153 = por %p151, %p152
    %p154 = scmp.ne.s32.totalorder %s143, %s146
    %p155 = scmp.eq.s32.totalorder %s22, 1
    %p156 = por %p154, %p155
    %p157 = scmp.ne.s32.totalorder %s146, %s147
    %p158 = scmp.eq.s32.totalorder %s22, 0
    %p159 = por %p157, %p158
    %p160 = scmp.ne.s32.totalorder %s146, %s147
    %p161 = scmp.eq.s32.totalorder %s23, 1
    %p162 = por %p160, %p161
    %p164 = scmp.ne.s32.totalorder %s147, %s163
    %p165 = scmp.eq.s32.totalorder %s23, 0
    %p166 = por %p164, %p165
    %s167 = ssub.s32 %s24, %s36
    %p168 = scmp.eq.s32.totalorder %s167, 0
    %s170 = sadd.s32 %s169, 1
    %s171 = scalar_select %p168, %s169, %s170
    %p174 = pneg %p168
    %p175 = scmp.eq.s32.totalorder %s17, 1
    %p176 = por %p174, %p175
    %p177 = scmp.ne.s32.totalorder %s169, %s172
    %p178 = scmp.eq.s32.totalorder %s17, 0
    %p179 = por %p177, %p178
    %p180 = scmp.ne.s32.totalorder %s169, %s172
    %p181 = scmp.eq.s32.totalorder %s22, 1
    %p182 = por %p180, %p181
    %p183 = scmp.ne.s32.totalorder %s172, %s173
    %p184 = scmp.eq.s32.totalorder %s22, 0
    %p185 = por %p183, %p184
    %p186 = scmp.ne.s32.totalorder %s172, %s173
    %p187 = scmp.eq.s32.totalorder %s23, 1
    %p188 = por %p186, %p187
    %p190 = scmp.ne.s32.totalorder %s173, %s189
    %p191 = scmp.eq.s32.totalorder %s23, 0
    %p192 = por %p190, %p191
    %s193 = ssub.s32 %s24, %s36
    %p194 = scmp.eq.s32.totalorder %s193, 0
    %s196 = sadd.s32 %s195, 1
    %s197 = scalar_select %p194, %s195, %s196
    %p200 = pneg %p194
    %p201 = scmp.eq.s32.totalorder %s17, 1
    %p202 = por %p200, %p201
    %p203 = scmp.ne.s32.totalorder %s195, %s198
    %p204 = scmp.eq.s32.totalorder %s17, 0
    %p205 = por %p203, %p204
    %p206 = scmp.ne.s32.totalorder %s195, %s198
    %p207 = scmp.eq.s32.totalorder %s22, 1
    %p208 = por %p206, %p207
    %p209 = scmp.ne.s32.totalorder %s198, %s199
    %p210 = scmp.eq.s32.totalorder %s22, 0
    %p211 = por %p209, %p210
    %p212 = scmp.ne.s32.totalorder %s198, %s199
    %p213 = scmp.eq.s32.totalorder %s23, 1
    %p214 = por %p212, %p213
    %p216 = scmp.ne.s32.totalorder %s199, %s215
    %p217 = scmp.eq.s32.totalorder %s23, 0
    %p218 = por %p216, %p217
    %s219 = ssub.s32 %s24, %s36
    %p220 = scmp.eq.s32.totalorder %s219, 0
    %s222 = sadd.s32 %s221, 1
    %s223 = scalar_select %p220, %s221, %s222
    %p226 = pneg %p220
    %p227 = scmp.eq.s32.totalorder %s17, 1
    %p228 = por %p226, %p227
    %p229 = scmp.ne.s32.totalorder %s221, %s224
    %p230 = scmp.eq.s32.totalorder %s17, 0
    %p231 = por %p229, %p230
    %p232 = scmp.ne.s32.totalorder %s221, %s224
    %p233 = scmp.eq.s32.totalorder %s22, 1
    %p234 = por %p232, %p233
    %p235 = scmp.ne.s32.totalorder %s224, %s225
    %p236 = scmp.eq.s32.totalorder %s22, 0
    %p237 = por %p235, %p236
    %p238 = scmp.ne.s32.totalorder %s224, %s225
    %p239 = scmp.eq.s32.totalorder %s23, 1
    %p240 = por %p238, %p239
    %p242 = scmp.ne.s32.totalorder %s225, %s241
    %p243 = scmp.eq.s32.totalorder %s23, 0
    %p244 = por %p242, %p243
    %s245 = ssub.s32 %s24, %s36
    %p246 = scmp.eq.s32.totalorder %s245, 0
    %s248 = sadd.s32 %s247, 1
    %s249 = scalar_select %p246, %s247, %s248
    %p252 = pneg %p246
    %p253 = scmp.eq.s32.totalorder %s17, 1
    %p254 = por %p252, %p253
    %p255 = scmp.ne.s32.totalorder %s247, %s250
    %p256 = scmp.eq.s32.totalorder %s17, 0
    %p257 = por %p255, %p256
    %p258 = scmp.ne.s32.totalorder %s247, %s250
    %p259 = scmp.eq.s32.totalorder %s22, 1
    %p260 = por %p258, %p259
    %p261 = scmp.ne.s32.totalorder %s250, %s251
    %p262 = scmp.eq.s32.totalorder %s22, 0
    %p263 = por %p261, %p262
    %p264 = scmp.ne.s32.totalorder %s250, %s251
    %p265 = scmp.eq.s32.totalorder %s23, 1
    %p266 = por %p264, %p265
    %p268 = scmp.ne.s32.totalorder %s251, %s267
    %p269 = scmp.eq.s32.totalorder %s23, 0
    %p270 = por %p268, %p269
    %s271 = ssub.s32 %s25, %s32
    %p272 = scmp.eq.s32.totalorder %s271, 0
    %s274 = sadd.s32 %s273, 1
    %s275 = scalar_select %p272, %s273, %s274
    %p278 = pneg %p272
    %p279 = scmp.eq.s32.totalorder %s17, 1
    %p280 = por %p278, %p279
    %p281 = scmp.ne.s32.totalorder %s273, %s276
    %p282 = scmp.eq.s32.totalorder %s17, 0
    %p283 = por %p281, %p282
    %p284 = scmp.ne.s32.totalorder %s273, %s276
    %p285 = scmp.eq.s32.totalorder %s22, 1
    %p286 = por %p284, %p285
    %p287 = scmp.ne.s32.totalorder %s276, %s277
    %p288 = scmp.eq.s32.totalorder %s22, 0
    %p289 = por %p287, %p288
    %p290 = scmp.ne.s32.totalorder %s276, %s277
    %p291 = scmp.eq.s32.totalorder %s23, 1
    %p292 = por %p290, %p291
    %p294 = scmp.ne.s32.totalorder %s277, %s293
    %p295 = scmp.eq.s32.totalorder %s23, 0
    %p296 = por %p294, %p295
    %s297 = ssub.s32 %s25, %s32
    %p298 = scmp.eq.s32.totalorder %s297, 0
    %s300 = sadd.s32 %s299, 1
    %s301 = scalar_select %p298, %s299, %s300
    %p304 = pneg %p298
    %p305 = scmp.eq.s32.totalorder %s17, 1
    %p306 = por %p304, %p305
    %p307 = scmp.ne.s32.totalorder %s299, %s302
    %p308 = scmp.eq.s32.totalorder %s17, 0
    %p309 = por %p307, %p308
    %p310 = scmp.ne.s32.totalorder %s299, %s302
    %p311 = scmp.eq.s32.totalorder %s22, 1
    %p312 = por %p310, %p311
    %p313 = scmp.ne.s32.totalorder %s302, %s303
    %p314 = scmp.eq.s32.totalorder %s22, 0
    %p315 = por %p313, %p314
    %p316 = scmp.ne.s32.totalorder %s302, %s303
    %p317 = scmp.eq.s32.totalorder %s23, 1
    %p318 = por %p316, %p317
    %p320 = scmp.ne.s32.totalorder %s303, %s319
    %p321 = scmp.eq.s32.totalorder %s23, 0
    %p322 = por %p320, %p321
    %s323 = ssub.s32 %s24, %s36
    %s324 = ssub.s32 %s25, %s32
    %s325 = sor.u32 %s323, %s324
    %p326 = scmp.eq.s32.totalorder %s325, 0
    %s328 = sadd.s32 %s327, 1
    %s329 = scalar_select %p326, %s327, %s328
    %p332 = pneg %p326
    %p333 = scmp.eq.s32.totalorder %s17, 1
    %p334 = por %p332, %p333
    %p335 = scmp.ne.s32.totalorder %s327, %s330
    %p336 = scmp.eq.s32.totalorder %s17, 0
    %p337 = por %p335, %p336
    %p338 = scmp.ne.s32.totalorder %s327, %s330
    %p339 = scmp.eq.s32.totalorder %s22, 1
    %p340 = por %p338, %p339
    %p341 = scmp.ne.s32.totalorder %s330, %s331
    %p342 = scmp.eq.s32.totalorder %s22, 0
    %p343 = por %p341, %p342
    %p344 = scmp.ne.s32.totalorder %s330, %s331
    %p345 = scmp.eq.s32.totalorder %s23, 1
    %p346 = por %p344, %p345
    %p348 = scmp.ne.s32.totalorder %s331, %s347
    %p349 = scmp.eq.s32.totalorder %s23, 0
    %p350 = por %p348, %p349
    %p351 = scmp.le.s32.totalorder 1, %s17
    %p352 = scmp.lt.s32.totalorder %s17, 3
    %p353 = pnand %p351, %p352
    %p354 = pneg %p353
    // Predicated region
    $region9: #{_lambda_.26} parent=5 // pred_check
      _
    $region10: #{_lambda_.26} parent=5 // pred_check_branch
      %356 = sbr.rel (%p353) target = $region12
    $region11: #{_lambda_.26} parent=5 // pred_region
      %s357 = ssub.s32 %s17, 1
      // Predicated region
      $region13: #{_lambda_.26} parent=11 // pred_check
        %p358 = pneg %p289
      $region14: #{_lambda_.26} parent=11 // pred_check_branch
        %360 = sbr.rel (%p358) target = $region16
      $region15: #{_lambda_.26} parent=11 // pred_region
        %p361 = scmp.lt.s32.totalorder %s27, 0
        %s362 = scalar_select %p361, %s27, 0
        %s363 = smul.addr %s362, 4
        %s364 = scalar_lea.vmem %s9, %s363
      $region16: #{_lambda_.26} parent=11 // pred_fallthru
        _
      // Predicated region
      $region17: #{_lambda_.26} parent=11 // pred_check
        %p365 = pneg %p315
      $region18: #{_lambda_.26} parent=11 // pred_check_branch
        %367 = sbr.rel (%p365) target = $region20
      $region19: #{_lambda_.26} parent=11 // pred_region
        %p368 = scmp.lt.s32.totalorder %s27, 0
        %s369 = scalar_select %p368, %s27, 0
        %s370 = scalar_lea.vmem %s10, %s369
      $region20: #{_lambda_.26} parent=11 // pred_fallthru
        _
    $region12: #{_lambda_.26} parent=5 // pred_fallthru
      _
    %p371 = scmp.lt.s32.totalorder %s17, 2
    // Predicated region
    $region21: #{_lambda_.26} parent=5 // pred_check
      %p372 = pneg %p371
    $region22: #{_lambda_.26} parent=5 // pred_check_branch
      %374 = sbr.rel (%p372) target = $region24
    $region23: #{_lambda_.26} parent=5 // pred_region
      // Predicated region
      $region25: #{_lambda_.26} parent=23 // pred_check
        %p375 = pneg %p49
      $region26: #{_lambda_.26} parent=23 // pred_check_branch
        %377 = sbr.rel (%p375) target = $region28
      $region27: #{_lambda_.26} parent=23 // pred_region
        %s378 = smul.u32 2, %s24
        %p379 = scmp.lt.s32.totalorder %s378, 3
        %s380 = scalar_select %p379, %s378, 3
        %s381 = smul.addr %s380, 4
        %s382 = scalar_lea.vmem %s0, %s381
        %s383 = smul.u32 2, %s24
      $region28: #{_lambda_.26} parent=23 // pred_fallthru
        _
      // Predicated region
      $region29: #{_lambda_.26} parent=23 // pred_check
        %p384 = pneg %p75
      $region30: #{_lambda_.26} parent=23 // pred_check_branch
        %386 = sbr.rel (%p384) target = $region32
      $region31: #{_lambda_.26} parent=23 // pred_region
        %s387 = smul.u32 2, %s24
        %p388 = scmp.lt.s32.totalorder %s387, 3
        %s389 = scalar_select %p388, %s387, 3
        %s390 = smul.addr %s389, 4
        %s391 = scalar_lea.vmem %s1, %s390
        %s392 = smul.u32 2, %s24
      $region32: #{_lambda_.26} parent=23 // pred_fallthru
        _
      // Predicated region
      $region33: #{_lambda_.26} parent=23 // pred_check
        %p393 = pneg %p101
      $region34: #{_lambda_.26} parent=23 // pred_check_branch
        %395 = sbr.rel (%p393) target = $region36
      $region35: #{_lambda_.26} parent=23 // pred_region
        %s396 = smul.u32 2, %s24
        %p397 = scmp.lt.s32.totalorder %s396, 3
        %s398 = scalar_select %p397, %s396, 3
        %s399 = smul.addr %s398, 4
        %s400 = scalar_lea.vmem %s2, %s399
        %s401 = smul.u32 2, %s24
      $region36: #{_lambda_.26} parent=23 // pred_fallthru
        _
      // Predicated region
      $region37: #{_lambda_.26} parent=23 // pred_check
        %p402 = pneg %p127
      $region38: #{_lambda_.26} parent=23 // pred_check_branch
        %404 = sbr.rel (%p402) target = $region40
      $region39: #{_lambda_.26} parent=23 // pred_region
        %s405 = smul.u32 2, %s24
        %p406 = scmp.lt.s32.totalorder %s405, 3
        %s407 = scalar_select %p406, %s405, 3
        %s408 = smul.addr %s407, 4
        %s409 = scalar_lea.vmem %s3, %s408
        %s410 = smul.u32 2, %s24
      $region40: #{_lambda_.26} parent=23 // pred_fallthru
        _
      // Predicated region
      $region41: #{_lambda_.26} parent=23 // pred_check
        %p411 = pneg %p153
      $region42: #{_lambda_.26} parent=23 // pred_check_branch
        %413 = sbr.rel (%p411) target = $region44
      $region43: #{_lambda_.26} parent=23 // pred_region
        %s414 = smul.u32 2, %s24
        %p415 = scmp.lt.s32.totalorder %s414, 3
        %s416 = scalar_select %p415, %s414, 3
        %s417 = smul.addr %s416, 4
        %s418 = scalar_lea.vmem %s4, %s417
        %s419 = smul.u32 2, %s24
      $region44: #{_lambda_.26} parent=23 // pred_fallthru
        _
      // Predicated region
      $region45: #{_lambda_.26} parent=23 // pred_check
        %p420 = pneg %p179
      $region46: #{_lambda_.26} parent=23 // pred_check_branch
        %422 = sbr.rel (%p420) target = $region48
      $region47: #{_lambda_.26} parent=23 // pred_region
        %s423 = smul.u32 2, %s24
        %p424 = scmp.lt.s32.totalorder %s423, 3
        %s425 = scalar_select %p424, %s423, 3
        %s426 = smul.addr %s425, 4
        %s427 = scalar_lea.vmem %s5, %s426
        %s428 = smul.u32 2, %s24
      $region48: #{_lambda_.26} parent=23 // pred_fallthru
        _
      // Predicated region
      $region49: #{_lambda_.26} parent=23 // pred_check
        %p429 = pneg %p205
      $region50: #{_lambda_.26} parent=23 // pred_check_branch
        %431 = sbr.rel (%p429) target = $region52
      $region51: #{_lambda_.26} parent=23 // pred_region
        %s432 = smul.u32 2, %s24
        %p433 = scmp.lt.s32.totalorder %s432, 3
        %s434 = scalar_select %p433, %s432, 3
        %s435 = smul.addr %s434, 4
        %s436 = scalar_lea.vmem %s6, %s435
        %s437 = smul.u32 2, %s24
      $region52: #{_lambda_.26} parent=23 // pred_fallthru
        _
      // Predicated region
      $region53: #{_lambda_.26} parent=23 // pred_check
        %p438 = pneg %p231
      $region54: #{_lambda_.26} parent=23 // pred_check_branch
        %440 = sbr.rel (%p438) target = $region56
      $region55: #{_lambda_.26} parent=23 // pred_region
        %s441 = smul.u32 2, %s24
        %p442 = scmp.lt.s32.totalorder %s441, 3
        %s443 = scalar_select %p442, %s441, 3
        %s444 = smul.addr %s443, 4
        %s445 = scalar_lea.vmem %s7, %s444
        %s446 = smul.u32 2, %s24
      $region56: #{_lambda_.26} parent=23 // pred_fallthru
        _
      // Predicated region
      $region57: #{_lambda_.26} parent=23 // pred_check
        %p447 = pneg %p257
      $region58: #{_lambda_.26} parent=23 // pred_check_branch
        %449 = sbr.rel (%p447) target = $region60
      $region59: #{_lambda_.26} parent=23 // pred_region
        %s450 = smul.u32 2, %s24
        %p451 = scmp.lt.s32.totalorder %s450, 3
        %s452 = scalar_select %p451, %s450, 3
        %s453 = smul.addr %s452, 4
        %s454 = scalar_lea.vmem %s8, %s453
        %s455 = smul.u32 2, %s24
      $region60: #{_lambda_.26} parent=23 // pred_fallthru
        _
    $region24: #{_lambda_.26} parent=5 // pred_fallthru
      _
    %p456 = scmp.le.s32.totalorder 1, %s17
    %p457 = scmp.lt.s32.totalorder %s17, 3
    %p458 = pnand %p456, %p457
    %p459 = pneg %p458
    // Predicated region
    $region61: #{_lambda_.26} parent=5 // pred_check
      _
    $region62: #{_lambda_.26} parent=5 // pred_check_branch
      %461 = sbr.rel (%p458) target = $region64
    $region63: #{_lambda_.26} parent=5 // pred_region
      %s462 = ssub.s32 %s17, 1
      %s463 = smul.u32 2, %s26
      %p464 = scmp.lt.s32.totalorder %s463, 3
      %s465 = scalar_select %p464, %s463, 3
      %s466 = smul.addr %s465, 4
      %s467 = scalar_lea.vmem %s0, %s466
      %p468 = pneg %p55
      %p469 = pneg %p52
      %s470 = smul.u32 2, %s26
      %p471 = scmp.lt.s32.totalorder %s470, 3
      %s472 = scalar_select %p471, %s470, 3
      %s473 = smul.addr %s472, 4
      %s474 = scalar_lea.vmem %s1, %s473
      %p475 = pneg %p81
      %p476 = pneg %p78
      %s477 = smul.u32 2, %s26
      %p478 = scmp.lt.s32.totalorder %s477, 3
      %s479 = scalar_select %p478, %s477, 3
      %s480 = smul.addr %s479, 4
      %s481 = scalar_lea.vmem %s2, %s480
      %p482 = pneg %p107
      %p483 = pneg %p104
      %s484 = smul.u32 2, %s26
      %p485 = scmp.lt.s32.totalorder %s484, 3
      %s486 = scalar_select %p485, %s484, 3
      %s487 = smul.addr %s486, 4
      %s488 = scalar_lea.vmem %s3, %s487
      %p489 = pneg %p133
      %p490 = pneg %p130
      %s491 = smul.u32 2, %s26
      %p492 = scmp.lt.s32.totalorder %s491, 3
      %s493 = scalar_select %p492, %s491, 3
      %s494 = smul.addr %s493, 4
      %s495 = scalar_lea.vmem %s4, %s494
      %p496 = pneg %p159
      %p497 = pneg %p156
      %s498 = smul.u32 2, %s26
      %p499 = scmp.lt.s32.totalorder %s498, 3
      %s500 = scalar_select %p499, %s498, 3
      %s501 = smul.addr %s500, 4
      %s502 = scalar_lea.vmem %s5, %s501
      %p503 = pneg %p185
      %p504 = pneg %p182
      %s505 = smul.u32 2, %s26
      %p506 = scmp.lt.s32.totalorder %s505, 3
      %s507 = scalar_select %p506, %s505, 3
      %s508 = smul.addr %s507, 4
      %s509 = scalar_lea.vmem %s6, %s508
      %p510 = pneg %p211
      %p511 = pneg %p208
      %s512 = smul.u32 2, %s26
      %p513 = scmp.lt.s32.totalorder %s512, 3
      %s514 = scalar_select %p513, %s512, 3
      %s515 = smul.addr %s514, 4
      %s516 = scalar_lea.vmem %s7, %s515
      %p517 = pneg %p237
      %p518 = pneg %p234
      %s519 = smul.u32 2, %s26
      %p520 = scmp.lt.s32.totalorder %s519, 3
      %s521 = scalar_select %p520, %s519, 3
      %s522 = smul.addr %s521, 4
      %s523 = scalar_lea.vmem %s8, %s522
      %p524 = pneg %p263
      %p525 = pneg %p260
      %p526 = scmp.lt.s32.totalorder %s27, 0
      %s527 = scalar_select %p526, %s27, 0
      %s528 = smul.addr %s527, 4
      %s529 = scalar_lea.vmem %s9, %s528
      %p530 = pneg %p289
      %p531 = pneg %p286
      %p532 = scmp.lt.s32.totalorder %s27, 0
      %s533 = scalar_select %p532, %s27, 0
      %s534 = scalar_lea.vmem %s10, %s533
      %p535 = pneg %p315
      %p536 = pneg %p312
      %p537 = pneg %p343
      %p538 = pneg %p340
      %s539 = smul.u32 2, %s26
      %p540 = scmp.lt.s32.totalorder %s539, 3
      %s541 = scalar_select %p540, %s539, 3
      %p542 = scmp.lt.s32.totalorder %s27, 0
      %s543 = scalar_select %p542, %s27, 0
      %s544 = sadd.s32 %s543, %s541
      %s545 = smul.addr %s544, 4
      %s546 = scalar_lea.vmem %s11, %s545
      %s547 = smul.u32 2, %s26
      %p548 = scmp.lt.s32.totalorder %s547, 3
      %s549 = scalar_select %p548, %s547, 3
      %s550 = smul.addr %s549, 4
      %s551 = scalar_lea.vmem %s0, %s550
      %s552 = smul.u32 2, %s26
      %s553 = smul.u32 2, %s26
      %p554 = scmp.lt.s32.totalorder %s553, 3
      %s555 = scalar_select %p554, %s553, 3
      %s556 = smul.addr %s555, 4
      %s557 = scalar_lea.vmem %s1, %s556
      %s558 = smul.u32 2, %s26
      %s559 = smul.u32 2, %s26
      %p560 = scmp.lt.s32.totalorder %s559, 3
      %s561 = scalar_select %p560, %s559, 3
      %s562 = smul.addr %s561, 4
      %s563 = scalar_lea.vmem %s2, %s562
      %s564 = smul.u32 2, %s26
      %s565 = smul.u32 2, %s26
      %p566 = scmp.lt.s32.totalorder %s565, 3
      %s567 = scalar_select %p566, %s565, 3
      %s568 = smul.addr %s567, 4
      %s569 = scalar_lea.vmem %s3, %s568
      %s570 = smul.u32 2, %s26
      %s571 = smul.u32 2, %s26
      %p572 = scmp.lt.s32.totalorder %s571, 3
      %s573 = scalar_select %p572, %s571, 3
      %s574 = smul.addr %s573, 4
      %s575 = scalar_lea.vmem %s4, %s574
      %s576 = smul.u32 2, %s26
      %s577 = smul.u32 2, %s26
      %p578 = scmp.lt.s32.totalorder %s577, 3
      %s579 = scalar_select %p578, %s577, 3
      %s580 = smul.addr %s579, 4
      %s581 = scalar_lea.vmem %s5, %s580
      %s582 = smul.u32 2, %s26
      %s583 = smul.u32 2, %s26
      %p584 = scmp.lt.s32.totalorder %s583, 3
      %s585 = scalar_select %p584, %s583, 3
      %s586 = smul.addr %s585, 4
      %s587 = scalar_lea.vmem %s6, %s586
      %s588 = smul.u32 2, %s26
      %s589 = smul.u32 2, %s26
      %p590 = scmp.lt.s32.totalorder %s589, 3
      %s591 = scalar_select %p590, %s589, 3
      %s592 = smul.addr %s591, 4
      %s593 = scalar_lea.vmem %s7, %s592
      %s594 = smul.u32 2, %s26
      %s595 = smul.u32 2, %s26
      %p596 = scmp.lt.s32.totalorder %s595, 3
      %s597 = scalar_select %p596, %s595, 3
      %s598 = smul.addr %s597, 4
      %s599 = scalar_lea.vmem %s8, %s598
      %s600 = smul.u32 2, %s26
      %p601 = scmp.lt.s32.totalorder %s27, 0
      %s602 = scalar_select %p601, %s27, 0
      %s603 = smul.addr %s602, 4
      %s604 = scalar_lea.vmem %s9, %s603
      %p605 = scmp.lt.s32.totalorder %s27, 0
      %s606 = scalar_select %p605, %s27, 0
      %s607 = scalar_lea.vmem %s10, %s606
      %s608 = smul.u32 2, %s26
      %p609 = scmp.lt.s32.totalorder %s608, 3
      %s610 = scalar_select %p609, %s608, 3
      %p611 = scmp.lt.s32.totalorder %s27, 0
      %s612 = scalar_select %p611, %s27, 0
      %s613 = sadd.s32 %s612, %s610
      %s614 = smul.addr %s613, 4
      %s615 = scalar_lea.vmem %s11, %s614
      %s616 = smul.u32 2, %s26
      %v618 = vld [vmem:[%s551] sm:$0xf]
      %v619 = vld [vmem:[%s551 + $0x4] sm:$0xf]
      %v620 = vld [vmem:[%s604] sm:$0xf]
      %v621 = vld [vmem:[%s557] sm:$0xf]
      %v622 = vld [vmem:[%s557 + $0x4] sm:$0xf]
      %s623 = scalar_lea.vmem %s604, 4
      %v624 = vld [vmem:[%s623] sm:$0xf]
      %v627 = vunpack.c.l.b16 %v621
      %v628 = vunpack.c.l.b16 %v622
      %v629 = vpack.c.b16 %v628, %v627
      %vm630 = vcmask 64512
      %v632 = vsel %vm630, %v629, 0
      %vm634 = vcmask 1043456
      %v636 = vsel %vm634, %v624, 0
      %638 = vmatprep.subr.bf16.mxu0 0
      %639 = vmatpush1.bf16.msra.mxu0 %v636
      %640 = vmatprep.subr.bf16.mxu0 0
      %641 = vmatpush1.bf16.msra.mxu0 0
      %642 = vmatprep.subr.bf16.mxu0 0
      %643 = vmatpush1.bf16.msra.mxu0 0
      %644 = vmatprep.subr.bf16.mxu0 0
      %645 = vmatpush1.bf16.msra.mxu0 0
      %646 = vmatprep.subr.bf16.mxu0 0
      %647 = vmatpush1.bf16.msra.mxu0 0
      %648 = vmatprep.subr.bf16.mxu0 0
      %649 = vmatpush1.bf16.msra.mxu0 0
      %650 = vmatprep.subr.bf16.mxu0 0
      %651 = vmatpush1.bf16.msra.mxu0 0
      %652 = vmatprep.subr.bf16.mxu0 0
      %653 = vmatpush1.bf16.msra.mxu0 0
      %654 = vmatprep.subr.bf16.mxu0 0
      %655 = vmatpush1.bf16.msra.mxu0 0
      %656 = vmatprep.subr.bf16.mxu0 0
      %657 = vmatpush1.bf16.msra.mxu0 0
      %658 = vmatprep.subr.bf16.mxu0 0
      %659 = vmatpush1.bf16.msra.mxu0 0
      %660 = vmatprep.subr.bf16.mxu0 0
      %661 = vmatpush1.bf16.msra.mxu0 0
      %662 = vmatprep.subr.bf16.mxu0 0
      %663 = vmatpush1.bf16.msra.mxu0 0
      %664 = vmatprep.subr.bf16.mxu0 0
      %665 = vmatpush1.bf16.msra.mxu0 0
      %666 = vmatprep.subr.bf16.mxu0 0
      %667 = vmatpush1.bf16.msra.mxu0 0
      %668 = vmatprep.subr.bf16.mxu0 0
      %669 = vmatpush1.bf16.msra.mxu0 0
      %670 = vmatprep.mubr.bf16.mxu0 0
      %671 = vmatmul.mubr.bf16.gmra.mrb[0].mxu0 %v632
      %v672 = vpop.f32.mrb[0].mxu0
      %v673 = vadd.f32 0.0, %v672
      %v674 = vpop.f32.mrb[0].mxu0
      %v675 = vpop.f32.mrb[0].mxu0
      %v676 = vadd.f32 0.0, %v675
      %v677 = vpop.f32.mrb[0].mxu0
      %678 = vdwg.mxu0
      %v681 = vunpack.c.l.b16 %v618
      %v682 = vunpack.c.l.b16 %v619
      %v683 = vpack.c.b16 %v682, %v681
      %v685 = vsel %vm630, %v683, 0
      %v688 = vsel %vm634, %v620, 0
      %690 = vmatprep.subr.bf16.mxu0 0
      %691 = vmatpush1.bf16.msra.mxu0 %v688
      %692 = vmatprep.subr.bf16.mxu0 0
      %693 = vmatpush1.bf16.msra.mxu0 0
      %694 = vmatprep.subr.bf16.mxu0 0
      %695 = vmatpush1.bf16.msra.mxu0 0
      %696 = vmatprep.subr.bf16.mxu0 0
      %697 = vmatpush1.bf16.msra.mxu0 0
      %698 = vmatprep.subr.bf16.mxu0 0
      %699 = vmatpush1.bf16.msra.mxu0 0
      %700 = vmatprep.subr.bf16.mxu0 0
      %701 = vmatpush1.bf16.msra.mxu0 0
      %702 = vmatprep.subr.bf16.mxu0 0
      %703 = vmatpush1.bf16.msra.mxu0 0
      %704 = vmatprep.subr.bf16.mxu0 0
      %705 = vmatpush1.bf16.msra.mxu0 0
      %706 = vmatprep.subr.bf16.mxu0 0
      %707 = vmatpush1.bf16.msra.mxu0 0
      %708 = vmatprep.subr.bf16.mxu0 0
      %709 = vmatpush1.bf16.msra.mxu0 0
      %710 = vmatprep.subr.bf16.mxu0 0
      %711 = vmatpush1.bf16.msra.mxu0 0
      %712 = vmatprep.subr.bf16.mxu0 0
      %713 = vmatpush1.bf16.msra.mxu0 0
      %714 = vmatprep.subr.bf16.mxu0 0
      %715 = vmatpush1.bf16.msra.mxu0 0
      %716 = vmatprep.subr.bf16.mxu0 0
      %717 = vmatpush1.bf16.msra.mxu0 0
      %718 = vmatprep.subr.bf16.mxu0 0
      %719 = vmatpush1.bf16.msra.mxu0 0
      %720 = vmatprep.subr.bf16.mxu0 0
      %721 = vmatpush1.bf16.msra.mxu0 0
      %722 = vmatprep.mubr.bf16.mxu0 0
      %723 = vmatmul.mubr.bf16.gmra.mrb[0].mxu0 %v685
      %v724 = vpop.f32.mrb[0].mxu0
      %v725 = vadd.f32 %v673, %v724
      %v726 = vpop.f32.mrb[0].mxu0
      %v727 = vpop.f32.mrb[0].mxu0
      %v728 = vadd.f32 %v676, %v727
      %v729 = vpop.f32.mrb[0].mxu0
      %730 = vdwg.mxu0
      %v731 = vld [vmem:[%s563] sm:$0xf]
      %v732 = vld [vmem:[%s563 + $0x4] sm:$0xf]
      %s733 = scalar_lea.vmem %s604, 8
      %v734 = vld [vmem:[%s733] sm:$0xf]
      %v737 = vunpack.c.l.b16 %v731
      %v738 = vunpack.c.l.b16 %v732
      %v739 = vpack.c.b16 %v738, %v737
      %v741 = vsel %vm630, %v739, 0
      %v744 = vsel %vm634, %v734, 0
      %746 = vmatprep.subr.bf16.mxu0 0
      %747 = vmatpush1.bf16.msra.mxu0 %v744
      %748 = vmatprep.subr.bf16.mxu0 0
      %749 = vmatpush1.bf16.msra.mxu0 0
      %750 = vmatprep.subr.bf16.mxu0 0
      %751 = vmatpush1.bf16.msra.mxu0 0
      %752 = vmatprep.subr.bf16.mxu0 0
      %753 = vmatpush1.bf16.msra.mxu0 0
      %754 = vmatprep.subr.bf16.mxu0 0
      %755 = vmatpush1.bf16.msra.mxu0 0
      %756 = vmatprep.subr.bf16.mxu0 0
      %757 = vmatpush1.bf16.msra.mxu0 0
      %758 = vmatprep.subr.bf16.mxu0 0
      %759 = vmatpush1.bf16.msra.mxu0 0
      %760 = vmatprep.subr.bf16.mxu0 0
      %761 = vmatpush1.bf16.msra.mxu0 0
      %762 = vmatprep.subr.bf16.mxu0 0
      %763 = vmatpush1.bf16.msra.mxu0 0
      %764 = vmatprep.subr.bf16.mxu0 0
      %765 = vmatpush1.bf16.msra.mxu0 0
      %766 = vmatprep.subr.bf16.mxu0 0
      %767 = vmatpush1.bf16.msra.mxu0 0
      %768 = vmatprep.subr.bf16.mxu0 0
      %769 = vmatpush1.bf16.msra.mxu0 0
      %770 = vmatprep.subr.bf16.mxu0 0
      %771 = vmatpush1.bf16.msra.mxu0 0
      %772 = vmatprep.subr.bf16.mxu0 0
      %773 = vmatpush1.bf16.msra.mxu0 0
      %774 = vmatprep.subr.bf16.mxu0 0
      %775 = vmatpush1.bf16.msra.mxu0 0
      %776 = vmatprep.subr.bf16.mxu0 0
      %777 = vmatpush1.bf16.msra.mxu0 0
      %778 = vmatprep.mubr.bf16.mxu0 0
      %779 = vmatmul.mubr.bf16.gmra.mrb[0].mxu0 %v741
      %v780 = vpop.f32.mrb[0].mxu0
      %v781 = vadd.f32 0.0, %v780
      %v782 = vpop.f32.mrb[0].mxu0
      %v783 = vpop.f32.mrb[0].mxu0
      %v784 = vadd.f32 0.0, %v783
      %v785 = vpop.f32.mrb[0].mxu0
      %786 = vdwg.mxu0
      %v787 = vadd.f32 %v725, %v781
      %v788 = vadd.f32 %v728, %v784
      %v789 = vld [vmem:[%s569] sm:$0xf]
      %v790 = vld [vmem:[%s569 + $0x4] sm:$0xf]
      %s791 = scalar_lea.vmem %s604, 12
      %v792 = vld [vmem:[%s791] sm:$0xf]
      %v795 = vunpack.c.l.b16 %v789
      %v796 = vunpack.c.l.b16 %v790
      %v797 = vpack.c.b16 %v796, %v795
      %v799 = vsel %vm630, %v797, 0
      %v802 = vsel %vm634, %v792, 0
      %804 = vmatprep.subr.bf16.mxu0 0
      %805 = vmatpush1.bf16.msra.mxu0 %v802
      %806 = vmatprep.subr.bf16.mxu0 0
      %807 = vmatpush1.bf16.msra.mxu0 0
      %808 = vmatprep.subr.bf16.mxu0 0
      %809 = vmatpush1.bf16.msra.mxu0 0
      %810 = vmatprep.subr.bf16.mxu0 0
      %811 = vmatpush1.bf16.msra.mxu0 0
      %812 = vmatprep.subr.bf16.mxu0 0
      %813 = vmatpush1.bf16.msra.mxu0 0
      %814 = vmatprep.subr.bf16.mxu0 0
      %815 = vmatpush1.bf16.msra.mxu0 0
      %816 = vmatprep.subr.bf16.mxu0 0
      %817 = vmatpush1.bf16.msra.mxu0 0
      %818 = vmatprep.subr.bf16.mxu0 0
      %819 = vmatpush1.bf16.msra.mxu0 0
      %820 = vmatprep.subr.bf16.mxu0 0
      %821 = vmatpush1.bf16.msra.mxu0 0
      %822 = vmatprep.subr.bf16.mxu0 0
      %823 = vmatpush1.bf16.msra.mxu0 0
      %824 = vmatprep.subr.bf16.mxu0 0
      %825 = vmatpush1.bf16.msra.mxu0 0
      %826 = vmatprep.subr.bf16.mxu0 0
      %827 = vmatpush1.bf16.msra.mxu0 0
      %828 = vmatprep.subr.bf16.mxu0 0
      %829 = vmatpush1.bf16.msra.mxu0 0
      %830 = vmatprep.subr.bf16.mxu0 0
      %831 = vmatpush1.bf16.msra.mxu0 0
      %832 = vmatprep.subr.bf16.mxu0 0
      %833 = vmatpush1.bf16.msra.mxu0 0
      %834 = vmatprep.subr.bf16.mxu0 0
      %835 = vmatpush1.bf16.msra.mxu0 0
      %836 = vmatprep.mubr.bf16.mxu0 0
      %837 = vmatmul.mubr.bf16.gmra.mrb[0].mxu0 %v799
      %v838 = vpop.f32.mrb[0].mxu0
      %v839 = vadd.f32 0.0, %v838
      %v840 = vpop.f32.mrb[0].mxu0
      %v841 = vpop.f32.mrb[0].mxu0
      %v842 = vadd.f32 0.0, %v841
      %v843 = vpop.f32.mrb[0].mxu0
      %844 = vdwg.mxu0
      %v845 = vadd.f32 %v787, %v839
      %v846 = vadd.f32 %v788, %v842
      %v847 = vld [vmem:[%s575] sm:$0xf]
      %v848 = vld [vmem:[%s575 + $0x4] sm:$0xf]
      %s849 = scalar_lea.vmem %s604, 16
      %v850 = vld [vmem:[%s849] sm:$0xf]
      %v853 = vunpack.c.l.b16 %v847
      %v854 = vunpack.c.l.b16 %v848
      %v855 = vpack.c.b16 %v854, %v853
      %v857 = vsel %vm630, %v855, 0
      %v860 = vsel %vm634, %v850, 0
      %862 = vmatprep.subr.bf16.mxu0 0
      %863 = vmatpush1.bf16.msra.mxu0 %v860
      %864 = vmatprep.subr.bf16.mxu0 0
      %865 = vmatpush1.bf16.msra.mxu0 0
      %866 = vmatprep.subr.bf16.mxu0 0
      %867 = vmatpush1.bf16.msra.mxu0 0
      %868 = vmatprep.subr.bf16.mxu0 0
      %869 = vmatpush1.bf16.msra.mxu0 0
      %870 = vmatprep.subr.bf16.mxu0 0
      %871 = vmatpush1.bf16.msra.mxu0 0
      %872 = vmatprep.subr.bf16.mxu0 0
      %873 = vmatpush1.bf16.msra.mxu0 0
      %874 = vmatprep.subr.bf16.mxu0 0
      %875 = vmatpush1.bf16.msra.mxu0 0
      %876 = vmatprep.subr.bf16.mxu0 0
      %877 = vmatpush1.bf16.msra.mxu0 0
      %878 = vmatprep.subr.bf16.mxu0 0
      %879 = vmatpush1.bf16.msra.mxu0 0
      %880 = vmatprep.subr.bf16.mxu0 0
      %881 = vmatpush1.bf16.msra.mxu0 0
      %882 = vmatprep.subr.bf16.mxu0 0
      %883 = vmatpush1.bf16.msra.mxu0 0
      %884 = vmatprep.subr.bf16.mxu0 0
      %885 = vmatpush1.bf16.msra.mxu0 0
      %886 = vmatprep.subr.bf16.mxu0 0
      %887 = vmatpush1.bf16.msra.mxu0 0
      %888 = vmatprep.subr.bf16.mxu0 0
      %889 = vmatpush1.bf16.msra.mxu0 0
      %890 = vmatprep.subr.bf16.mxu0 0
      %891 = vmatpush1.bf16.msra.mxu0 0
      %892 = vmatprep.subr.bf16.mxu0 0
      %893 = vmatpush1.bf16.msra.mxu0 0
      %894 = vmatprep.mubr.bf16.mxu0 0
      %895 = vmatmul.mubr.bf16.gmra.mrb[0].mxu0 %v857
      %v896 = vpop.f32.mrb[0].mxu0
      %v897 = vadd.f32 0.0, %v896
      %v898 = vpop.f32.mrb[0].mxu0
      %v899 = vpop.f32.mrb[0].mxu0
      %v900 = vadd.f32 0.0, %v899
      %v901 = vpop.f32.mrb[0].mxu0
      %902 = vdwg.mxu0
      %v903 = vadd.f32 %v845, %v897
      %v904 = vadd.f32 %v846, %v900
      %v905 = vld [vmem:[%s581] sm:$0xf]
      %v906 = vld [vmem:[%s581 + $0x4] sm:$0xf]
      %s907 = scalar_lea.vmem %s604, 20
      %v908 = vld [vmem:[%s907] sm:$0xf]
      %v911 = vunpack.c.l.b16 %v905
      %v912 = vunpack.c.l.b16 %v906
      %v913 = vpack.c.b16 %v912, %v911
      %v915 = vsel %vm630, %v913, 0
      %v918 = vsel %vm634, %v908, 0
      %920 = vmatprep.subr.bf16.mxu0 0
      %921 = vmatpush1.bf16.msra.mxu0 %v918
      %922 = vmatprep.subr.bf16.mxu0 0
      %923 = vmatpush1.bf16.msra.mxu0 0
      %924 = vmatprep.subr.bf16.mxu0 0
      %925 = vmatpush1.bf16.msra.mxu0 0
      %926 = vmatprep.subr.bf16.mxu0 0
      %927 = vmatpush1.bf16.msra.mxu0 0
      %928 = vmatprep.subr.bf16.mxu0 0
      %929 = vmatpush1.bf16.msra.mxu0 0
      %930 = vmatprep.subr.bf16.mxu0 0
      %931 = vmatpush1.bf16.msra.mxu0 0
      %932 = vmatprep.subr.bf16.mxu0 0
      %933 = vmatpush1.bf16.msra.mxu0 0
      %934 = vmatprep.subr.bf16.mxu0 0
      %935 = vmatpush1.bf16.msra.mxu0 0
      %936 = vmatprep.subr.bf16.mxu0 0
      %937 = vmatpush1.bf16.msra.mxu0 0
      %938 = vmatprep.subr.bf16.mxu0 0
      %939 = vmatpush1.bf16.msra.mxu0 0
      %940 = vmatprep.subr.bf16.mxu0 0
      %941 = vmatpush1.bf16.msra.mxu0 0
      %942 = vmatprep.subr.bf16.mxu0 0
      %943 = vmatpush1.bf16.msra.mxu0 0
      %944 = vmatprep.subr.bf16.mxu0 0
      %945 = vmatpush1.bf16.msra.mxu0 0
      %946 = vmatprep.subr.bf16.mxu0 0
      %947 = vmatpush1.bf16.msra.mxu0 0
      %948 = vmatprep.subr.bf16.mxu0 0
      %949 = vmatpush1.bf16.msra.mxu0 0
      %950 = vmatprep.subr.bf16.mxu0 0
      %951 = vmatpush1.bf16.msra.mxu0 0
      %952 = vmatprep.mubr.bf16.mxu0 0
      %953 = vmatmul.mubr.bf16.gmra.mrb[0].mxu0 %v915
      %v954 = vpop.f32.mrb[0].mxu0
      %v955 = vadd.f32 0.0, %v954
      %v956 = vpop.f32.mrb[0].mxu0
      %v957 = vpop.f32.mrb[0].mxu0
      %v958 = vadd.f32 0.0, %v957
      %v959 = vpop.f32.mrb[0].mxu0
      %960 = vdwg.mxu0
      %v961 = vadd.f32 %v903, %v955
      %v962 = vadd.f32 %v904, %v958
      %v963 = vld [vmem:[%s587] sm:$0xf]
      %v964 = vld [vmem:[%s587 + $0x4] sm:$0xf]
      %s965 = scalar_lea.vmem %s604, 24
      %v966 = vld [vmem:[%s965] sm:$0xf]
      %v969 = vunpack.c.l.b16 %v963
      %v970 = vunpack.c.l.b16 %v964
      %v971 = vpack.c.b16 %v970, %v969
      %v973 = vsel %vm630, %v971, 0
      %v976 = vsel %vm634, %v966, 0
      %978 = vmatprep.subr.bf16.mxu0 0
      %979 = vmatpush1.bf16.msra.mxu0 %v976
      %980 = vmatprep.subr.bf16.mxu0 0
      %981 = vmatpush1.bf16.msra.mxu0 0
      %982 = vmatprep.subr.bf16.mxu0 0
      %983 = vmatpush1.bf16.msra.mxu0 0
      %984 = vmatprep.subr.bf16.mxu0 0
      %985 = vmatpush1.bf16.msra.mxu0 0
      %986 = vmatprep.subr.bf16.mxu0 0
      %987 = vmatpush1.bf16.msra.mxu0 0
      %988 = vmatprep.subr.bf16.mxu0 0
      %989 = vmatpush1.bf16.msra.mxu0 0
      %990 = vmatprep.subr.bf16.mxu0 0
      %991 = vmatpush1.bf16.msra.mxu0 0
      %992 = vmatprep.subr.bf16.mxu0 0
      %993 = vmatpush1.bf16.msra.mxu0 0
      %994 = vmatprep.subr.bf16.mxu0 0
      %995 = vmatpush1.bf16.msra.mxu0 0
      %996 = vmatprep.subr.bf16.mxu0 0
      %997 = vmatpush1.bf16.msra.mxu0 0
      %998 = vmatprep.subr.bf16.mxu0 0
      %999 = vmatpush1.bf16.msra.mxu0 0
      %1000 = vmatprep.subr.bf16.mxu0 0
      %1001 = vmatpush1.bf16.msra.mxu0 0
      %1002 = vmatprep.subr.bf16.mxu0 0
      %1003 = vmatpush1.bf16.msra.mxu0 0
      %1004 = vmatprep.subr.bf16.mxu0 0
      %1005 = vmatpush1.bf16.msra.mxu0 0
      %1006 = vmatprep.subr.bf16.mxu0 0
      %1007 = vmatpush1.bf16.msra.mxu0 0
      %1008 = vmatprep.subr.bf16.mxu0 0
      %1009 = vmatpush1.bf16.msra.mxu0 0
      %1010 = vmatprep.mubr.bf16.mxu0 0
      %1011 = vmatmul.mubr.bf16.gmra.mrb[0].mxu0 %v973
      %v1012 = vpop.f32.mrb[0].mxu0
      %v1013 = vadd.f32 0.0, %v1012
      %v1014 = vpop.f32.mrb[0].mxu0
      %v1015 = vpop.f32.mrb[0].mxu0
      %v1016 = vadd.f32 0.0, %v1015
      %v1017 = vpop.f32.mrb[0].mxu0
      %1018 = vdwg.mxu0
      %v1019 = vadd.f32 %v961, %v1013
      %v1020 = vadd.f32 %v962, %v1016
      %v1021 = vld [vmem:[%s593] sm:$0xf]
      %v1022 = vld [vmem:[%s593 + $0x4] sm:$0xf]
      %s1023 = scalar_lea.vmem %s604, 28
      %v1024 = vld [vmem:[%s1023] sm:$0xf]
      %v1027 = vunpack.c.l.b16 %v1021
      %v1028 = vunpack.c.l.b16 %v1022
      %v1029 = vpack.c.b16 %v1028, %v1027
      %v1031 = vsel %vm630, %v1029, 0
      %v1034 = vsel %vm634, %v1024, 0
      %1036 = vmatprep.subr.bf16.mxu0 0
      %1037 = vmatpush1.bf16.msra.mxu0 %v1034
      %1038 = vmatprep.subr.bf16.mxu0 0
      %1039 = vmatpush1.bf16.msra.mxu0 0
      %1040 = vmatprep.subr.bf16.mxu0 0
      %1041 = vmatpush1.bf16.msra.mxu0 0
      %1042 = vmatprep.subr.bf16.mxu0 0
      %1043 = vmatpush1.bf16.msra.mxu0 0
      %1044 = vmatprep.subr.bf16.mxu0 0
      %1045 = vmatpush1.bf16.msra.mxu0 0
      %1046 = vmatprep.subr.bf16.mxu0 0
      %1047 = vmatpush1.bf16.msra.mxu0 0
      %1048 = vmatprep.subr.bf16.mxu0 0
      %1049 = vmatpush1.bf16.msra.mxu0 0
      %1050 = vmatprep.subr.bf16.mxu0 0
      %1051 = vmatpush1.bf16.msra.mxu0 0
      %1052 = vmatprep.subr.bf16.mxu0 0
      %1053 = vmatpush1.bf16.msra.mxu0 0
      %1054 = vmatprep.subr.bf16.mxu0 0
      %1055 = vmatpush1.bf16.msra.mxu0 0
      %1056 = vmatprep.subr.bf16.mxu0 0
      %1057 = vmatpush1.bf16.msra.mxu0 0
      %1058 = vmatprep.subr.bf16.mxu0 0
      %1059 = vmatpush1.bf16.msra.mxu0 0
      %1060 = vmatprep.subr.bf16.mxu0 0
      %1061 = vmatpush1.bf16.msra.mxu0 0
      %1062 = vmatprep.subr.bf16.mxu0 0
      %1063 = vmatpush1.bf16.msra.mxu0 0
      %1064 = vmatprep.subr.bf16.mxu0 0
      %1065 = vmatpush1.bf16.msra.mxu0 0
      %1066 = vmatprep.subr.bf16.mxu0 0
      %1067 = vmatpush1.bf16.msra.mxu0 0
      %1068 = vmatprep.mubr.bf16.mxu0 0
      %1069 = vmatmul.mubr.bf16.gmra.mrb[0].mxu0 %v1031
      %v1070 = vpop.f32.mrb[0].mxu0
      %v1071 = vadd.f32 0.0, %v1070
      %v1072 = vpop.f32.mrb[0].mxu0
      %v1073 = vpop.f32.mrb[0].mxu0
      %v1074 = vadd.f32 0.0, %v1073
      %v1075 = vpop.f32.mrb[0].mxu0
      %1076 = vdwg.mxu0
      %v1077 = vadd.f32 %v1019, %v1071
      %v1078 = vadd.f32 %v1020, %v1074
      %v1079 = vld [vmem:[%s599] sm:$0xf]
      %v1080 = vld [vmem:[%s599 + $0x4] sm:$0xf]
      %s1081 = scalar_lea.vmem %s604, 32
      %v1082 = vld [vmem:[%s1081] sm:$0xf]
      %v1085 = vunpack.c.l.b16 %v1079
      %v1086 = vunpack.c.l.b16 %v1080
      %v1087 = vpack.c.b16 %v1086, %v1085
      %v1089 = vsel %vm630, %v1087, 0
      %v1092 = vsel %vm634, %v1082, 0
      %1094 = vmatprep.subr.bf16.mxu0 0
      %1095 = vmatpush1.bf16.msra.mxu0 %v1092
      %1096 = vmatprep.subr.bf16.mxu0 0
      %1097 = vmatpush1.bf16.msra.mxu0 0
      %1098 = vmatprep.subr.bf16.mxu0 0
      %1099 = vmatpush1.bf16.msra.mxu0 0
      %1100 = vmatprep.subr.bf16.mxu0 0
      %1101 = vmatpush1.bf16.msra.mxu0 0
      %1102 = vmatprep.subr.bf16.mxu0 0
      %1103 = vmatpush1.bf16.msra.mxu0 0
      %1104 = vmatprep.subr.bf16.mxu0 0
      %1105 = vmatpush1.bf16.msra.mxu0 0
      %1106 = vmatprep.subr.bf16.mxu0 0
      %1107 = vmatpush1.bf16.msra.mxu0 0
      %1108 = vmatprep.subr.bf16.mxu0 0
      %1109 = vmatpush1.bf16.msra.mxu0 0
      %1110 = vmatprep.subr.bf16.mxu0 0
      %1111 = vmatpush1.bf16.msra.mxu0 0
      %1112 = vmatprep.subr.bf16.mxu0 0
      %1113 = vmatpush1.bf16.msra.mxu0 0
      %1114 = vmatprep.subr.bf16.mxu0 0
      %1115 = vmatpush1.bf16.msra.mxu0 0
      %1116 = vmatprep.subr.bf16.mxu0 0
      %1117 = vmatpush1.bf16.msra.mxu0 0
      %1118 = vmatprep.subr.bf16.mxu0 0
      %1119 = vmatpush1.bf16.msra.mxu0 0
      %1120 = vmatprep.subr.bf16.mxu0 0
      %1121 = vmatpush1.bf16.msra.mxu0 0
      %1122 = vmatprep.subr.bf16.mxu0 0
      %1123 = vmatpush1.bf16.msra.mxu0 0
      %1124 = vmatprep.subr.bf16.mxu0 0
      %1125 = vmatpush1.bf16.msra.mxu0 0
      %1126 = vmatprep.mubr.bf16.mxu0 0
      %1127 = vmatmul.mubr.bf16.gmra.mrb[0].mxu0 %v1089
      %v1128 = vpop.f32.mrb[0].mxu0
      %v1129 = vadd.f32 0.0, %v1128
      %v1130 = vpop.f32.mrb[0].mxu0
      %v1131 = vpop.f32.mrb[0].mxu0
      %v1132 = vadd.f32 0.0, %v1131
      %v1133 = vpop.f32.mrb[0].mxu0
      %1134 = vdwg.mxu0
      %v1135 = vadd.f32 %v1077, %v1129
      %v1136 = vadd.f32 %v1078, %v1132
      %v1137 = vld [vmem:[%s607] sm:$0x1]
      %v1139 = vlaneseq
      %v1140 = vshrl.u32 %v1139, 7
      %v1141 = vsub.s32 0, %v1140
      %v1142 = vrot.slane %v1137, %v1141
      %v1144 = vadd.f32 %v1135, %v1142
      %v1145 = vadd.f32 %v1136, %v1142
      %v1146 = vmax.f32 %v1144, 0.0
      %v1147 = vmax.f32 %v1145, 0.0
      %v1148 = vpack.c.bf16 %v1147, %v1146
      %v1150 = vunpack.c.l.b16 %v1148
      %v1151 = vunpack.c.h.b16 %v1148
      %v1152 = vpack.c.b16 %v1150, %v1150
      %v1153 = vpack.c.b16 %v1151, %v1151
      %vm1156 = vcmask 60416
      %1157 = vst.msk [vmem:[%s615] sm:$0xf] %vm1156, %v1152
      %1158 = vst.msk [vmem:[%s615 + $0x4] sm:$0xf] %vm1156, %v1153
      %s1159 = smul.u32 2, %s26
      %p1160 = scmp.lt.s32.totalorder %s1159, 3
      %s1161 = scalar_select %p1160, %s1159, 3
      %p1162 = scmp.lt.s32.totalorder %s27, 0
      %s1163 = scalar_select %p1162, %s27, 0
      %s1164 = sadd.s32 %s1163, %s1161
      %s1165 = smul.addr %s1164, 4
      %s1166 = scalar_lea.vmem %s11, %s1165
      // Predicated region
      $region65: #{_lambda_.26} parent=63 // pred_check
        %p1167 = pneg %p340
      $region66: #{_lambda_.26} parent=63 // pred_check_branch
        %1169 = sbr.rel (%p1167) target = $region68
      $region67: #{_lambda_.26} parent=63 // pred_region
        %s1170 = smul.u32 2, %s26
      $region68: #{_lambda_.26} parent=63 // pred_fallthru
        _
    $region64: #{_lambda_.26} parent=5 // pred_fallthru
      _
    %p1171 = scmp.le.s32.totalorder 2, %s17
    // Predicated region
    $region69: #{_lambda_.26} parent=5 // pred_check
      %p1172 = pneg %p1171
    $region70: #{_lambda_.26} parent=5 // pred_check_branch
      %1174 = sbr.rel (%p1172) target = $region72
    $region71: #{_lambda_.26} parent=5 // pred_region
      %s1175 = ssub.s32 %s17, 2
      // Predicated region
      $region73: #{_lambda_.26} parent=71 // pred_check
        %p1176 = pneg %p346
      $region74: #{_lambda_.26} parent=71 // pred_check_branch
        %1178 = sbr.rel (%p1176) target = $region76
      $region75: #{_lambda_.26} parent=71 // pred_region
        %s1179 = smul.u32 2, %s28
        %p1180 = scmp.lt.s32.totalorder %s1179, 3
        %s1181 = scalar_select %p1180, %s1179, 3
        %p1182 = scmp.lt.s32.totalorder %s29, 0
        %s1183 = scalar_select %p1182, %s29, 0
        %s1184 = sadd.s32 %s1183, %s1181
        %s1185 = smul.addr %s1184, 4
        %s1186 = scalar_lea.vmem %s11, %s1185
      $region76: #{_lambda_.26} parent=71 // pred_fallthru
        _
    $region72: #{_lambda_.26} parent=5 // pred_fallthru
      _
  $region6: #{_lambda_.26} parent=0 // loop_footer
    %s21 = sadd.s32 1, %s17
  $region7: #{_lambda_.26} parent=0 // loop_footer_branch
    %16 = sbr.rel target = $region3
  $region8: #{_lambda_.26} parent=0 // loop_exit
    _

// kernel: _lambda_.23
$region0: #{_lambda_.23}
  #allocation0 [shape = 'u32[]', space=smem, size = 0x4, offset = 0x4, fixed_abs, tag = 'smem constant byte address 0x4 - core index']
  #allocation1 [shape = 'u32[144,128]{1,0:T(1,128)}', space=vmem, size = 0x12000, scoped, tag = 'internal scratch']
  %s0 = inlined_call_operand.vmem [shape: bf16[512,3], index: 0, kind: input, shape index: {}]
  %s1 = inlined_call_operand.vmem [shape: bf16[512,3], index: 1, kind: input, shape index: {}]
  %s2 = inlined_call_operand.vmem [shape: bf16[512,3], index: 2, kind: input, shape index: {}]
  %s3 = inlined_call_operand.vmem [shape: bf16[512,3], index: 3, kind: input, shape index: {}]
  %s4 = inlined_call_operand.vmem [shape: bf16[512,3], index: 4, kind: input, shape index: {}]
  %s5 = inlined_call_operand.vmem [shape: bf16[512,3], index: 5, kind: input, shape index: {}]
  %s6 = inlined_call_operand.vmem [shape: bf16[512,3], index: 6, kind: input, shape index: {}]
  %s7 = inlined_call_operand.vmem [shape: bf16[512,3], index: 7, kind: input, shape index: {}]
  %s8 = inlined_call_operand.vmem [shape: bf16[512,3], index: 8, kind: input, shape index: {}]
  %s9 = inlined_call_operand.vmem [shape: bf16[9,3,8], index: 9, kind: input, shape index: {}]
  %s10 = inlined_call_operand.vmem [shape: f32[1,8], index: 10, kind: input, shape index: {}]
  %s11 = inlined_call_operand.vmem [shape: bf16[512,8], index: 11, kind: output, shape index: {}]
  %s12 = sld [smem:[#allocation0]]
  $region77: #{_lambda_.23} parent=0
    _
  %s14 = ssub.s32 1, %s12
  %s15 = scalar_select 0, %s14, %s12
  loop: start=0, step=1, limit=4
  $region2: #{_lambda_.23} parent=0 // loop_pre_header
    _
  $region3: #{_lambda_.23} parent=0 // loop_header
    %s17 = sphi 0, %s21
    %p18 = scmp.ge.s32.totalorder %s17, 4
    %s24 = sphi 0, %s36
    %s25 = sphi 0, %s32
    %s26 = sphi 0, %s24
    %s27 = sphi 0, %s25
    %s28 = sphi 0, %s26
    %s29 = sphi 0, %s27
    %s39 = sphi 0, %s41
    %s42 = sphi 0, %s39
    %s43 = sphi 0, %s42
    %s59 = sphi 0, %s43
    %s65 = sphi 0, %s67
    %s68 = sphi 0, %s65
    %s69 = sphi 0, %s68
    %s85 = sphi 0, %s69
    %s91 = sphi 0, %s93
    %s94 = sphi 0, %s91
    %s95 = sphi 0, %s94
    %s111 = sphi 0, %s95
    %s117 = sphi 0, %s119
    %s120 = sphi 0, %s117
    %s121 = sphi 0, %s120
    %s137 = sphi 0, %s121
    %s143 = sphi 0, %s145
    %s146 = sphi 0, %s143
    %s147 = sphi 0, %s146
    %s163 = sphi 0, %s147
    %s169 = sphi 0, %s171
    %s172 = sphi 0, %s169
    %s173 = sphi 0, %s172
    %s189 = sphi 0, %s173
    %s195 = sphi 0, %s197
    %s198 = sphi 0, %s195
    %s199 = sphi 0, %s198
    %s215 = sphi 0, %s199
    %s221 = sphi 0, %s223
    %s224 = sphi 0, %s221
    %s225 = sphi 0, %s224
    %s241 = sphi 0, %s225
    %s247 = sphi 0, %s249
    %s250 = sphi 0, %s247
    %s251 = sphi 0, %s250
    %s267 = sphi 0, %s251
    %s273 = sphi 0, %s275
    %s276 = sphi 0, %s273
    %s277 = sphi 0, %s276
    %s293 = sphi 0, %s277
    %s299 = sphi 0, %s301
    %s302 = sphi 0, %s299
    %s303 = sphi 0, %s302
    %s319 = sphi 0, %s303
    %s327 = sphi 0, %s329
    %s330 = sphi 0, %s327
    %s331 = sphi 0, %s330
    %s347 = sphi 0, %s331
  $region4: #{_lambda_.23} parent=0 // loop_header_branch
    %20 = sbr.rel (%p18) target = $region8
  $region5: #{_lambda_.23} parent=0 // loop_body
    %s22 = ssub.s32 %s17, 1
    %s23 = ssub.s32 %s17, 2
    %s30 = sadd.s32 1, %s25
    %p31 = scmp.ge.s32.totalorder %s30, 1
    %s32 = scalar_select %p31, 0, %s30
    %s33 = sadd.s32 1, %s24
    %s34 = scalar_select %p31, %s33, %s24
    %p35 = scmp.ge.s32.totalorder %s34, 2
    %s36 = scalar_select %p35, 0, %s34
    %s37 = ssub.s32 %s24, %s36
    %p38 = scmp.eq.s32.totalorder %s37, 0
    %s40 = sadd.s32 %s39, 1
    %s41 = scalar_select %p38, %s39, %s40
    %p44 = pneg %p38
    %p45 = scmp.eq.s32.totalorder %s17, 1
    %p46 = por %p44, %p45
    %p47 = scmp.ne.s32.totalorder %s39, %s42
    %p48 = scmp.eq.s32.totalorder %s17, 0
    %p49 = por %p47, %p48
    %p50 = scmp.ne.s32.totalorder %s39, %s42
    %p51 = scmp.eq.s32.totalorder %s22, 1
    %p52 = por %p50, %p51
    %p53 = scmp.ne.s32.totalorder %s42, %s43
    %p54 = scmp.eq.s32.totalorder %s22, 0
    %p55 = por %p53, %p54
    %p56 = scmp.ne.s32.totalorder %s42, %s43
    %p57 = scmp.eq.s32.totalorder %s23, 1
    %p58 = por %p56, %p57
    %p60 = scmp.ne.s32.totalorder %s43, %s59
    %p61 = scmp.eq.s32.totalorder %s23, 0
    %p62 = por %p60, %p61
    %s63 = ssub.s32 %s24, %s36
    %p64 = scmp.eq.s32.totalorder %s63, 0
    %s66 = sadd.s32 %s65, 1
    %s67 = scalar_select %p64, %s65, %s66
    %p70 = pneg %p64
    %p71 = scmp.eq.s32.totalorder %s17, 1
    %p72 = por %p70, %p71
    %p73 = scmp.ne.s32.totalorder %s65, %s68
    %p74 = scmp.eq.s32.totalorder %s17, 0
    %p75 = por %p73, %p74
    %p76 = scmp.ne.s32.totalorder %s65, %s68
    %p77 = scmp.eq.s32.totalorder %s22, 1
    %p78 = por %p76, %p77
    %p79 = scmp.ne.s32.totalorder %s68, %s69
    %p80 = scmp.eq.s32.totalorder %s22, 0
    %p81 = por %p79, %p80
    %p82 = scmp.ne.s32.totalorder %s68, %s69
    %p83 = scmp.eq.s32.totalorder %s23, 1
    %p84 = por %p82, %p83
    %p86 = scmp.ne.s32.totalorder %s69, %s85
    %p87 = scmp.eq.s32.totalorder %s23, 0
    %p88 = por %p86, %p87
    %s89 = ssub.s32 %s24, %s36
    %p90 = scmp.eq.s32.totalorder %s89, 0
    %s92 = sadd.s32 %s91, 1
    %s93 = scalar_select %p90, %s91, %s92
    %p96 = pneg %p90
    %p97 = scmp.eq.s32.totalorder %s17, 1
    %p98 = por %p96, %p97
    %p99 = scmp.ne.s32.totalorder %s91, %s94
    %p100 = scmp.eq.s32.totalorder %s17, 0
    %p101 = por %p99, %p100
    %p102 = scmp.ne.s32.totalorder %s91, %s94
    %p103 = scmp.eq.s32.totalorder %s22, 1
    %p104 = por %p102, %p103
    %p105 = scmp.ne.s32.totalorder %s94, %s95
    %p106 = scmp.eq.s32.totalorder %s22, 0
    %p107 = por %p105, %p106
    %p108 = scmp.ne.s32.totalorder %s94, %s95
    %p109 = scmp.eq.s32.totalorder %s23, 1
    %p110 = por %p108, %p109
    %p112 = scmp.ne.s32.totalorder %s95, %s111
    %p113 = scmp.eq.s32.totalorder %s23, 0
    %p114 = por %p112, %p113
    %s115 = ssub.s32 %s24, %s36
    %p116 = scmp.eq.s32.totalorder %s115, 0
    %s118 = sadd.s32 %s117, 1
    %s119 = scalar_select %p116, %s117, %s118
    %p122 = pneg %p116
    %p123 = scmp.eq.s32.totalorder %s17, 1
    %p124 = por %p122, %p123
    %p125 = scmp.ne.s32.totalorder %s117, %s120
    %p126 = scmp.eq.s32.totalorder %s17, 0
    %p127 = por %p125, %p126
    %p128 = scmp.ne.s32.totalorder %s117, %s120
    %p129 = scmp.eq.s32.totalorder %s22, 1
    %p130 = por %p128, %p129
    %p131 = scmp.ne.s32.totalorder %s120, %s121
    %p132 = scmp.eq.s32.totalorder %s22, 0
    %p133 = por %p131, %p132
    %p134 = scmp.ne.s32.totalorder %s120, %s121
    %p135 = scmp.eq.s32.totalorder %s23, 1
    %p136 = por %p134, %p135
    %p138 = scmp.ne.s32.totalorder %s121, %s137
    %p139 = scmp.eq.s32.totalorder %s23, 0
    %p140 = por %p138, %p139
    %s141 = ssub.s32 %s24, %s36
    %p142 = scmp.eq.s32.totalorder %s141, 0
    %s144 = sadd.s32 %s143, 1
    %s145 = scalar_select %p142, %s143, %s144
    %p148 = pneg %p142
    %p149 = scmp.eq.s32.totalorder %s17, 1
    %p150 = por %p148, %p149
    %p151 = scmp.ne.s32.totalorder %s143, %s146
    %p152 = scmp.eq.s32.totalorder %s17, 0
    %p153 = por %p151, %p152
    %p154 = scmp.ne.s32.totalorder %s143, %s146
    %p155 = scmp.eq.s32.totalorder %s22, 1
    %p156 = por %p154, %p155
    %p157 = scmp.ne.s32.totalorder %s146, %s147
    %p158 = scmp.eq.s32.totalorder %s22, 0
    %p159 = por %p157, %p158
    %p160 = scmp.ne.s32.totalorder %s146, %s147
    %p161 = scmp.eq.s32.totalorder %s23, 1
    %p162 = por %p160, %p161
    %p164 = scmp.ne.s32.totalorder %s147, %s163
    %p165 = scmp.eq.s32.totalorder %s23, 0
    %p166 = por %p164, %p165
    %s167 = ssub.s32 %s24, %s36
    %p168 = scmp.eq.s32.totalorder %s167, 0
    %s170 = sadd.s32 %s169, 1
    %s171 = scalar_select %p168, %s169, %s170
    %p174 = pneg %p168
    %p175 = scmp.eq.s32.totalorder %s17, 1
    %p176 = por %p174, %p175
    %p177 = scmp.ne.s32.totalorder %s169, %s172
    %p178 = scmp.eq.s32.totalorder %s17, 0
    %p179 = por %p177, %p178
    %p180 = scmp.ne.s32.totalorder %s169, %s172
    %p181 = scmp.eq.s32.totalorder %s22, 1
    %p182 = por %p180, %p181
    %p183 = scmp.ne.s32.totalorder %s172, %s173
    %p184 = scmp.eq.s32.totalorder %s22, 0
    %p185 = por %p183, %p184
    %p186 = scmp.ne.s32.totalorder %s172, %s173
    %p187 = scmp.eq.s32.totalorder %s23, 1
    %p188 = por %p186, %p187
    %p190 = scmp.ne.s32.totalorder %s173, %s189
    %p191 = scmp.eq.s32.totalorder %s23, 0
    %p192 = por %p190, %p191
    %s193 = ssub.s32 %s24, %s36
    %p194 = scmp.eq.s32.totalorder %s193, 0
    %s196 = sadd.s32 %s195, 1
    %s197 = scalar_select %p194, %s195, %s196
    %p200 = pneg %p194
    %p201 = scmp.eq.s32.totalorder %s17, 1
    %p202 = por %p200, %p201
    %p203 = scmp.ne.s32.totalorder %s195, %s198
    %p204 = scmp.eq.s32.totalorder %s17, 0
    %p205 = por %p203, %p204
    %p206 = scmp.ne.s32.totalorder %s195, %s198
    %p207 = scmp.eq.s32.totalorder %s22, 1
    %p208 = por %p206, %p207
    %p209 = scmp.ne.s32.totalorder %s198, %s199
    %p210 = scmp.eq.s32.totalorder %s22, 0
    %p211 = por %p209, %p210
    %p212 = scmp.ne.s32.totalorder %s198, %s199
    %p213 = scmp.eq.s32.totalorder %s23, 1
    %p214 = por %p212, %p213
    %p216 = scmp.ne.s32.totalorder %s199, %s215
    %p217 = scmp.eq.s32.totalorder %s23, 0
    %p218 = por %p216, %p217
    %s219 = ssub.s32 %s24, %s36
    %p220 = scmp.eq.s32.totalorder %s219, 0
    %s222 = sadd.s32 %s221, 1
    %s223 = scalar_select %p220, %s221, %s222
    %p226 = pneg %p220
    %p227 = scmp.eq.s32.totalorder %s17, 1
    %p228 = por %p226, %p227
    %p229 = scmp.ne.s32.totalorder %s221, %s224
    %p230 = scmp.eq.s32.totalorder %s17, 0
    %p231 = por %p229, %p230
    %p232 = scmp.ne.s32.totalorder %s221, %s224
    %p233 = scmp.eq.s32.totalorder %s22, 1
    %p234 = por %p232, %p233
    %p235 = scmp.ne.s32.totalorder %s224, %s225
    %p236 = scmp.eq.s32.totalorder %s22, 0
    %p237 = por %p235, %p236
    %p238 = scmp.ne.s32.totalorder %s224, %s225
    %p239 = scmp.eq.s32.totalorder %s23, 1
    %p240 = por %p238, %p239
    %p242 = scmp.ne.s32.totalorder %s225, %s241
    %p243 = scmp.eq.s32.totalorder %s23, 0
    %p244 = por %p242, %p243
    %s245 = ssub.s32 %s24, %s36
    %p246 = scmp.eq.s32.totalorder %s245, 0
    %s248 = sadd.s32 %s247, 1
    %s249 = scalar_select %p246, %s247, %s248
    %p252 = pneg %p246
    %p253 = scmp.eq.s32.totalorder %s17, 1
    %p254 = por %p252, %p253
    %p255 = scmp.ne.s32.totalorder %s247, %s250
    %p256 = scmp.eq.s32.totalorder %s17, 0
    %p257 = por %p255, %p256
    %p258 = scmp.ne.s32.totalorder %s247, %s250
    %p259 = scmp.eq.s32.totalorder %s22, 1
    %p260 = por %p258, %p259
    %p261 = scmp.ne.s32.totalorder %s250, %s251
    %p262 = scmp.eq.s32.totalorder %s22, 0
    %p263 = por %p261, %p262
    %p264 = scmp.ne.s32.totalorder %s250, %s251
    %p265 = scmp.eq.s32.totalorder %s23, 1
    %p266 = por %p264, %p265
    %p268 = scmp.ne.s32.totalorder %s251, %s267
    %p269 = scmp.eq.s32.totalorder %s23, 0
    %p270 = por %p268, %p269
    %s271 = ssub.s32 %s25, %s32
    %p272 = scmp.eq.s32.totalorder %s271, 0
    %s274 = sadd.s32 %s273, 1
    %s275 = scalar_select %p272, %s273, %s274
    %p278 = pneg %p272
    %p279 = scmp.eq.s32.totalorder %s17, 1
    %p280 = por %p278, %p279
    %p281 = scmp.ne.s32.totalorder %s273, %s276
    %p282 = scmp.eq.s32.totalorder %s17, 0
    %p283 = por %p281, %p282
    %p284 = scmp.ne.s32.totalorder %s273, %s276
    %p285 = scmp.eq.s32.totalorder %s22, 1
    %p286 = por %p284, %p285
    %p287 = scmp.ne.s32.totalorder %s276, %s277
    %p288 = scmp.eq.s32.totalorder %s22, 0
    %p289 = por %p287, %p288
    %p290 = scmp.ne.s32.totalorder %s276, %s277
    %p291 = scmp.eq.s32.totalorder %s23, 1
    %p292 = por %p290, %p291
    %p294 = scmp.ne.s32.totalorder %s277, %s293
    %p295 = scmp.eq.s32.totalorder %s23, 0
    %p296 = por %p294, %p295
    %s297 = ssub.s32 %s25, %s32
    %p298 = scmp.eq.s32.totalorder %s297, 0
    %s300 = sadd.s32 %s299, 1
    %s301 = scalar_select %p298, %s299, %s300
    %p304 = pneg %p298
    %p305 = scmp.eq.s32.totalorder %s17, 1
    %p306 = por %p304, %p305
    %p307 = scmp.ne.s32.totalorder %s299, %s302
    %p308 = scmp.eq.s32.totalorder %s17, 0
    %p309 = por %p307, %p308
    %p310 = scmp.ne.s32.totalorder %s299, %s302
    %p311 = scmp.eq.s32.totalorder %s22, 1
    %p312 = por %p310, %p311
    %p313 = scmp.ne.s32.totalorder %s302, %s303
    %p314 = scmp.eq.s32.totalorder %s22, 0
    %p315 = por %p313, %p314
    %p316 = scmp.ne.s32.totalorder %s302, %s303
    %p317 = scmp.eq.s32.totalorder %s23, 1
    %p318 = por %p316, %p317
    %p320 = scmp.ne.s32.totalorder %s303, %s319
    %p321 = scmp.eq.s32.totalorder %s23, 0
    %p322 = por %p320, %p321
    %s323 = ssub.s32 %s24, %s36
    %s324 = ssub.s32 %s25, %s32
    %s325 = sor.u32 %s323, %s324
    %p326 = scmp.eq.s32.totalorder %s325, 0
    %s328 = sadd.s32 %s327, 1
    %s329 = scalar_select %p326, %s327, %s328
    %p332 = pneg %p326
    %p333 = scmp.eq.s32.totalorder %s17, 1
    %p334 = por %p332, %p333
    %p335 = scmp.ne.s32.totalorder %s327, %s330
    %p336 = scmp.eq.s32.totalorder %s17, 0
    %p337 = por %p335, %p336
    %p338 = scmp.ne.s32.totalorder %s327, %s330
    %p339 = scmp.eq.s32.totalorder %s22, 1
    %p340 = por %p338, %p339
    %p341 = scmp.ne.s32.totalorder %s330, %s331
    %p342 = scmp.eq.s32.totalorder %s22, 0
    %p343 = por %p341, %p342
    %p344 = scmp.ne.s32.totalorder %s330, %s331
    %p345 = scmp.eq.s32.totalorder %s23, 1
    %p346 = por %p344, %p345
    %p348 = scmp.ne.s32.totalorder %s331, %s347
    %p349 = scmp.eq.s32.totalorder %s23, 0
    %p350 = por %p348, %p349
    %p351 = scmp.le.s32.totalorder 1, %s17
    %p352 = scmp.lt.s32.totalorder %s17, 3
    %p353 = pnand %p351, %p352
    %p354 = pneg %p353
    // Predicated region
    $region9: #{_lambda_.23} parent=5 // pred_check
      _
    $region10: #{_lambda_.23} parent=5 // pred_check_branch
      %356 = sbr.rel (%p353) target = $region12
    $region11: #{_lambda_.23} parent=5 // pred_region
      %s357 = ssub.s32 %s17, 1
      // Predicated region
      $region13: #{_lambda_.23} parent=11 // pred_check
        %p358 = pneg %p289
      $region14: #{_lambda_.23} parent=11 // pred_check_branch
        %360 = sbr.rel (%p358) target = $region16
      $region15: #{_lambda_.23} parent=11 // pred_region
        %p361 = scmp.lt.s32.totalorder %s27, 0
        %s362 = scalar_select %p361, %s27, 0
        %s363 = smul.addr %s362, 2
        %s364 = scalar_lea.vmem %s9, %s363
      $region16: #{_lambda_.23} parent=11 // pred_fallthru
        _
      // Predicated region
      $region17: #{_lambda_.23} parent=11 // pred_check
        %p365 = pneg %p315
      $region18: #{_lambda_.23} parent=11 // pred_check_branch
        %367 = sbr.rel (%p365) target = $region20
      $region19: #{_lambda_.23} parent=11 // pred_region
        %p368 = scmp.lt.s32.totalorder %s27, 0
        %s369 = scalar_select %p368, %s27, 0
        %s370 = scalar_lea.vmem %s10, %s369
      $region20: #{_lambda_.23} parent=11 // pred_fallthru
        _
    $region12: #{_lambda_.23} parent=5 // pred_fallthru
      _
    %p371 = scmp.lt.s32.totalorder %s17, 2
    // Predicated region
    $region21: #{_lambda_.23} parent=5 // pred_check
      %p372 = pneg %p371
    $region22: #{_lambda_.23} parent=5 // pred_check_branch
      %374 = sbr.rel (%p372) target = $region24
    $region23: #{_lambda_.23} parent=5 // pred_region
      // Predicated region
      $region25: #{_lambda_.23} parent=23 // pred_check
        %p375 = pneg %p49
      $region26: #{_lambda_.23} parent=23 // pred_check_branch
        %377 = sbr.rel (%p375) target = $region28
      $region27: #{_lambda_.23} parent=23 // pred_region
        %s378 = smul.u32 32, %s24
        %p379 = scmp.lt.s32.totalorder %s378, 63
        %s380 = scalar_select %p379, %s378, 63
        %s381 = smul.addr %s380, 4
        %s382 = scalar_lea.vmem %s0, %s381
        %s383 = smul.u32 32, %s24
      $region28: #{_lambda_.23} parent=23 // pred_fallthru
        _
      // Predicated region
      $region29: #{_lambda_.23} parent=23 // pred_check
        %p384 = pneg %p75
      $region30: #{_lambda_.23} parent=23 // pred_check_branch
        %386 = sbr.rel (%p384) target = $region32
      $region31: #{_lambda_.23} parent=23 // pred_region
        %s387 = smul.u32 32, %s24
        %p388 = scmp.lt.s32.totalorder %s387, 63
        %s389 = scalar_select %p388, %s387, 63
        %s390 = smul.addr %s389, 4
        %s391 = scalar_lea.vmem %s1, %s390
        %s392 = smul.u32 32, %s24
      $region32: #{_lambda_.23} parent=23 // pred_fallthru
        _
      // Predicated region
      $region33: #{_lambda_.23} parent=23 // pred_check
        %p393 = pneg %p101
      $region34: #{_lambda_.23} parent=23 // pred_check_branch
        %395 = sbr.rel (%p393) target = $region36
      $region35: #{_lambda_.23} parent=23 // pred_region
        %s396 = smul.u32 32, %s24
        %p397 = scmp.lt.s32.totalorder %s396, 63
        %s398 = scalar_select %p397, %s396, 63
        %s399 = smul.addr %s398, 4
        %s400 = scalar_lea.vmem %s2, %s399
        %s401 = smul.u32 32, %s24
      $region36: #{_lambda_.23} parent=23 // pred_fallthru
        _
      // Predicated region
      $region37: #{_lambda_.23} parent=23 // pred_check
        %p402 = pneg %p127
      $region38: #{_lambda_.23} parent=23 // pred_check_branch
        %404 = sbr.rel (%p402) target = $region40
      $region39: #{_lambda_.23} parent=23 // pred_region
        %s405 = smul.u32 32, %s24
        %p406 = scmp.lt.s32.totalorder %s405, 63
        %s407 = scalar_select %p406, %s405, 63
        %s408 = smul.addr %s407, 4
        %s409 = scalar_lea.vmem %s3, %s408
        %s410 = smul.u32 32, %s24
      $region40: #{_lambda_.23} parent=23 // pred_fallthru
        _
      // Predicated region
      $region41: #{_lambda_.23} parent=23 // pred_check
        %p411 = pneg %p153
      $region42: #{_lambda_.23} parent=23 // pred_check_branch
        %413 = sbr.rel (%p411) target = $region44
      $region43: #{_lambda_.23} parent=23 // pred_region
        %s414 = smul.u32 32, %s24
        %p415 = scmp.lt.s32.totalorder %s414, 63
        %s416 = scalar_select %p415, %s414, 63
        %s417 = smul.addr %s416, 4
        %s418 = scalar_lea.vmem %s4, %s417
        %s419 = smul.u32 32, %s24
      $region44: #{_lambda_.23} parent=23 // pred_fallthru
        _
      // Predicated region
      $region45: #{_lambda_.23} parent=23 // pred_check
        %p420 = pneg %p179
      $region46: #{_lambda_.23} parent=23 // pred_check_branch
        %422 = sbr.rel (%p420) target = $region48
      $region47: #{_lambda_.23} parent=23 // pred_region
        %s423 = smul.u32 32, %s24
        %p424 = scmp.lt.s32.totalorder %s423, 63
        %s425 = scalar_select %p424, %s423, 63
        %s426 = smul.addr %s425, 4
        %s427 = scalar_lea.vmem %s5, %s426
        %s428 = smul.u32 32, %s24
      $region48: #{_lambda_.23} parent=23 // pred_fallthru
        _
      // Predicated region
      $region49: #{_lambda_.23} parent=23 // pred_check
        %p429 = pneg %p205
      $region50: #{_lambda_.23} parent=23 // pred_check_branch
        %431 = sbr.rel (%p429) target = $region52
      $region51: #{_lambda_.23} parent=23 // pred_region
        %s432 = smul.u32 32, %s24
        %p433 = scmp.lt.s32.totalorder %s432, 63
        %s434 = scalar_select %p433, %s432, 63
        %s435 = smul.addr %s434, 4
        %s436 = scalar_lea.vmem %s6, %s435
        %s437 = smul.u32 32, %s24
      $region52: #{_lambda_.23} parent=23 // pred_fallthru
        _
      // Predicated region
      $region53: #{_lambda_.23} parent=23 // pred_check
        %p438 = pneg %p231
      $region54: #{_lambda_.23} parent=23 // pred_check_branch
        %440 = sbr.rel (%p438) target = $region56
      $region55: #{_lambda_.23} parent=23 // pred_region
        %s441 = smul.u32 32, %s24
        %p442 = scmp.lt.s32.totalorder %s441, 63
        %s443 = scalar_select %p442, %s441, 63
        %s444 = smul.addr %s443, 4
        %s445 = scalar_lea.vmem %s7, %s444
        %s446 = smul.u32 32, %s24
      $region56: #{_lambda_.23} parent=23 // pred_fallthru
        _
      // Predicated region
      $region57: #{_lambda_.23} parent=23 // pred_check
        %p447 = pneg %p257
      $region58: #{_lambda_.23} parent=23 // pred_check_branch
        %449 = sbr.rel (%p447) target = $region60
      $region59: #{_lambda_.23} parent=23 // pred_region
        %s450 = smul.u32 32, %s24
        %p451 = scmp.lt.s32.totalorder %s450, 63
        %s452 = scalar_select %p451, %s450, 63
        %s453 = smul.addr %s452, 4
        %s454 = scalar_lea.vmem %s8, %s453
        %s455 = smul.u32 32, %s24
      $region60: #{_lambda_.23} parent=23 // pred_fallthru
        _
    $region24: #{_lambda_.23} parent=5 // pred_fallthru
      _
    %p456 = scmp.le.s32.totalorder 1, %s17
    %p457 = scmp.lt.s32.totalorder %s17, 3
    %p458 = pnand %p456, %p457
    %p459 = pneg %p458
    // Predicated region
    $region61: #{_lambda_.23} parent=5 // pred_check
      _
    $region62: #{_lambda_.23} parent=5 // pred_check_branch
      %461 = sbr.rel (%p458) target = $region64
    $region63: #{_lambda_.23} parent=5 // pred_region
      %s462 = ssub.s32 %s17, 1
      %s463 = smul.u32 32, %s26
      %p464 = scmp.lt.s32.totalorder %s463, 63
      %s465 = scalar_select %p464, %s463, 63
      %s466 = smul.addr %s465, 4
      %s467 = scalar_lea.vmem %s0, %s466
      %p468 = pneg %p55
      %p469 = pneg %p52
      %s470 = smul.u32 32, %s26
      %p471 = scmp.lt.s32.totalorder %s470, 63
      %s472 = scalar_select %p471, %s470, 63
      %s473 = smul.addr %s472, 4
      %s474 = scalar_lea.vmem %s1, %s473
      %p475 = pneg %p81
      %p476 = pneg %p78
      %s477 = smul.u32 32, %s26
      %p478 = scmp.lt.s32.totalorder %s477, 63
      %s479 = scalar_select %p478, %s477, 63
      %s480 = smul.addr %s479, 4
      %s481 = scalar_lea.vmem %s2, %s480
      %p482 = pneg %p107
      %p483 = pneg %p104
      %s484 = smul.u32 32, %s26
      %p485 = scmp.lt.s32.totalorder %s484, 63
      %s486 = scalar_select %p485, %s484, 63
      %s487 = smul.addr %s486, 4
      %s488 = scalar_lea.vmem %s3, %s487
      %p489 = pneg %p133
      %p490 = pneg %p130
      %s491 = smul.u32 32, %s26
      %p492 = scmp.lt.s32.totalorder %s491, 63
      %s493 = scalar_select %p492, %s491, 63
      %s494 = smul.addr %s493, 4
      %s495 = scalar_lea.vmem %s4, %s494
      %p496 = pneg %p159
      %p497 = pneg %p156
      %s498 = smul.u32 32, %s26
      %p499 = scmp.lt.s32.totalorder %s498, 63
      %s500 = scalar_select %p499, %s498, 63
      %s501 = smul.addr %s500, 4
      %s502 = scalar_lea.vmem %s5, %s501
      %p503 = pneg %p185
      %p504 = pneg %p182
      %s505 = smul.u32 32, %s26
      %p506 = scmp.lt.s32.totalorder %s505, 63
      %s507 = scalar_select %p506, %s505, 63
      %s508 = smul.addr %s507, 4
      %s509 = scalar_lea.vmem %s6, %s508
      %p510 = pneg %p211
      %p511 = pneg %p208
      %s512 = smul.u32 32, %s26
      %p513 = scmp.lt.s32.totalorder %s512, 63
      %s514 = scalar_select %p513, %s512, 63
      %s515 = smul.addr %s514, 4
      %s516 = scalar_lea.vmem %s7, %s515
      %p517 = pneg %p237
      %p518 = pneg %p234
      %s519 = smul.u32 32, %s26
      %p520 = scmp.lt.s32.totalorder %s519, 63
      %s521 = scalar_select %p520, %s519, 63
      %s522 = smul.addr %s521, 4
      %s523 = scalar_lea.vmem %s8, %s522
      %p524 = pneg %p263
      %p525 = pneg %p260
      %p526 = scmp.lt.s32.totalorder %s27, 0
      %s527 = scalar_select %p526, %s27, 0
      %s528 = smul.addr %s527, 2
      %s529 = scalar_lea.vmem %s9, %s528
      %p530 = pneg %p289
      %p531 = pneg %p286
      %p532 = scmp.lt.s32.totalorder %s27, 0
      %s533 = scalar_select %p532, %s27, 0
      %s534 = scalar_lea.vmem %s10, %s533
      %p535 = pneg %p315
      %p536 = pneg %p312
      %p537 = pneg %p343
      %p538 = pneg %p340
      %s539 = smul.u32 32, %s26
      %p540 = scmp.lt.s32.totalorder %s539, 63
      %s541 = scalar_select %p540, %s539, 63
      %p542 = scmp.lt.s32.totalorder %s27, 0
      %s543 = scalar_select %p542, %s27, 0
      %s544 = sadd.s32 %s543, %s541
      %s545 = smul.addr %s544, 4
      %s546 = scalar_lea.vmem %s11, %s545
      %s547 = smul.u32 32, %s26
      %p548 = scmp.lt.s32.totalorder %s547, 63
      %s549 = scalar_select %p548, %s547, 63
      %s550 = smul.addr %s549, 4
      %s551 = scalar_lea.vmem %s0, %s550
      %s552 = smul.u32 32, %s26
      %s553 = smul.u32 32, %s26
      %p554 = scmp.lt.s32.totalorder %s553, 63
      %s555 = scalar_select %p554, %s553, 63
      %s556 = smul.addr %s555, 4
      %s557 = scalar_lea.vmem %s1, %s556
      %s558 = smul.u32 32, %s26
      %s559 = smul.u32 32, %s26
      %p560 = scmp.lt.s32.totalorder %s559, 63
      %s561 = scalar_select %p560, %s559, 63
      %s562 = smul.addr %s561, 4
      %s563 = scalar_lea.vmem %s2, %s562
      %s564 = smul.u32 32, %s26
      %s565 = smul.u32 32, %s26
      %p566 = scmp.lt.s32.totalorder %s565, 63
      %s567 = scalar_select %p566, %s565, 63
      %s568 = smul.addr %s567, 4
      %s569 = scalar_lea.vmem %s3, %s568
      %s570 = smul.u32 32, %s26
      %s571 = smul.u32 32, %s26
      %p572 = scmp.lt.s32.totalorder %s571, 63
      %s573 = scalar_select %p572, %s571, 63
      %s574 = smul.addr %s573, 4
      %s575 = scalar_lea.vmem %s4, %s574
      %s576 = smul.u32 32, %s26
      %s577 = smul.u32 32, %s26
      %p578 = scmp.lt.s32.totalorder %s577, 63
      %s579 = scalar_select %p578, %s577, 63
      %s580 = smul.addr %s579, 4
      %s581 = scalar_lea.vmem %s5, %s580
      %s582 = smul.u32 32, %s26
      %s583 = smul.u32 32, %s26
      %p584 = scmp.lt.s32.totalorder %s583, 63
      %s585 = scalar_select %p584, %s583, 63
      %s586 = smul.addr %s585, 4
      %s587 = scalar_lea.vmem %s6, %s586
      %s588 = smul.u32 32, %s26
      %s589 = smul.u32 32, %s26
      %p590 = scmp.lt.s32.totalorder %s589, 63
      %s591 = scalar_select %p590, %s589, 63
      %s592 = smul.addr %s591, 4
      %s593 = scalar_lea.vmem %s7, %s592
      %s594 = smul.u32 32, %s26
      %s595 = smul.u32 32, %s26
      %p596 = scmp.lt.s32.totalorder %s595, 63
      %s597 = scalar_select %p596, %s595, 63
      %s598 = smul.addr %s597, 4
      %s599 = scalar_lea.vmem %s8, %s598
      %s600 = smul.u32 32, %s26
      %p601 = scmp.lt.s32.totalorder %s27, 0
      %s602 = scalar_select %p601, %s27, 0
      %s603 = smul.addr %s602, 2
      %s604 = scalar_lea.vmem %s9, %s603
      %p605 = scmp.lt.s32.totalorder %s27, 0
      %s606 = scalar_select %p605, %s27, 0
      %s607 = scalar_lea.vmem %s10, %s606
      %s608 = smul.u32 32, %s26
      %p609 = scmp.lt.s32.totalorder %s608, 63
      %s610 = scalar_select %p609, %s608, 63
      %p611 = scmp.lt.s32.totalorder %s27, 0
      %s612 = scalar_select %p611, %s27, 0
      %s613 = sadd.s32 %s612, %s610
      %s614 = smul.addr %s613, 4
      %s615 = scalar_lea.vmem %s11, %s614
      %s616 = smul.u32 32, %s26
      %v618 = vld [vmem:[%s551] sm:$0xf]
      %v619 = vld [vmem:[%s551 + $0x4] sm:$0xf]
      %v620 = vld [vmem:[%s551 + $0x8] sm:$0xf]
      %v621 = vld [vmem:[%s551 + $0xc] sm:$0xf]
      %v622 = vld [vmem:[%s551 + $0x10] sm:$0xf]
      %v623 = vld [vmem:[%s551 + $0x14] sm:$0xf]
      %v624 = vld [vmem:[%s551 + $0x18] sm:$0xf]
      %v625 = vld [vmem:[%s551 + $0x1c] sm:$0xf]
      %v626 = vld [vmem:[%s551 + $0x20] sm:$0xf]
      %v627 = vld [vmem:[%s551 + $0x24] sm:$0xf]
      %v628 = vld [vmem:[%s551 + $0x28] sm:$0xf]
      %v629 = vld [vmem:[%s551 + $0x2c] sm:$0xf]
      %v630 = vld [vmem:[%s551 + $0x30] sm:$0xf]
      %v631 = vld [vmem:[%s551 + $0x34] sm:$0xf]
      %v632 = vld [vmem:[%s551 + $0x38] sm:$0xf]
      %v633 = vld [vmem:[%s551 + $0x3c] sm:$0xf]
      %v634 = vld [vmem:[%s551 + $0x40] sm:$0xf]
      %v635 = vld [vmem:[%s551 + $0x44] sm:$0xf]
      %v636 = vld [vmem:[%s551 + $0x48] sm:$0xf]
      %v637 = vld [vmem:[%s551 + $0x4c] sm:$0xf]
      %v638 = vld [vmem:[%s551 + $0x50] sm:$0xf]
      %v639 = vld [vmem:[%s551 + $0x54] sm:$0xf]
      %v640 = vld [vmem:[%s551 + $0x58] sm:$0xf]
      %v641 = vld [vmem:[%s551 + $0x5c] sm:$0xf]
      %v642 = vld [vmem:[%s551 + $0x60] sm:$0xf]
      %v643 = vld [vmem:[%s551 + $0x64] sm:$0xf]
      %v644 = vld [vmem:[%s551 + $0x68] sm:$0xf]
      %v645 = vld [vmem:[%s551 + $0x6c] sm:$0xf]
      %v646 = vld [vmem:[%s551 + $0x70] sm:$0xf]
      %v647 = vld [vmem:[%s551 + $0x74] sm:$0xf]
      %v648 = vld [vmem:[%s551 + $0x78] sm:$0xf]
      %v649 = vld [vmem:[%s551 + $0x7c] sm:$0xf]
      %v650 = vld [vmem:[%s604] sm:$0x3]
      %v651 = vld [vmem:[%s557] sm:$0xf]
      %v652 = vld [vmem:[%s557 + $0x4] sm:$0xf]
      %v653 = vld [vmem:[%s557 + $0x8] sm:$0xf]
      %v654 = vld [vmem:[%s557 + $0xc] sm:$0xf]
      %v655 = vld [vmem:[%s557 + $0x10] sm:$0xf]
      %v656 = vld [vmem:[%s557 + $0x14] sm:$0xf]
      %v657 = vld [vmem:[%s557 + $0x18] sm:$0xf]
      %v658 = vld [vmem:[%s557 + $0x1c] sm:$0xf]
      %v659 = vld [vmem:[%s557 + $0x20] sm:$0xf]
      %v660 = vld [vmem:[%s557 + $0x24] sm:$0xf]
      %v661 = vld [vmem:[%s557 + $0x28] sm:$0xf]
      %v662 = vld [vmem:[%s557 + $0x2c] sm:$0xf]
      %v663 = vld [vmem:[%s557 + $0x30] sm:$0xf]
      %v664 = vld [vmem:[%s557 + $0x34] sm:$0xf]
      %v665 = vld [vmem:[%s557 + $0x38] sm:$0xf]
      %v666 = vld [vmem:[%s557 + $0x3c] sm:$0xf]
      %v667 = vld [vmem:[%s557 + $0x40] sm:$0xf]
      %v668 = vld [vmem:[%s557 + $0x44] sm:$0xf]
      %v669 = vld [vmem:[%s557 + $0x48] sm:$0xf]
      %v670 = vld [vmem:[%s557 + $0x4c] sm:$0xf]
      %v671 = vld [vmem:[%s557 + $0x50] sm:$0xf]
      %v672 = vld [vmem:[%s557 + $0x54] sm:$0xf]
      %v673 = vld [vmem:[%s557 + $0x58] sm:$0xf]
      %v674 = vld [vmem:[%s557 + $0x5c] sm:$0xf]
      %v675 = vld [vmem:[%s557 + $0x60] sm:$0xf]
      %v676 = vld [vmem:[%s557 + $0x64] sm:$0xf]
      %v677 = vld [vmem:[%s557 + $0x68] sm:$0xf]
      %v678 = vld [vmem:[%s557 + $0x6c] sm:$0xf]
      %v679 = vld [vmem:[%s557 + $0x70] sm:$0xf]
      %v680 = vld [vmem:[%s557 + $0x74] sm:$0xf]
      %v681 = vld [vmem:[%s557 + $0x78] sm:$0xf]
      %v682 = vld [vmem:[%s557 + $0x7c] sm:$0xf]
      %s683 = scalar_lea.vmem %s604, 2
      %v684 = vld [vmem:[%s683] sm:$0x3]
      %v717 = vunpack.c.l.b16 %v651
      %v718 = vunpack.c.l.b16 %v652
      %v719 = vunpack.c.l.b16 %v653
      %v720 = vunpack.c.l.b16 %v654
      %v721 = vunpack.c.l.b16 %v655
      %v722 = vunpack.c.l.b16 %v656
      %v723 = vunpack.c.l.b16 %v657
      %v724 = vunpack.c.l.b16 %v658
      %v725 = vunpack.c.l.b16 %v659
      %v726 = vunpack.c.l.b16 %v660
      %v727 = vunpack.c.l.b16 %v661
      %v728 = vunpack.c.l.b16 %v662
      %v729 = vunpack.c.l.b16 %v663
      %v730 = vunpack.c.l.b16 %v664
      %v731 = vunpack.c.l.b16 %v665
      %v732 = vunpack.c.l.b16 %v666
      %v733 = vunpack.c.l.b16 %v667
      %v734 = vunpack.c.l.b16 %v668
      %v735 = vunpack.c.l.b16 %v669
      %v736 = vunpack.c.l.b16 %v670
      %v737 = vunpack.c.l.b16 %v671
      %v738 = vunpack.c.l.b16 %v672
      %v739 = vunpack.c.l.b16 %v673
      %v740 = vunpack.c.l.b16 %v674
      %v741 = vunpack.c.l.b16 %v675
      %v742 = vunpack.c.l.b16 %v676
      %v743 = vunpack.c.l.b16 %v677
      %v744 = vunpack.c.l.b16 %v678
      %v745 = vunpack.c.l.b16 %v679
      %v746 = vunpack.c.l.b16 %v680
      %v747 = vunpack.c.l.b16 %v681
      %v748 = vunpack.c.l.b16 %v682
      %v749 = vpack.c.b16 %v718, %v717
      %v750 = vpack.c.b16 %v720, %v719
      %v751 = vpack.c.b16 %v722, %v721
      %v752 = vpack.c.b16 %v724, %v723
      %v753 = vpack.c.b16 %v726, %v725
      %v754 = vpack.c.b16 %v728, %v727
      %v755 = vpack.c.b16 %v730, %v729
      %v756 = vpack.c.b16 %v732, %v731
      %v757 = vpack.c.b16 %v734, %v733
      %v758 = vpack.c.b16 %v736, %v735
      %v759 = vpack.c.b16 %v738, %v737
      %v760 = vpack.c.b16 %v740, %v739
      %v761 = vpack.c.b16 %v742, %v741
      %v762 = vpack.c.b16 %v744, %v743
      %v763 = vpack.c.b16 %v746, %v745
      %v764 = vpack.c.b16 %v748, %v747
      %vm765 = vcmask 23552
      %v767 = vsel %vm765, %v749, 0
      %v770 = vsel %vm765, %v750, 0
      %v773 = vsel %vm765, %v751, 0
      %v776 = vsel %vm765, %v752, 0
      %v779 = vsel %vm765, %v753, 0
      %v782 = vsel %vm765, %v754, 0
      %v785 = vsel %vm765, %v755, 0
      %v788 = vsel %vm765, %v756, 0
      %v791 = vsel %vm765, %v757, 0
      %v794 = vsel %vm765, %v758, 0
      %v797 = vsel %vm765, %v759, 0
      %v800 = vsel %vm765, %v760, 0
      %v803 = vsel %vm765, %v761, 0
      %v806 = vsel %vm765, %v762, 0
      %v809 = vsel %vm765, %v763, 0
      %v812 = vsel %vm765, %v764, 0
      %vm814 = vcmask 1040384
      %vm815 = vcmask 1041408
      %v816 = vsel %vm814, 4294967295, 65535
      %v817 = vsel %vm815, %v816, 0
      %v819 = vand.u32 %v684, %v817
      %821 = vmatprep.subr.bf16.mxu0 0
      %822 = vmatpush1.bf16.msra.mxu0 %v819
      %823 = vmatprep.subr.bf16.mxu0 0
      %824 = vmatpush1.bf16.msra.mxu0 0
      %825 = vmatprep.subr.bf16.mxu0 0
      %826 = vmatpush1.bf16.msra.mxu0 0
      %827 = vmatprep.subr.bf16.mxu0 0
      %828 = vmatpush1.bf16.msra.mxu0 0
      %829 = vmatprep.subr.bf16.mxu0 0
      %830 = vmatpush1.bf16.msra.mxu0 0
      %831 = vmatprep.subr.bf16.mxu0 0
      %832 = vmatpush1.bf16.msra.mxu0 0
      %833 = vmatprep.subr.bf16.mxu0 0
      %834 = vmatpush1.bf16.msra.mxu0 0
      %835 = vmatprep.subr.bf16.mxu0 0
      %836 = vmatpush1.bf16.msra.mxu0 0
      %837 = vmatprep.subr.bf16.mxu0 0
      %838 = vmatpush1.bf16.msra.mxu0 0
      %839 = vmatprep.subr.bf16.mxu0 0
      %840 = vmatpush1.bf16.msra.mxu0 0
      %841 = vmatprep.subr.bf16.mxu0 0
      %842 = vmatpush1.bf16.msra.mxu0 0
      %843 = vmatprep.subr.bf16.mxu0 0
      %844 = vmatpush1.bf16.msra.mxu0 0
      %845 = vmatprep.subr.bf16.mxu0 0
      %846 = vmatpush1.bf16.msra.mxu0 0
      %847 = vmatprep.subr.bf16.mxu0 0
      %848 = vmatpush1.bf16.msra.mxu0 0
      %849 = vmatprep.subr.bf16.mxu0 0
      %850 = vmatpush1.bf16.msra.mxu0 0
      %851 = vmatprep.subr.bf16.mxu0 0
      %852 = vmatpush1.bf16.msra.mxu0 0
      %853 = vmatprep.mubr.bf16.mxu0 0
      %854 = vmatmul.mubr.bf16.gmra.mrb[0].mxu0 %v767
      %v855 = vpop.f32.mrb[0].mxu0
      %v856 = vadd.f32 0.0, %v855
      %v857 = vpop.f32.mrb[0].mxu0
      %v858 = vpop.f32.mrb[0].mxu0
      %v859 = vadd.f32 0.0, %v858
      %v860 = vpop.f32.mrb[0].mxu0
      %861 = vmatprep.mubr.bf16.mxu0 0
      %862 = vmatmul.mubr.bf16.gmra.mrb[0].mxu0 %v770
      %v863 = vpop.f32.mrb[0].mxu0
      %v864 = vadd.f32 0.0, %v863
      %v865 = vpop.f32.mrb[0].mxu0
      %v866 = vpop.f32.mrb[0].mxu0
      %v867 = vadd.f32 0.0, %v866
      %v868 = vpop.f32.mrb[0].mxu0
      %869 = vmatprep.mubr.bf16.mxu0 0
      %870 = vmatmul.mubr.bf16.gmra.mrb[0].mxu0 %v773
      %v871 = vpop.f32.mrb[0].mxu0
      %v872 = vadd.f32 0.0, %v871
      %v873 = vpop.f32.mrb[0].mxu0
      %v874 = vpop.f32.mrb[0].mxu0
      %v875 = vadd.f32 0.0, %v874
      %v876 = vpop.f32.mrb[0].mxu0
      %877 = vmatprep.mubr.bf16.mxu0 0
      %878 = vmatmul.mubr.bf16.gmra.mrb[0].mxu0 %v776
      %v879 = vpop.f32.mrb[0].mxu0
      %v880 = vadd.f32 0.0, %v879
      %v881 = vpop.f32.mrb[0].mxu0
      %v882 = vpop.f32.mrb[0].mxu0
      %v883 = vadd.f32 0.0, %v882
      %v884 = vpop.f32.mrb[0].mxu0
      %885 = vmatprep.mubr.bf16.mxu0 0
      %886 = vmatmul.mubr.bf16.gmra.mrb[0].mxu0 %v779
      %v887 = vpop.f32.mrb[0].mxu0
      %v888 = vadd.f32 0.0, %v887
      %v889 = vpop.f32.mrb[0].mxu0
      %v890 = vpop.f32.mrb[0].mxu0
      %v891 = vadd.f32 0.0, %v890
      %v892 = vpop.f32.mrb[0].mxu0
      %893 = vmatprep.mubr.bf16.mxu0 0
      %894 = vmatmul.mubr.bf16.gmra.mrb[0].mxu0 %v782
      %v895 = vpop.f32.mrb[0].mxu0
      %v896 = vadd.f32 0.0, %v895
      %v897 = vpop.f32.mrb[0].mxu0
      %v898 = vpop.f32.mrb[0].mxu0
      %v899 = vadd.f32 0.0, %v898
      %v900 = vpop.f32.mrb[0].mxu0
      %901 = vmatprep.mubr.bf16.mxu0 0
      %902 = vmatmul.mubr.bf16.gmra.mrb[0].mxu0 %v785
      %v903 = vpop.f32.mrb[0].mxu0
      %v904 = vadd.f32 0.0, %v903
      %v905 = vpop.f32.mrb[0].mxu0
      %v906 = vpop.f32.mrb[0].mxu0
      %v907 = vadd.f32 0.0, %v906
      %v908 = vpop.f32.mrb[0].mxu0
      %909 = vmatprep.mubr.bf16.mxu0 0
      %910 = vmatmul.mubr.bf16.gmra.mrb[0].mxu0 %v788
      %v911 = vpop.f32.mrb[0].mxu0
      %v912 = vadd.f32 0.0, %v911
      %v913 = vpop.f32.mrb[0].mxu0
      %v914 = vpop.f32.mrb[0].mxu0
      %v915 = vadd.f32 0.0, %v914
      %v916 = vpop.f32.mrb[0].mxu0
      %917 = vmatprep.mubr.bf16.mxu0 0
      %918 = vmatmul.mubr.bf16.gmra.mrb[0].mxu0 %v791
      %v919 = vpop.f32.mrb[0].mxu0
      %v920 = vadd.f32 0.0, %v919
      %v921 = vpop.f32.mrb[0].mxu0
      %v922 = vpop.f32.mrb[0].mxu0
      %v923 = vadd.f32 0.0, %v922
      %v924 = vpop.f32.mrb[0].mxu0
      %925 = vmatprep.mubr.bf16.mxu0 0
      %926 = vmatmul.mubr.bf16.gmra.mrb[0].mxu0 %v794
      %v927 = vpop.f32.mrb[0].mxu0
      %v928 = vadd.f32 0.0, %v927
      %v929 = vpop.f32.mrb[0].mxu0
      %v930 = vpop.f32.mrb[0].mxu0
      %v931 = vadd.f32 0.0, %v930
      %v932 = vpop.f32.mrb[0].mxu0
      %933 = vmatprep.mubr.bf16.mxu0 0
      %934 = vmatmul.mubr.bf16.gmra.mrb[0].mxu0 %v797
      %v935 = vpop.f32.mrb[0].mxu0
      %v936 = vadd.f32 0.0, %v935
      %v937 = vpop.f32.mrb[0].mxu0
      %v938 = vpop.f32.mrb[0].mxu0
      %v939 = vadd.f32 0.0, %v938
      %v940 = vpop.f32.mrb[0].mxu0
      %941 = vmatprep.mubr.bf16.mxu0 0
      %942 = vmatmul.mubr.bf16.gmra.mrb[0].mxu0 %v800
      %v943 = vpop.f32.mrb[0].mxu0
      %v944 = vadd.f32 0.0, %v943
      %v945 = vpop.f32.mrb[0].mxu0
      %v946 = vpop.f32.mrb[0].mxu0
      %v947 = vadd.f32 0.0, %v946
      %v948 = vpop.f32.mrb[0].mxu0
      %949 = vmatprep.mubr.bf16.mxu0 0
      %950 = vmatmul.mubr.bf16.gmra.mrb[0].mxu0 %v803
      %v951 = vpop.f32.mrb[0].mxu0
      %v952 = vadd.f32 0.0, %v951
      %v953 = vpop.f32.mrb[0].mxu0
      %v954 = vpop.f32.mrb[0].mxu0
      %v955 = vadd.f32 0.0, %v954
      %v956 = vpop.f32.mrb[0].mxu0
      %957 = vmatprep.mubr.bf16.mxu0 0
      %958 = vmatmul.mubr.bf16.gmra.mrb[0].mxu0 %v806
      %v959 = vpop.f32.mrb[0].mxu0
      %v960 = vadd.f32 0.0, %v959
      %v961 = vpop.f32.mrb[0].mxu0
      %v962 = vpop.f32.mrb[0].mxu0
      %v963 = vadd.f32 0.0, %v962
      %v964 = vpop.f32.mrb[0].mxu0
      %965 = vmatprep.mubr.bf16.mxu0 0
      %966 = vmatmul.mubr.bf16.gmra.mrb[0].mxu0 %v809
      %v967 = vpop.f32.mrb[0].mxu0
      %v968 = vadd.f32 0.0, %v967
      %v969 = vpop.f32.mrb[0].mxu0
      %v970 = vpop.f32.mrb[0].mxu0
      %v971 = vadd.f32 0.0, %v970
      %v972 = vpop.f32.mrb[0].mxu0
      %973 = vmatprep.mubr.bf16.mxu0 0
      %974 = vmatmul.mubr.bf16.gmra.mrb[0].mxu0 %v812
      %v975 = vpop.f32.mrb[0].mxu0
      %v976 = vadd.f32 0.0, %v975
      %v977 = vpop.f32.mrb[0].mxu0
      %v978 = vpop.f32.mrb[0].mxu0
      %v979 = vadd.f32 0.0, %v978
      %v980 = vpop.f32.mrb[0].mxu0
      %981 = vdwg.mxu0
      %v1014 = vunpack.c.l.b16 %v618
      %v1015 = vunpack.c.l.b16 %v619
      %v1016 = vunpack.c.l.b16 %v620
      %v1017 = vunpack.c.l.b16 %v621
      %v1018 = vunpack.c.l.b16 %v622
      %v1019 = vunpack.c.l.b16 %v623
      %v1020 = vunpack.c.l.b16 %v624
      %v1021 = vunpack.c.l.b16 %v625
      %v1022 = vunpack.c.l.b16 %v626
      %v1023 = vunpack.c.l.b16 %v627
      %v1024 = vunpack.c.l.b16 %v628
      %v1025 = vunpack.c.l.b16 %v629
      %v1026 = vunpack.c.l.b16 %v630
      %v1027 = vunpack.c.l.b16 %v631
      %v1028 = vunpack.c.l.b16 %v632
      %v1029 = vunpack.c.l.b16 %v633
      %v1030 = vunpack.c.l.b16 %v634
      %v1031 = vunpack.c.l.b16 %v635
      %v1032 = vunpack.c.l.b16 %v636
      %v1033 = vunpack.c.l.b16 %v637
      %v1034 = vunpack.c.l.b16 %v638
      %v1035 = vunpack.c.l.b16 %v639
      %v1036 = vunpack.c.l.b16 %v640
      %v1037 = vunpack.c.l.b16 %v641
      %v1038 = vunpack.c.l.b16 %v642
      %v1039 = vunpack.c.l.b16 %v643
      %v1040 = vunpack.c.l.b16 %v644
      %v1041 = vunpack.c.l.b16 %v645
      %v1042 = vunpack.c.l.b16 %v646
      %v1043 = vunpack.c.l.b16 %v647
      %v1044 = vunpack.c.l.b16 %v648
      %v1045 = vunpack.c.l.b16 %v649
      %v1046 = vpack.c.b16 %v1015, %v1014
      %v1047 = vpack.c.b16 %v1017, %v1016
      %v1048 = vpack.c.b16 %v1019, %v1018
      %v1049 = vpack.c.b16 %v1021, %v1020
      %v1050 = vpack.c.b16 %v1023, %v1022
      %v1051 = vpack.c.b16 %v1025, %v1024
      %v1052 = vpack.c.b16 %v1027, %v1026
      %v1053 = vpack.c.b16 %v1029, %v1028
      %v1054 = vpack.c.b16 %v1031, %v1030
      %v1055 = vpack.c.b16 %v1033, %v1032
      %v1056 = vpack.c.b16 %v1035, %v1034
      %v1057 = vpack.c.b16 %v1037, %v1036
      %v1058 = vpack.c.b16 %v1039, %v1038
      %v1059 = vpack.c.b16 %v1041, %v1040
      %v1060 = vpack.c.b16 %v1043, %v1042
      %v1061 = vpack.c.b16 %v1045, %v1044
      %v1063 = vsel %vm765, %v1046, 0
      %v1066 = vsel %vm765, %v1047, 0
      %v1069 = vsel %vm765, %v1048, 0
      %v1072 = vsel %vm765, %v1049, 0
      %v1075 = vsel %vm765, %v1050, 0
      %v1078 = vsel %vm765, %v1051, 0
      %v1081 = vsel %vm765, %v1052, 0
      %v1084 = vsel %vm765, %v1053, 0
      %v1087 = vsel %vm765, %v1054, 0
      %v1090 = vsel %vm765, %v1055, 0
      %v1093 = vsel %vm765, %v1056, 0
      %v1096 = vsel %vm765, %v1057, 0
      %v1099 = vsel %vm765, %v1058, 0
      %v1102 = vsel %vm765, %v1059, 0
      %v1105 = vsel %vm765, %v1060, 0
      %v1108 = vsel %vm765, %v1061, 0
      %v1111 = vand.u32 %v650, %v817
      %1113 = vmatprep.subr.bf16.mxu0 0
      %1114 = vmatpush1.bf16.msra.mxu0 %v1111
      %1115 = vmatprep.subr.bf16.mxu0 0
      %1116 = vmatpush1.bf16.msra.mxu0 0
      %1117 = vmatprep.subr.bf16.mxu0 0
      %1118 = vmatpush1.bf16.msra.mxu0 0
      %1119 = vmatprep.subr.bf16.mxu0 0
      %1120 = vmatpush1.bf16.msra.mxu0 0
      %1121 = vmatprep.subr.bf16.mxu0 0
      %1122 = vmatpush1.bf16.msra.mxu0 0
      %1123 = vmatprep.subr.bf16.mxu0 0
      %1124 = vmatpush1.bf16.msra.mxu0 0
      %1125 = vmatprep.subr.bf16.mxu0 0
      %1126 = vmatpush1.bf16.msra.mxu0 0
      %1127 = vmatprep.subr.bf16.mxu0 0
      %1128 = vmatpush1.bf16.msra.mxu0 0
      %1129 = vmatprep.subr.bf16.mxu0 0
      %1130 = vmatpush1.bf16.msra.mxu0 0
      %1131 = vmatprep.subr.bf16.mxu0 0
      %1132 = vmatpush1.bf16.msra.mxu0 0
      %1133 = vmatprep.subr.bf16.mxu0 0
      %1134 = vmatpush1.bf16.msra.mxu0 0
      %1135 = vmatprep.subr.bf16.mxu0 0
      %1136 = vmatpush1.bf16.msra.mxu0 0
      %1137 = vmatprep.subr.bf16.mxu0 0
      %1138 = vmatpush1.bf16.msra.mxu0 0
      %1139 = vmatprep.subr.bf16.mxu0 0
      %1140 = vmatpush1.bf16.msra.mxu0 0
      %1141 = vmatprep.subr.bf16.mxu0 0
      %1142 = vmatpush1.bf16.msra.mxu0 0
      %1143 = vmatprep.subr.bf16.mxu0 0
      %1144 = vmatpush1.bf16.msra.mxu0 0
      %1145 = vmatprep.mubr.bf16.mxu0 0
      %1146 = vmatmul.mubr.bf16.gmra.mrb[0].mxu0 %v1063
      %v1147 = vpop.f32.mrb[0].mxu0
      %v1148 = vadd.f32 %v856, %v1147
      %v1149 = vpop.f32.mrb[0].mxu0
      %v1150 = vpop.f32.mrb[0].mxu0
      %v1151 = vadd.f32 %v859, %v1150
      %v1152 = vpop.f32.mrb[0].mxu0
      %1153 = vmatprep.mubr.bf16.mxu0 0
      %1154 = vmatmul.mubr.bf16.gmra.mrb[0].mxu0 %v1066
      %v1155 = vpop.f32.mrb[0].mxu0
      %v1156 = vadd.f32 %v864, %v1155
      %v1157 = vpop.f32.mrb[0].mxu0
      %v1158 = vpop.f32.mrb[0].mxu0
      %v1159 = vadd.f32 %v867, %v1158
      %v1160 = vpop.f32.mrb[0].mxu0
      %1161 = vmatprep.mubr.bf16.mxu0 0
      %1162 = vmatmul.mubr.bf16.gmra.mrb[0].mxu0 %v1069
      %v1163 = vpop.f32.mrb[0].mxu0
      %v1164 = vadd.f32 %v872, %v1163
      %v1165 = vpop.f32.mrb[0].mxu0
      %v1166 = vpop.f32.mrb[0].mxu0
      %v1167 = vadd.f32 %v875, %v1166
      %v1168 = vpop.f32.mrb[0].mxu0
      %1169 = vmatprep.mubr.bf16.mxu0 0
      %1170 = vmatmul.mubr.bf16.gmra.mrb[0].mxu0 %v1072
      %v1171 = vpop.f32.mrb[0].mxu0
      %v1172 = vadd.f32 %v880, %v1171
      %v1173 = vpop.f32.mrb[0].mxu0
      %v1174 = vpop.f32.mrb[0].mxu0
      %v1175 = vadd.f32 %v883, %v1174
      %v1176 = vpop.f32.mrb[0].mxu0
      %1177 = vmatprep.mubr.bf16.mxu0 0
      %1178 = vmatmul.mubr.bf16.gmra.mrb[0].mxu0 %v1075
      %v1179 = vpop.f32.mrb[0].mxu0
      %v1180 = vadd.f32 %v888, %v1179
      %v1181 = vpop.f32.mrb[0].mxu0
      %v1182 = vpop.f32.mrb[0].mxu0
      %v1183 = vadd.f32 %v891, %v1182
      %v1184 = vpop.f32.mrb[0].mxu0
      %1185 = vmatprep.mubr.bf16.mxu0 0
      %1186 = vmatmul.mubr.bf16.gmra.mrb[0].mxu0 %v1078
      %v1187 = vpop.f32.mrb[0].mxu0
      %v1188 = vadd.f32 %v896, %v1187
      %v1189 = vpop.f32.mrb[0].mxu0
      %v1190 = vpop.f32.mrb[0].mxu0
      %v1191 = vadd.f32 %v899, %v1190
      %v1192 = vpop.f32.mrb[0].mxu0
      %1193 = vmatprep.mubr.bf16.mxu0 0
      %1194 = vmatmul.mubr.bf16.gmra.mrb[0].mxu0 %v1081
      %v1195 = vpop.f32.mrb[0].mxu0
      %v1196 = vadd.f32 %v904, %v1195
      %v1197 = vpop.f32.mrb[0].mxu0
      %v1198 = vpop.f32.mrb[0].mxu0
      %v1199 = vadd.f32 %v907, %v1198
      %v1200 = vpop.f32.mrb[0].mxu0
      %1201 = vmatprep.mubr.bf16.mxu0 0
      %1202 = vmatmul.mubr.bf16.gmra.mrb[0].mxu0 %v1084
      %v1203 = vpop.f32.mrb[0].mxu0
      %v1204 = vadd.f32 %v912, %v1203
      %v1205 = vpop.f32.mrb[0].mxu0
      %v1206 = vpop.f32.mrb[0].mxu0
      %v1207 = vadd.f32 %v915, %v1206
      %v1208 = vpop.f32.mrb[0].mxu0
      %1209 = vmatprep.mubr.bf16.mxu0 0
      %1210 = vmatmul.mubr.bf16.gmra.mrb[0].mxu0 %v1087
      %v1211 = vpop.f32.mrb[0].mxu0
      %v1212 = vadd.f32 %v920, %v1211
      %v1213 = vpop.f32.mrb[0].mxu0
      %v1214 = vpop.f32.mrb[0].mxu0
      %v1215 = vadd.f32 %v923, %v1214
      %v1216 = vpop.f32.mrb[0].mxu0
      %1217 = vmatprep.mubr.bf16.mxu0 0
      %1218 = vmatmul.mubr.bf16.gmra.mrb[0].mxu0 %v1090
      %v1219 = vpop.f32.mrb[0].mxu0
      %v1220 = vadd.f32 %v928, %v1219
      %v1221 = vpop.f32.mrb[0].mxu0
      %v1222 = vpop.f32.mrb[0].mxu0
      %v1223 = vadd.f32 %v931, %v1222
      %v1224 = vpop.f32.mrb[0].mxu0
      %1225 = vmatprep.mubr.bf16.mxu0 0
      %1226 = vmatmul.mubr.bf16.gmra.mrb[0].mxu0 %v1093
      %v1227 = vpop.f32.mrb[0].mxu0
      %v1228 = vadd.f32 %v936, %v1227
      %v1229 = vpop.f32.mrb[0].mxu0
      %v1230 = vpop.f32.mrb[0].mxu0
      %v1231 = vadd.f32 %v939, %v1230
      %v1232 = vpop.f32.mrb[0].mxu0
      %1233 = vmatprep.mubr.bf16.mxu0 0
      %1234 = vmatmul.mubr.bf16.gmra.mrb[0].mxu0 %v1096
      %v1235 = vpop.f32.mrb[0].mxu0
      %v1236 = vadd.f32 %v944, %v1235
      %v1237 = vpop.f32.mrb[0].mxu0
      %v1238 = vpop.f32.mrb[0].mxu0
      %v1239 = vadd.f32 %v947, %v1238
      %v1240 = vpop.f32.mrb[0].mxu0
      %1241 = vmatprep.mubr.bf16.mxu0 0
      %1242 = vmatmul.mubr.bf16.gmra.mrb[0].mxu0 %v1099
      %v1243 = vpop.f32.mrb[0].mxu0
      %v1244 = vadd.f32 %v952, %v1243
      %v1245 = vpop.f32.mrb[0].mxu0
      %v1246 = vpop.f32.mrb[0].mxu0
      %v1247 = vadd.f32 %v955, %v1246
      %v1248 = vpop.f32.mrb[0].mxu0
      %1249 = vmatprep.mubr.bf16.mxu0 0
      %1250 = vmatmul.mubr.bf16.gmra.mrb[0].mxu0 %v1102
      %v1251 = vpop.f32.mrb[0].mxu0
      %v1252 = vadd.f32 %v960, %v1251
      %v1253 = vpop.f32.mrb[0].mxu0
      %v1254 = vpop.f32.mrb[0].mxu0
      %v1255 = vadd.f32 %v963, %v1254
      %v1256 = vpop.f32.mrb[0].mxu0
      %1257 = vmatprep.mubr.bf16.mxu0 0
      %1258 = vmatmul.mubr.bf16.gmra.mrb[0].mxu0 %v1105
      %v1259 = vpop.f32.mrb[0].mxu0
      %v1260 = vadd.f32 %v968, %v1259
      %v1261 = vpop.f32.mrb[0].mxu0
      %v1262 = vpop.f32.mrb[0].mxu0
      %v1263 = vadd.f32 %v971, %v1262
      %v1264 = vpop.f32.mrb[0].mxu0
      %1265 = vmatprep.mubr.bf16.mxu0 0
      %1266 = vmatmul.mubr.bf16.gmra.mrb[0].mxu0 %v1108
      %v1267 = vpop.f32.mrb[0].mxu0
      %v1268 = vadd.f32 %v976, %v1267
      %v1269 = vpop.f32.mrb[0].mxu0
      %v1270 = vpop.f32.mrb[0].mxu0
      %v1271 = vadd.f32 %v979, %v1270
      %v1272 = vpop.f32.mrb[0].mxu0
      %1273 = vdwg.mxu0
      %v1274 = vld [vmem:[%s563] sm:$0xf]
      %v1275 = vld [vmem:[%s563 + $0x4] sm:$0xf]
      %v1276 = vld [vmem:[%s563 + $0x8] sm:$0xf]
      %v1277 = vld [vmem:[%s563 + $0xc] sm:$0xf]
      %v1278 = vld [vmem:[%s563 + $0x10] sm:$0xf]
      %v1279 = vld [vmem:[%s563 + $0x14] sm:$0xf]
      %v1280 = vld [vmem:[%s563 + $0x18] sm:$0xf]
      %v1281 = vld [vmem:[%s563 + $0x1c] sm:$0xf]
      %v1282 = vld [vmem:[%s563 + $0x20] sm:$0xf]
      %v1283 = vld [vmem:[%s563 + $0x24] sm:$0xf]
      %v1284 = vld [vmem:[%s563 + $0x28] sm:$0xf]
      %v1285 = vld [vmem:[%s563 + $0x2c] sm:$0xf]
      %v1286 = vld [vmem:[%s563 + $0x30] sm:$0xf]
      %v1287 = vld [vmem:[%s563 + $0x34] sm:$0xf]
      %v1288 = vld [vmem:[%s563 + $0x38] sm:$0xf]
      %v1289 = vld [vmem:[%s563 + $0x3c] sm:$0xf]
      %v1290 = vld [vmem:[%s563 + $0x40] sm:$0xf]
      %v1291 = vld [vmem:[%s563 + $0x44] sm:$0xf]
      %v1292 = vld [vmem:[%s563 + $0x48] sm:$0xf]
      %v1293 = vld [vmem:[%s563 + $0x4c] sm:$0xf]
      %v1294 = vld [vmem:[%s563 + $0x50] sm:$0xf]
      %v1295 = vld [vmem:[%s563 + $0x54] sm:$0xf]
      %v1296 = vld [vmem:[%s563 + $0x58] sm:$0xf]
      %v1297 = vld [vmem:[%s563 + $0x5c] sm:$0xf]
      %v1298 = vld [vmem:[%s563 + $0x60] sm:$0xf]
      %v1299 = vld [vmem:[%s563 + $0x64] sm:$0xf]
      %v1300 = vld [vmem:[%s563 + $0x68] sm:$0xf]
      %v1301 = vld [vmem:[%s563 + $0x6c] sm:$0xf]
      %v1302 = vld [vmem:[%s563 + $0x70] sm:$0xf]
      %v1303 = vld [vmem:[%s563 + $0x74] sm:$0xf]
      %v1304 = vld [vmem:[%s563 + $0x78] sm:$0xf]
      %v1305 = vld [vmem:[%s563 + $0x7c] sm:$0xf]
      %s1306 = scalar_lea.vmem %s604, 4
      %v1307 = vld [vmem:[%s1306] sm:$0x3]
      %v1340 = vunpack.c.l.b16 %v1274
      %v1341 = vunpack.c.l.b16 %v1275
      %v1342 = vunpack.c.l.b16 %v1276
      %v1343 = vunpack.c.l.b16 %v1277
      %v1344 = vunpack.c.l.b16 %v1278
      %v1345 = vunpack.c.l.b16 %v1279
      %v1346 = vunpack.c.l.b16 %v1280
      %v1347 = vunpack.c.l.b16 %v1281
      %v1348 = vunpack.c.l.b16 %v1282
      %v1349 = vunpack.c.l.b16 %v1283
      %v1350 = vunpack.c.l.b16 %v1284
      %v1351 = vunpack.c.l.b16 %v1285
      %v1352 = vunpack.c.l.b16 %v1286
      %v1353 = vunpack.c.l.b16 %v1287
      %v1354 = vunpack.c.l.b16 %v1288
      %v1355 = vunpack.c.l.b16 %v1289
      %v1356 = vunpack.c.l.b16 %v1290
      %v1357 = vunpack.c.l.b16 %v1291
      %v1358 = vunpack.c.l.b16 %v1292
      %v1359 = vunpack.c.l.b16 %v1293
      %v1360 = vunpack.c.l.b16 %v1294
      %v1361 = vunpack.c.l.b16 %v1295
      %v1362 = vunpack.c.l.b16 %v1296
      %v1363 = vunpack.c.l.b16 %v1297
      %v1364 = vunpack.c.l.b16 %v1298
      %v1365 = vunpack.c.l.b16 %v1299
      %v1366 = vunpack.c.l.b16 %v1300
      %v1367 = vunpack.c.l.b16 %v1301
      %v1368 = vunpack.c.l.b16 %v1302
      %v1369 = vunpack.c.l.b16 %v1303
      %v1370 = vunpack.c.l.b16 %v1304
      %v1371 = vunpack.c.l.b16 %v1305
      %v1372 = vpack.c.b16 %v1341, %v1340
      %v1373 = vpack.c.b16 %v1343, %v1342
      %v1374 = vpack.c.b16 %v1345, %v1344
      %v1375 = vpack.c.b16 %v1347, %v1346
      %v1376 = vpack.c.b16 %v1349, %v1348
      %v1377 = vpack.c.b16 %v1351, %v1350
      %v1378 = vpack.c.b16 %v1353, %v1352
      %v1379 = vpack.c.b16 %v1355, %v1354
      %v1380 = vpack.c.b16 %v1357, %v1356
      %v1381 = vpack.c.b16 %v1359, %v1358
      %v1382 = vpack.c.b16 %v1361, %v1360
      %v1383 = vpack.c.b16 %v1363, %v1362
      %v1384 = vpack.c.b16 %v1365, %v1364
      %v1385 = vpack.c.b16 %v1367, %v1366
      %v1386 = vpack.c.b16 %v1369, %v1368
      %v1387 = vpack.c.b16 %v1371, %v1370
      %v1389 = vsel %vm765, %v1372, 0
      %v1392 = vsel %vm765, %v1373, 0
      %v1395 = vsel %vm765, %v1374, 0
      %v1398 = vsel %vm765, %v1375, 0
      %v1401 = vsel %vm765, %v1376, 0
      %v1404 = vsel %vm765, %v1377, 0
      %v1407 = vsel %vm765, %v1378, 0
      %v1410 = vsel %vm765, %v1379, 0
      %v1413 = vsel %vm765, %v1380, 0
      %v1416 = vsel %vm765, %v1381, 0
      %v1419 = vsel %vm765, %v1382, 0
      %v1422 = vsel %vm765, %v1383, 0
      %v1425 = vsel %vm765, %v1384, 0
      %v1428 = vsel %vm765, %v1385, 0
      %v1431 = vsel %vm765, %v1386, 0
      %v1434 = vsel %vm765, %v1387, 0
      %v1437 = vand.u32 %v1307, %v817
      %1439 = vmatprep.subr.bf16.mxu0 0
      %1440 = vmatpush1.bf16.msra.mxu0 %v1437
      %1441 = vmatprep.subr.bf16.mxu0 0
      %1442 = vmatpush1.bf16.msra.mxu0 0
      %1443 = vmatprep.subr.bf16.mxu0 0
      %1444 = vmatpush1.bf16.msra.mxu0 0
      %1445 = vmatprep.subr.bf16.mxu0 0
      %1446 = vmatpush1.bf16.msra.mxu0 0
      %1447 = vmatprep.subr.bf16.mxu0 0
      %1448 = vmatpush1.bf16.msra.mxu0 0
      %1449 = vmatprep.subr.bf16.mxu0 0
      %1450 = vmatpush1.bf16.msra.mxu0 0
      %1451 = vmatprep.subr.bf16.mxu0 0
      %1452 = vmatpush1.bf16.msra.mxu0 0
      %1453 = vmatprep.subr.bf16.mxu0 0
      %1454 = vmatpush1.bf16.msra.mxu0 0
      %1455 = vmatprep.subr.bf16.mxu0 0
      %1456 = vmatpush1.bf16.msra.mxu0 0
      %1457 = vmatprep.subr.bf16.mxu0 0
      %1458 = vmatpush1.bf16.msra.mxu0 0
      %1459 = vmatprep.subr.bf16.mxu0 0
      %1460 = vmatpush1.bf16.msra.mxu0 0
      %1461 = vmatprep.subr.bf16.mxu0 0
      %1462 = vmatpush1.bf16.msra.mxu0 0
      %1463 = vmatprep.subr.bf16.mxu0 0
      %1464 = vmatpush1.bf16.msra.mxu0 0
      %1465 = vmatprep.subr.bf16.mxu0 0
      %1466 = vmatpush1.bf16.msra.mxu0 0
      %1467 = vmatprep.subr.bf16.mxu0 0
      %1468 = vmatpush1.bf16.msra.mxu0 0
      %1469 = vmatprep.subr.bf16.mxu0 0
      %1470 = vmatpush1.bf16.msra.mxu0 0
      %1471 = vmatprep.mubr.bf16.mxu0 0
      %1472 = vmatmul.mubr.bf16.gmra.mrb[0].mxu0 %v1389
      %v1473 = vpop.f32.mrb[0].mxu0
      %v1474 = vadd.f32 0.0, %v1473
      %v1475 = vpop.f32.mrb[0].mxu0
      %v1476 = vpop.f32.mrb[0].mxu0
      %v1477 = vadd.f32 0.0, %v1476
      %v1478 = vpop.f32.mrb[0].mxu0
      %1479 = vmatprep.mubr.bf16.mxu0 0
      %1480 = vmatmul.mubr.bf16.gmra.mrb[0].mxu0 %v1392
      %v1481 = vpop.f32.mrb[0].mxu0
      %v1482 = vadd.f32 0.0, %v1481
      %v1483 = vpop.f32.mrb[0].mxu0
      %v1484 = vpop.f32.mrb[0].mxu0
      %v1485 = vadd.f32 0.0, %v1484
      %v1486 = vpop.f32.mrb[0].mxu0
      %1487 = vmatprep.mubr.bf16.mxu0 0
      %1488 = vmatmul.mubr.bf16.gmra.mrb[0].mxu0 %v1395
      %v1489 = vpop.f32.mrb[0].mxu0
      %v1490 = vadd.f32 0.0, %v1489
      %v1491 = vpop.f32.mrb[0].mxu0
      %v1492 = vpop.f32.mrb[0].mxu0
      %v1493 = vadd.f32 0.0, %v1492
      %v1494 = vpop.f32.mrb[0].mxu0
      %1495 = vmatprep.mubr.bf16.mxu0 0
      %1496 = vmatmul.mubr.bf16.gmra.mrb[0].mxu0 %v1398
      %v1497 = vpop.f32.mrb[0].mxu0
      %v1498 = vadd.f32 0.0, %v1497
      %v1499 = vpop.f32.mrb[0].mxu0
      %v1500 = vpop.f32.mrb[0].mxu0
      %v1501 = vadd.f32 0.0, %v1500
      %v1502 = vpop.f32.mrb[0].mxu0
      %1503 = vmatprep.mubr.bf16.mxu0 0
      %1504 = vmatmul.mubr.bf16.gmra.mrb[0].mxu0 %v1401
      %v1505 = vpop.f32.mrb[0].mxu0
      %v1506 = vadd.f32 0.0, %v1505
      %v1507 = vpop.f32.mrb[0].mxu0
      %v1508 = vpop.f32.mrb[0].mxu0
      %v1509 = vadd.f32 0.0, %v1508
      %v1510 = vpop.f32.mrb[0].mxu0
      %1511 = vmatprep.mubr.bf16.mxu0 0
      %1512 = vmatmul.mubr.bf16.gmra.mrb[0].mxu0 %v1404
      %v1513 = vpop.f32.mrb[0].mxu0
      %v1514 = vadd.f32 0.0, %v1513
      %v1515 = vpop.f32.mrb[0].mxu0
      %v1516 = vpop.f32.mrb[0].mxu0
      %v1517 = vadd.f32 0.0, %v1516
      %v1518 = vpop.f32.mrb[0].mxu0
      %1519 = vmatprep.mubr.bf16.mxu0 0
      %1520 = vmatmul.mubr.bf16.gmra.mrb[0].mxu0 %v1407
      %v1521 = vpop.f32.mrb[0].mxu0
      %v1522 = vadd.f32 0.0, %v1521
      %v1523 = vpop.f32.mrb[0].mxu0
      %v1524 = vpop.f32.mrb[0].mxu0
      %v1525 = vadd.f32 0.0, %v1524
      %v1526 = vpop.f32.mrb[0].mxu0
      %1527 = vmatprep.mubr.bf16.mxu0 0
      %1528 = vmatmul.mubr.bf16.gmra.mrb[0].mxu0 %v1410
      %v1529 = vpop.f32.mrb[0].mxu0
      %v1530 = vadd.f32 0.0, %v1529
      %v1531 = vpop.f32.mrb[0].mxu0
      %v1532 = vpop.f32.mrb[0].mxu0
      %v1533 = vadd.f32 0.0, %v1532
      %v1534 = vpop.f32.mrb[0].mxu0
      %1535 = vmatprep.mubr.bf16.mxu0 0
      %1536 = vmatmul.mubr.bf16.gmra.mrb[0].mxu0 %v1413
      %v1537 = vpop.f32.mrb[0].mxu0
      %v1538 = vadd.f32 0.0, %v1537
      %v1539 = vpop.f32.mrb[0].mxu0
      %v1540 = vpop.f32.mrb[0].mxu0
      %v1541 = vadd.f32 0.0, %v1540
      %v1542 = vpop.f32.mrb[0].mxu0
      %1543 = vmatprep.mubr.bf16.mxu0 0
      %1544 = vmatmul.mubr.bf16.gmra.mrb[0].mxu0 %v1416
      %v1545 = vpop.f32.mrb[0].mxu0
      %v1546 = vadd.f32 0.0, %v1545
      %v1547 = vpop.f32.mrb[0].mxu0
      %v1548 = vpop.f32.mrb[0].mxu0
      %v1549 = vadd.f32 0.0, %v1548
      %v1550 = vpop.f32.mrb[0].mxu0
      %1551 = vmatprep.mubr.bf16.mxu0 0
      %1552 = vmatmul.mubr.bf16.gmra.mrb[0].mxu0 %v1419
      %v1553 = vpop.f32.mrb[0].mxu0
      %v1554 = vadd.f32 0.0, %v1553
      %v1555 = vpop.f32.mrb[0].mxu0
      %v1556 = vpop.f32.mrb[0].mxu0
      %v1557 = vadd.f32 0.0, %v1556
      %v1558 = vpop.f32.mrb[0].mxu0
      %1559 = vmatprep.mubr.bf16.mxu0 0
      %1560 = vmatmul.mubr.bf16.gmra.mrb[0].mxu0 %v1422
      %v1561 = vpop.f32.mrb[0].mxu0
      %v1562 = vadd.f32 0.0, %v1561
      %v1563 = vpop.f32.mrb[0].mxu0
      %v1564 = vpop.f32.mrb[0].mxu0
      %v1565 = vadd.f32 0.0, %v1564
      %v1566 = vpop.f32.mrb[0].mxu0
      %1567 = vmatprep.mubr.bf16.mxu0 0
      %1568 = vmatmul.mubr.bf16.gmra.mrb[0].mxu0 %v1425
      %v1569 = vpop.f32.mrb[0].mxu0
      %v1570 = vadd.f32 0.0, %v1569
      %v1571 = vpop.f32.mrb[0].mxu0
      %v1572 = vpop.f32.mrb[0].mxu0
      %v1573 = vadd.f32 0.0, %v1572
      %v1574 = vpop.f32.mrb[0].mxu0
      %1575 = vmatprep.mubr.bf16.mxu0 0
      %1576 = vmatmul.mubr.bf16.gmra.mrb[0].mxu0 %v1428
      %v1577 = vpop.f32.mrb[0].mxu0
      %v1578 = vadd.f32 0.0, %v1577
      %v1579 = vpop.f32.mrb[0].mxu0
      %v1580 = vpop.f32.mrb[0].mxu0
      %v1581 = vadd.f32 0.0, %v1580
      %v1582 = vpop.f32.mrb[0].mxu0
      %1583 = vmatprep.mubr.bf16.mxu0 0
      %1584 = vmatmul.mubr.bf16.gmra.mrb[0].mxu0 %v1431
      %v1585 = vpop.f32.mrb[0].mxu0
      %v1586 = vadd.f32 0.0, %v1585
      %v1587 = vpop.f32.mrb[0].mxu0
      %v1588 = vpop.f32.mrb[0].mxu0
      %v1589 = vadd.f32 0.0, %v1588
      %v1590 = vpop.f32.mrb[0].mxu0
      %1591 = vmatprep.mubr.bf16.mxu0 0
      %1592 = vmatmul.mubr.bf16.gmra.mrb[0].mxu0 %v1434
      %v1593 = vpop.f32.mrb[0].mxu0
      %v1594 = vadd.f32 0.0, %v1593
      %v1595 = vpop.f32.mrb[0].mxu0
      %v1596 = vpop.f32.mrb[0].mxu0
      %v1597 = vadd.f32 0.0, %v1596
      %v1598 = vpop.f32.mrb[0].mxu0
      %1599 = vdwg.mxu0
      %v1600 = vadd.f32 %v1148, %v1474
      %v1601 = vadd.f32 %v1151, %v1477
      %v1602 = vadd.f32 %v1156, %v1482
      %v1603 = vadd.f32 %v1159, %v1485
      %v1604 = vadd.f32 %v1164, %v1490
      %v1605 = vadd.f32 %v1167, %v1493
      %v1606 = vadd.f32 %v1172, %v1498
      %v1607 = vadd.f32 %v1175, %v1501
      %v1608 = vadd.f32 %v1180, %v1506
      %v1609 = vadd.f32 %v1183, %v1509
      %v1610 = vadd.f32 %v1188, %v1514
      %v1611 = vadd.f32 %v1191, %v1517
      %v1612 = vadd.f32 %v1196, %v1522
      %v1613 = vadd.f32 %v1199, %v1525
      %v1614 = vadd.f32 %v1204, %v1530
      %v1615 = vadd.f32 %v1207, %v1533
      %v1616 = vadd.f32 %v1212, %v1538
      %v1617 = vadd.f32 %v1215, %v1541
      %v1618 = vadd.f32 %v1220, %v1546
      %v1619 = vadd.f32 %v1223, %v1549
      %v1620 = vadd.f32 %v1228, %v1554
      %v1621 = vadd.f32 %v1231, %v1557
      %v1622 = vadd.f32 %v1236, %v1562
      %v1623 = vadd.f32 %v1239, %v1565
      %v1624 = vadd.f32 %v1244, %v1570
      %v1625 = vadd.f32 %v1247, %v1573
      %v1626 = vadd.f32 %v1252, %v1578
      %v1627 = vadd.f32 %v1255, %v1581
      %v1628 = vadd.f32 %v1260, %v1586
      %v1629 = vadd.f32 %v1263, %v1589
      %v1630 = vadd.f32 %v1268, %v1594
      %v1631 = vadd.f32 %v1271, %v1597
      %v1632 = vld [vmem:[%s569] sm:$0xf]
      %v1633 = vld [vmem:[%s569 + $0x4] sm:$0xf]
      %v1634 = vld [vmem:[%s569 + $0x8] sm:$0xf]
      %v1635 = vld [vmem:[%s569 + $0xc] sm:$0xf]
      %v1636 = vld [vmem:[%s569 + $0x10] sm:$0xf]
      %v1637 = vld [vmem:[%s569 + $0x14] sm:$0xf]
      %v1638 = vld [vmem:[%s569 + $0x18] sm:$0xf]
      %v1639 = vld [vmem:[%s569 + $0x1c] sm:$0xf]
      %v1640 = vld [vmem:[%s569 + $0x20] sm:$0xf]
      %v1641 = vld [vmem:[%s569 + $0x24] sm:$0xf]
      %v1642 = vld [vmem:[%s569 + $0x28] sm:$0xf]
      %v1643 = vld [vmem:[%s569 + $0x2c] sm:$0xf]
      %v1644 = vld [vmem:[%s569 + $0x30] sm:$0xf]
      %v1645 = vld [vmem:[%s569 + $0x34] sm:$0xf]
      %v1646 = vld [vmem:[%s569 + $0x38] sm:$0xf]
      %v1647 = vld [vmem:[%s569 + $0x3c] sm:$0xf]
      %v1648 = vld [vmem:[%s569 + $0x40] sm:$0xf]
      %v1649 = vld [vmem:[%s569 + $0x44] sm:$0xf]
      %v1650 = vld [vmem:[%s569 + $0x48] sm:$0xf]
      %v1651 = vld [vmem:[%s569 + $0x4c] sm:$0xf]
      %v1652 = vld [vmem:[%s569 + $0x50] sm:$0xf]
      %v1653 = vld [vmem:[%s569 + $0x54] sm:$0xf]
      %v1654 = vld [vmem:[%s569 + $0x58] sm:$0xf]
      %v1655 = vld [vmem:[%s569 + $0x5c] sm:$0xf]
      %v1656 = vld [vmem:[%s569 + $0x60] sm:$0xf]
      %v1657 = vld [vmem:[%s569 + $0x64] sm:$0xf]
      %v1658 = vld [vmem:[%s569 + $0x68] sm:$0xf]
      %v1659 = vld [vmem:[%s569 + $0x6c] sm:$0xf]
      %v1660 = vld [vmem:[%s569 + $0x70] sm:$0xf]
      %v1661 = vld [vmem:[%s569 + $0x74] sm:$0xf]
      %v1662 = vld [vmem:[%s569 + $0x78] sm:$0xf]
      %v1663 = vld [vmem:[%s569 + $0x7c] sm:$0xf]
      %s1664 = scalar_lea.vmem %s604, 6
      %v1665 = vld [vmem:[%s1664] sm:$0x3]
      %v1698 = vunpack.c.l.b16 %v1632
      %v1699 = vunpack.c.l.b16 %v1633
      %v1700 = vunpack.c.l.b16 %v1634
      %v1701 = vunpack.c.l.b16 %v1635
      %v1702 = vunpack.c.l.b16 %v1636
      %v1703 = vunpack.c.l.b16 %v1637
      %v1704 = vunpack.c.l.b16 %v1638
      %v1705 = vunpack.c.l.b16 %v1639
      %v1706 = vunpack.c.l.b16 %v1640
      %v1707 = vunpack.c.l.b16 %v1641
      %v1708 = vunpack.c.l.b16 %v1642
      %v1709 = vunpack.c.l.b16 %v1643
      %v1710 = vunpack.c.l.b16 %v1644
      %v1711 = vunpack.c.l.b16 %v1645
      %v1712 = vunpack.c.l.b16 %v1646
      %v1713 = vunpack.c.l.b16 %v1647
      %v1714 = vunpack.c.l.b16 %v1648
      %v1715 = vunpack.c.l.b16 %v1649
      %v1716 = vunpack.c.l.b16 %v1650
      %v1717 = vunpack.c.l.b16 %v1651
      %v1718 = vunpack.c.l.b16 %v1652
      %v1719 = vunpack.c.l.b16 %v1653
      %v1720 = vunpack.c.l.b16 %v1654
      %v1721 = vunpack.c.l.b16 %v1655
      %v1722 = vunpack.c.l.b16 %v1656
      %v1723 = vunpack.c.l.b16 %v1657
      %v1724 = vunpack.c.l.b16 %v1658
      %v1725 = vunpack.c.l.b16 %v1659
      %v1726 = vunpack.c.l.b16 %v1660
      %v1727 = vunpack.c.l.b16 %v1661
      %v1728 = vunpack.c.l.b16 %v1662
      %v1729 = vunpack.c.l.b16 %v1663
      %v1730 = vpack.c.b16 %v1699, %v1698
      %v1731 = vpack.c.b16 %v1701, %v1700
      %v1732 = vpack.c.b16 %v1703, %v1702
      %v1733 = vpack.c.b16 %v1705, %v1704
      %v1734 = vpack.c.b16 %v1707, %v1706
      %v1735 = vpack.c.b16 %v1709, %v1708
      %v1736 = vpack.c.b16 %v1711, %v1710
      %v1737 = vpack.c.b16 %v1713, %v1712
      %v1738 = vpack.c.b16 %v1715, %v1714
      %v1739 = vpack.c.b16 %v1717, %v1716
      %v1740 = vpack.c.b16 %v1719, %v1718
      %v1741 = vpack.c.b16 %v1721, %v1720
      %v1742 = vpack.c.b16 %v1723, %v1722
      %v1743 = vpack.c.b16 %v1725, %v1724
      %v1744 = vpack.c.b16 %v1727, %v1726
      %v1745 = vpack.c.b16 %v1729, %v1728
      %v1747 = vsel %vm765, %v1730, 0
      %v1750 = vsel %vm765, %v1731, 0
      %v1753 = vsel %vm765, %v1732, 0
      %v1756 = vsel %vm765, %v1733, 0
      %v1759 = vsel %vm765, %v1734, 0
      %v1762 = vsel %vm765, %v1735, 0
      %v1765 = vsel %vm765, %v1736, 0
      %v1768 = vsel %vm765, %v1737, 0
      %v1771 = vsel %vm765, %v1738, 0
      %v1774 = vsel %vm765, %v1739, 0
      %v1777 = vsel %vm765, %v1740, 0
      %v1780 = vsel %vm765, %v1741, 0
      %v1783 = vsel %vm765, %v1742, 0
      %v1786 = vsel %vm765, %v1743, 0
      %v1789 = vsel %vm765, %v1744, 0
      %v1792 = vsel %vm765, %v1745, 0
      %v1795 = vand.u32 %v1665, %v817
      %1797 = vmatprep.subr.bf16.mxu0 0
      %1798 = vmatpush1.bf16.msra.mxu0 %v1795
      %1799 = vmatprep.subr.bf16.mxu0 0
      %1800 = vmatpush1.bf16.msra.mxu0 0
      %1801 = vmatprep.subr.bf16.mxu0 0
      %1802 = vmatpush1.bf16.msra.mxu0 0
      %1803 = vmatprep.subr.bf16.mxu0 0
      %1804 = vmatpush1.bf16.msra.mxu0 0
      %1805 = vmatprep.subr.bf16.mxu0 0
      %1806 = vmatpush1.bf16.msra.mxu0 0
      %1807 = vmatprep.subr.bf16.mxu0 0
      %1808 = vmatpush1.bf16.msra.mxu0 0
      %1809 = vmatprep.subr.bf16.mxu0 0
      %1810 = vmatpush1.bf16.msra.mxu0 0
      %1811 = vmatprep.subr.bf16.mxu0 0
      %1812 = vmatpush1.bf16.msra.mxu0 0
      %1813 = vmatprep.subr.bf16.mxu0 0
      %1814 = vmatpush1.bf16.msra.mxu0 0
      %1815 = vmatprep.subr.bf16.mxu0 0
      %1816 = vmatpush1.bf16.msra.mxu0 0
      %1817 = vmatprep.subr.bf16.mxu0 0
      %1818 = vmatpush1.bf16.msra.mxu0 0
      %1819 = vmatprep.subr.bf16.mxu0 0
      %1820 = vmatpush1.bf16.msra.mxu0 0
      %1821 = vmatprep.subr.bf16.mxu0 0
      %1822 = vmatpush1.bf16.msra.mxu0 0
      %1823 = vmatprep.subr.bf16.mxu0 0
      %1824 = vmatpush1.bf16.msra.mxu0 0
      %1825 = vmatprep.subr.bf16.mxu0 0
      %1826 = vmatpush1.bf16.msra.mxu0 0
      %1827 = vmatprep.subr.bf16.mxu0 0
      %1828 = vmatpush1.bf16.msra.mxu0 0
      %1829 = vmatprep.mubr.bf16.mxu0 0
      %1830 = vmatmul.mubr.bf16.gmra.mrb[0].mxu0 %v1747
      %v1831 = vpop.f32.mrb[0].mxu0
      %v1832 = vadd.f32 0.0, %v1831
      %v1833 = vpop.f32.mrb[0].mxu0
      %v1834 = vpop.f32.mrb[0].mxu0
      %v1835 = vadd.f32 0.0, %v1834
      %v1836 = vpop.f32.mrb[0].mxu0
      %1837 = vmatprep.mubr.bf16.mxu0 0
      %1838 = vmatmul.mubr.bf16.gmra.mrb[0].mxu0 %v1750
      %v1839 = vpop.f32.mrb[0].mxu0
      %v1840 = vadd.f32 0.0, %v1839
      %v1841 = vpop.f32.mrb[0].mxu0
      %v1842 = vpop.f32.mrb[0].mxu0
      %v1843 = vadd.f32 0.0, %v1842
      %v1844 = vpop.f32.mrb[0].mxu0
      %1845 = vmatprep.mubr.bf16.mxu0 0
      %1846 = vmatmul.mubr.bf16.gmra.mrb[0].mxu0 %v1753
      %v1847 = vpop.f32.mrb[0].mxu0
      %v1848 = vadd.f32 0.0, %v1847
      %v1849 = vpop.f32.mrb[0].mxu0
      %v1850 = vpop.f32.mrb[0].mxu0
      %v1851 = vadd.f32 0.0, %v1850
      %v1852 = vpop.f32.mrb[0].mxu0
      %1853 = vmatprep.mubr.bf16.mxu0 0
      %1854 = vmatmul.mubr.bf16.gmra.mrb[0].mxu0 %v1756
      %v1855 = vpop.f32.mrb[0].mxu0
      %v1856 = vadd.f32 0.0, %v1855
      %v1857 = vpop.f32.mrb[0].mxu0
      %v1858 = vpop.f32.mrb[0].mxu0
      %v1859 = vadd.f32 0.0, %v1858
      %v1860 = vpop.f32.mrb[0].mxu0
      %1861 = vmatprep.mubr.bf16.mxu0 0
      %1862 = vmatmul.mubr.bf16.gmra.mrb[0].mxu0 %v1759
      %v1863 = vpop.f32.mrb[0].mxu0
      %v1864 = vadd.f32 0.0, %v1863
      %v1865 = vpop.f32.mrb[0].mxu0
      %v1866 = vpop.f32.mrb[0].mxu0
      %v1867 = vadd.f32 0.0, %v1866
      %v1868 = vpop.f32.mrb[0].mxu0
      %1869 = vmatprep.mubr.bf16.mxu0 0
      %1870 = vmatmul.mubr.bf16.gmra.mrb[0].mxu0 %v1762
      %v1871 = vpop.f32.mrb[0].mxu0
      %v1872 = vadd.f32 0.0, %v1871
      %v1873 = vpop.f32.mrb[0].mxu0
      %v1874 = vpop.f32.mrb[0].mxu0
      %v1875 = vadd.f32 0.0, %v1874
      %v1876 = vpop.f32.mrb[0].mxu0
      %1877 = vmatprep.mubr.bf16.mxu0 0
      %1878 = vmatmul.mubr.bf16.gmra.mrb[0].mxu0 %v1765
      %v1879 = vpop.f32.mrb[0].mxu0
      %v1880 = vadd.f32 0.0, %v1879
      %v1881 = vpop.f32.mrb[0].mxu0
      %v1882 = vpop.f32.mrb[0].mxu0
      %v1883 = vadd.f32 0.0, %v1882
      %v1884 = vpop.f32.mrb[0].mxu0
      %1885 = vmatprep.mubr.bf16.mxu0 0
      %1886 = vmatmul.mubr.bf16.gmra.mrb[0].mxu0 %v1768
      %v1887 = vpop.f32.mrb[0].mxu0
      %v1888 = vadd.f32 0.0, %v1887
      %v1889 = vpop.f32.mrb[0].mxu0
      %v1890 = vpop.f32.mrb[0].mxu0
      %v1891 = vadd.f32 0.0, %v1890
      %v1892 = vpop.f32.mrb[0].mxu0
      %1893 = vmatprep.mubr.bf16.mxu0 0
      %1894 = vmatmul.mubr.bf16.gmra.mrb[0].mxu0 %v1771
      %v1895 = vpop.f32.mrb[0].mxu0
      %v1896 = vadd.f32 0.0, %v1895
      %v1897 = vpop.f32.mrb[0].mxu0
      %v1898 = vpop.f32.mrb[0].mxu0
      %v1899 = vadd.f32 0.0, %v1898
      %v1900 = vpop.f32.mrb[0].mxu0
      %1901 = vmatprep.mubr.bf16.mxu0 0
      %1902 = vmatmul.mubr.bf16.gmra.mrb[0].mxu0 %v1774
      %v1903 = vpop.f32.mrb[0].mxu0
      %v1904 = vadd.f32 0.0, %v1903
      %v1905 = vpop.f32.mrb[0].mxu0
      %v1906 = vpop.f32.mrb[0].mxu0
      %v1907 = vadd.f32 0.0, %v1906
      %v1908 = vpop.f32.mrb[0].mxu0
      %1909 = vmatprep.mubr.bf16.mxu0 0
      %1910 = vmatmul.mubr.bf16.gmra.mrb[0].mxu0 %v1777
      %v1911 = vpop.f32.mrb[0].mxu0
      %v1912 = vadd.f32 0.0, %v1911
      %v1913 = vpop.f32.mrb[0].mxu0
      %v1914 = vpop.f32.mrb[0].mxu0
      %v1915 = vadd.f32 0.0, %v1914
      %v1916 = vpop.f32.mrb[0].mxu0
      %1917 = vmatprep.mubr.bf16.mxu0 0
      %1918 = vmatmul.mubr.bf16.gmra.mrb[0].mxu0 %v1780
      %v1919 = vpop.f32.mrb[0].mxu0
      %v1920 = vadd.f32 0.0, %v1919
      %v1921 = vpop.f32.mrb[0].mxu0
      %v1922 = vpop.f32.mrb[0].mxu0
      %v1923 = vadd.f32 0.0, %v1922
      %v1924 = vpop.f32.mrb[0].mxu0
      %1925 = vmatprep.mubr.bf16.mxu0 0
      %1926 = vmatmul.mubr.bf16.gmra.mrb[0].mxu0 %v1783
      %v1927 = vpop.f32.mrb[0].mxu0
      %v1928 = vadd.f32 0.0, %v1927
      %v1929 = vpop.f32.mrb[0].mxu0
      %v1930 = vpop.f32.mrb[0].mxu0
      %v1931 = vadd.f32 0.0, %v1930
      %v1932 = vpop.f32.mrb[0].mxu0
      %1933 = vmatprep.mubr.bf16.mxu0 0
      %1934 = vmatmul.mubr.bf16.gmra.mrb[0].mxu0 %v1786
      %v1935 = vpop.f32.mrb[0].mxu0
      %v1936 = vadd.f32 0.0, %v1935
      %v1937 = vpop.f32.mrb[0].mxu0
      %v1938 = vpop.f32.mrb[0].mxu0
      %v1939 = vadd.f32 0.0, %v1938
      %v1940 = vpop.f32.mrb[0].mxu0
      %1941 = vmatprep.mubr.bf16.mxu0 0
      %1942 = vmatmul.mubr.bf16.gmra.mrb[0].mxu0 %v1789
      %v1943 = vpop.f32.mrb[0].mxu0
      %v1944 = vadd.f32 0.0, %v1943
      %v1945 = vpop.f32.mrb[0].mxu0
      %v1946 = vpop.f32.mrb[0].mxu0
      %v1947 = vadd.f32 0.0, %v1946
      %v1948 = vpop.f32.mrb[0].mxu0
      %1949 = vmatprep.mubr.bf16.mxu0 0
      %1950 = vmatmul.mubr.bf16.gmra.mrb[0].mxu0 %v1792
      %v1951 = vpop.f32.mrb[0].mxu0
      %v1952 = vadd.f32 0.0, %v1951
      %v1953 = vpop.f32.mrb[0].mxu0
      %v1954 = vpop.f32.mrb[0].mxu0
      %v1955 = vadd.f32 0.0, %v1954
      %v1956 = vpop.f32.mrb[0].mxu0
      %1957 = vdwg.mxu0
      %v1958 = vadd.f32 %v1600, %v1832
      %v1959 = vadd.f32 %v1601, %v1835
      %v1960 = vadd.f32 %v1602, %v1840
      %v1961 = vadd.f32 %v1603, %v1843
      %v1962 = vadd.f32 %v1604, %v1848
      %v1963 = vadd.f32 %v1605, %v1851
      %v1964 = vadd.f32 %v1606, %v1856
      %v1965 = vadd.f32 %v1607, %v1859
      %v1966 = vadd.f32 %v1608, %v1864
      %v1967 = vadd.f32 %v1609, %v1867
      %v1968 = vadd.f32 %v1610, %v1872
      %v1969 = vadd.f32 %v1611, %v1875
      %v1970 = vadd.f32 %v1612, %v1880
      %v1971 = vadd.f32 %v1613, %v1883
      %v1972 = vadd.f32 %v1614, %v1888
      %v1973 = vadd.f32 %v1615, %v1891
      %v1974 = vadd.f32 %v1616, %v1896
      %v1975 = vadd.f32 %v1617, %v1899
      %v1976 = vadd.f32 %v1618, %v1904
      %v1977 = vadd.f32 %v1619, %v1907
      %v1978 = vadd.f32 %v1620, %v1912
      %v1979 = vadd.f32 %v1621, %v1915
      %v1980 = vadd.f32 %v1622, %v1920
      %v1981 = vadd.f32 %v1623, %v1923
      %v1982 = vadd.f32 %v1624, %v1928
      %v1983 = vadd.f32 %v1625, %v1931
      %v1984 = vadd.f32 %v1626, %v1936
      %v1985 = vadd.f32 %v1627, %v1939
      %v1986 = vadd.f32 %v1628, %v1944
      %v1987 = vadd.f32 %v1629, %v1947
      %v1988 = vadd.f32 %v1630, %v1952
      %v1989 = vadd.f32 %v1631, %v1955
      %v1990 = vld [vmem:[%s575] sm:$0xf]
      %v1991 = vld [vmem:[%s575 + $0x4] sm:$0xf]
      %v1992 = vld [vmem:[%s575 + $0x8] sm:$0xf]
      %v1993 = vld [vmem:[%s575 + $0xc] sm:$0xf]
      %v1994 = vld [vmem:[%s575 + $0x10] sm:$0xf]
      %v1995 = vld [vmem:[%s575 + $0x14] sm:$0xf]
      %v1996 = vld [vmem:[%s575 + $0x18] sm:$0xf]
      %v1997 = vld [vmem:[%s575 + $0x1c] sm:$0xf]
      %v1998 = vld [vmem:[%s575 + $0x20] sm:$0xf]
      %v1999 = vld [vmem:[%s575 + $0x24] sm:$0xf]
      %v2000 = vld [vmem:[%s575 + $0x28] sm:$0xf]
      %v2001 = vld [vmem:[%s575 + $0x2c] sm:$0xf]
      %v2002 = vld [vmem:[%s575 + $0x30] sm:$0xf]
      %v2003 = vld [vmem:[%s575 + $0x34] sm:$0xf]
      %v2004 = vld [vmem:[%s575 + $0x38] sm:$0xf]
      %v2005 = vld [vmem:[%s575 + $0x3c] sm:$0xf]
      %v2006 = vld [vmem:[%s575 + $0x40] sm:$0xf]
      %v2007 = vld [vmem:[%s575 + $0x44] sm:$0xf]
      %v2008 = vld [vmem:[%s575 + $0x48] sm:$0xf]
      %v2009 = vld [vmem:[%s575 + $0x4c] sm:$0xf]
      %v2010 = vld [vmem:[%s575 + $0x50] sm:$0xf]
      %v2011 = vld [vmem:[%s575 + $0x54] sm:$0xf]
      %v2012 = vld [vmem:[%s575 + $0x58] sm:$0xf]
      %v2013 = vld [vmem:[%s575 + $0x5c] sm:$0xf]
      %v2014 = vld [vmem:[%s575 + $0x60] sm:$0xf]
      %v2015 = vld [vmem:[%s575 + $0x64] sm:$0xf]
      %v2016 = vld [vmem:[%s575 + $0x68] sm:$0xf]
      %v2017 = vld [vmem:[%s575 + $0x6c] sm:$0xf]
      %v2018 = vld [vmem:[%s575 + $0x70] sm:$0xf]
      %v2019 = vld [vmem:[%s575 + $0x74] sm:$0xf]
      %v2020 = vld [vmem:[%s575 + $0x78] sm:$0xf]
      %v2021 = vld [vmem:[%s575 + $0x7c] sm:$0xf]
      %s2022 = scalar_lea.vmem %s604, 8
      %v2023 = vld [vmem:[%s2022] sm:$0x3]
      %v2056 = vunpack.c.l.b16 %v1990
      %v2057 = vunpack.c.l.b16 %v1991
      %v2058 = vunpack.c.l.b16 %v1992
      %v2059 = vunpack.c.l.b16 %v1993
      %v2060 = vunpack.c.l.b16 %v1994
      %v2061 = vunpack.c.l.b16 %v1995
      %v2062 = vunpack.c.l.b16 %v1996
      %v2063 = vunpack.c.l.b16 %v1997
      %v2064 = vunpack.c.l.b16 %v1998
      %v2065 = vunpack.c.l.b16 %v1999
      %v2066 = vunpack.c.l.b16 %v2000
      %v2067 = vunpack.c.l.b16 %v2001
      %v2068 = vunpack.c.l.b16 %v2002
      %v2069 = vunpack.c.l.b16 %v2003
      %v2070 = vunpack.c.l.b16 %v2004
      %v2071 = vunpack.c.l.b16 %v2005
      %v2072 = vunpack.c.l.b16 %v2006
      %v2073 = vunpack.c.l.b16 %v2007
      %v2074 = vunpack.c.l.b16 %v2008
      %v2075 = vunpack.c.l.b16 %v2009
      %v2076 = vunpack.c.l.b16 %v2010
      %v2077 = vunpack.c.l.b16 %v2011
      %v2078 = vunpack.c.l.b16 %v2012
      %v2079 = vunpack.c.l.b16 %v2013
      %v2080 = vunpack.c.l.b16 %v2014
      %v2081 = vunpack.c.l.b16 %v2015
      %v2082 = vunpack.c.l.b16 %v2016
      %v2083 = vunpack.c.l.b16 %v2017
      %v2084 = vunpack.c.l.b16 %v2018
      %v2085 = vunpack.c.l.b16 %v2019
      %v2086 = vunpack.c.l.b16 %v2020
      %v2087 = vunpack.c.l.b16 %v2021
      %v2088 = vpack.c.b16 %v2057, %v2056
      %v2089 = vpack.c.b16 %v2059, %v2058
      %v2090 = vpack.c.b16 %v2061, %v2060
      %v2091 = vpack.c.b16 %v2063, %v2062
      %v2092 = vpack.c.b16 %v2065, %v2064
      %v2093 = vpack.c.b16 %v2067, %v2066
      %v2094 = vpack.c.b16 %v2069, %v2068
      %v2095 = vpack.c.b16 %v2071, %v2070
      %v2096 = vpack.c.b16 %v2073, %v2072
      %v2097 = vpack.c.b16 %v2075, %v2074
      %v2098 = vpack.c.b16 %v2077, %v2076
      %v2099 = vpack.c.b16 %v2079, %v2078
      %v2100 = vpack.c.b16 %v2081, %v2080
      %v2101 = vpack.c.b16 %v2083, %v2082
      %v2102 = vpack.c.b16 %v2085, %v2084
      %v2103 = vpack.c.b16 %v2087, %v2086
      %v2105 = vsel %vm765, %v2088, 0
      %v2108 = vsel %vm765, %v2089, 0
      %v2111 = vsel %vm765, %v2090, 0
      %v2114 = vsel %vm765, %v2091, 0
      %v2117 = vsel %vm765, %v2092, 0
      %v2120 = vsel %vm765, %v2093, 0
      %v2123 = vsel %vm765, %v2094, 0
      %v2126 = vsel %vm765, %v2095, 0
      %v2129 = vsel %vm765, %v2096, 0
      %v2132 = vsel %vm765, %v2097, 0
      %v2135 = vsel %vm765, %v2098, 0
      %v2138 = vsel %vm765, %v2099, 0
      %v2141 = vsel %vm765, %v2100, 0
      %v2144 = vsel %vm765, %v2101, 0
      %v2147 = vsel %vm765, %v2102, 0
      %v2150 = vsel %vm765, %v2103, 0
      %v2153 = vand.u32 %v2023, %v817
      %2155 = vmatprep.subr.bf16.mxu0 0
      %2156 = vmatpush1.bf16.msra.mxu0 %v2153
      %2157 = vmatprep.subr.bf16.mxu0 0
      %2158 = vmatpush1.bf16.msra.mxu0 0
      %2159 = vmatprep.subr.bf16.mxu0 0
      %2160 = vmatpush1.bf16.msra.mxu0 0
      %2161 = vmatprep.subr.bf16.mxu0 0
      %2162 = vmatpush1.bf16.msra.mxu0 0
      %2163 = vmatprep.subr.bf16.mxu0 0
      %2164 = vmatpush1.bf16.msra.mxu0 0
      %2165 = vmatprep.subr.bf16.mxu0 0
      %2166 = vmatpush1.bf16.msra.mxu0 0
      %2167 = vmatprep.subr.bf16.mxu0 0
      %2168 = vmatpush1.bf16.msra.mxu0 0
      %2169 = vmatprep.subr.bf16.mxu0 0
      %2170 = vmatpush1.bf16.msra.mxu0 0
      %2171 = vmatprep.subr.bf16.mxu0 0
      %2172 = vmatpush1.bf16.msra.mxu0 0
      %2173 = vmatprep.subr.bf16.mxu0 0
      %2174 = vmatpush1.bf16.msra.mxu0 0
      %2175 = vmatprep.subr.bf16.mxu0 0
      %2176 = vmatpush1.bf16.msra.mxu0 0
      %2177 = vmatprep.subr.bf16.mxu0 0
      %2178 = vmatpush1.bf16.msra.mxu0 0
      %2179 = vmatprep.subr.bf16.mxu0 0
      %2180 = vmatpush1.bf16.msra.mxu0 0
      %2181 = vmatprep.subr.bf16.mxu0 0
      %2182 = vmatpush1.bf16.msra.mxu0 0
      %2183 = vmatprep.subr.bf16.mxu0 0
      %2184 = vmatpush1.bf16.msra.mxu0 0
      %2185 = vmatprep.subr.bf16.mxu0 0
      %2186 = vmatpush1.bf16.msra.mxu0 0
      %2187 = vmatprep.mubr.bf16.mxu0 0
      %2188 = vmatmul.mubr.bf16.gmra.mrb[0].mxu0 %v2105
      %v2189 = vpop.f32.mrb[0].mxu0
      %v2190 = vadd.f32 0.0, %v2189
      %v2191 = vpop.f32.mrb[0].mxu0
      %v2192 = vpop.f32.mrb[0].mxu0
      %v2193 = vadd.f32 0.0, %v2192
      %v2194 = vpop.f32.mrb[0].mxu0
      %2195 = vmatprep.mubr.bf16.mxu0 0
      %2196 = vmatmul.mubr.bf16.gmra.mrb[0].mxu0 %v2108
      %v2197 = vpop.f32.mrb[0].mxu0
      %v2198 = vadd.f32 0.0, %v2197
      %v2199 = vpop.f32.mrb[0].mxu0
      %v2200 = vpop.f32.mrb[0].mxu0
      %v2201 = vadd.f32 0.0, %v2200
      %v2202 = vpop.f32.mrb[0].mxu0
      %2203 = vmatprep.mubr.bf16.mxu0 0
      %2204 = vmatmul.mubr.bf16.gmra.mrb[0].mxu0 %v2111
      %v2205 = vpop.f32.mrb[0].mxu0
      %v2206 = vadd.f32 0.0, %v2205
      %v2207 = vpop.f32.mrb[0].mxu0
      %v2208 = vpop.f32.mrb[0].mxu0
      %v2209 = vadd.f32 0.0, %v2208
      %v2210 = vpop.f32.mrb[0].mxu0
      %2211 = vmatprep.mubr.bf16.mxu0 0
      %2212 = vmatmul.mubr.bf16.gmra.mrb[0].mxu0 %v2114
      %v2213 = vpop.f32.mrb[0].mxu0
      %v2214 = vadd.f32 0.0, %v2213
      %v2215 = vpop.f32.mrb[0].mxu0
      %v2216 = vpop.f32.mrb[0].mxu0
      %v2217 = vadd.f32 0.0, %v2216
      %v2218 = vpop.f32.mrb[0].mxu0
      %2219 = vmatprep.mubr.bf16.mxu0 0
      %2220 = vmatmul.mubr.bf16.gmra.mrb[0].mxu0 %v2117
      %v2221 = vpop.f32.mrb[0].mxu0
      %v2222 = vadd.f32 0.0, %v2221
      %v2223 = vpop.f32.mrb[0].mxu0
      %v2224 = vpop.f32.mrb[0].mxu0
      %v2225 = vadd.f32 0.0, %v2224
      %v2226 = vpop.f32.mrb[0].mxu0
      %2227 = vmatprep.mubr.bf16.mxu0 0
      %2228 = vmatmul.mubr.bf16.gmra.mrb[0].mxu0 %v2120
      %v2229 = vpop.f32.mrb[0].mxu0
      %v2230 = vadd.f32 0.0, %v2229
      %v2231 = vpop.f32.mrb[0].mxu0
      %v2232 = vpop.f32.mrb[0].mxu0
      %v2233 = vadd.f32 0.0, %v2232
      %v2234 = vpop.f32.mrb[0].mxu0
      %2235 = vmatprep.mubr.bf16.mxu0 0
      %2236 = vmatmul.mubr.bf16.gmra.mrb[0].mxu0 %v2123
      %v2237 = vpop.f32.mrb[0].mxu0
      %v2238 = vadd.f32 0.0, %v2237
      %v2239 = vpop.f32.mrb[0].mxu0
      %v2240 = vpop.f32.mrb[0].mxu0
      %v2241 = vadd.f32 0.0, %v2240
      %v2242 = vpop.f32.mrb[0].mxu0
      %2243 = vmatprep.mubr.bf16.mxu0 0
      %2244 = vmatmul.mubr.bf16.gmra.mrb[0].mxu0 %v2126
      %v2245 = vpop.f32.mrb[0].mxu0
      %v2246 = vadd.f32 0.0, %v2245
      %v2247 = vpop.f32.mrb[0].mxu0
      %v2248 = vpop.f32.mrb[0].mxu0
      %v2249 = vadd.f32 0.0, %v2248
      %v2250 = vpop.f32.mrb[0].mxu0
      %2251 = vmatprep.mubr.bf16.mxu0 0
      %2252 = vmatmul.mubr.bf16.gmra.mrb[0].mxu0 %v2129
      %v2253 = vpop.f32.mrb[0].mxu0
      %v2254 = vadd.f32 0.0, %v2253
      %v2255 = vpop.f32.mrb[0].mxu0
      %v2256 = vpop.f32.mrb[0].mxu0
      %v2257 = vadd.f32 0.0, %v2256
      %v2258 = vpop.f32.mrb[0].mxu0
      %2259 = vmatprep.mubr.bf16.mxu0 0
      %2260 = vmatmul.mubr.bf16.gmra.mrb[0].mxu0 %v2132
      %v2261 = vpop.f32.mrb[0].mxu0
      %v2262 = vadd.f32 0.0, %v2261
      %v2263 = vpop.f32.mrb[0].mxu0
      %v2264 = vpop.f32.mrb[0].mxu0
      %v2265 = vadd.f32 0.0, %v2264
      %v2266 = vpop.f32.mrb[0].mxu0
      %2267 = vmatprep.mubr.bf16.mxu0 0
      %2268 = vmatmul.mubr.bf16.gmra.mrb[0].mxu0 %v2135
      %v2269 = vpop.f32.mrb[0].mxu0
      %v2270 = vadd.f32 0.0, %v2269
      %v2271 = vpop.f32.mrb[0].mxu0
      %v2272 = vpop.f32.mrb[0].mxu0
      %v2273 = vadd.f32 0.0, %v2272
      %v2274 = vpop.f32.mrb[0].mxu0
      %2275 = vmatprep.mubr.bf16.mxu0 0
      %2276 = vmatmul.mubr.bf16.gmra.mrb[0].mxu0 %v2138
      %v2277 = vpop.f32.mrb[0].mxu0
      %v2278 = vadd.f32 0.0, %v2277
      %v2279 = vpop.f32.mrb[0].mxu0
      %v2280 = vpop.f32.mrb[0].mxu0
      %v2281 = vadd.f32 0.0, %v2280
      %v2282 = vpop.f32.mrb[0].mxu0
      %2283 = vmatprep.mubr.bf16.mxu0 0
      %2284 = vmatmul.mubr.bf16.gmra.mrb[0].mxu0 %v2141
      %v2285 = vpop.f32.mrb[0].mxu0
      %v2286 = vadd.f32 0.0, %v2285
      %v2287 = vpop.f32.mrb[0].mxu0
      %v2288 = vpop.f32.mrb[0].mxu0
      %v2289 = vadd.f32 0.0, %v2288
      %v2290 = vpop.f32.mrb[0].mxu0
      %2291 = vmatprep.mubr.bf16.mxu0 0
      %2292 = vmatmul.mubr.bf16.gmra.mrb[0].mxu0 %v2144
      %v2293 = vpop.f32.mrb[0].mxu0
      %v2294 = vadd.f32 0.0, %v2293
      %v2295 = vpop.f32.mrb[0].mxu0
      %v2296 = vpop.f32.mrb[0].mxu0
      %v2297 = vadd.f32 0.0, %v2296
      %v2298 = vpop.f32.mrb[0].mxu0
      %2299 = vmatprep.mubr.bf16.mxu0 0
      %2300 = vmatmul.mubr.bf16.gmra.mrb[0].mxu0 %v2147
      %v2301 = vpop.f32.mrb[0].mxu0
      %v2302 = vadd.f32 0.0, %v2301
      %v2303 = vpop.f32.mrb[0].mxu0
      %v2304 = vpop.f32.mrb[0].mxu0
      %v2305 = vadd.f32 0.0, %v2304
      %v2306 = vpop.f32.mrb[0].mxu0
      %2307 = vmatprep.mubr.bf16.mxu0 0
      %2308 = vmatmul.mubr.bf16.gmra.mrb[0].mxu0 %v2150
      %v2309 = vpop.f32.mrb[0].mxu0
      %v2310 = vadd.f32 0.0, %v2309
      %v2311 = vpop.f32.mrb[0].mxu0
      %v2312 = vpop.f32.mrb[0].mxu0
      %v2313 = vadd.f32 0.0, %v2312
      %v2314 = vpop.f32.mrb[0].mxu0
      %2315 = vdwg.mxu0
      %v2316 = vadd.f32 %v1958, %v2190
      %v2317 = vadd.f32 %v1959, %v2193
      %v2318 = vadd.f32 %v1960, %v2198
      %v2319 = vadd.f32 %v1961, %v2201
      %v2320 = vadd.f32 %v1962, %v2206
      %v2321 = vadd.f32 %v1963, %v2209
      %v2322 = vadd.f32 %v1964, %v2214
      %v2323 = vadd.f32 %v1965, %v2217
      %v2324 = vadd.f32 %v1966, %v2222
      %v2325 = vadd.f32 %v1967, %v2225
      %v2326 = vadd.f32 %v1968, %v2230
      %v2327 = vadd.f32 %v1969, %v2233
      %v2328 = vadd.f32 %v1970, %v2238
      %v2329 = vadd.f32 %v1971, %v2241
      %v2330 = vadd.f32 %v1972, %v2246
      %v2331 = vadd.f32 %v1973, %v2249
      %v2332 = vadd.f32 %v1974, %v2254
      %v2333 = vadd.f32 %v1975, %v2257
      %v2334 = vadd.f32 %v1976, %v2262
      %v2335 = vadd.f32 %v1977, %v2265
      %v2336 = vadd.f32 %v1978, %v2270
      %v2337 = vadd.f32 %v1979, %v2273
      %v2338 = vadd.f32 %v1980, %v2278
      %v2339 = vadd.f32 %v1981, %v2281
      %v2340 = vadd.f32 %v1982, %v2286
      %v2341 = vadd.f32 %v1983, %v2289
      %v2342 = vadd.f32 %v1984, %v2294
      %v2343 = vadd.f32 %v1985, %v2297
      %v2344 = vadd.f32 %v1986, %v2302
      %v2345 = vadd.f32 %v1987, %v2305
      %v2346 = vadd.f32 %v1988, %v2310
      %v2347 = vadd.f32 %v1989, %v2313
      %v2348 = vld [vmem:[%s581] sm:$0xf]
      %v2349 = vld [vmem:[%s581 + $0x4] sm:$0xf]
      %v2350 = vld [vmem:[%s581 + $0x8] sm:$0xf]
      %v2351 = vld [vmem:[%s581 + $0xc] sm:$0xf]
      %v2352 = vld [vmem:[%s581 + $0x10] sm:$0xf]
      %v2353 = vld [vmem:[%s581 + $0x14] sm:$0xf]
      %v2354 = vld [vmem:[%s581 + $0x18] sm:$0xf]
      %v2355 = vld [vmem:[%s581 + $0x1c] sm:$0xf]
      %v2356 = vld [vmem:[%s581 + $0x20] sm:$0xf]
      %v2357 = vld [vmem:[%s581 + $0x24] sm:$0xf]
      %v2358 = vld [vmem:[%s581 + $0x28] sm:$0xf]
      %v2359 = vld [vmem:[%s581 + $0x2c] sm:$0xf]
      %v2360 = vld [vmem:[%s581 + $0x30] sm:$0xf]
      %v2361 = vld [vmem:[%s581 + $0x34] sm:$0xf]
      %v2362 = vld [vmem:[%s581 + $0x38] sm:$0xf]
      %v2363 = vld [vmem:[%s581 + $0x3c] sm:$0xf]
      %v2364 = vld [vmem:[%s581 + $0x40] sm:$0xf]
      %v2365 = vld [vmem:[%s581 + $0x44] sm:$0xf]
      %v2366 = vld [vmem:[%s581 + $0x48] sm:$0xf]
      %v2367 = vld [vmem:[%s581 + $0x4c] sm:$0xf]
      %v2368 = vld [vmem:[%s581 + $0x50] sm:$0xf]
      %v2369 = vld [vmem:[%s581 + $0x54] sm:$0xf]
      %v2370 = vld [vmem:[%s581 + $0x58] sm:$0xf]
      %v2371 = vld [vmem:[%s581 + $0x5c] sm:$0xf]
      %v2372 = vld [vmem:[%s581 + $0x60] sm:$0xf]
      %v2373 = vld [vmem:[%s581 + $0x64] sm:$0xf]
      %v2374 = vld [vmem:[%s581 + $0x68] sm:$0xf]
      %v2375 = vld [vmem:[%s581 + $0x6c] sm:$0xf]
      %v2376 = vld [vmem:[%s581 + $0x70] sm:$0xf]
      %v2377 = vld [vmem:[%s581 + $0x74] sm:$0xf]
      %v2378 = vld [vmem:[%s581 + $0x78] sm:$0xf]
      %v2379 = vld [vmem:[%s581 + $0x7c] sm:$0xf]
      %s2380 = scalar_lea.vmem %s604, 10
      %v2381 = vld [vmem:[%s2380] sm:$0x3]
      %v2414 = vunpack.c.l.b16 %v2348
      %v2415 = vunpack.c.l.b16 %v2349
      %v2416 = vunpack.c.l.b16 %v2350
      %v2417 = vunpack.c.l.b16 %v2351
      %v2418 = vunpack.c.l.b16 %v2352
      %v2419 = vunpack.c.l.b16 %v2353
      %v2420 = vunpack.c.l.b16 %v2354
      %v2421 = vunpack.c.l.b16 %v2355
      %v2422 = vunpack.c.l.b16 %v2356
      %v2423 = vunpack.c.l.b16 %v2357
      %v2424 = vunpack.c.l.b16 %v2358
      %v2425 = vunpack.c.l.b16 %v2359
      %v2426 = vunpack.c.l.b16 %v2360
      %v2427 = vunpack.c.l.b16 %v2361
      %v2428 = vunpack.c.l.b16 %v2362
      %v2429 = vunpack.c.l.b16 %v2363
      %v2430 = vunpack.c.l.b16 %v2364
      %v2431 = vunpack.c.l.b16 %v2365
      %v2432 = vunpack.c.l.b16 %v2366
      %v2433 = vunpack.c.l.b16 %v2367
      %v2434 = vunpack.c.l.b16 %v2368
      %v2435 = vunpack.c.l.b16 %v2369
      %v2436 = vunpack.c.l.b16 %v2370
      %v2437 = vunpack.c.l.b16 %v2371
      %v2438 = vunpack.c.l.b16 %v2372
      %v2439 = vunpack.c.l.b16 %v2373
      %v2440 = vunpack.c.l.b16 %v2374
      %v2441 = vunpack.c.l.b16 %v2375
      %v2442 = vunpack.c.l.b16 %v2376
      %v2443 = vunpack.c.l.b16 %v2377
      %v2444 = vunpack.c.l.b16 %v2378
      %v2445 = vunpack.c.l.b16 %v2379
      %v2446 = vpack.c.b16 %v2415, %v2414
      %v2447 = vpack.c.b16 %v2417, %v2416
      %v2448 = vpack.c.b16 %v2419, %v2418
      %v2449 = vpack.c.b16 %v2421, %v2420
      %v2450 = vpack.c.b16 %v2423, %v2422
      %v2451 = vpack.c.b16 %v2425, %v2424
      %v2452 = vpack.c.b16 %v2427, %v2426
      %v2453 = vpack.c.b16 %v2429, %v2428
      %v2454 = vpack.c.b16 %v2431, %v2430
      %v2455 = vpack.c.b16 %v2433, %v2432
      %v2456 = vpack.c.b16 %v2435, %v2434
      %v2457 = vpack.c.b16 %v2437, %v2436
      %v2458 = vpack.c.b16 %v2439, %v2438
      %v2459 = vpack.c.b16 %v2441, %v2440
      %v2460 = vpack.c.b16 %v2443, %v2442
      %v2461 = vpack.c.b16 %v2445, %v2444
      %v2463 = vsel %vm765, %v2446, 0
      %v2466 = vsel %vm765, %v2447, 0
      %v2469 = vsel %vm765, %v2448, 0
      %v2472 = vsel %vm765, %v2449, 0
      %v2475 = vsel %vm765, %v2450, 0
      %v2478 = vsel %vm765, %v2451, 0
      %v2481 = vsel %vm765, %v2452, 0
      %v2484 = vsel %vm765, %v2453, 0
      %v2487 = vsel %vm765, %v2454, 0
      %v2490 = vsel %vm765, %v2455, 0
      %v2493 = vsel %vm765, %v2456, 0
      %v2496 = vsel %vm765, %v2457, 0
      %v2499 = vsel %vm765, %v2458, 0
      %v2502 = vsel %vm765, %v2459, 0
      %v2505 = vsel %vm765, %v2460, 0
      %v2508 = vsel %vm765, %v2461, 0
      %v2511 = vand.u32 %v2381, %v817
      %2513 = vmatprep.subr.bf16.mxu0 0
      %2514 = vmatpush1.bf16.msra.mxu0 %v2511
      %2515 = vmatprep.subr.bf16.mxu0 0
      %2516 = vmatpush1.bf16.msra.mxu0 0
      %2517 = vmatprep.subr.bf16.mxu0 0
      %2518 = vmatpush1.bf16.msra.mxu0 0
      %2519 = vmatprep.subr.bf16.mxu0 0
      %2520 = vmatpush1.bf16.msra.mxu0 0
      %2521 = vmatprep.subr.bf16.mxu0 0
      %2522 = vmatpush1.bf16.msra.mxu0 0
      %2523 = vmatprep.subr.bf16.mxu0 0
      %2524 = vmatpush1.bf16.msra.mxu0 0
      %2525 = vmatprep.subr.bf16.mxu0 0
      %2526 = vmatpush1.bf16.msra.mxu0 0
      %2527 = vmatprep.subr.bf16.mxu0 0
      %2528 = vmatpush1.bf16.msra.mxu0 0
      %2529 = vmatprep.subr.bf16.mxu0 0
      %2530 = vmatpush1.bf16.msra.mxu0 0
      %2531 = vmatprep.subr.bf16.mxu0 0
      %2532 = vmatpush1.bf16.msra.mxu0 0
      %2533 = vmatprep.subr.bf16.mxu0 0
      %2534 = vmatpush1.bf16.msra.mxu0 0
      %2535 = vmatprep.subr.bf16.mxu0 0
      %2536 = vmatpush1.bf16.msra.mxu0 0
      %2537 = vmatprep.subr.bf16.mxu0 0
      %2538 = vmatpush1.bf16.msra.mxu0 0
      %2539 = vmatprep.subr.bf16.mxu0 0
      %2540 = vmatpush1.bf16.msra.mxu0 0
      %2541 = vmatprep.subr.bf16.mxu0 0
      %2542 = vmatpush1.bf16.msra.mxu0 0
      %2543 = vmatprep.subr.bf16.mxu0 0
      %2544 = vmatpush1.bf16.msra.mxu0 0
      %2545 = vmatprep.mubr.bf16.mxu0 0
      %2546 = vmatmul.mubr.bf16.gmra.mrb[0].mxu0 %v2463
      %v2547 = vpop.f32.mrb[0].mxu0
      %v2548 = vadd.f32 0.0, %v2547
      %v2549 = vpop.f32.mrb[0].mxu0
      %v2550 = vpop.f32.mrb[0].mxu0
      %v2551 = vadd.f32 0.0, %v2550
      %v2552 = vpop.f32.mrb[0].mxu0
      %2553 = vmatprep.mubr.bf16.mxu0 0
      %2554 = vmatmul.mubr.bf16.gmra.mrb[0].mxu0 %v2466
      %v2555 = vpop.f32.mrb[0].mxu0
      %v2556 = vadd.f32 0.0, %v2555
      %v2557 = vpop.f32.mrb[0].mxu0
      %v2558 = vpop.f32.mrb[0].mxu0
      %v2559 = vadd.f32 0.0, %v2558
      %v2560 = vpop.f32.mrb[0].mxu0
      %2561 = vmatprep.mubr.bf16.mxu0 0
      %2562 = vmatmul.mubr.bf16.gmra.mrb[0].mxu0 %v2469
      %v2563 = vpop.f32.mrb[0].mxu0
      %v2564 = vadd.f32 0.0, %v2563
      %v2565 = vpop.f32.mrb[0].mxu0
      %v2566 = vpop.f32.mrb[0].mxu0
      %v2567 = vadd.f32 0.0, %v2566
      %v2568 = vpop.f32.mrb[0].mxu0
      %2569 = vmatprep.mubr.bf16.mxu0 0
      %2570 = vmatmul.mubr.bf16.gmra.mrb[0].mxu0 %v2472
      %v2571 = vpop.f32.mrb[0].mxu0
      %v2572 = vadd.f32 0.0, %v2571
      %v2573 = vpop.f32.mrb[0].mxu0
      %v2574 = vpop.f32.mrb[0].mxu0
      %v2575 = vadd.f32 0.0, %v2574
      %v2576 = vpop.f32.mrb[0].mxu0
      %2577 = vmatprep.mubr.bf16.mxu0 0
      %2578 = vmatmul.mubr.bf16.gmra.mrb[0].mxu0 %v2475
      %v2579 = vpop.f32.mrb[0].mxu0
      %v2580 = vadd.f32 0.0, %v2579
      %v2581 = vpop.f32.mrb[0].mxu0
      %v2582 = vpop.f32.mrb[0].mxu0
      %v2583 = vadd.f32 0.0, %v2582
      %v2584 = vpop.f32.mrb[0].mxu0
      %2585 = vmatprep.mubr.bf16.mxu0 0
      %2586 = vmatmul.mubr.bf16.gmra.mrb[0].mxu0 %v2478
      %v2587 = vpop.f32.mrb[0].mxu0
      %v2588 = vadd.f32 0.0, %v2587
      %v2589 = vpop.f32.mrb[0].mxu0
      %v2590 = vpop.f32.mrb[0].mxu0
      %v2591 = vadd.f32 0.0, %v2590
      %v2592 = vpop.f32.mrb[0].mxu0
      %2593 = vmatprep.mubr.bf16.mxu0 0
      %2594 = vmatmul.mubr.bf16.gmra.mrb[0].mxu0 %v2481
      %v2595 = vpop.f32.mrb[0].mxu0
      %v2596 = vadd.f32 0.0, %v2595
      %v2597 = vpop.f32.mrb[0].mxu0
      %v2598 = vpop.f32.mrb[0].mxu0
      %v2599 = vadd.f32 0.0, %v2598
      %v2600 = vpop.f32.mrb[0].mxu0
      %2601 = vmatprep.mubr.bf16.mxu0 0
      %2602 = vmatmul.mubr.bf16.gmra.mrb[0].mxu0 %v2484
      %v2603 = vpop.f32.mrb[0].mxu0
      %v2604 = vadd.f32 0.0, %v2603
      %v2605 = vpop.f32.mrb[0].mxu0
      %v2606 = vpop.f32.mrb[0].mxu0
      %v2607 = vadd.f32 0.0, %v2606
      %v2608 = vpop.f32.mrb[0].mxu0
      %2609 = vmatprep.mubr.bf16.mxu0 0
      %2610 = vmatmul.mubr.bf16.gmra.mrb[0].mxu0 %v2487
      %v2611 = vpop.f32.mrb[0].mxu0
      %v2612 = vadd.f32 0.0, %v2611
      %v2613 = vpop.f32.mrb[0].mxu0
      %v2614 = vpop.f32.mrb[0].mxu0
      %v2615 = vadd.f32 0.0, %v2614
      %v2616 = vpop.f32.mrb[0].mxu0
      %2617 = vmatprep.mubr.bf16.mxu0 0
      %2618 = vmatmul.mubr.bf16.gmra.mrb[0].mxu0 %v2490
      %v2619 = vpop.f32.mrb[0].mxu0
      %v2620 = vadd.f32 0.0, %v2619
      %v2621 = vpop.f32.mrb[0].mxu0
      %v2622 = vpop.f32.mrb[0].mxu0
      %v2623 = vadd.f32 0.0, %v2622
      %v2624 = vpop.f32.mrb[0].mxu0
      %2625 = vmatprep.mubr.bf16.mxu0 0
      %2626 = vmatmul.mubr.bf16.gmra.mrb[0].mxu0 %v2493
      %v2627 = vpop.f32.mrb[0].mxu0
      %v2628 = vadd.f32 0.0, %v2627
      %v2629 = vpop.f32.mrb[0].mxu0
      %v2630 = vpop.f32.mrb[0].mxu0
      %v2631 = vadd.f32 0.0, %v2630
      %v2632 = vpop.f32.mrb[0].mxu0
      %2633 = vmatprep.mubr.bf16.mxu0 0
      %2634 = vmatmul.mubr.bf16.gmra.mrb[0].mxu0 %v2496
      %v2635 = vpop.f32.mrb[0].mxu0
      %v2636 = vadd.f32 0.0, %v2635
      %v2637 = vpop.f32.mrb[0].mxu0
      %v2638 = vpop.f32.mrb[0].mxu0
      %v2639 = vadd.f32 0.0, %v2638
      %v2640 = vpop.f32.mrb[0].mxu0
      %2641 = vmatprep.mubr.bf16.mxu0 0
      %2642 = vmatmul.mubr.bf16.gmra.mrb[0].mxu0 %v2499
      %v2643 = vpop.f32.mrb[0].mxu0
      %v2644 = vadd.f32 0.0, %v2643
      %v2645 = vpop.f32.mrb[0].mxu0
      %v2646 = vpop.f32.mrb[0].mxu0
      %v2647 = vadd.f32 0.0, %v2646
      %v2648 = vpop.f32.mrb[0].mxu0
      %2649 = vmatprep.mubr.bf16.mxu0 0
      %2650 = vmatmul.mubr.bf16.gmra.mrb[0].mxu0 %v2502
      %v2651 = vpop.f32.mrb[0].mxu0
      %v2652 = vadd.f32 0.0, %v2651
      %v2653 = vpop.f32.mrb[0].mxu0
      %v2654 = vpop.f32.mrb[0].mxu0
      %v2655 = vadd.f32 0.0, %v2654
      %v2656 = vpop.f32.mrb[0].mxu0
      %2657 = vmatprep.mubr.bf16.mxu0 0
      %2658 = vmatmul.mubr.bf16.gmra.mrb[0].mxu0 %v2505
      %v2659 = vpop.f32.mrb[0].mxu0
      %v2660 = vadd.f32 0.0, %v2659
      %v2661 = vpop.f32.mrb[0].mxu0
      %v2662 = vpop.f32.mrb[0].mxu0
      %v2663 = vadd.f32 0.0, %v2662
      %v2664 = vpop.f32.mrb[0].mxu0
      %2665 = vmatprep.mubr.bf16.mxu0 0
      %2666 = vmatmul.mubr.bf16.gmra.mrb[0].mxu0 %v2508
      %v2667 = vpop.f32.mrb[0].mxu0
      %v2668 = vadd.f32 0.0, %v2667
      %v2669 = vpop.f32.mrb[0].mxu0
      %v2670 = vpop.f32.mrb[0].mxu0
      %v2671 = vadd.f32 0.0, %v2670
      %v2672 = vpop.f32.mrb[0].mxu0
      %2673 = vdwg.mxu0
      %v2674 = vadd.f32 %v2316, %v2548
      %v2675 = vadd.f32 %v2317, %v2551
      %v2676 = vadd.f32 %v2318, %v2556
      %v2677 = vadd.f32 %v2319, %v2559
      %v2678 = vadd.f32 %v2320, %v2564
      %v2679 = vadd.f32 %v2321, %v2567
      %v2680 = vadd.f32 %v2322, %v2572
      %v2681 = vadd.f32 %v2323, %v2575
      %v2682 = vadd.f32 %v2324, %v2580
      %v2683 = vadd.f32 %v2325, %v2583
      %v2684 = vadd.f32 %v2326, %v2588
      %v2685 = vadd.f32 %v2327, %v2591
      %v2686 = vadd.f32 %v2328, %v2596
      %v2687 = vadd.f32 %v2329, %v2599
      %v2688 = vadd.f32 %v2330, %v2604
      %v2689 = vadd.f32 %v2331, %v2607
      %v2690 = vadd.f32 %v2332, %v2612
      %v2691 = vadd.f32 %v2333, %v2615
      %v2692 = vadd.f32 %v2334, %v2620
      %v2693 = vadd.f32 %v2335, %v2623
      %v2694 = vadd.f32 %v2336, %v2628
      %v2695 = vadd.f32 %v2337, %v2631
      %v2696 = vadd.f32 %v2338, %v2636
      %v2697 = vadd.f32 %v2339, %v2639
      %v2698 = vadd.f32 %v2340, %v2644
      %v2699 = vadd.f32 %v2341, %v2647
      %v2700 = vadd.f32 %v2342, %v2652
      %v2701 = vadd.f32 %v2343, %v2655
      %v2702 = vadd.f32 %v2344, %v2660
      %v2703 = vadd.f32 %v2345, %v2663
      %v2704 = vadd.f32 %v2346, %v2668
      %v2705 = vadd.f32 %v2347, %v2671
      %v2706 = vld [vmem:[%s587] sm:$0xf]
      %v2707 = vld [vmem:[%s587 + $0x4] sm:$0xf]
      %v2708 = vld [vmem:[%s587 + $0x8] sm:$0xf]
      %v2709 = vld [vmem:[%s587 + $0xc] sm:$0xf]
      %v2710 = vld [vmem:[%s587 + $0x10] sm:$0xf]
      %v2711 = vld [vmem:[%s587 + $0x14] sm:$0xf]
      %v2712 = vld [vmem:[%s587 + $0x18] sm:$0xf]
      %v2713 = vld [vmem:[%s587 + $0x1c] sm:$0xf]
      %v2714 = vld [vmem:[%s587 + $0x20] sm:$0xf]
      %v2715 = vld [vmem:[%s587 + $0x24] sm:$0xf]
      %v2716 = vld [vmem:[%s587 + $0x28] sm:$0xf]
      %v2717 = vld [vmem:[%s587 + $0x2c] sm:$0xf]
      %v2718 = vld [vmem:[%s587 + $0x30] sm:$0xf]
      %v2719 = vld [vmem:[%s587 + $0x34] sm:$0xf]
      %v2720 = vld [vmem:[%s587 + $0x38] sm:$0xf]
      %v2721 = vld [vmem:[%s587 + $0x3c] sm:$0xf]
      %v2722 = vld [vmem:[%s587 + $0x40] sm:$0xf]
      %v2723 = vld [vmem:[%s587 + $0x44] sm:$0xf]
      %v2724 = vld [vmem:[%s587 + $0x48] sm:$0xf]
      %v2725 = vld [vmem:[%s587 + $0x4c] sm:$0xf]
      %v2726 = vld [vmem:[%s587 + $0x50] sm:$0xf]
      %v2727 = vld [vmem:[%s587 + $0x54] sm:$0xf]
      %v2728 = vld [vmem:[%s587 + $0x58] sm:$0xf]
      %v2729 = vld [vmem:[%s587 + $0x5c] sm:$0xf]
      %v2730 = vld [vmem:[%s587 + $0x60] sm:$0xf]
      %v2731 = vld [vmem:[%s587 + $0x64] sm:$0xf]
      %v2732 = vld [vmem:[%s587 + $0x68] sm:$0xf]
      %v2733 = vld [vmem:[%s587 + $0x6c] sm:$0xf]
      %v2734 = vld [vmem:[%s587 + $0x70] sm:$0xf]
      %v2735 = vld [vmem:[%s587 + $0x74] sm:$0xf]
      %v2736 = vld [vmem:[%s587 + $0x78] sm:$0xf]
      %v2737 = vld [vmem:[%s587 + $0x7c] sm:$0xf]
      %s2738 = scalar_lea.vmem %s604, 12
      %v2739 = vld [vmem:[%s2738] sm:$0x3]
      %v2772 = vunpack.c.l.b16 %v2706
      %v2773 = vunpack.c.l.b16 %v2707
      %v2774 = vunpack.c.l.b16 %v2708
      %v2775 = vunpack.c.l.b16 %v2709
      %v2776 = vunpack.c.l.b16 %v2710
      %v2777 = vunpack.c.l.b16 %v2711
      %v2778 = vunpack.c.l.b16 %v2712
      %v2779 = vunpack.c.l.b16 %v2713
      %v2780 = vunpack.c.l.b16 %v2714
      %v2781 = vunpack.c.l.b16 %v2715
      %v2782 = vunpack.c.l.b16 %v2716
      %v2783 = vunpack.c.l.b16 %v2717
      %v2784 = vunpack.c.l.b16 %v2718
      %v2785 = vunpack.c.l.b16 %v2719
      %v2786 = vunpack.c.l.b16 %v2720
      %v2787 = vunpack.c.l.b16 %v2721
      %v2788 = vunpack.c.l.b16 %v2722
      %v2789 = vunpack.c.l.b16 %v2723
      %v2790 = vunpack.c.l.b16 %v2724
      %v2791 = vunpack.c.l.b16 %v2725
      %v2792 = vunpack.c.l.b16 %v2726
      %v2793 = vunpack.c.l.b16 %v2727
      %v2794 = vunpack.c.l.b16 %v2728
      %v2795 = vunpack.c.l.b16 %v2729
      %v2796 = vunpack.c.l.b16 %v2730
      %v2797 = vunpack.c.l.b16 %v2731
      %v2798 = vunpack.c.l.b16 %v2732
      %v2799 = vunpack.c.l.b16 %v2733
      %v2800 = vunpack.c.l.b16 %v2734
      %v2801 = vunpack.c.l.b16 %v2735
      %v2802 = vunpack.c.l.b16 %v2736
      %v2803 = vunpack.c.l.b16 %v2737
      %v2804 = vpack.c.b16 %v2773, %v2772
      %v2805 = vpack.c.b16 %v2775, %v2774
      %v2806 = vpack.c.b16 %v2777, %v2776
      %v2807 = vpack.c.b16 %v2779, %v2778
      %v2808 = vpack.c.b16 %v2781, %v2780
      %v2809 = vpack.c.b16 %v2783, %v2782
      %v2810 = vpack.c.b16 %v2785, %v2784
      %v2811 = vpack.c.b16 %v2787, %v2786
      %v2812 = vpack.c.b16 %v2789, %v2788
      %v2813 = vpack.c.b16 %v2791, %v2790
      %v2814 = vpack.c.b16 %v2793, %v2792
      %v2815 = vpack.c.b16 %v2795, %v2794
      %v2816 = vpack.c.b16 %v2797, %v2796
      %v2817 = vpack.c.b16 %v2799, %v2798
      %v2818 = vpack.c.b16 %v2801, %v2800
      %v2819 = vpack.c.b16 %v2803, %v2802
      %v2821 = vsel %vm765, %v2804, 0
      %v2824 = vsel %vm765, %v2805, 0
      %v2827 = vsel %vm765, %v2806, 0
      %v2830 = vsel %vm765, %v2807, 0
      %v2833 = vsel %vm765, %v2808, 0
      %v2836 = vsel %vm765, %v2809, 0
      %v2839 = vsel %vm765, %v2810, 0
      %v2842 = vsel %vm765, %v2811, 0
      %v2845 = vsel %vm765, %v2812, 0
      %v2848 = vsel %vm765, %v2813, 0
      %v2851 = vsel %vm765, %v2814, 0
      %v2854 = vsel %vm765, %v2815, 0
      %v2857 = vsel %vm765, %v2816, 0
      %v2860 = vsel %vm765, %v2817, 0
      %v2863 = vsel %vm765, %v2818, 0
      %v2866 = vsel %vm765, %v2819, 0
      %v2869 = vand.u32 %v2739, %v817
      %2871 = vmatprep.subr.bf16.mxu0 0
      %2872 = vmatpush1.bf16.msra.mxu0 %v2869
      %2873 = vmatprep.subr.bf16.mxu0 0
      %2874 = vmatpush1.bf16.msra.mxu0 0
      %2875 = vmatprep.subr.bf16.mxu0 0
      %2876 = vmatpush1.bf16.msra.mxu0 0
      %2877 = vmatprep.subr.bf16.mxu0 0
      %2878 = vmatpush1.bf16.msra.mxu0 0
      %2879 = vmatprep.subr.bf16.mxu0 0
      %2880 = vmatpush1.bf16.msra.mxu0 0
      %2881 = vmatprep.subr.bf16.mxu0 0
      %2882 = vmatpush1.bf16.msra.mxu0 0
      %2883 = vmatprep.subr.bf16.mxu0 0
      %2884 = vmatpush1.bf16.msra.mxu0 0
      %2885 = vmatprep.subr.bf16.mxu0 0
      %2886 = vmatpush1.bf16.msra.mxu0 0
      %2887 = vmatprep.subr.bf16.mxu0 0
      %2888 = vmatpush1.bf16.msra.mxu0 0
      %2889 = vmatprep.subr.bf16.mxu0 0
      %2890 = vmatpush1.bf16.msra.mxu0 0
      %2891 = vmatprep.subr.bf16.mxu0 0
      %2892 = vmatpush1.bf16.msra.mxu0 0
      %2893 = vmatprep.subr.bf16.mxu0 0
      %2894 = vmatpush1.bf16.msra.mxu0 0
      %2895 = vmatprep.subr.bf16.mxu0 0
      %2896 = vmatpush1.bf16.msra.mxu0 0
      %2897 = vmatprep.subr.bf16.mxu0 0
      %2898 = vmatpush1.bf16.msra.mxu0 0
      %2899 = vmatprep.subr.bf16.mxu0 0
      %2900 = vmatpush1.bf16.msra.mxu0 0
      %2901 = vmatprep.subr.bf16.mxu0 0
      %2902 = vmatpush1.bf16.msra.mxu0 0
      %2903 = vmatprep.mubr.bf16.mxu0 0
      %2904 = vmatmul.mubr.bf16.gmra.mrb[0].mxu0 %v2821
      %v2905 = vpop.f32.mrb[0].mxu0
      %v2906 = vadd.f32 0.0, %v2905
      %v2907 = vpop.f32.mrb[0].mxu0
      %v2908 = vpop.f32.mrb[0].mxu0
      %v2909 = vadd.f32 0.0, %v2908
      %v2910 = vpop.f32.mrb[0].mxu0
      %2911 = vmatprep.mubr.bf16.mxu0 0
      %2912 = vmatmul.mubr.bf16.gmra.mrb[0].mxu0 %v2824
      %v2913 = vpop.f32.mrb[0].mxu0
      %v2914 = vadd.f32 0.0, %v2913
      %v2915 = vpop.f32.mrb[0].mxu0
      %v2916 = vpop.f32.mrb[0].mxu0
      %v2917 = vadd.f32 0.0, %v2916
      %v2918 = vpop.f32.mrb[0].mxu0
      %2919 = vmatprep.mubr.bf16.mxu0 0
      %2920 = vmatmul.mubr.bf16.gmra.mrb[0].mxu0 %v2827
      %v2921 = vpop.f32.mrb[0].mxu0
      %v2922 = vadd.f32 0.0, %v2921
      %v2923 = vpop.f32.mrb[0].mxu0
      %v2924 = vpop.f32.mrb[0].mxu0
      %v2925 = vadd.f32 0.0, %v2924
      %v2926 = vpop.f32.mrb[0].mxu0
      %2927 = vmatprep.mubr.bf16.mxu0 0
      %2928 = vmatmul.mubr.bf16.gmra.mrb[0].mxu0 %v2830
      %v2929 = vpop.f32.mrb[0].mxu0
      %v2930 = vadd.f32 0.0, %v2929
      %v2931 = vpop.f32.mrb[0].mxu0
      %v2932 = vpop.f32.mrb[0].mxu0
      %v2933 = vadd.f32 0.0, %v2932
      %v2934 = vpop.f32.mrb[0].mxu0
      %2935 = vmatprep.mubr.bf16.mxu0 0
      %2936 = vmatmul.mubr.bf16.gmra.mrb[0].mxu0 %v2833
      %v2937 = vpop.f32.mrb[0].mxu0
      %v2938 = vadd.f32 0.0, %v2937
      %v2939 = vpop.f32.mrb[0].mxu0
      %v2940 = vpop.f32.mrb[0].mxu0
      %v2941 = vadd.f32 0.0, %v2940
      %v2942 = vpop.f32.mrb[0].mxu0
      %2943 = vmatprep.mubr.bf16.mxu0 0
      %2944 = vmatmul.mubr.bf16.gmra.mrb[0].mxu0 %v2836
      %v2945 = vpop.f32.mrb[0].mxu0
      %v2946 = vadd.f32 0.0, %v2945
      %v2947 = vpop.f32.mrb[0].mxu0
      %v2948 = vpop.f32.mrb[0].mxu0
      %v2949 = vadd.f32 0.0, %v2948
      %v2950 = vpop.f32.mrb[0].mxu0
      %2951 = vmatprep.mubr.bf16.mxu0 0
      %2952 = vmatmul.mubr.bf16.gmra.mrb[0].mxu0 %v2839
      %v2953 = vpop.f32.mrb[0].mxu0
      %v2954 = vadd.f32 0.0, %v2953
      %v2955 = vpop.f32.mrb[0].mxu0
      %v2956 = vpop.f32.mrb[0].mxu0
      %v2957 = vadd.f32 0.0, %v2956
      %v2958 = vpop.f32.mrb[0].mxu0
      %2959 = vmatprep.mubr.bf16.mxu0 0
      %2960 = vmatmul.mubr.bf16.gmra.mrb[0].mxu0 %v2842
      %v2961 = vpop.f32.mrb[0].mxu0
      %v2962 = vadd.f32 0.0, %v2961
      %v2963 = vpop.f32.mrb[0].mxu0
      %v2964 = vpop.f32.mrb[0].mxu0
      %v2965 = vadd.f32 0.0, %v2964
      %v2966 = vpop.f32.mrb[0].mxu0
      %2967 = vmatprep.mubr.bf16.mxu0 0
      %2968 = vmatmul.mubr.bf16.gmra.mrb[0].mxu0 %v2845
      %v2969 = vpop.f32.mrb[0].mxu0
      %v2970 = vadd.f32 0.0, %v2969
      %v2971 = vpop.f32.mrb[0].mxu0
      %v2972 = vpop.f32.mrb[0].mxu0
      %v2973 = vadd.f32 0.0, %v2972
      %v2974 = vpop.f32.mrb[0].mxu0
      %2975 = vmatprep.mubr.bf16.mxu0 0
      %2976 = vmatmul.mubr.bf16.gmra.mrb[0].mxu0 %v2848
      %v2977 = vpop.f32.mrb[0].mxu0
      %v2978 = vadd.f32 0.0, %v2977
      %v2979 = vpop.f32.mrb[0].mxu0
      %v2980 = vpop.f32.mrb[0].mxu0
      %v2981 = vadd.f32 0.0, %v2980
      %v2982 = vpop.f32.mrb[0].mxu0
      %2983 = vmatprep.mubr.bf16.mxu0 0
      %2984 = vmatmul.mubr.bf16.gmra.mrb[0].mxu0 %v2851
      %v2985 = vpop.f32.mrb[0].mxu0
      %v2986 = vadd.f32 0.0, %v2985
      %v2987 = vpop.f32.mrb[0].mxu0
      %v2988 = vpop.f32.mrb[0].mxu0
      %v2989 = vadd.f32 0.0, %v2988
      %v2990 = vpop.f32.mrb[0].mxu0
      %2991 = vmatprep.mubr.bf16.mxu0 0
      %2992 = vmatmul.mubr.bf16.gmra.mrb[0].mxu0 %v2854
      %v2993 = vpop.f32.mrb[0].mxu0
      %v2994 = vadd.f32 0.0, %v2993
      %v2995 = vpop.f32.mrb[0].mxu0
      %v2996 = vpop.f32.mrb[0].mxu0
      %v2997 = vadd.f32 0.0, %v2996
      %v2998 = vpop.f32.mrb[0].mxu0
      %2999 = vmatprep.mubr.bf16.mxu0 0
      %3000 = vmatmul.mubr.bf16.gmra.mrb[0].mxu0 %v2857
      %v3001 = vpop.f32.mrb[0].mxu0
      %v3002 = vadd.f32 0.0, %v3001
      %v3003 = vpop.f32.mrb[0].mxu0
      %v3004 = vpop.f32.mrb[0].mxu0
      %v3005 = vadd.f32 0.0, %v3004
      %v3006 = vpop.f32.mrb[0].mxu0
      %3007 = vmatprep.mubr.bf16.mxu0 0
      %3008 = vmatmul.mubr.bf16.gmra.mrb[0].mxu0 %v2860
      %v3009 = vpop.f32.mrb[0].mxu0
      %v3010 = vadd.f32 0.0, %v3009
      %v3011 = vpop.f32.mrb[0].mxu0
      %v3012 = vpop.f32.mrb[0].mxu0
      %v3013 = vadd.f32 0.0, %v3012
      %v3014 = vpop.f32.mrb[0].mxu0
      %3015 = vmatprep.mubr.bf16.mxu0 0
      %3016 = vmatmul.mubr.bf16.gmra.mrb[0].mxu0 %v2863
      %v3017 = vpop.f32.mrb[0].mxu0
      %v3018 = vadd.f32 0.0, %v3017
      %v3019 = vpop.f32.mrb[0].mxu0
      %v3020 = vpop.f32.mrb[0].mxu0
      %v3021 = vadd.f32 0.0, %v3020
      %v3022 = vpop.f32.mrb[0].mxu0
      %3023 = vmatprep.mubr.bf16.mxu0 0
      %3024 = vmatmul.mubr.bf16.gmra.mrb[0].mxu0 %v2866
      %v3025 = vpop.f32.mrb[0].mxu0
      %v3026 = vadd.f32 0.0, %v3025
      %v3027 = vpop.f32.mrb[0].mxu0
      %v3028 = vpop.f32.mrb[0].mxu0
      %v3029 = vadd.f32 0.0, %v3028
      %v3030 = vpop.f32.mrb[0].mxu0
      %3031 = vdwg.mxu0
      %v3032 = vadd.f32 %v2674, %v2906
      %v3033 = vadd.f32 %v2675, %v2909
      %v3034 = vadd.f32 %v2676, %v2914
      %v3035 = vadd.f32 %v2677, %v2917
      %v3036 = vadd.f32 %v2678, %v2922
      %v3037 = vadd.f32 %v2679, %v2925
      %v3038 = vadd.f32 %v2680, %v2930
      %v3039 = vadd.f32 %v2681, %v2933
      %v3040 = vadd.f32 %v2682, %v2938
      %v3041 = vadd.f32 %v2683, %v2941
      %v3042 = vadd.f32 %v2684, %v2946
      %v3043 = vadd.f32 %v2685, %v2949
      %v3044 = vadd.f32 %v2686, %v2954
      %v3045 = vadd.f32 %v2687, %v2957
      %v3046 = vadd.f32 %v2688, %v2962
      %v3047 = vadd.f32 %v2689, %v2965
      %v3048 = vadd.f32 %v2690, %v2970
      %v3049 = vadd.f32 %v2691, %v2973
      %v3050 = vadd.f32 %v2692, %v2978
      %v3051 = vadd.f32 %v2693, %v2981
      %v3052 = vadd.f32 %v2694, %v2986
      %v3053 = vadd.f32 %v2695, %v2989
      %v3054 = vadd.f32 %v2696, %v2994
      %v3055 = vadd.f32 %v2697, %v2997
      %v3056 = vadd.f32 %v2698, %v3002
      %v3057 = vadd.f32 %v2699, %v3005
      %v3058 = vadd.f32 %v2700, %v3010
      %v3059 = vadd.f32 %v2701, %v3013
      %v3060 = vadd.f32 %v2702, %v3018
      %v3061 = vadd.f32 %v2703, %v3021
      %v3062 = vadd.f32 %v2704, %v3026
      %v3063 = vadd.f32 %v2705, %v3029
      %v3064 = vld [vmem:[%s593] sm:$0xf]
      %v3065 = vld [vmem:[%s593 + $0x4] sm:$0xf]
      %v3066 = vld [vmem:[%s593 + $0x8] sm:$0xf]
      %v3067 = vld [vmem:[%s593 + $0xc] sm:$0xf]
      %v3068 = vld [vmem:[%s593 + $0x10] sm:$0xf]
      %v3069 = vld [vmem:[%s593 + $0x14] sm:$0xf]
      %v3070 = vld [vmem:[%s593 + $0x18] sm:$0xf]
      %v3071 = vld [vmem:[%s593 + $0x1c] sm:$0xf]
      %v3072 = vld [vmem:[%s593 + $0x20] sm:$0xf]
      %v3073 = vld [vmem:[%s593 + $0x24] sm:$0xf]
      %v3074 = vld [vmem:[%s593 + $0x28] sm:$0xf]
      %v3075 = vld [vmem:[%s593 + $0x2c] sm:$0xf]
      %v3076 = vld [vmem:[%s593 + $0x30] sm:$0xf]
      %v3077 = vld [vmem:[%s593 + $0x34] sm:$0xf]
      %v3078 = vld [vmem:[%s593 + $0x38] sm:$0xf]
      %v3079 = vld [vmem:[%s593 + $0x3c] sm:$0xf]
      %v3080 = vld [vmem:[%s593 + $0x40] sm:$0xf]
      %v3081 = vld [vmem:[%s593 + $0x44] sm:$0xf]
      %v3082 = vld [vmem:[%s593 + $0x48] sm:$0xf]
      %v3083 = vld [vmem:[%s593 + $0x4c] sm:$0xf]
      %v3084 = vld [vmem:[%s593 + $0x50] sm:$0xf]
      %v3085 = vld [vmem:[%s593 + $0x54] sm:$0xf]
      %v3086 = vld [vmem:[%s593 + $0x58] sm:$0xf]
      %v3087 = vld [vmem:[%s593 + $0x5c] sm:$0xf]
      %v3088 = vld [vmem:[%s593 + $0x60] sm:$0xf]
      %v3089 = vld [vmem:[%s593 + $0x64] sm:$0xf]
      %v3090 = vld [vmem:[%s593 + $0x68] sm:$0xf]
      %v3091 = vld [vmem:[%s593 + $0x6c] sm:$0xf]
      %v3092 = vld [vmem:[%s593 + $0x70] sm:$0xf]
      %v3093 = vld [vmem:[%s593 + $0x74] sm:$0xf]
      %v3094 = vld [vmem:[%s593 + $0x78] sm:$0xf]
      %v3095 = vld [vmem:[%s593 + $0x7c] sm:$0xf]
      %s3096 = scalar_lea.vmem %s604, 14
      %v3097 = vld [vmem:[%s3096] sm:$0x3]
      %v3130 = vunpack.c.l.b16 %v3064
      %v3131 = vunpack.c.l.b16 %v3065
      %v3132 = vunpack.c.l.b16 %v3066
      %v3133 = vunpack.c.l.b16 %v3067
      %v3134 = vunpack.c.l.b16 %v3068
      %v3135 = vunpack.c.l.b16 %v3069
      %v3136 = vunpack.c.l.b16 %v3070
      %v3137 = vunpack.c.l.b16 %v3071
      %v3138 = vunpack.c.l.b16 %v3072
      %v3139 = vunpack.c.l.b16 %v3073
      %v3140 = vunpack.c.l.b16 %v3074
      %v3141 = vunpack.c.l.b16 %v3075
      %v3142 = vunpack.c.l.b16 %v3076
      %v3143 = vunpack.c.l.b16 %v3077
      %v3144 = vunpack.c.l.b16 %v3078
      %v3145 = vunpack.c.l.b16 %v3079
      %v3146 = vunpack.c.l.b16 %v3080
      %v3147 = vunpack.c.l.b16 %v3081
      %v3148 = vunpack.c.l.b16 %v3082
      %v3149 = vunpack.c.l.b16 %v3083
      %v3150 = vunpack.c.l.b16 %v3084
      %v3151 = vunpack.c.l.b16 %v3085
      %v3152 = vunpack.c.l.b16 %v3086
      %v3153 = vunpack.c.l.b16 %v3087
      %v3154 = vunpack.c.l.b16 %v3088
      %v3155 = vunpack.c.l.b16 %v3089
      %v3156 = vunpack.c.l.b16 %v3090
      %v3157 = vunpack.c.l.b16 %v3091
      %v3158 = vunpack.c.l.b16 %v3092
      %v3159 = vunpack.c.l.b16 %v3093
      %v3160 = vunpack.c.l.b16 %v3094
      %v3161 = vunpack.c.l.b16 %v3095
      %v3162 = vpack.c.b16 %v3131, %v3130
      %v3163 = vpack.c.b16 %v3133, %v3132
      %v3164 = vpack.c.b16 %v3135, %v3134
      %v3165 = vpack.c.b16 %v3137, %v3136
      %v3166 = vpack.c.b16 %v3139, %v3138
      %v3167 = vpack.c.b16 %v3141, %v3140
      %v3168 = vpack.c.b16 %v3143, %v3142
      %v3169 = vpack.c.b16 %v3145, %v3144
      %v3170 = vpack.c.b16 %v3147, %v3146
      %v3171 = vpack.c.b16 %v3149, %v3148
      %v3172 = vpack.c.b16 %v3151, %v3150
      %v3173 = vpack.c.b16 %v3153, %v3152
      %v3174 = vpack.c.b16 %v3155, %v3154
      %v3175 = vpack.c.b16 %v3157, %v3156
      %v3176 = vpack.c.b16 %v3159, %v3158
      %v3177 = vpack.c.b16 %v3161, %v3160
      %v3179 = vsel %vm765, %v3162, 0
      %v3182 = vsel %vm765, %v3163, 0
      %v3185 = vsel %vm765, %v3164, 0
      %v3188 = vsel %vm765, %v3165, 0
      %v3191 = vsel %vm765, %v3166, 0
      %v3194 = vsel %vm765, %v3167, 0
      %v3197 = vsel %vm765, %v3168, 0
      %v3200 = vsel %vm765, %v3169, 0
      %v3203 = vsel %vm765, %v3170, 0
      %v3206 = vsel %vm765, %v3171, 0
      %v3209 = vsel %vm765, %v3172, 0
      %v3212 = vsel %vm765, %v3173, 0
      %v3215 = vsel %vm765, %v3174, 0
      %v3218 = vsel %vm765, %v3175, 0
      %v3221 = vsel %vm765, %v3176, 0
      %v3224 = vsel %vm765, %v3177, 0
      %v3227 = vand.u32 %v3097, %v817
      %3229 = vmatprep.subr.bf16.mxu0 0
      %3230 = vmatpush1.bf16.msra.mxu0 %v3227
      %3231 = vmatprep.subr.bf16.mxu0 0
      %3232 = vmatpush1.bf16.msra.mxu0 0
      %3233 = vmatprep.subr.bf16.mxu0 0
      %3234 = vmatpush1.bf16.msra.mxu0 0
      %3235 = vmatprep.subr.bf16.mxu0 0
      %3236 = vmatpush1.bf16.msra.mxu0 0
      %3237 = vmatprep.subr.bf16.mxu0 0
      %3238 = vmatpush1.bf16.msra.mxu0 0
      %3239 = vmatprep.subr.bf16.mxu0 0
      %3240 = vmatpush1.bf16.msra.mxu0 0
      %3241 = vmatprep.subr.bf16.mxu0 0
      %3242 = vmatpush1.bf16.msra.mxu0 0
      %3243 = vmatprep.subr.bf16.mxu0 0
      %3244 = vmatpush1.bf16.msra.mxu0 0
      %3245 = vmatprep.subr.bf16.mxu0 0
      %3246 = vmatpush1.bf16.msra.mxu0 0
      %3247 = vmatprep.subr.bf16.mxu0 0
      %3248 = vmatpush1.bf16.msra.mxu0 0
      %3249 = vmatprep.subr.bf16.mxu0 0
      %3250 = vmatpush1.bf16.msra.mxu0 0
      %3251 = vmatprep.subr.bf16.mxu0 0
      %3252 = vmatpush1.bf16.msra.mxu0 0
      %3253 = vmatprep.subr.bf16.mxu0 0
      %3254 = vmatpush1.bf16.msra.mxu0 0
      %3255 = vmatprep.subr.bf16.mxu0 0
      %3256 = vmatpush1.bf16.msra.mxu0 0
      %3257 = vmatprep.subr.bf16.mxu0 0
      %3258 = vmatpush1.bf16.msra.mxu0 0
      %3259 = vmatprep.subr.bf16.mxu0 0
      %3260 = vmatpush1.bf16.msra.mxu0 0
      %3261 = vmatprep.mubr.bf16.mxu0 0
      %3262 = vmatmul.mubr.bf16.gmra.mrb[0].mxu0 %v3179
      %v3263 = vpop.f32.mrb[0].mxu0
      %v3264 = vadd.f32 0.0, %v3263
      %v3265 = vpop.f32.mrb[0].mxu0
      %v3266 = vpop.f32.mrb[0].mxu0
      %v3267 = vadd.f32 0.0, %v3266
      %v3268 = vpop.f32.mrb[0].mxu0
      %3269 = vmatprep.mubr.bf16.mxu0 0
      %3270 = vmatmul.mubr.bf16.gmra.mrb[0].mxu0 %v3182
      %v3271 = vpop.f32.mrb[0].mxu0
      %v3272 = vadd.f32 0.0, %v3271
      %v3273 = vpop.f32.mrb[0].mxu0
      %v3274 = vpop.f32.mrb[0].mxu0
      %v3275 = vadd.f32 0.0, %v3274
      %v3276 = vpop.f32.mrb[0].mxu0
      %3277 = vmatprep.mubr.bf16.mxu0 0
      %3278 = vmatmul.mubr.bf16.gmra.mrb[0].mxu0 %v3185
      %v3279 = vpop.f32.mrb[0].mxu0
      %v3280 = vadd.f32 0.0, %v3279
      %v3281 = vpop.f32.mrb[0].mxu0
      %v3282 = vpop.f32.mrb[0].mxu0
      %v3283 = vadd.f32 0.0, %v3282
      %v3284 = vpop.f32.mrb[0].mxu0
      %3285 = vmatprep.mubr.bf16.mxu0 0
      %3286 = vmatmul.mubr.bf16.gmra.mrb[0].mxu0 %v3188
      %v3287 = vpop.f32.mrb[0].mxu0
      %v3288 = vadd.f32 0.0, %v3287
      %v3289 = vpop.f32.mrb[0].mxu0
      %v3290 = vpop.f32.mrb[0].mxu0
      %v3291 = vadd.f32 0.0, %v3290
      %v3292 = vpop.f32.mrb[0].mxu0
      %3293 = vmatprep.mubr.bf16.mxu0 0
      %3294 = vmatmul.mubr.bf16.gmra.mrb[0].mxu0 %v3191
      %v3295 = vpop.f32.mrb[0].mxu0
      %v3296 = vadd.f32 0.0, %v3295
      %v3297 = vpop.f32.mrb[0].mxu0
      %v3298 = vpop.f32.mrb[0].mxu0
      %v3299 = vadd.f32 0.0, %v3298
      %v3300 = vpop.f32.mrb[0].mxu0
      %3301 = vmatprep.mubr.bf16.mxu0 0
      %3302 = vmatmul.mubr.bf16.gmra.mrb[0].mxu0 %v3194
      %v3303 = vpop.f32.mrb[0].mxu0
      %v3304 = vadd.f32 0.0, %v3303
      %v3305 = vpop.f32.mrb[0].mxu0
      %v3306 = vpop.f32.mrb[0].mxu0
      %v3307 = vadd.f32 0.0, %v3306
      %v3308 = vpop.f32.mrb[0].mxu0
      %3309 = vmatprep.mubr.bf16.mxu0 0
      %3310 = vmatmul.mubr.bf16.gmra.mrb[0].mxu0 %v3197
      %v3311 = vpop.f32.mrb[0].mxu0
      %v3312 = vadd.f32 0.0, %v3311
      %v3313 = vpop.f32.mrb[0].mxu0
      %v3314 = vpop.f32.mrb[0].mxu0
      %v3315 = vadd.f32 0.0, %v3314
      %v3316 = vpop.f32.mrb[0].mxu0
      %3317 = vmatprep.mubr.bf16.mxu0 0
      %3318 = vmatmul.mubr.bf16.gmra.mrb[0].mxu0 %v3200
      %v3319 = vpop.f32.mrb[0].mxu0
      %v3320 = vadd.f32 0.0, %v3319
      %v3321 = vpop.f32.mrb[0].mxu0
      %v3322 = vpop.f32.mrb[0].mxu0
      %v3323 = vadd.f32 0.0, %v3322
      %v3324 = vpop.f32.mrb[0].mxu0
      %3325 = vmatprep.mubr.bf16.mxu0 0
      %3326 = vmatmul.mubr.bf16.gmra.mrb[0].mxu0 %v3203
      %v3327 = vpop.f32.mrb[0].mxu0
      %v3328 = vadd.f32 0.0, %v3327
      %v3329 = vpop.f32.mrb[0].mxu0
      %v3330 = vpop.f32.mrb[0].mxu0
      %v3331 = vadd.f32 0.0, %v3330
      %v3332 = vpop.f32.mrb[0].mxu0
      %3333 = vmatprep.mubr.bf16.mxu0 0
      %3334 = vmatmul.mubr.bf16.gmra.mrb[0].mxu0 %v3206
      %v3335 = vpop.f32.mrb[0].mxu0
      %v3336 = vadd.f32 0.0, %v3335
      %v3337 = vpop.f32.mrb[0].mxu0
      %v3338 = vpop.f32.mrb[0].mxu0
      %v3339 = vadd.f32 0.0, %v3338
      %v3340 = vpop.f32.mrb[0].mxu0
      %3341 = vmatprep.mubr.bf16.mxu0 0
      %3342 = vmatmul.mubr.bf16.gmra.mrb[0].mxu0 %v3209
      %v3343 = vpop.f32.mrb[0].mxu0
      %v3344 = vadd.f32 0.0, %v3343
      %v3345 = vpop.f32.mrb[0].mxu0
      %v3346 = vpop.f32.mrb[0].mxu0
      %v3347 = vadd.f32 0.0, %v3346
      %v3348 = vpop.f32.mrb[0].mxu0
      %3349 = vmatprep.mubr.bf16.mxu0 0
      %3350 = vmatmul.mubr.bf16.gmra.mrb[0].mxu0 %v3212
      %v3351 = vpop.f32.mrb[0].mxu0
      %v3352 = vadd.f32 0.0, %v3351
      %v3353 = vpop.f32.mrb[0].mxu0
      %v3354 = vpop.f32.mrb[0].mxu0
      %v3355 = vadd.f32 0.0, %v3354
      %v3356 = vpop.f32.mrb[0].mxu0
      %3357 = vmatprep.mubr.bf16.mxu0 0
      %3358 = vmatmul.mubr.bf16.gmra.mrb[0].mxu0 %v3215
      %v3359 = vpop.f32.mrb[0].mxu0
      %v3360 = vadd.f32 0.0, %v3359
      %v3361 = vpop.f32.mrb[0].mxu0
      %v3362 = vpop.f32.mrb[0].mxu0
      %v3363 = vadd.f32 0.0, %v3362
      %v3364 = vpop.f32.mrb[0].mxu0
      %3365 = vmatprep.mubr.bf16.mxu0 0
      %3366 = vmatmul.mubr.bf16.gmra.mrb[0].mxu0 %v3218
      %v3367 = vpop.f32.mrb[0].mxu0
      %v3368 = vadd.f32 0.0, %v3367
      %v3369 = vpop.f32.mrb[0].mxu0
      %v3370 = vpop.f32.mrb[0].mxu0
      %v3371 = vadd.f32 0.0, %v3370
      %v3372 = vpop.f32.mrb[0].mxu0
      %3373 = vmatprep.mubr.bf16.mxu0 0
      %3374 = vmatmul.mubr.bf16.gmra.mrb[0].mxu0 %v3221
      %v3375 = vpop.f32.mrb[0].mxu0
      %v3376 = vadd.f32 0.0, %v3375
      %v3377 = vpop.f32.mrb[0].mxu0
      %v3378 = vpop.f32.mrb[0].mxu0
      %v3379 = vadd.f32 0.0, %v3378
      %v3380 = vpop.f32.mrb[0].mxu0
      %3381 = vmatprep.mubr.bf16.mxu0 0
      %3382 = vmatmul.mubr.bf16.gmra.mrb[0].mxu0 %v3224
      %v3383 = vpop.f32.mrb[0].mxu0
      %v3384 = vadd.f32 0.0, %v3383
      %v3385 = vpop.f32.mrb[0].mxu0
      %v3386 = vpop.f32.mrb[0].mxu0
      %v3387 = vadd.f32 0.0, %v3386
      %v3388 = vpop.f32.mrb[0].mxu0
      %3389 = vdwg.mxu0
      %v3390 = vadd.f32 %v3032, %v3264
      %v3391 = vadd.f32 %v3033, %v3267
      %v3392 = vadd.f32 %v3034, %v3272
      %v3393 = vadd.f32 %v3035, %v3275
      %v3394 = vadd.f32 %v3036, %v3280
      %v3395 = vadd.f32 %v3037, %v3283
      %v3396 = vadd.f32 %v3038, %v3288
      %v3397 = vadd.f32 %v3039, %v3291
      %v3398 = vadd.f32 %v3040, %v3296
      %v3399 = vadd.f32 %v3041, %v3299
      %v3400 = vadd.f32 %v3042, %v3304
      %v3401 = vadd.f32 %v3043, %v3307
      %v3402 = vadd.f32 %v3044, %v3312
      %v3403 = vadd.f32 %v3045, %v3315
      %v3404 = vadd.f32 %v3046, %v3320
      %v3405 = vadd.f32 %v3047, %v3323
      %v3406 = vadd.f32 %v3048, %v3328
      %v3407 = vadd.f32 %v3049, %v3331
      %v3408 = vadd.f32 %v3050, %v3336
      %v3409 = vadd.f32 %v3051, %v3339
      %v3410 = vadd.f32 %v3052, %v3344
      %v3411 = vadd.f32 %v3053, %v3347
      %v3412 = vadd.f32 %v3054, %v3352
      %v3413 = vadd.f32 %v3055, %v3355
      %v3414 = vadd.f32 %v3056, %v3360
      %v3415 = vadd.f32 %v3057, %v3363
      %v3416 = vadd.f32 %v3058, %v3368
      %v3417 = vadd.f32 %v3059, %v3371
      %v3418 = vadd.f32 %v3060, %v3376
      %v3419 = vadd.f32 %v3061, %v3379
      %v3420 = vadd.f32 %v3062, %v3384
      %v3421 = vadd.f32 %v3063, %v3387
      %v3422 = vld [vmem:[%s599] sm:$0xf]
      %v3423 = vld [vmem:[%s599 + $0x4] sm:$0xf]
      %v3424 = vld [vmem:[%s599 + $0x8] sm:$0xf]
      %v3425 = vld [vmem:[%s599 + $0xc] sm:$0xf]
      %v3426 = vld [vmem:[%s599 + $0x10] sm:$0xf]
      %v3427 = vld [vmem:[%s599 + $0x14] sm:$0xf]
      %v3428 = vld [vmem:[%s599 + $0x18] sm:$0xf]
      %v3429 = vld [vmem:[%s599 + $0x1c] sm:$0xf]
      %v3430 = vld [vmem:[%s599 + $0x20] sm:$0xf]
      %v3431 = vld [vmem:[%s599 + $0x24] sm:$0xf]
      %v3432 = vld [vmem:[%s599 + $0x28] sm:$0xf]
      %v3433 = vld [vmem:[%s599 + $0x2c] sm:$0xf]
      %v3434 = vld [vmem:[%s599 + $0x30] sm:$0xf]
      %v3435 = vld [vmem:[%s599 + $0x34] sm:$0xf]
      %v3436 = vld [vmem:[%s599 + $0x38] sm:$0xf]
      %v3437 = vld [vmem:[%s599 + $0x3c] sm:$0xf]
      %v3438 = vld [vmem:[%s599 + $0x40] sm:$0xf]
      %v3439 = vld [vmem:[%s599 + $0x44] sm:$0xf]
      %v3440 = vld [vmem:[%s599 + $0x48] sm:$0xf]
      %v3441 = vld [vmem:[%s599 + $0x4c] sm:$0xf]
      %v3442 = vld [vmem:[%s599 + $0x50] sm:$0xf]
      %v3443 = vld [vmem:[%s599 + $0x54] sm:$0xf]
      %v3444 = vld [vmem:[%s599 + $0x58] sm:$0xf]
      %v3445 = vld [vmem:[%s599 + $0x5c] sm:$0xf]
      %v3446 = vld [vmem:[%s599 + $0x60] sm:$0xf]
      %v3447 = vld [vmem:[%s599 + $0x64] sm:$0xf]
      %v3448 = vld [vmem:[%s599 + $0x68] sm:$0xf]
      %v3449 = vld [vmem:[%s599 + $0x6c] sm:$0xf]
      %v3450 = vld [vmem:[%s599 + $0x70] sm:$0xf]
      %v3451 = vld [vmem:[%s599 + $0x74] sm:$0xf]
      %v3452 = vld [vmem:[%s599 + $0x78] sm:$0xf]
      %v3453 = vld [vmem:[%s599 + $0x7c] sm:$0xf]
      %s3454 = scalar_lea.vmem %s604, 16
      %v3455 = vld [vmem:[%s3454] sm:$0x3]
      %v3488 = vunpack.c.l.b16 %v3422
      %v3489 = vunpack.c.l.b16 %v3423
      %v3490 = vunpack.c.l.b16 %v3424
      %v3491 = vunpack.c.l.b16 %v3425
      %v3492 = vunpack.c.l.b16 %v3426
      %v3493 = vunpack.c.l.b16 %v3427
      %v3494 = vunpack.c.l.b16 %v3428
      %v3495 = vunpack.c.l.b16 %v3429
      %v3496 = vunpack.c.l.b16 %v3430
      %v3497 = vunpack.c.l.b16 %v3431
      %v3498 = vunpack.c.l.b16 %v3432
      %v3499 = vunpack.c.l.b16 %v3433
      %v3500 = vunpack.c.l.b16 %v3434
      %v3501 = vunpack.c.l.b16 %v3435
      %v3502 = vunpack.c.l.b16 %v3436
      %v3503 = vunpack.c.l.b16 %v3437
      %v3504 = vunpack.c.l.b16 %v3438
      %v3505 = vunpack.c.l.b16 %v3439
      %v3506 = vunpack.c.l.b16 %v3440
      %v3507 = vunpack.c.l.b16 %v3441
      %v3508 = vunpack.c.l.b16 %v3442
      %v3509 = vunpack.c.l.b16 %v3443
      %v3510 = vunpack.c.l.b16 %v3444
      %v3511 = vunpack.c.l.b16 %v3445
      %v3512 = vunpack.c.l.b16 %v3446
      %v3513 = vunpack.c.l.b16 %v3447
      %v3514 = vunpack.c.l.b16 %v3448
      %v3515 = vunpack.c.l.b16 %v3449
      %v3516 = vunpack.c.l.b16 %v3450
      %v3517 = vunpack.c.l.b16 %v3451
      %v3518 = vunpack.c.l.b16 %v3452
      %v3519 = vunpack.c.l.b16 %v3453
      %v3520 = vpack.c.b16 %v3489, %v3488
      %v3521 = vpack.c.b16 %v3491, %v3490
      %v3522 = vpack.c.b16 %v3493, %v3492
      %v3523 = vpack.c.b16 %v3495, %v3494
      %v3524 = vpack.c.b16 %v3497, %v3496
      %v3525 = vpack.c.b16 %v3499, %v3498
      %v3526 = vpack.c.b16 %v3501, %v3500
      %v3527 = vpack.c.b16 %v3503, %v3502
      %v3528 = vpack.c.b16 %v3505, %v3504
      %v3529 = vpack.c.b16 %v3507, %v3506
      %v3530 = vpack.c.b16 %v3509, %v3508
      %v3531 = vpack.c.b16 %v3511, %v3510
      %v3532 = vpack.c.b16 %v3513, %v3512
      %v3533 = vpack.c.b16 %v3515, %v3514
      %v3534 = vpack.c.b16 %v3517, %v3516
      %v3535 = vpack.c.b16 %v3519, %v3518
      %v3537 = vsel %vm765, %v3520, 0
      %v3540 = vsel %vm765, %v3521, 0
      %v3543 = vsel %vm765, %v3522, 0
      %v3546 = vsel %vm765, %v3523, 0
      %v3549 = vsel %vm765, %v3524, 0
      %v3552 = vsel %vm765, %v3525, 0
      %v3555 = vsel %vm765, %v3526, 0
      %v3558 = vsel %vm765, %v3527, 0
      %v3561 = vsel %vm765, %v3528, 0
      %v3564 = vsel %vm765, %v3529, 0
      %v3567 = vsel %vm765, %v3530, 0
      %v3570 = vsel %vm765, %v3531, 0
      %v3573 = vsel %vm765, %v3532, 0
      %v3576 = vsel %vm765, %v3533, 0
      %v3579 = vsel %vm765, %v3534, 0
      %v3582 = vsel %vm765, %v3535, 0
      %v3585 = vand.u32 %v3455, %v817
      %3587 = vmatprep.subr.bf16.mxu0 0
      %3588 = vmatpush1.bf16.msra.mxu0 %v3585
      %3589 = vmatprep.subr.bf16.mxu0 0
      %3590 = vmatpush1.bf16.msra.mxu0 0
      %3591 = vmatprep.subr.bf16.mxu0 0
      %3592 = vmatpush1.bf16.msra.mxu0 0
      %3593 = vmatprep.subr.bf16.mxu0 0
      %3594 = vmatpush1.bf16.msra.mxu0 0
      %3595 = vmatprep.subr.bf16.mxu0 0
      %3596 = vmatpush1.bf16.msra.mxu0 0
      %3597 = vmatprep.subr.bf16.mxu0 0
      %3598 = vmatpush1.bf16.msra.mxu0 0
      %3599 = vmatprep.subr.bf16.mxu0 0
      %3600 = vmatpush1.bf16.msra.mxu0 0
      %3601 = vmatprep.subr.bf16.mxu0 0
      %3602 = vmatpush1.bf16.msra.mxu0 0
      %3603 = vmatprep.subr.bf16.mxu0 0
      %3604 = vmatpush1.bf16.msra.mxu0 0
      %3605 = vmatprep.subr.bf16.mxu0 0
      %3606 = vmatpush1.bf16.msra.mxu0 0
      %3607 = vmatprep.subr.bf16.mxu0 0
      %3608 = vmatpush1.bf16.msra.mxu0 0
      %3609 = vmatprep.subr.bf16.mxu0 0
      %3610 = vmatpush1.bf16.msra.mxu0 0
      %3611 = vmatprep.subr.bf16.mxu0 0
      %3612 = vmatpush1.bf16.msra.mxu0 0
      %3613 = vmatprep.subr.bf16.mxu0 0
      %3614 = vmatpush1.bf16.msra.mxu0 0
      %3615 = vmatprep.subr.bf16.mxu0 0
      %3616 = vmatpush1.bf16.msra.mxu0 0
      %3617 = vmatprep.subr.bf16.mxu0 0
      %3618 = vmatpush1.bf16.msra.mxu0 0
      %3619 = vmatprep.mubr.bf16.mxu0 0
      %3620 = vmatmul.mubr.bf16.gmra.mrb[0].mxu0 %v3537
      %v3621 = vpop.f32.mrb[0].mxu0
      %v3622 = vadd.f32 0.0, %v3621
      %v3623 = vpop.f32.mrb[0].mxu0
      %v3624 = vpop.f32.mrb[0].mxu0
      %v3625 = vadd.f32 0.0, %v3624
      %v3626 = vpop.f32.mrb[0].mxu0
      %3627 = vmatprep.mubr.bf16.mxu0 0
      %3628 = vmatmul.mubr.bf16.gmra.mrb[0].mxu0 %v3540
      %v3629 = vpop.f32.mrb[0].mxu0
      %v3630 = vadd.f32 0.0, %v3629
      %v3631 = vpop.f32.mrb[0].mxu0
      %v3632 = vpop.f32.mrb[0].mxu0
      %v3633 = vadd.f32 0.0, %v3632
      %v3634 = vpop.f32.mrb[0].mxu0
      %3635 = vmatprep.mubr.bf16.mxu0 0
      %3636 = vmatmul.mubr.bf16.gmra.mrb[0].mxu0 %v3543
      %v3637 = vpop.f32.mrb[0].mxu0
      %v3638 = vadd.f32 0.0, %v3637
      %v3639 = vpop.f32.mrb[0].mxu0
      %v3640 = vpop.f32.mrb[0].mxu0
      %v3641 = vadd.f32 0.0, %v3640
      %v3642 = vpop.f32.mrb[0].mxu0
      %3643 = vmatprep.mubr.bf16.mxu0 0
      %3644 = vmatmul.mubr.bf16.gmra.mrb[0].mxu0 %v3546
      %v3645 = vpop.f32.mrb[0].mxu0
      %v3646 = vadd.f32 0.0, %v3645
      %v3647 = vpop.f32.mrb[0].mxu0
      %v3648 = vpop.f32.mrb[0].mxu0
      %v3649 = vadd.f32 0.0, %v3648
      %v3650 = vpop.f32.mrb[0].mxu0
      %3651 = vmatprep.mubr.bf16.mxu0 0
      %3652 = vmatmul.mubr.bf16.gmra.mrb[0].mxu0 %v3549
      %v3653 = vpop.f32.mrb[0].mxu0
      %v3654 = vadd.f32 0.0, %v3653
      %v3655 = vpop.f32.mrb[0].mxu0
      %v3656 = vpop.f32.mrb[0].mxu0
      %v3657 = vadd.f32 0.0, %v3656
      %v3658 = vpop.f32.mrb[0].mxu0
      %3659 = vmatprep.mubr.bf16.mxu0 0
      %3660 = vmatmul.mubr.bf16.gmra.mrb[0].mxu0 %v3552
      %v3661 = vpop.f32.mrb[0].mxu0
      %v3662 = vadd.f32 0.0, %v3661
      %v3663 = vpop.f32.mrb[0].mxu0
      %v3664 = vpop.f32.mrb[0].mxu0
      %v3665 = vadd.f32 0.0, %v3664
      %v3666 = vpop.f32.mrb[0].mxu0
      %3667 = vmatprep.mubr.bf16.mxu0 0
      %3668 = vmatmul.mubr.bf16.gmra.mrb[0].mxu0 %v3555
      %v3669 = vpop.f32.mrb[0].mxu0
      %v3670 = vadd.f32 0.0, %v3669
      %v3671 = vpop.f32.mrb[0].mxu0
      %v3672 = vpop.f32.mrb[0].mxu0
      %v3673 = vadd.f32 0.0, %v3672
      %v3674 = vpop.f32.mrb[0].mxu0
      %3675 = vmatprep.mubr.bf16.mxu0 0
      %3676 = vmatmul.mubr.bf16.gmra.mrb[0].mxu0 %v3558
      %v3677 = vpop.f32.mrb[0].mxu0
      %v3678 = vadd.f32 0.0, %v3677
      %v3679 = vpop.f32.mrb[0].mxu0
      %v3680 = vpop.f32.mrb[0].mxu0
      %v3681 = vadd.f32 0.0, %v3680
      %v3682 = vpop.f32.mrb[0].mxu0
      %3683 = vmatprep.mubr.bf16.mxu0 0
      %3684 = vmatmul.mubr.bf16.gmra.mrb[0].mxu0 %v3561
      %v3685 = vpop.f32.mrb[0].mxu0
      %v3686 = vadd.f32 0.0, %v3685
      %v3687 = vpop.f32.mrb[0].mxu0
      %v3688 = vpop.f32.mrb[0].mxu0
      %v3689 = vadd.f32 0.0, %v3688
      %v3690 = vpop.f32.mrb[0].mxu0
      %3691 = vmatprep.mubr.bf16.mxu0 0
      %3692 = vmatmul.mubr.bf16.gmra.mrb[0].mxu0 %v3564
      %v3693 = vpop.f32.mrb[0].mxu0
      %v3694 = vadd.f32 0.0, %v3693
      %v3695 = vpop.f32.mrb[0].mxu0
      %v3696 = vpop.f32.mrb[0].mxu0
      %v3697 = vadd.f32 0.0, %v3696
      %v3698 = vpop.f32.mrb[0].mxu0
      %3699 = vmatprep.mubr.bf16.mxu0 0
      %3700 = vmatmul.mubr.bf16.gmra.mrb[0].mxu0 %v3567
      %v3701 = vpop.f32.mrb[0].mxu0
      %v3702 = vadd.f32 0.0, %v3701
      %v3703 = vpop.f32.mrb[0].mxu0
      %v3704 = vpop.f32.mrb[0].mxu0
      %v3705 = vadd.f32 0.0, %v3704
      %v3706 = vpop.f32.mrb[0].mxu0
      %3707 = vmatprep.mubr.bf16.mxu0 0
      %3708 = vmatmul.mubr.bf16.gmra.mrb[0].mxu0 %v3570
      %v3709 = vpop.f32.mrb[0].mxu0
      %v3710 = vadd.f32 0.0, %v3709
      %v3711 = vpop.f32.mrb[0].mxu0
      %v3712 = vpop.f32.mrb[0].mxu0
      %v3713 = vadd.f32 0.0, %v3712
      %v3714 = vpop.f32.mrb[0].mxu0
      %3715 = vmatprep.mubr.bf16.mxu0 0
      %3716 = vmatmul.mubr.bf16.gmra.mrb[0].mxu0 %v3573
      %v3717 = vpop.f32.mrb[0].mxu0
      %v3718 = vadd.f32 0.0, %v3717
      %v3719 = vpop.f32.mrb[0].mxu0
      %v3720 = vpop.f32.mrb[0].mxu0
      %v3721 = vadd.f32 0.0, %v3720
      %v3722 = vpop.f32.mrb[0].mxu0
      %3723 = vmatprep.mubr.bf16.mxu0 0
      %3724 = vmatmul.mubr.bf16.gmra.mrb[0].mxu0 %v3576
      %v3725 = vpop.f32.mrb[0].mxu0
      %v3726 = vadd.f32 0.0, %v3725
      %v3727 = vpop.f32.mrb[0].mxu0
      %v3728 = vpop.f32.mrb[0].mxu0
      %v3729 = vadd.f32 0.0, %v3728
      %v3730 = vpop.f32.mrb[0].mxu0
      %3731 = vmatprep.mubr.bf16.mxu0 0
      %3732 = vmatmul.mubr.bf16.gmra.mrb[0].mxu0 %v3579
      %v3733 = vpop.f32.mrb[0].mxu0
      %v3734 = vadd.f32 0.0, %v3733
      %v3735 = vpop.f32.mrb[0].mxu0
      %v3736 = vpop.f32.mrb[0].mxu0
      %v3737 = vadd.f32 0.0, %v3736
      %v3738 = vpop.f32.mrb[0].mxu0
      %3739 = vmatprep.mubr.bf16.mxu0 0
      %3740 = vmatmul.mubr.bf16.gmra.mrb[0].mxu0 %v3582
      %v3741 = vpop.f32.mrb[0].mxu0
      %v3742 = vadd.f32 0.0, %v3741
      %v3743 = vpop.f32.mrb[0].mxu0
      %v3744 = vpop.f32.mrb[0].mxu0
      %v3745 = vadd.f32 0.0, %v3744
      %v3746 = vpop.f32.mrb[0].mxu0
      %3747 = vdwg.mxu0
      %v3748 = vadd.f32 %v3390, %v3622
      %v3749 = vadd.f32 %v3391, %v3625
      %v3750 = vadd.f32 %v3392, %v3630
      %v3751 = vadd.f32 %v3393, %v3633
      %v3752 = vadd.f32 %v3394, %v3638
      %v3753 = vadd.f32 %v3395, %v3641
      %v3754 = vadd.f32 %v3396, %v3646
      %v3755 = vadd.f32 %v3397, %v3649
      %v3756 = vadd.f32 %v3398, %v3654
      %v3757 = vadd.f32 %v3399, %v3657
      %v3758 = vadd.f32 %v3400, %v3662
      %v3759 = vadd.f32 %v3401, %v3665
      %v3760 = vadd.f32 %v3402, %v3670
      %v3761 = vadd.f32 %v3403, %v3673
      %v3762 = vadd.f32 %v3404, %v3678
      %v3763 = vadd.f32 %v3405, %v3681
      %v3764 = vadd.f32 %v3406, %v3686
      %v3765 = vadd.f32 %v3407, %v3689
      %v3766 = vadd.f32 %v3408, %v3694
      %v3767 = vadd.f32 %v3409, %v3697
      %v3768 = vadd.f32 %v3410, %v3702
      %v3769 = vadd.f32 %v3411, %v3705
      %v3770 = vadd.f32 %v3412, %v3710
      %v3771 = vadd.f32 %v3413, %v3713
      %v3772 = vadd.f32 %v3414, %v3718
      %v3773 = vadd.f32 %v3415, %v3721
      %v3774 = vadd.f32 %v3416, %v3726
      %v3775 = vadd.f32 %v3417, %v3729
      %v3776 = vadd.f32 %v3418, %v3734
      %v3777 = vadd.f32 %v3419, %v3737
      %v3778 = vadd.f32 %v3420, %v3742
      %v3779 = vadd.f32 %v3421, %v3745
      %v3780 = vld [vmem:[%s607] sm:$0x1]
      %v3782 = vlaneseq
      %v3783 = vshrl.u32 %v3782, 7
      %v3784 = vsub.s32 0, %v3783
      %v3785 = vrot.slane %v3780, %v3784
      %v3787 = vadd.f32 %v3748, %v3785
      %v3788 = vadd.f32 %v3749, %v3785
      %v3789 = vadd.f32 %v3750, %v3785
      %v3790 = vadd.f32 %v3751, %v3785
      %v3791 = vadd.f32 %v3752, %v3785
      %v3792 = vadd.f32 %v3753, %v3785
      %v3793 = vadd.f32 %v3754, %v3785
      %v3794 = vadd.f32 %v3755, %v3785
      %v3795 = vadd.f32 %v3756, %v3785
      %v3796 = vadd.f32 %v3757, %v3785
      %v3797 = vadd.f32 %v3758, %v3785
      %v3798 = vadd.f32 %v3759, %v3785
      %v3799 = vadd.f32 %v3760, %v3785
      %v3800 = vadd.f32 %v3761, %v3785
      %v3801 = vadd.f32 %v3762, %v3785
      %v3802 = vadd.f32 %v3763, %v3785
      %v3803 = vadd.f32 %v3764, %v3785
      %v3804 = vadd.f32 %v3765, %v3785
      %v3805 = vadd.f32 %v3766, %v3785
      %v3806 = vadd.f32 %v3767, %v3785
      %v3807 = vadd.f32 %v3768, %v3785
      %v3808 = vadd.f32 %v3769, %v3785
      %v3809 = vadd.f32 %v3770, %v3785
      %v3810 = vadd.f32 %v3771, %v3785
      %v3811 = vadd.f32 %v3772, %v3785
      %v3812 = vadd.f32 %v3773, %v3785
      %v3813 = vadd.f32 %v3774, %v3785
      %v3814 = vadd.f32 %v3775, %v3785
      %v3815 = vadd.f32 %v3776, %v3785
      %v3816 = vadd.f32 %v3777, %v3785
      %v3817 = vadd.f32 %v3778, %v3785
      %v3818 = vadd.f32 %v3779, %v3785
      %v3819 = vmax.f32 %v3787, 0.0
      %v3820 = vmax.f32 %v3788, 0.0
      %v3821 = vmax.f32 %v3789, 0.0
      %v3822 = vmax.f32 %v3790, 0.0
      %v3823 = vmax.f32 %v3791, 0.0
      %v3824 = vmax.f32 %v3792, 0.0
      %v3825 = vmax.f32 %v3793, 0.0
      %v3826 = vmax.f32 %v3794, 0.0
      %v3827 = vmax.f32 %v3795, 0.0
      %v3828 = vmax.f32 %v3796, 0.0
      %v3829 = vmax.f32 %v3797, 0.0
      %v3830 = vmax.f32 %v3798, 0.0
      %v3831 = vmax.f32 %v3799, 0.0
      %v3832 = vmax.f32 %v3800, 0.0
      %v3833 = vmax.f32 %v3801, 0.0
      %v3834 = vmax.f32 %v3802, 0.0
      %v3835 = vmax.f32 %v3803, 0.0
      %v3836 = vmax.f32 %v3804, 0.0
      %v3837 = vmax.f32 %v3805, 0.0
      %v3838 = vmax.f32 %v3806, 0.0
      %v3839 = vmax.f32 %v3807, 0.0
      %v3840 = vmax.f32 %v3808, 0.0
      %v3841 = vmax.f32 %v3809, 0.0
      %v3842 = vmax.f32 %v3810, 0.0
      %v3843 = vmax.f32 %v3811, 0.0
      %v3844 = vmax.f32 %v3812, 0.0
      %v3845 = vmax.f32 %v3813, 0.0
      %v3846 = vmax.f32 %v3814, 0.0
      %v3847 = vmax.f32 %v3815, 0.0
      %v3848 = vmax.f32 %v3816, 0.0
      %v3849 = vmax.f32 %v3817, 0.0
      %v3850 = vmax.f32 %v3818, 0.0
      %v3851 = vpack.c.bf16 %v3820, %v3819
      %v3852 = vpack.c.bf16 %v3822, %v3821
      %v3853 = vpack.c.bf16 %v3824, %v3823
      %v3854 = vpack.c.bf16 %v3826, %v3825
      %v3855 = vpack.c.bf16 %v3828, %v3827
      %v3856 = vpack.c.bf16 %v3830, %v3829
      %v3857 = vpack.c.bf16 %v3832, %v3831
      %v3858 = vpack.c.bf16 %v3834, %v3833
      %v3859 = vpack.c.bf16 %v3836, %v3835
      %v3860 = vpack.c.bf16 %v3838, %v3837
      %v3861 = vpack.c.bf16 %v3840, %v3839
      %v3862 = vpack.c.bf16 %v3842, %v3841
      %v3863 = vpack.c.bf16 %v3844, %v3843
      %v3864 = vpack.c.bf16 %v3846, %v3845
      %v3865 = vpack.c.bf16 %v3848, %v3847
      %v3866 = vpack.c.bf16 %v3850, %v3849
      %v3883 = vunpack.c.l.b16 %v3851
      %v3884 = vunpack.c.h.b16 %v3851
      %v3885 = vunpack.c.l.b16 %v3852
      %v3886 = vunpack.c.h.b16 %v3852
      %v3887 = vunpack.c.l.b16 %v3853
      %v3888 = vunpack.c.h.b16 %v3853
      %v3889 = vunpack.c.l.b16 %v3854
      %v3890 = vunpack.c.h.b16 %v3854
      %v3891 = vunpack.c.l.b16 %v3855
      %v3892 = vunpack.c.h.b16 %v3855
      %v3893 = vunpack.c.l.b16 %v3856
      %v3894 = vunpack.c.h.b16 %v3856
      %v3895 = vunpack.c.l.b16 %v3857
      %v3896 = vunpack.c.h.b16 %v3857
      %v3897 = vunpack.c.l.b16 %v3858
      %v3898 = vunpack.c.h.b16 %v3858
      %v3899 = vunpack.c.l.b16 %v3859
      %v3900 = vunpack.c.h.b16 %v3859
      %v3901 = vunpack.c.l.b16 %v3860
      %v3902 = vunpack.c.h.b16 %v3860
      %v3903 = vunpack.c.l.b16 %v3861
      %v3904 = vunpack.c.h.b16 %v3861
      %v3905 = vunpack.c.l.b16 %v3862
      %v3906 = vunpack.c.h.b16 %v3862
      %v3907 = vunpack.c.l.b16 %v3863
      %v3908 = vunpack.c.h.b16 %v3863
      %v3909 = vunpack.c.l.b16 %v3864
      %v3910 = vunpack.c.h.b16 %v3864
      %v3911 = vunpack.c.l.b16 %v3865
      %v3912 = vunpack.c.h.b16 %v3865
      %v3913 = vunpack.c.l.b16 %v3866
      %v3914 = vunpack.c.h.b16 %v3866
      %v3915 = vpack.c.b16 %v3883, %v3883
      %v3916 = vpack.c.b16 %v3884, %v3884
      %v3917 = vpack.c.b16 %v3885, %v3885
      %v3918 = vpack.c.b16 %v3886, %v3886
      %v3919 = vpack.c.b16 %v3887, %v3887
      %v3920 = vpack.c.b16 %v3888, %v3888
      %v3921 = vpack.c.b16 %v3889, %v3889
      %v3922 = vpack.c.b16 %v3890, %v3890
      %v3923 = vpack.c.b16 %v3891, %v3891
      %v3924 = vpack.c.b16 %v3892, %v3892
      %v3925 = vpack.c.b16 %v3893, %v3893
      %v3926 = vpack.c.b16 %v3894, %v3894
      %v3927 = vpack.c.b16 %v3895, %v3895
      %v3928 = vpack.c.b16 %v3896, %v3896
      %v3929 = vpack.c.b16 %v3897, %v3897
      %v3930 = vpack.c.b16 %v3898, %v3898
      %v3931 = vpack.c.b16 %v3899, %v3899
      %v3932 = vpack.c.b16 %v3900, %v3900
      %v3933 = vpack.c.b16 %v3901, %v3901
      %v3934 = vpack.c.b16 %v3902, %v3902
      %v3935 = vpack.c.b16 %v3903, %v3903
      %v3936 = vpack.c.b16 %v3904, %v3904
      %v3937 = vpack.c.b16 %v3905, %v3905
      %v3938 = vpack.c.b16 %v3906, %v3906
      %v3939 = vpack.c.b16 %v3907, %v3907
      %v3940 = vpack.c.b16 %v3908, %v3908
      %v3941 = vpack.c.b16 %v3909, %v3909
      %v3942 = vpack.c.b16 %v3910, %v3910
      %v3943 = vpack.c.b16 %v3911, %v3911
      %v3944 = vpack.c.b16 %v3912, %v3912
      %v3945 = vpack.c.b16 %v3913, %v3913
      %v3946 = vpack.c.b16 %v3914, %v3914
      %vm3979 = vcmask 60416
      %3980 = vst.msk [vmem:[%s615] sm:$0xf] %vm3979, %v3915
      %3981 = vst.msk [vmem:[%s615 + $0x4] sm:$0xf] %vm3979, %v3916
      %3982 = vst.msk [vmem:[%s615 + $0x8] sm:$0xf] %vm3979, %v3917
      %3983 = vst.msk [vmem:[%s615 + $0xc] sm:$0xf] %vm3979, %v3918
      %3984 = vst.msk [vmem:[%s615 + $0x10] sm:$0xf] %vm3979, %v3919
      %3985 = vst.msk [vmem:[%s615 + $0x14] sm:$0xf] %vm3979, %v3920
      %3986 = vst.msk [vmem:[%s615 + $0x18] sm:$0xf] %vm3979, %v3921
      %3987 = vst.msk [vmem:[%s615 + $0x1c] sm:$0xf] %vm3979, %v3922
      %3988 = vst.msk [vmem:[%s615 + $0x20] sm:$0xf] %vm3979, %v3923
      %3989 = vst.msk [vmem:[%s615 + $0x24] sm:$0xf] %vm3979, %v3924
      %3990 = vst.msk [vmem:[%s615 + $0x28] sm:$0xf] %vm3979, %v3925
      %3991 = vst.msk [vmem:[%s615 + $0x2c] sm:$0xf] %vm3979, %v3926
      %3992 = vst.msk [vmem:[%s615 + $0x30] sm:$0xf] %vm3979, %v3927
      %3993 = vst.msk [vmem:[%s615 + $0x34] sm:$0xf] %vm3979, %v3928
      %3994 = vst.msk [vmem:[%s615 + $0x38] sm:$0xf] %vm3979, %v3929
      %3995 = vst.msk [vmem:[%s615 + $0x3c] sm:$0xf] %vm3979, %v3930
      %3996 = vst.msk [vmem:[%s615 + $0x40] sm:$0xf] %vm3979, %v3931
      %3997 = vst.msk [vmem:[%s615 + $0x44] sm:$0xf] %vm3979, %v3932
      %3998 = vst.msk [vmem:[%s615 + $0x48] sm:$0xf] %vm3979, %v3933
      %3999 = vst.msk [vmem:[%s615 + $0x4c] sm:$0xf] %vm3979, %v3934
      %4000 = vst.msk [vmem:[%s615 + $0x50] sm:$0xf] %vm3979, %v3935
      %4001 = vst.msk [vmem:[%s615 + $0x54] sm:$0xf] %vm3979, %v3936
      %4002 = vst.msk [vmem:[%s615 + $0x58] sm:$0xf] %vm3979, %v3937
      %4003 = vst.msk [vmem:[%s615 + $0x5c] sm:$0xf] %vm3979, %v3938
      %4004 = vst.msk [vmem:[%s615 + $0x60] sm:$0xf] %vm3979, %v3939
      %4005 = vst.msk [vmem:[%s615 + $0x64] sm:$0xf] %vm3979, %v3940
      %4006 = vst.msk [vmem:[%s615 + $0x68] sm:$0xf] %vm3979, %v3941
      %4007 = vst.msk [vmem:[%s615 + $0x6c] sm:$0xf] %vm3979, %v3942
      %4008 = vst.msk [vmem:[%s615 + $0x70] sm:$0xf] %vm3979, %v3943
      %4009 = vst.msk [vmem:[%s615 + $0x74] sm:$0xf] %vm3979, %v3944
      %4010 = vst.msk [vmem:[%s615 + $0x78] sm:$0xf] %vm3979, %v3945
      %4011 = vst.msk [vmem:[%s615 + $0x7c] sm:$0xf] %vm3979, %v3946
      %s4012 = smul.u32 32, %s26
      %p4013 = scmp.lt.s32.totalorder %s4012, 63
      %s4014 = scalar_select %p4013, %s4012, 63
      %p4015 = scmp.lt.s32.totalorder %s27, 0
      %s4016 = scalar_select %p4015, %s27, 0
      %s4017 = sadd.s32 %s4016, %s4014
      %s4018 = smul.addr %s4017, 4
      %s4019 = scalar_lea.vmem %s11, %s4018
      // Predicated region
      $region65: #{_lambda_.23} parent=63 // pred_check
        %p4020 = pneg %p340
      $region66: #{_lambda_.23} parent=63 // pred_check_branch
        %4022 = sbr.rel (%p4020) target = $region68
      $region67: #{_lambda_.23} parent=63 // pred_region
        %s4023 = smul.u32 32, %s26
      $region68: #{_lambda_.23} parent=63 // pred_fallthru
        _
    $region64: #{_lambda_.23} parent=5 // pred_fallthru
      _
    %p4024 = scmp.le.s32.totalorder 2, %s17
    // Predicated region
    $region69: #{_lambda_.23} parent=5 // pred_check
      %p4025 = pneg %p4024
    $region70: #{_lambda_.23} parent=5 // pred_check_branch
      %4027 = sbr.rel (%p4025) target = $region72
    $region71: #{_lambda_.23} parent=5 // pred_region
      %s4028 = ssub.s32 %s17, 2
      // Predicated region
      $region73: #{_lambda_.23} parent=71 // pred_check
        %p4029 = pneg %p346
      $region74: #{_lambda_.23} parent=71 // pred_check_branch
        %4031 = sbr.rel (%p4029) target = $region76
      $region75: #{_lambda_.23} parent=71 // pred_region
        %s4032 = smul.u32 32, %s28
        %p4033 = scmp.lt.s32.totalorder %s4032, 63
        %s4034 = scalar_select %p4033, %s4032, 63
        %p4035 = scmp.lt.s32.totalorder %s29, 0
        %s4036 = scalar_select %p4035, %s29, 0
        %s4037 = sadd.s32 %s4036, %s4034
        %s4038 = smul.addr %s4037, 4
        %s4039 = scalar_lea.vmem %s11, %s4038
      $region76: #{_lambda_.23} parent=71 // pred_fallthru
        _
    $region72: #{_lambda_.23} parent=5 // pred_fallthru
      _
  $region6: #{_lambda_.23} parent=0 // loop_footer
    %s21 = sadd.s32 1, %s17
  $region7: #{_lambda_.23} parent=0 // loop_footer_branch
    %16 = sbr.rel target = $region3
  $region8: #{_lambda_.23} parent=0 // loop_exit
    _

// kernel: _lambda_.29
$region0: #{_lambda_.29}
  #allocation0 [shape = 'u32[]', space=smem, size = 0x4, offset = 0x4, fixed_abs, tag = 'smem constant byte address 0x4 - core index']
  #allocation1 [shape = 'u32[144,128]{1,0:T(1,128)}', space=vmem, size = 0x12000, scoped, tag = 'internal scratch']
  %s0 = inlined_call_operand.vmem [shape: bf16[32,32], index: 0, kind: input, shape index: {}]
  %s1 = inlined_call_operand.vmem [shape: bf16[1,32,8], index: 1, kind: input, shape index: {}]
  %s2 = inlined_call_operand.vmem [shape: f32[1,8], index: 2, kind: input, shape index: {}]
  %s3 = inlined_call_operand.vmem [shape: bf16[32,8], index: 3, kind: output, shape index: {}]
  %s4 = sld [smem:[#allocation0]]
  $region45: #{_lambda_.29} parent=0
    _
  %s6 = ssub.s32 1, %s4
  %s7 = scalar_select 0, %s6, %s4
  loop: start=0, step=1, limit=4
  $region2: #{_lambda_.29} parent=0 // loop_pre_header
    _
  $region3: #{_lambda_.29} parent=0 // loop_header
    %s9 = sphi 0, %s13
    %p10 = scmp.ge.s32.totalorder %s9, 4
    %s16 = sphi 0, %s28
    %s17 = sphi 0, %s24
    %s18 = sphi 0, %s16
    %s19 = sphi 0, %s17
    %s20 = sphi 0, %s18
    %s21 = sphi 0, %s19
    %s31 = sphi 0, %s33
    %s34 = sphi 0, %s31
    %s35 = sphi 0, %s34
    %s51 = sphi 0, %s35
    %s57 = sphi 0, %s59
    %s60 = sphi 0, %s57
    %s61 = sphi 0, %s60
    %s77 = sphi 0, %s61
    %s83 = sphi 0, %s85
    %s86 = sphi 0, %s83
    %s87 = sphi 0, %s86
    %s103 = sphi 0, %s87
    %s111 = sphi 0, %s113
    %s114 = sphi 0, %s111
    %s115 = sphi 0, %s114
    %s131 = sphi 0, %s115
  $region4: #{_lambda_.29} parent=0 // loop_header_branch
    %12 = sbr.rel (%p10) target = $region8
  $region5: #{_lambda_.29} parent=0 // loop_body
    %s14 = ssub.s32 %s9, 1
    %s15 = ssub.s32 %s9, 2
    %s22 = sadd.s32 1, %s17
    %p23 = scmp.ge.s32.totalorder %s22, 1
    %s24 = scalar_select %p23, 0, %s22
    %s25 = sadd.s32 1, %s16
    %s26 = scalar_select %p23, %s25, %s16
    %p27 = scmp.ge.s32.totalorder %s26, 2
    %s28 = scalar_select %p27, 0, %s26
    %s29 = ssub.s32 %s16, %s28
    %p30 = scmp.eq.s32.totalorder %s29, 0
    %s32 = sadd.s32 %s31, 1
    %s33 = scalar_select %p30, %s31, %s32
    %p36 = pneg %p30
    %p37 = scmp.eq.s32.totalorder %s9, 1
    %p38 = por %p36, %p37
    %p39 = scmp.ne.s32.totalorder %s31, %s34
    %p40 = scmp.eq.s32.totalorder %s9, 0
    %p41 = por %p39, %p40
    %p42 = scmp.ne.s32.totalorder %s31, %s34
    %p43 = scmp.eq.s32.totalorder %s14, 1
    %p44 = por %p42, %p43
    %p45 = scmp.ne.s32.totalorder %s34, %s35
    %p46 = scmp.eq.s32.totalorder %s14, 0
    %p47 = por %p45, %p46
    %p48 = scmp.ne.s32.totalorder %s34, %s35
    %p49 = scmp.eq.s32.totalorder %s15, 1
    %p50 = por %p48, %p49
    %p52 = scmp.ne.s32.totalorder %s35, %s51
    %p53 = scmp.eq.s32.totalorder %s15, 0
    %p54 = por %p52, %p53
    %s55 = ssub.s32 %s17, %s24
    %p56 = scmp.eq.s32.totalorder %s55, 0
    %s58 = sadd.s32 %s57, 1
    %s59 = scalar_select %p56, %s57, %s58
    %p62 = pneg %p56
    %p63 = scmp.eq.s32.totalorder %s9, 1
    %p64 = por %p62, %p63
    %p65 = scmp.ne.s32.totalorder %s57, %s60
    %p66 = scmp.eq.s32.totalorder %s9, 0
    %p67 = por %p65, %p66
    %p68 = scmp.ne.s32.totalorder %s57, %s60
    %p69 = scmp.eq.s32.totalorder %s14, 1
    %p70 = por %p68, %p69
    %p71 = scmp.ne.s32.totalorder %s60, %s61
    %p72 = scmp.eq.s32.totalorder %s14, 0
    %p73 = por %p71, %p72
    %p74 = scmp.ne.s32.totalorder %s60, %s61
    %p75 = scmp.eq.s32.totalorder %s15, 1
    %p76 = por %p74, %p75
    %p78 = scmp.ne.s32.totalorder %s61, %s77
    %p79 = scmp.eq.s32.totalorder %s15, 0
    %p80 = por %p78, %p79
    %s81 = ssub.s32 %s17, %s24
    %p82 = scmp.eq.s32.totalorder %s81, 0
    %s84 = sadd.s32 %s83, 1
    %s85 = scalar_select %p82, %s83, %s84
    %p88 = pneg %p82
    %p89 = scmp.eq.s32.totalorder %s9, 1
    %p90 = por %p88, %p89
    %p91 = scmp.ne.s32.totalorder %s83, %s86
    %p92 = scmp.eq.s32.totalorder %s9, 0
    %p93 = por %p91, %p92
    %p94 = scmp.ne.s32.totalorder %s83, %s86
    %p95 = scmp.eq.s32.totalorder %s14, 1
    %p96 = por %p94, %p95
    %p97 = scmp.ne.s32.totalorder %s86, %s87
    %p98 = scmp.eq.s32.totalorder %s14, 0
    %p99 = por %p97, %p98
    %p100 = scmp.ne.s32.totalorder %s86, %s87
    %p101 = scmp.eq.s32.totalorder %s15, 1
    %p102 = por %p100, %p101
    %p104 = scmp.ne.s32.totalorder %s87, %s103
    %p105 = scmp.eq.s32.totalorder %s15, 0
    %p106 = por %p104, %p105
    %s107 = ssub.s32 %s16, %s28
    %s108 = ssub.s32 %s17, %s24
    %s109 = sor.u32 %s107, %s108
    %p110 = scmp.eq.s32.totalorder %s109, 0
    %s112 = sadd.s32 %s111, 1
    %s113 = scalar_select %p110, %s111, %s112
    %p116 = pneg %p110
    %p117 = scmp.eq.s32.totalorder %s9, 1
    %p118 = por %p116, %p117
    %p119 = scmp.ne.s32.totalorder %s111, %s114
    %p120 = scmp.eq.s32.totalorder %s9, 0
    %p121 = por %p119, %p120
    %p122 = scmp.ne.s32.totalorder %s111, %s114
    %p123 = scmp.eq.s32.totalorder %s14, 1
    %p124 = por %p122, %p123
    %p125 = scmp.ne.s32.totalorder %s114, %s115
    %p126 = scmp.eq.s32.totalorder %s14, 0
    %p127 = por %p125, %p126
    %p128 = scmp.ne.s32.totalorder %s114, %s115
    %p129 = scmp.eq.s32.totalorder %s15, 1
    %p130 = por %p128, %p129
    %p132 = scmp.ne.s32.totalorder %s115, %s131
    %p133 = scmp.eq.s32.totalorder %s15, 0
    %p134 = por %p132, %p133
    %p135 = scmp.le.s32.totalorder 1, %s9
    %p136 = scmp.lt.s32.totalorder %s9, 3
    %p137 = pnand %p135, %p136
    %p138 = pneg %p137
    // Predicated region
    $region9: #{_lambda_.29} parent=5 // pred_check
      _
    $region10: #{_lambda_.29} parent=5 // pred_check_branch
      %140 = sbr.rel (%p137) target = $region12
    $region11: #{_lambda_.29} parent=5 // pred_region
      %s141 = ssub.s32 %s9, 1
      // Predicated region
      $region13: #{_lambda_.29} parent=11 // pred_check
        %p142 = pneg %p73
      $region14: #{_lambda_.29} parent=11 // pred_check_branch
        %144 = sbr.rel (%p142) target = $region16
      $region15: #{_lambda_.29} parent=11 // pred_region
        %p145 = scmp.lt.s32.totalorder %s19, 0
        %s146 = scalar_select %p145, %s19, 0
        %s147 = smul.addr %s146, 4
        %s148 = scalar_lea.vmem %s1, %s147
      $region16: #{_lambda_.29} parent=11 // pred_fallthru
        _
      // Predicated region
      $region17: #{_lambda_.29} parent=11 // pred_check
        %p149 = pneg %p99
      $region18: #{_lambda_.29} parent=11 // pred_check_branch
        %151 = sbr.rel (%p149) target = $region20
      $region19: #{_lambda_.29} parent=11 // pred_region
        %p152 = scmp.lt.s32.totalorder %s19, 0
        %s153 = scalar_select %p152, %s19, 0
        %s154 = scalar_lea.vmem %s2, %s153
      $region20: #{_lambda_.29} parent=11 // pred_fallthru
        _
    $region12: #{_lambda_.29} parent=5 // pred_fallthru
      _
    %p155 = scmp.lt.s32.totalorder %s9, 2
    // Predicated region
    $region21: #{_lambda_.29} parent=5 // pred_check
      %p156 = pneg %p155
    $region22: #{_lambda_.29} parent=5 // pred_check_branch
      %158 = sbr.rel (%p156) target = $region24
    $region23: #{_lambda_.29} parent=5 // pred_region
      // Predicated region
      $region25: #{_lambda_.29} parent=23 // pred_check
        %p159 = pneg %p41
      $region26: #{_lambda_.29} parent=23 // pred_check_branch
        %161 = sbr.rel (%p159) target = $region28
      $region27: #{_lambda_.29} parent=23 // pred_region
        %s162 = smul.u32 2, %s16
        %p163 = scmp.lt.s32.totalorder %s162, 3
        %s164 = scalar_select %p163, %s162, 3
        %s165 = smul.addr %s164, 4
        %s166 = scalar_lea.vmem %s0, %s165
        %s167 = smul.u32 2, %s16
      $region28: #{_lambda_.29} parent=23 // pred_fallthru
        _
    $region24: #{_lambda_.29} parent=5 // pred_fallthru
      _
    %p168 = scmp.le.s32.totalorder 1, %s9
    %p169 = scmp.lt.s32.totalorder %s9, 3
    %p170 = pnand %p168, %p169
    %p171 = pneg %p170
    // Predicated region
    $region29: #{_lambda_.29} parent=5 // pred_check
      _
    $region30: #{_lambda_.29} parent=5 // pred_check_branch
      %173 = sbr.rel (%p170) target = $region32
    $region31: #{_lambda_.29} parent=5 // pred_region
      %s174 = ssub.s32 %s9, 1
      %s175 = smul.u32 2, %s18
      %p176 = scmp.lt.s32.totalorder %s175, 3
      %s177 = scalar_select %p176, %s175, 3
      %s178 = smul.addr %s177, 4
      %s179 = scalar_lea.vmem %s0, %s178
      %p180 = pneg %p47
      %p181 = pneg %p44
      %p182 = scmp.lt.s32.totalorder %s19, 0
      %s183 = scalar_select %p182, %s19, 0
      %s184 = smul.addr %s183, 4
      %s185 = scalar_lea.vmem %s1, %s184
      %p186 = pneg %p73
      %p187 = pneg %p70
      %p188 = scmp.lt.s32.totalorder %s19, 0
      %s189 = scalar_select %p188, %s19, 0
      %s190 = scalar_lea.vmem %s2, %s189
      %p191 = pneg %p99
      %p192 = pneg %p96
      %p193 = pneg %p127
      %p194 = pneg %p124
      %s195 = smul.u32 2, %s18
      %p196 = scmp.lt.s32.totalorder %s195, 3
      %s197 = scalar_select %p196, %s195, 3
      %p198 = scmp.lt.s32.totalorder %s19, 0
      %s199 = scalar_select %p198, %s19, 0
      %s200 = sadd.s32 %s199, %s197
      %s201 = smul.addr %s200, 4
      %s202 = scalar_lea.vmem %s3, %s201
      %s203 = smul.u32 2, %s18
      %p204 = scmp.lt.s32.totalorder %s203, 3
      %s205 = scalar_select %p204, %s203, 3
      %s206 = smul.addr %s205, 4
      %s207 = scalar_lea.vmem %s0, %s206
      %s208 = smul.u32 2, %s18
      %p209 = scmp.lt.s32.totalorder %s19, 0
      %s210 = scalar_select %p209, %s19, 0
      %s211 = smul.addr %s210, 4
      %s212 = scalar_lea.vmem %s1, %s211
      %p213 = scmp.lt.s32.totalorder %s19, 0
      %s214 = scalar_select %p213, %s19, 0
      %s215 = scalar_lea.vmem %s2, %s214
      %s216 = smul.u32 2, %s18
      %p217 = scmp.lt.s32.totalorder %s216, 3
      %s218 = scalar_select %p217, %s216, 3
      %p219 = scmp.lt.s32.totalorder %s19, 0
      %s220 = scalar_select %p219, %s19, 0
      %s221 = sadd.s32 %s220, %s218
      %s222 = smul.addr %s221, 4
      %s223 = scalar_lea.vmem %s3, %s222
      %s224 = smul.u32 2, %s18
      %v226 = vld [vmem:[%s207] sm:$0xf]
      %v227 = vld [vmem:[%s207 + $0x4] sm:$0xf]
      %v228 = vld [vmem:[%s212] sm:$0xf]
      %v229 = vld [vmem:[%s212 + $0x4] sm:$0xf]
      %v230 = vld [vmem:[%s212 + $0x8] sm:$0xf]
      %v231 = vld [vmem:[%s212 + $0xc] sm:$0xf]
      %v232 = vld [vmem:[%s215] sm:$0x1]
      %v234 = vlaneseq
      %v235 = vshrl.u32 %v234, 7
      %v236 = vsub.s32 0, %v235
      %v237 = vrot.slane %v232, %v236
      %v241 = vunpack.c.l.b16 %v226
      %v242 = vunpack.c.l.b16 %v227
      %v243 = vpack.c.b16 %v242, %v241
      %v248 = vunpack.c.l.b16 %v228
      %v249 = vunpack.c.l.b16 %v229
      %v250 = vunpack.c.l.b16 %v230
      %v251 = vunpack.c.l.b16 %v231
      %v252 = vpack.c.b16 %v249, %v248
      %v253 = vpack.c.b16 %v251, %v250
      %vm256 = vcmask 261120
      %v258 = vsel %vm256, %v243, 0
      %260 = vmatprep.subr.bf16.mxu0 0
      %261 = vmatpush1.bf16.msra.mxu0 %v252
      %262 = vmatprep.subr.bf16.mxu0 0
      %263 = vmatpush1.bf16.msra.mxu0 %v253
      %264 = vmatprep.subr.bf16.mxu0 0
      %265 = vmatpush1.bf16.msra.mxu0 0
      %266 = vmatprep.subr.bf16.mxu0 0
      %267 = vmatpush1.bf16.msra.mxu0 0
      %268 = vmatprep.subr.bf16.mxu0 0
      %269 = vmatpush1.bf16.msra.mxu0 0
      %270 = vmatprep.subr.bf16.mxu0 0
      %271 = vmatpush1.bf16.msra.mxu0 0
      %272 = vmatprep.subr.bf16.mxu0 0
      %273 = vmatpush1.bf16.msra.mxu0 0
      %274 = vmatprep.subr.bf16.mxu0 0
      %275 = vmatpush1.bf16.msra.mxu0 0
      %276 = vmatprep.subr.bf16.mxu0 0
      %277 = vmatpush1.bf16.msra.mxu0 0
      %278 = vmatprep.subr.bf16.mxu0 0
      %279 = vmatpush1.bf16.msra.mxu0 0
      %280 = vmatprep.subr.bf16.mxu0 0
      %281 = vmatpush1.bf16.msra.mxu0 0
      %282 = vmatprep.subr.bf16.mxu0 0
      %283 = vmatpush1.bf16.msra.mxu0 0
      %284 = vmatprep.subr.bf16.mxu0 0
      %285 = vmatpush1.bf16.msra.mxu0 0
      %286 = vmatprep.subr.bf16.mxu0 0
      %287 = vmatpush1.bf16.msra.mxu0 0
      %288 = vmatprep.subr.bf16.mxu0 0
      %289 = vmatpush1.bf16.msra.mxu0 0
      %290 = vmatprep.subr.bf16.mxu0 0
      %291 = vmatpush1.bf16.msra.mxu0 0
      %292 = vmatprep.mubr.bf16.mxu0 0
      %293 = vmatmul.mubr.bf16.gmra.mrb[0].mxu0 %v258
      %v294 = vpop.f32.mrb[0].mxu0
      %v295 = vadd.f32 %v237, %v294
      %v296 = vpop.f32.mrb[0].mxu0
      %v297 = vpop.f32.mrb[0].mxu0
      %v298 = vadd.f32 %v237, %v297
      %v299 = vpop.f32.mrb[0].mxu0
      %300 = vdwg.mxu0
      %v301 = vmax.f32 %v295, 0.0
      %v302 = vmax.f32 %v298, 0.0
      %v303 = vpack.c.bf16 %v302, %v301
      %v305 = vunpack.c.l.b16 %v303
      %v306 = vunpack.c.h.b16 %v303
      %v307 = vpack.c.b16 %v305, %v305
      %v308 = vpack.c.b16 %v306, %v306
      %vm311 = vcmask 60416
      %312 = vst.msk [vmem:[%s223] sm:$0xf] %vm311, %v307
      %313 = vst.msk [vmem:[%s223 + $0x4] sm:$0xf] %vm311, %v308
      %s314 = smul.u32 2, %s18
      %p315 = scmp.lt.s32.totalorder %s314, 3
      %s316 = scalar_select %p315, %s314, 3
      %p317 = scmp.lt.s32.totalorder %s19, 0
      %s318 = scalar_select %p317, %s19, 0
      %s319 = sadd.s32 %s318, %s316
      %s320 = smul.addr %s319, 4
      %s321 = scalar_lea.vmem %s3, %s320
      // Predicated region
      $region33: #{_lambda_.29} parent=31 // pred_check
        %p322 = pneg %p124
      $region34: #{_lambda_.29} parent=31 // pred_check_branch
        %324 = sbr.rel (%p322) target = $region36
      $region35: #{_lambda_.29} parent=31 // pred_region
        %s325 = smul.u32 2, %s18
      $region36: #{_lambda_.29} parent=31 // pred_fallthru
        _
    $region32: #{_lambda_.29} parent=5 // pred_fallthru
      _
    %p326 = scmp.le.s32.totalorder 2, %s9
    // Predicated region
    $region37: #{_lambda_.29} parent=5 // pred_check
      %p327 = pneg %p326
    $region38: #{_lambda_.29} parent=5 // pred_check_branch
      %329 = sbr.rel (%p327) target = $region40
    $region39: #{_lambda_.29} parent=5 // pred_region
      %s330 = ssub.s32 %s9, 2
      // Predicated region
      $region41: #{_lambda_.29} parent=39 // pred_check
        %p331 = pneg %p130
      $region42: #{_lambda_.29} parent=39 // pred_check_branch
        %333 = sbr.rel (%p331) target = $region44
      $region43: #{_lambda_.29} parent=39 // pred_region
        %s334 = smul.u32 2, %s20
        %p335 = scmp.lt.s32.totalorder %s334, 3
        %s336 = scalar_select %p335, %s334, 3
        %p337 = scmp.lt.s32.totalorder %s21, 0
        %s338 = scalar_select %p337, %s21, 0
        %s339 = sadd.s32 %s338, %s336
        %s340 = smul.addr %s339, 4
        %s341 = scalar_lea.vmem %s3, %s340
      $region44: #{_lambda_.29} parent=39 // pred_fallthru
        _
    $region40: #{_lambda_.29} parent=5 // pred_fallthru
      _
  $region6: #{_lambda_.29} parent=0 // loop_footer
    %s13 = sadd.s32 1, %s9
  $region7: #{_lambda_.29} parent=0 // loop_footer_branch
    %8 = sbr.rel target = $region3
  $region8: #{_lambda_.29} parent=0 // loop_exit
    _

// kernel: _lambda_.32
$region0: #{_lambda_.32}
  #allocation0 [shape = 'u32[]', space=smem, size = 0x4, offset = 0x4, fixed_abs, tag = 'smem constant byte address 0x4 - core index']
  #allocation1 [shape = 'u32[144,128]{1,0:T(1,128)}', space=vmem, size = 0x12000, scoped, tag = 'internal scratch']
  %s0 = inlined_call_operand.vmem [shape: bf16[32,32], index: 0, kind: input, shape index: {}]
  %s1 = inlined_call_operand.vmem [shape: bf16[1,32,16], index: 1, kind: input, shape index: {}]
  %s2 = inlined_call_operand.vmem [shape: f32[1,16], index: 2, kind: input, shape index: {}]
  %s3 = inlined_call_operand.vmem [shape: bf16[32,16], index: 3, kind: output, shape index: {}]
  %s4 = sld [smem:[#allocation0]]
  $region45: #{_lambda_.32} parent=0
    _
  %s6 = ssub.s32 1, %s4
  %s7 = scalar_select 0, %s6, %s4
  loop: start=0, step=1, limit=4
  $region2: #{_lambda_.32} parent=0 // loop_pre_header
    _
  $region3: #{_lambda_.32} parent=0 // loop_header
    %s9 = sphi 0, %s13
    %p10 = scmp.ge.s32.totalorder %s9, 4
    %s16 = sphi 0, %s28
    %s17 = sphi 0, %s24
    %s18 = sphi 0, %s16
    %s19 = sphi 0, %s17
    %s20 = sphi 0, %s18
    %s21 = sphi 0, %s19
    %s31 = sphi 0, %s33
    %s34 = sphi 0, %s31
    %s35 = sphi 0, %s34
    %s51 = sphi 0, %s35
    %s57 = sphi 0, %s59
    %s60 = sphi 0, %s57
    %s61 = sphi 0, %s60
    %s77 = sphi 0, %s61
    %s83 = sphi 0, %s85
    %s86 = sphi 0, %s83
    %s87 = sphi 0, %s86
    %s103 = sphi 0, %s87
    %s111 = sphi 0, %s113
    %s114 = sphi 0, %s111
    %s115 = sphi 0, %s114
    %s131 = sphi 0, %s115
  $region4: #{_lambda_.32} parent=0 // loop_header_branch
    %12 = sbr.rel (%p10) target = $region8
  $region5: #{_lambda_.32} parent=0 // loop_body
    %s14 = ssub.s32 %s9, 1
    %s15 = ssub.s32 %s9, 2
    %s22 = sadd.s32 1, %s17
    %p23 = scmp.ge.s32.totalorder %s22, 1
    %s24 = scalar_select %p23, 0, %s22
    %s25 = sadd.s32 1, %s16
    %s26 = scalar_select %p23, %s25, %s16
    %p27 = scmp.ge.s32.totalorder %s26, 2
    %s28 = scalar_select %p27, 0, %s26
    %s29 = ssub.s32 %s16, %s28
    %p30 = scmp.eq.s32.totalorder %s29, 0
    %s32 = sadd.s32 %s31, 1
    %s33 = scalar_select %p30, %s31, %s32
    %p36 = pneg %p30
    %p37 = scmp.eq.s32.totalorder %s9, 1
    %p38 = por %p36, %p37
    %p39 = scmp.ne.s32.totalorder %s31, %s34
    %p40 = scmp.eq.s32.totalorder %s9, 0
    %p41 = por %p39, %p40
    %p42 = scmp.ne.s32.totalorder %s31, %s34
    %p43 = scmp.eq.s32.totalorder %s14, 1
    %p44 = por %p42, %p43
    %p45 = scmp.ne.s32.totalorder %s34, %s35
    %p46 = scmp.eq.s32.totalorder %s14, 0
    %p47 = por %p45, %p46
    %p48 = scmp.ne.s32.totalorder %s34, %s35
    %p49 = scmp.eq.s32.totalorder %s15, 1
    %p50 = por %p48, %p49
    %p52 = scmp.ne.s32.totalorder %s35, %s51
    %p53 = scmp.eq.s32.totalorder %s15, 0
    %p54 = por %p52, %p53
    %s55 = ssub.s32 %s17, %s24
    %p56 = scmp.eq.s32.totalorder %s55, 0
    %s58 = sadd.s32 %s57, 1
    %s59 = scalar_select %p56, %s57, %s58
    %p62 = pneg %p56
    %p63 = scmp.eq.s32.totalorder %s9, 1
    %p64 = por %p62, %p63
    %p65 = scmp.ne.s32.totalorder %s57, %s60
    %p66 = scmp.eq.s32.totalorder %s9, 0
    %p67 = por %p65, %p66
    %p68 = scmp.ne.s32.totalorder %s57, %s60
    %p69 = scmp.eq.s32.totalorder %s14, 1
    %p70 = por %p68, %p69
    %p71 = scmp.ne.s32.totalorder %s60, %s61
    %p72 = scmp.eq.s32.totalorder %s14, 0
    %p73 = por %p71, %p72
    %p74 = scmp.ne.s32.totalorder %s60, %s61
    %p75 = scmp.eq.s32.totalorder %s15, 1
    %p76 = por %p74, %p75
    %p78 = scmp.ne.s32.totalorder %s61, %s77
    %p79 = scmp.eq.s32.totalorder %s15, 0
    %p80 = por %p78, %p79
    %s81 = ssub.s32 %s17, %s24
    %p82 = scmp.eq.s32.totalorder %s81, 0
    %s84 = sadd.s32 %s83, 1
    %s85 = scalar_select %p82, %s83, %s84
    %p88 = pneg %p82
    %p89 = scmp.eq.s32.totalorder %s9, 1
    %p90 = por %p88, %p89
    %p91 = scmp.ne.s32.totalorder %s83, %s86
    %p92 = scmp.eq.s32.totalorder %s9, 0
    %p93 = por %p91, %p92
    %p94 = scmp.ne.s32.totalorder %s83, %s86
    %p95 = scmp.eq.s32.totalorder %s14, 1
    %p96 = por %p94, %p95
    %p97 = scmp.ne.s32.totalorder %s86, %s87
    %p98 = scmp.eq.s32.totalorder %s14, 0
    %p99 = por %p97, %p98
    %p100 = scmp.ne.s32.totalorder %s86, %s87
    %p101 = scmp.eq.s32.totalorder %s15, 1
    %p102 = por %p100, %p101
    %p104 = scmp.ne.s32.totalorder %s87, %s103
    %p105 = scmp.eq.s32.totalorder %s15, 0
    %p106 = por %p104, %p105
    %s107 = ssub.s32 %s16, %s28
    %s108 = ssub.s32 %s17, %s24
    %s109 = sor.u32 %s107, %s108
    %p110 = scmp.eq.s32.totalorder %s109, 0
    %s112 = sadd.s32 %s111, 1
    %s113 = scalar_select %p110, %s111, %s112
    %p116 = pneg %p110
    %p117 = scmp.eq.s32.totalorder %s9, 1
    %p118 = por %p116, %p117
    %p119 = scmp.ne.s32.totalorder %s111, %s114
    %p120 = scmp.eq.s32.totalorder %s9, 0
    %p121 = por %p119, %p120
    %p122 = scmp.ne.s32.totalorder %s111, %s114
    %p123 = scmp.eq.s32.totalorder %s14, 1
    %p124 = por %p122, %p123
    %p125 = scmp.ne.s32.totalorder %s114, %s115
    %p126 = scmp.eq.s32.totalorder %s14, 0
    %p127 = por %p125, %p126
    %p128 = scmp.ne.s32.totalorder %s114, %s115
    %p129 = scmp.eq.s32.totalorder %s15, 1
    %p130 = por %p128, %p129
    %p132 = scmp.ne.s32.totalorder %s115, %s131
    %p133 = scmp.eq.s32.totalorder %s15, 0
    %p134 = por %p132, %p133
    %p135 = scmp.le.s32.totalorder 1, %s9
    %p136 = scmp.lt.s32.totalorder %s9, 3
    %p137 = pnand %p135, %p136
    %p138 = pneg %p137
    // Predicated region
    $region9: #{_lambda_.32} parent=5 // pred_check
      _
    $region10: #{_lambda_.32} parent=5 // pred_check_branch
      %140 = sbr.rel (%p137) target = $region12
    $region11: #{_lambda_.32} parent=5 // pred_region
      %s141 = ssub.s32 %s9, 1
      // Predicated region
      $region13: #{_lambda_.32} parent=11 // pred_check
        %p142 = pneg %p73
      $region14: #{_lambda_.32} parent=11 // pred_check_branch
        %144 = sbr.rel (%p142) target = $region16
      $region15: #{_lambda_.32} parent=11 // pred_region
        %p145 = scmp.lt.s32.totalorder %s19, 0
        %s146 = scalar_select %p145, %s19, 0
        %s147 = smul.addr %s146, 4
        %s148 = scalar_lea.vmem %s1, %s147
      $region16: #{_lambda_.32} parent=11 // pred_fallthru
        _
      // Predicated region
      $region17: #{_lambda_.32} parent=11 // pred_check
        %p149 = pneg %p99
      $region18: #{_lambda_.32} parent=11 // pred_check_branch
        %151 = sbr.rel (%p149) target = $region20
      $region19: #{_lambda_.32} parent=11 // pred_region
        %p152 = scmp.lt.s32.totalorder %s19, 0
        %s153 = scalar_select %p152, %s19, 0
        %s154 = scalar_lea.vmem %s2, %s153
      $region20: #{_lambda_.32} parent=11 // pred_fallthru
        _
    $region12: #{_lambda_.32} parent=5 // pred_fallthru
      _
    %p155 = scmp.lt.s32.totalorder %s9, 2
    // Predicated region
    $region21: #{_lambda_.32} parent=5 // pred_check
      %p156 = pneg %p155
    $region22: #{_lambda_.32} parent=5 // pred_check_branch
      %158 = sbr.rel (%p156) target = $region24
    $region23: #{_lambda_.32} parent=5 // pred_region
      // Predicated region
      $region25: #{_lambda_.32} parent=23 // pred_check
        %p159 = pneg %p41
      $region26: #{_lambda_.32} parent=23 // pred_check_branch
        %161 = sbr.rel (%p159) target = $region28
      $region27: #{_lambda_.32} parent=23 // pred_region
        %s162 = smul.u32 2, %s16
        %p163 = scmp.lt.s32.totalorder %s162, 3
        %s164 = scalar_select %p163, %s162, 3
        %s165 = smul.addr %s164, 4
        %s166 = scalar_lea.vmem %s0, %s165
        %s167 = smul.u32 2, %s16
      $region28: #{_lambda_.32} parent=23 // pred_fallthru
        _
    $region24: #{_lambda_.32} parent=5 // pred_fallthru
      _
    %p168 = scmp.le.s32.totalorder 1, %s9
    %p169 = scmp.lt.s32.totalorder %s9, 3
    %p170 = pnand %p168, %p169
    %p171 = pneg %p170
    // Predicated region
    $region29: #{_lambda_.32} parent=5 // pred_check
      _
    $region30: #{_lambda_.32} parent=5 // pred_check_branch
      %173 = sbr.rel (%p170) target = $region32
    $region31: #{_lambda_.32} parent=5 // pred_region
      %s174 = ssub.s32 %s9, 1
      %s175 = smul.u32 2, %s18
      %p176 = scmp.lt.s32.totalorder %s175, 3
      %s177 = scalar_select %p176, %s175, 3
      %s178 = smul.addr %s177, 4
      %s179 = scalar_lea.vmem %s0, %s178
      %p180 = pneg %p47
      %p181 = pneg %p44
      %p182 = scmp.lt.s32.totalorder %s19, 0
      %s183 = scalar_select %p182, %s19, 0
      %s184 = smul.addr %s183, 4
      %s185 = scalar_lea.vmem %s1, %s184
      %p186 = pneg %p73
      %p187 = pneg %p70
      %p188 = scmp.lt.s32.totalorder %s19, 0
      %s189 = scalar_select %p188, %s19, 0
      %s190 = scalar_lea.vmem %s2, %s189
      %p191 = pneg %p99
      %p192 = pneg %p96
      %p193 = pneg %p127
      %p194 = pneg %p124
      %s195 = smul.u32 2, %s18
      %p196 = scmp.lt.s32.totalorder %s195, 3
      %s197 = scalar_select %p196, %s195, 3
      %p198 = scmp.lt.s32.totalorder %s19, 0
      %s199 = scalar_select %p198, %s19, 0
      %s200 = sadd.s32 %s199, %s197
      %s201 = smul.addr %s200, 4
      %s202 = scalar_lea.vmem %s3, %s201
      %s203 = smul.u32 2, %s18
      %p204 = scmp.lt.s32.totalorder %s203, 3
      %s205 = scalar_select %p204, %s203, 3
      %s206 = smul.addr %s205, 4
      %s207 = scalar_lea.vmem %s0, %s206
      %s208 = smul.u32 2, %s18
      %p209 = scmp.lt.s32.totalorder %s19, 0
      %s210 = scalar_select %p209, %s19, 0
      %s211 = smul.addr %s210, 4
      %s212 = scalar_lea.vmem %s1, %s211
      %p213 = scmp.lt.s32.totalorder %s19, 0
      %s214 = scalar_select %p213, %s19, 0
      %s215 = scalar_lea.vmem %s2, %s214
      %s216 = smul.u32 2, %s18
      %p217 = scmp.lt.s32.totalorder %s216, 3
      %s218 = scalar_select %p217, %s216, 3
      %p219 = scmp.lt.s32.totalorder %s19, 0
      %s220 = scalar_select %p219, %s19, 0
      %s221 = sadd.s32 %s220, %s218
      %s222 = smul.addr %s221, 4
      %s223 = scalar_lea.vmem %s3, %s222
      %s224 = smul.u32 2, %s18
      %v226 = vld [vmem:[%s207] sm:$0xf]
      %v227 = vld [vmem:[%s207 + $0x4] sm:$0xf]
      %v228 = vld [vmem:[%s212] sm:$0xf]
      %v229 = vld [vmem:[%s212 + $0x4] sm:$0xf]
      %v230 = vld [vmem:[%s212 + $0x8] sm:$0xf]
      %v231 = vld [vmem:[%s212 + $0xc] sm:$0xf]
      %v232 = vld [vmem:[%s215] sm:$0x1]
      %v234 = vlaneseq
      %v235 = vshrl.u32 %v234, 7
      %v236 = vsub.s32 0, %v235
      %v237 = vrot.slane %v232, %v236
      %v241 = vunpack.c.l.b16 %v226
      %v242 = vunpack.c.l.b16 %v227
      %v243 = vpack.c.b16 %v242, %v241
      %v248 = vunpack.c.l.b16 %v228
      %v249 = vunpack.c.l.b16 %v229
      %v250 = vunpack.c.l.b16 %v230
      %v251 = vunpack.c.l.b16 %v231
      %v252 = vpack.c.b16 %v249, %v248
      %v253 = vpack.c.b16 %v251, %v250
      %vm256 = vcmask 261120
      %v258 = vsel %vm256, %v243, 0
      %260 = vmatprep.subr.bf16.mxu0 0
      %261 = vmatpush1.bf16.msra.mxu0 %v252
      %262 = vmatprep.subr.bf16.mxu0 0
      %263 = vmatpush1.bf16.msra.mxu0 %v253
      %264 = vmatprep.subr.bf16.mxu0 0
      %265 = vmatpush1.bf16.msra.mxu0 0
      %266 = vmatprep.subr.bf16.mxu0 0
      %267 = vmatpush1.bf16.msra.mxu0 0
      %268 = vmatprep.subr.bf16.mxu0 0
      %269 = vmatpush1.bf16.msra.mxu0 0
      %270 = vmatprep.subr.bf16.mxu0 0
      %271 = vmatpush1.bf16.msra.mxu0 0
      %272 = vmatprep.subr.bf16.mxu0 0
      %273 = vmatpush1.bf16.msra.mxu0 0
      %274 = vmatprep.subr.bf16.mxu0 0
      %275 = vmatpush1.bf16.msra.mxu0 0
      %276 = vmatprep.subr.bf16.mxu0 0
      %277 = vmatpush1.bf16.msra.mxu0 0
      %278 = vmatprep.subr.bf16.mxu0 0
      %279 = vmatpush1.bf16.msra.mxu0 0
      %280 = vmatprep.subr.bf16.mxu0 0
      %281 = vmatpush1.bf16.msra.mxu0 0
      %282 = vmatprep.subr.bf16.mxu0 0
      %283 = vmatpush1.bf16.msra.mxu0 0
      %284 = vmatprep.subr.bf16.mxu0 0
      %285 = vmatpush1.bf16.msra.mxu0 0
      %286 = vmatprep.subr.bf16.mxu0 0
      %287 = vmatpush1.bf16.msra.mxu0 0
      %288 = vmatprep.subr.bf16.mxu0 0
      %289 = vmatpush1.bf16.msra.mxu0 0
      %290 = vmatprep.subr.bf16.mxu0 0
      %291 = vmatpush1.bf16.msra.mxu0 0
      %292 = vmatprep.mubr.bf16.mxu0 0
      %293 = vmatmul.mubr.bf16.gmra.mrb[0].mxu0 %v258
      %v294 = vpop.f32.mrb[0].mxu0
      %v295 = vadd.f32 %v237, %v294
      %v296 = vpop.f32.mrb[0].mxu0
      %v297 = vpop.f32.mrb[0].mxu0
      %v298 = vadd.f32 %v237, %v297
      %v299 = vpop.f32.mrb[0].mxu0
      %300 = vdwg.mxu0
      %v301 = vmax.f32 %v295, 0.0
      %v302 = vmax.f32 %v298, 0.0
      %v303 = vpack.c.bf16 %v302, %v301
      %v305 = vunpack.c.l.b16 %v303
      %v306 = vunpack.c.h.b16 %v303
      %v307 = vpack.c.b16 %v305, %v305
      %v308 = vpack.c.b16 %v306, %v306
      %vm311 = vcmask 125952
      %312 = vst.msk [vmem:[%s223] sm:$0xf] %vm311, %v307
      %313 = vst.msk [vmem:[%s223 + $0x4] sm:$0xf] %vm311, %v308
      %s314 = smul.u32 2, %s18
      %p315 = scmp.lt.s32.totalorder %s314, 3
      %s316 = scalar_select %p315, %s314, 3
      %p317 = scmp.lt.s32.totalorder %s19, 0
      %s318 = scalar_select %p317, %s19, 0
      %s319 = sadd.s32 %s318, %s316
      %s320 = smul.addr %s319, 4
      %s321 = scalar_lea.vmem %s3, %s320
      // Predicated region
      $region33: #{_lambda_.32} parent=31 // pred_check
        %p322 = pneg %p124
      $region34: #{_lambda_.32} parent=31 // pred_check_branch
        %324 = sbr.rel (%p322) target = $region36
      $region35: #{_lambda_.32} parent=31 // pred_region
        %s325 = smul.u32 2, %s18
      $region36: #{_lambda_.32} parent=31 // pred_fallthru
        _
    $region32: #{_lambda_.32} parent=5 // pred_fallthru
      _
    %p326 = scmp.le.s32.totalorder 2, %s9
    // Predicated region
    $region37: #{_lambda_.32} parent=5 // pred_check
      %p327 = pneg %p326
    $region38: #{_lambda_.32} parent=5 // pred_check_branch
      %329 = sbr.rel (%p327) target = $region40
    $region39: #{_lambda_.32} parent=5 // pred_region
      %s330 = ssub.s32 %s9, 2
      // Predicated region
      $region41: #{_lambda_.32} parent=39 // pred_check
        %p331 = pneg %p130
      $region42: #{_lambda_.32} parent=39 // pred_check_branch
        %333 = sbr.rel (%p331) target = $region44
      $region43: #{_lambda_.32} parent=39 // pred_region
        %s334 = smul.u32 2, %s20
        %p335 = scmp.lt.s32.totalorder %s334, 3
        %s336 = scalar_select %p335, %s334, 3
        %p337 = scmp.lt.s32.totalorder %s21, 0
        %s338 = scalar_select %p337, %s21, 0
        %s339 = sadd.s32 %s338, %s336
        %s340 = smul.addr %s339, 4
        %s341 = scalar_lea.vmem %s3, %s340
      $region44: #{_lambda_.32} parent=39 // pred_fallthru
        _
    $region40: #{_lambda_.32} parent=5 // pred_fallthru
      _
  $region6: #{_lambda_.32} parent=0 // loop_footer
    %s13 = sadd.s32 1, %s9
  $region7: #{_lambda_.32} parent=0 // loop_footer_branch
    %8 = sbr.rel target = $region3
  $region8: #{_lambda_.32} parent=0 // loop_exit
    _

// kernel: _lambda_.34
$region0: #{_lambda_.34}
  #allocation0 [shape = 'u32[]', space=smem, size = 0x4, offset = 0x4, fixed_abs, tag = 'smem constant byte address 0x4 - core index']
  #allocation1 [shape = 'u32[144,128]{1,0:T(1,128)}', space=vmem, size = 0x12000, scoped, tag = 'internal scratch']
  %s0 = inlined_call_operand.vmem [shape: bf16[8,32], index: 0, kind: input, shape index: {}]
  %s1 = inlined_call_operand.vmem [shape: bf16[1,32,64], index: 1, kind: input, shape index: {}]
  %s2 = inlined_call_operand.vmem [shape: f32[1,64], index: 2, kind: input, shape index: {}]
  %s3 = inlined_call_operand.vmem [shape: bf16[8,64], index: 3, kind: output, shape index: {}]
  %s4 = sld [smem:[#allocation0]]
  $region22: #{_lambda_.34} parent=0
    _
  %s6 = ssub.s32 1, %s4
  %s7 = scalar_select 0, %s6, %s4
  // Predicated region
  $region2: #{_lambda_.34} parent=0 // pred_check
    _
  $region3: #{_lambda_.34} parent=0 // pred_check_branch
    %9 = sbr.rel (0) target = $region5
  $region4: #{_lambda_.34} parent=0 // pred_region
    _
  $region5: #{_lambda_.34} parent=0 // pred_fallthru
    _
  // Predicated region
  $region6: #{_lambda_.34} parent=0 // pred_check
    _
  $region7: #{_lambda_.34} parent=0 // pred_check_branch
    %11 = sbr.rel (0) target = $region9
  $region8: #{_lambda_.34} parent=0 // pred_region
    _
  $region9: #{_lambda_.34} parent=0 // pred_fallthru
    _
  // Predicated region
  $region10: #{_lambda_.34} parent=0 // pred_check
    _
  $region11: #{_lambda_.34} parent=0 // pred_check_branch
    %13 = sbr.rel (0) target = $region13
  $region12: #{_lambda_.34} parent=0 // pred_region
    _
  $region13: #{_lambda_.34} parent=0 // pred_fallthru
    _
  %v15 = vld [vmem:[%s0] sm:$0xf]
  %v16 = vld [vmem:[%s1] sm:$0xf]
  %v17 = vld [vmem:[%s1 + $0x4] sm:$0xf]
  %v18 = vld [vmem:[%s1 + $0x8] sm:$0xf]
  %v19 = vld [vmem:[%s1 + $0xc] sm:$0xf]
  %v20 = vld [vmem:[%s2] sm:$0x1]
  %v22 = vlaneseq
  %v23 = vshrl.u32 %v22, 7
  %v24 = vsub.s32 0, %v23
  %v25 = vrot.slane %v20, %v24
  %v31 = vunpack.c.l.b16 %v16
  %v32 = vunpack.c.l.b16 %v17
  %v33 = vunpack.c.l.b16 %v18
  %v34 = vunpack.c.l.b16 %v19
  %v35 = vpack.c.b16 %v32, %v31
  %v36 = vpack.c.b16 %v34, %v33
  %vm39 = vcmask 261120
  %v41 = vsel %vm39, %v15, 0
  %43 = vmatprep.subr.bf16.mxu0 0
  %44 = vmatpush1.bf16.msra.mxu0 %v35
  %45 = vmatprep.subr.bf16.mxu0 0
  %46 = vmatpush1.bf16.msra.mxu0 %v36
  %47 = vmatprep.subr.bf16.mxu0 0
  %48 = vmatpush1.bf16.msra.mxu0 0
  %49 = vmatprep.subr.bf16.mxu0 0
  %50 = vmatpush1.bf16.msra.mxu0 0
  %51 = vmatprep.subr.bf16.mxu0 0
  %52 = vmatpush1.bf16.msra.mxu0 0
  %53 = vmatprep.subr.bf16.mxu0 0
  %54 = vmatpush1.bf16.msra.mxu0 0
  %55 = vmatprep.subr.bf16.mxu0 0
  %56 = vmatpush1.bf16.msra.mxu0 0
  %57 = vmatprep.subr.bf16.mxu0 0
  %58 = vmatpush1.bf16.msra.mxu0 0
  %59 = vmatprep.subr.bf16.mxu0 0
  %60 = vmatpush1.bf16.msra.mxu0 0
  %61 = vmatprep.subr.bf16.mxu0 0
  %62 = vmatpush1.bf16.msra.mxu0 0
  %63 = vmatprep.subr.bf16.mxu0 0
  %64 = vmatpush1.bf16.msra.mxu0 0
  %65 = vmatprep.subr.bf16.mxu0 0
  %66 = vmatpush1.bf16.msra.mxu0 0
  %67 = vmatprep.subr.bf16.mxu0 0
  %68 = vmatpush1.bf16.msra.mxu0 0
  %69 = vmatprep.subr.bf16.mxu0 0
  %70 = vmatpush1.bf16.msra.mxu0 0
  %71 = vmatprep.subr.bf16.mxu0 0
  %72 = vmatpush1.bf16.msra.mxu0 0
  %73 = vmatprep.subr.bf16.mxu0 0
  %74 = vmatpush1.bf16.msra.mxu0 0
  %75 = vmatprep.mubr.bf16.mxu0 0
  %76 = vmatmul.mubr.bf16.gmra.mrb[0].mxu0 %v41
  %v77 = vpop.f32.mrb[0].mxu0
  %v78 = vadd.f32 %v25, %v77
  %v79 = vpop.f32.mrb[0].mxu0
  %v80 = vpop.f32.mrb[0].mxu0
  %v81 = vpop.f32.mrb[0].mxu0
  %82 = vdwg.mxu0
  %v83 = vpack.c.bf16 %v78, %v78
  %vm84 = vcmask 519168
  %85 = vst.msk [vmem:[%s3] sm:$0xf] %vm84, %v83
  // Predicated region
  $region14: #{_lambda_.34} parent=0 // pred_check
    _
  $region15: #{_lambda_.34} parent=0 // pred_check_branch
    %87 = sbr.rel (0) target = $region17
  $region16: #{_lambda_.34} parent=0 // pred_region
    _
  $region17: #{_lambda_.34} parent=0 // pred_fallthru
    _
  // Predicated region
  $region18: #{_lambda_.34} parent=0 // pred_check
    _
  $region19: #{_lambda_.34} parent=0 // pred_check_branch
    %89 = sbr.rel (0) target = $region21
  $region20: #{_lambda_.34} parent=0 // pred_region
    _
  $region21: #{_lambda_.34} parent=0 // pred_fallthru
    _

// kernel: _lambda_.33
$region0: #{_lambda_.33}
  #allocation0 [shape = 'u32[]', space=smem, size = 0x4, offset = 0x4, fixed_abs, tag = 'smem constant byte address 0x4 - core index']
  #allocation1 [shape = 'u32[144,128]{1,0:T(1,128)}', space=vmem, size = 0x12000, scoped, tag = 'internal scratch']
  %s0 = inlined_call_operand.vmem [shape: bf16[8,16], index: 0, kind: input, shape index: {}]
  %s1 = inlined_call_operand.vmem [shape: bf16[8,16], index: 1, kind: input, shape index: {}]
  %s2 = inlined_call_operand.vmem [shape: bf16[8,16], index: 2, kind: input, shape index: {}]
  %s3 = inlined_call_operand.vmem [shape: bf16[8,16], index: 3, kind: input, shape index: {}]
  %s4 = inlined_call_operand.vmem [shape: bf16[8,16], index: 4, kind: input, shape index: {}]
  %s5 = inlined_call_operand.vmem [shape: bf16[8,16], index: 5, kind: input, shape index: {}]
  %s6 = inlined_call_operand.vmem [shape: bf16[8,16], index: 6, kind: input, shape index: {}]
  %s7 = inlined_call_operand.vmem [shape: bf16[8,16], index: 7, kind: input, shape index: {}]
  %s8 = inlined_call_operand.vmem [shape: bf16[8,16], index: 8, kind: input, shape index: {}]
  %s9 = inlined_call_operand.vmem [shape: bf16[9,16,16], index: 9, kind: input, shape index: {}]
  %s10 = inlined_call_operand.vmem [shape: f32[1,16], index: 10, kind: input, shape index: {}]
  %s11 = inlined_call_operand.vmem [shape: bf16[8,16], index: 11, kind: output, shape index: {}]
  %s12 = sld [smem:[#allocation0]]
  $region54: #{_lambda_.33} parent=0
    _
  %s14 = ssub.s32 1, %s12
  %s15 = scalar_select 0, %s14, %s12
  // Predicated region
  $region2: #{_lambda_.33} parent=0 // pred_check
    _
  $region3: #{_lambda_.33} parent=0 // pred_check_branch
    %17 = sbr.rel (0) target = $region5
  $region4: #{_lambda_.33} parent=0 // pred_region
    _
  $region5: #{_lambda_.33} parent=0 // pred_fallthru
    _
  // Predicated region
  $region6: #{_lambda_.33} parent=0 // pred_check
    _
  $region7: #{_lambda_.33} parent=0 // pred_check_branch
    %19 = sbr.rel (0) target = $region9
  $region8: #{_lambda_.33} parent=0 // pred_region
    _
  $region9: #{_lambda_.33} parent=0 // pred_fallthru
    _
  // Predicated region
  $region10: #{_lambda_.33} parent=0 // pred_check
    _
  $region11: #{_lambda_.33} parent=0 // pred_check_branch
    %21 = sbr.rel (0) target = $region13
  $region12: #{_lambda_.33} parent=0 // pred_region
    _
  $region13: #{_lambda_.33} parent=0 // pred_fallthru
    _
  // Predicated region
  $region14: #{_lambda_.33} parent=0 // pred_check
    _
  $region15: #{_lambda_.33} parent=0 // pred_check_branch
    %23 = sbr.rel (0) target = $region17
  $region16: #{_lambda_.33} parent=0 // pred_region
    _
  $region17: #{_lambda_.33} parent=0 // pred_fallthru
    _
  // Predicated region
  $region18: #{_lambda_.33} parent=0 // pred_check
    _
  $region19: #{_lambda_.33} parent=0 // pred_check_branch
    %25 = sbr.rel (0) target = $region21
  $region20: #{_lambda_.33} parent=0 // pred_region
    _
  $region21: #{_lambda_.33} parent=0 // pred_fallthru
    _
  // Predicated region
  $region22: #{_lambda_.33} parent=0 // pred_check
    _
  $region23: #{_lambda_.33} parent=0 // pred_check_branch
    %27 = sbr.rel (0) target = $region25
  $region24: #{_lambda_.33} parent=0 // pred_region
    _
  $region25: #{_lambda_.33} parent=0 // pred_fallthru
    _
  // Predicated region
  $region26: #{_lambda_.33} parent=0 // pred_check
    _
  $region27: #{_lambda_.33} parent=0 // pred_check_branch
    %29 = sbr.rel (0) target = $region29
  $region28: #{_lambda_.33} parent=0 // pred_region
    _
  $region29: #{_lambda_.33} parent=0 // pred_fallthru
    _
  // Predicated region
  $region30: #{_lambda_.33} parent=0 // pred_check
    _
  $region31: #{_lambda_.33} parent=0 // pred_check_branch
    %31 = sbr.rel (0) target = $region33
  $region32: #{_lambda_.33} parent=0 // pred_region
    _
  $region33: #{_lambda_.33} parent=0 // pred_fallthru
    _
  // Predicated region
  $region34: #{_lambda_.33} parent=0 // pred_check
    _
  $region35: #{_lambda_.33} parent=0 // pred_check_branch
    %33 = sbr.rel (0) target = $region37
  $region36: #{_lambda_.33} parent=0 // pred_region
    _
  $region37: #{_lambda_.33} parent=0 // pred_fallthru
    _
  // Predicated region
  $region38: #{_lambda_.33} parent=0 // pred_check
    _
  $region39: #{_lambda_.33} parent=0 // pred_check_branch
    %35 = sbr.rel (0) target = $region41
  $region40: #{_lambda_.33} parent=0 // pred_region
    _
  $region41: #{_lambda_.33} parent=0 // pred_fallthru
    _
  // Predicated region
  $region42: #{_lambda_.33} parent=0 // pred_check
    _
  $region43: #{_lambda_.33} parent=0 // pred_check_branch
    %37 = sbr.rel (0) target = $region45
  $region44: #{_lambda_.33} parent=0 // pred_region
    _
  $region45: #{_lambda_.33} parent=0 // pred_fallthru
    _
  %v39 = vld [vmem:[%s0] sm:$0xf]
  %v40 = vld [vmem:[%s9] sm:$0xf]
  %v41 = vld [vmem:[%s9 + $0x4] sm:$0xf]
  %v42 = vld [vmem:[%s1] sm:$0xf]
  %s43 = scalar_lea.vmem %s9, 8
  %v44 = vld [vmem:[%s43] sm:$0xf]
  %v45 = vld [vmem:[%s43 + $0x4] sm:$0xf]
  %v48 = vunpack.c.l.b16 %v44
  %v49 = vunpack.c.l.b16 %v45
  %v50 = vpack.c.b16 %v49, %v48
  %vm52 = vcmask 130048
  %v54 = vsel %vm52, %v42, 0
  %56 = vmatprep.subr.bf16.mxu0 0
  %57 = vmatpush1.bf16.msra.mxu0 %v50
  %58 = vmatprep.subr.bf16.mxu0 0
  %59 = vmatpush1.bf16.msra.mxu0 0
  %60 = vmatprep.subr.bf16.mxu0 0
  %61 = vmatpush1.bf16.msra.mxu0 0
  %62 = vmatprep.subr.bf16.mxu0 0
  %63 = vmatpush1.bf16.msra.mxu0 0
  %64 = vmatprep.subr.bf16.mxu0 0
  %65 = vmatpush1.bf16.msra.mxu0 0
  %66 = vmatprep.subr.bf16.mxu0 0
  %67 = vmatpush1.bf16.msra.mxu0 0
  %68 = vmatprep.subr.bf16.mxu0 0
  %69 = vmatpush1.bf16.msra.mxu0 0
  %70 = vmatprep.subr.bf16.mxu0 0
  %71 = vmatpush1.bf16.msra.mxu0 0
  %72 = vmatprep.subr.bf16.mxu0 0
  %73 = vmatpush1.bf16.msra.mxu0 0
  %74 = vmatprep.subr.bf16.mxu0 0
  %75 = vmatpush1.bf16.msra.mxu0 0
  %76 = vmatprep.subr.bf16.mxu0 0
  %77 = vmatpush1.bf16.msra.mxu0 0
  %78 = vmatprep.subr.bf16.mxu0 0
  %79 = vmatpush1.bf16.msra.mxu0 0
  %80 = vmatprep.subr.bf16.mxu0 0
  %81 = vmatpush1.bf16.msra.mxu0 0
  %82 = vmatprep.subr.bf16.mxu0 0
  %83 = vmatpush1.bf16.msra.mxu0 0
  %84 = vmatprep.subr.bf16.mxu0 0
  %85 = vmatpush1.bf16.msra.mxu0 0
  %86 = vmatprep.subr.bf16.mxu0 0
  %87 = vmatpush1.bf16.msra.mxu0 0
  %88 = vmatprep.mubr.bf16.mxu0 0
  %89 = vmatmul.mubr.bf16.gmra.mrb[0].mxu0 %v54
  %v90 = vpop.f32.mrb[0].mxu0
  %v91 = vadd.f32 0.0, %v90
  %v92 = vpop.f32.mrb[0].mxu0
  %v93 = vpop.f32.mrb[0].mxu0
  %v94 = vpop.f32.mrb[0].mxu0
  %95 = vdwg.mxu0
  %v98 = vunpack.c.l.b16 %v40
  %v99 = vunpack.c.l.b16 %v41
  %v100 = vpack.c.b16 %v99, %v98
  %v103 = vsel %vm52, %v39, 0
  %105 = vmatprep.subr.bf16.mxu0 0
  %106 = vmatpush1.bf16.msra.mxu0 %v100
  %107 = vmatprep.subr.bf16.mxu0 0
  %108 = vmatpush1.bf16.msra.mxu0 0
  %109 = vmatprep.subr.bf16.mxu0 0
  %110 = vmatpush1.bf16.msra.mxu0 0
  %111 = vmatprep.subr.bf16.mxu0 0
  %112 = vmatpush1.bf16.msra.mxu0 0
  %113 = vmatprep.subr.bf16.mxu0 0
  %114 = vmatpush1.bf16.msra.mxu0 0
  %115 = vmatprep.subr.bf16.mxu0 0
  %116 = vmatpush1.bf16.msra.mxu0 0
  %117 = vmatprep.subr.bf16.mxu0 0
  %118 = vmatpush1.bf16.msra.mxu0 0
  %119 = vmatprep.subr.bf16.mxu0 0
  %120 = vmatpush1.bf16.msra.mxu0 0
  %121 = vmatprep.subr.bf16.mxu0 0
  %122 = vmatpush1.bf16.msra.mxu0 0
  %123 = vmatprep.subr.bf16.mxu0 0
  %124 = vmatpush1.bf16.msra.mxu0 0
  %125 = vmatprep.subr.bf16.mxu0 0
  %126 = vmatpush1.bf16.msra.mxu0 0
  %127 = vmatprep.subr.bf16.mxu0 0
  %128 = vmatpush1.bf16.msra.mxu0 0
  %129 = vmatprep.subr.bf16.mxu0 0
  %130 = vmatpush1.bf16.msra.mxu0 0
  %131 = vmatprep.subr.bf16.mxu0 0
  %132 = vmatpush1.bf16.msra.mxu0 0
  %133 = vmatprep.subr.bf16.mxu0 0
  %134 = vmatpush1.bf16.msra.mxu0 0
  %135 = vmatprep.subr.bf16.mxu0 0
  %136 = vmatpush1.bf16.msra.mxu0 0
  %137 = vmatprep.mubr.bf16.mxu0 0
  %138 = vmatmul.mubr.bf16.gmra.mrb[0].mxu0 %v103
  %v139 = vpop.f32.mrb[0].mxu0
  %v140 = vadd.f32 %v91, %v139
  %v141 = vpop.f32.mrb[0].mxu0
  %v142 = vpop.f32.mrb[0].mxu0
  %v143 = vpop.f32.mrb[0].mxu0
  %144 = vdwg.mxu0
  %v145 = vld [vmem:[%s2] sm:$0xf]
  %s146 = scalar_lea.vmem %s9, 16
  %v147 = vld [vmem:[%s146] sm:$0xf]
  %v148 = vld [vmem:[%s146 + $0x4] sm:$0xf]
  %v151 = vunpack.c.l.b16 %v147
  %v152 = vunpack.c.l.b16 %v148
  %v153 = vpack.c.b16 %v152, %v151
  %v156 = vsel %vm52, %v145, 0
  %158 = vmatprep.subr.bf16.mxu0 0
  %159 = vmatpush1.bf16.msra.mxu0 %v153
  %160 = vmatprep.subr.bf16.mxu0 0
  %161 = vmatpush1.bf16.msra.mxu0 0
  %162 = vmatprep.subr.bf16.mxu0 0
  %163 = vmatpush1.bf16.msra.mxu0 0
  %164 = vmatprep.subr.bf16.mxu0 0
  %165 = vmatpush1.bf16.msra.mxu0 0
  %166 = vmatprep.subr.bf16.mxu0 0
  %167 = vmatpush1.bf16.msra.mxu0 0
  %168 = vmatprep.subr.bf16.mxu0 0
  %169 = vmatpush1.bf16.msra.mxu0 0
  %170 = vmatprep.subr.bf16.mxu0 0
  %171 = vmatpush1.bf16.msra.mxu0 0
  %172 = vmatprep.subr.bf16.mxu0 0
  %173 = vmatpush1.bf16.msra.mxu0 0
  %174 = vmatprep.subr.bf16.mxu0 0
  %175 = vmatpush1.bf16.msra.mxu0 0
  %176 = vmatprep.subr.bf16.mxu0 0
  %177 = vmatpush1.bf16.msra.mxu0 0
  %178 = vmatprep.subr.bf16.mxu0 0
  %179 = vmatpush1.bf16.msra.mxu0 0
  %180 = vmatprep.subr.bf16.mxu0 0
  %181 = vmatpush1.bf16.msra.mxu0 0
  %182 = vmatprep.subr.bf16.mxu0 0
  %183 = vmatpush1.bf16.msra.mxu0 0
  %184 = vmatprep.subr.bf16.mxu0 0
  %185 = vmatpush1.bf16.msra.mxu0 0
  %186 = vmatprep.subr.bf16.mxu0 0
  %187 = vmatpush1.bf16.msra.mxu0 0
  %188 = vmatprep.subr.bf16.mxu0 0
  %189 = vmatpush1.bf16.msra.mxu0 0
  %190 = vmatprep.mubr.bf16.mxu0 0
  %191 = vmatmul.mubr.bf16.gmra.mrb[0].mxu0 %v156
  %v192 = vpop.f32.mrb[0].mxu0
  %v193 = vadd.f32 0.0, %v192
  %v194 = vpop.f32.mrb[0].mxu0
  %v195 = vpop.f32.mrb[0].mxu0
  %v196 = vpop.f32.mrb[0].mxu0
  %197 = vdwg.mxu0
  %v198 = vadd.f32 %v140, %v193
  %v199 = vld [vmem:[%s3] sm:$0xf]
  %s200 = scalar_lea.vmem %s9, 24
  %v201 = vld [vmem:[%s200] sm:$0xf]
  %v202 = vld [vmem:[%s200 + $0x4] sm:$0xf]
  %v205 = vunpack.c.l.b16 %v201
  %v206 = vunpack.c.l.b16 %v202
  %v207 = vpack.c.b16 %v206, %v205
  %v210 = vsel %vm52, %v199, 0
  %212 = vmatprep.subr.bf16.mxu0 0
  %213 = vmatpush1.bf16.msra.mxu0 %v207
  %214 = vmatprep.subr.bf16.mxu0 0
  %215 = vmatpush1.bf16.msra.mxu0 0
  %216 = vmatprep.subr.bf16.mxu0 0
  %217 = vmatpush1.bf16.msra.mxu0 0
  %218 = vmatprep.subr.bf16.mxu0 0
  %219 = vmatpush1.bf16.msra.mxu0 0
  %220 = vmatprep.subr.bf16.mxu0 0
  %221 = vmatpush1.bf16.msra.mxu0 0
  %222 = vmatprep.subr.bf16.mxu0 0
  %223 = vmatpush1.bf16.msra.mxu0 0
  %224 = vmatprep.subr.bf16.mxu0 0
  %225 = vmatpush1.bf16.msra.mxu0 0
  %226 = vmatprep.subr.bf16.mxu0 0
  %227 = vmatpush1.bf16.msra.mxu0 0
  %228 = vmatprep.subr.bf16.mxu0 0
  %229 = vmatpush1.bf16.msra.mxu0 0
  %230 = vmatprep.subr.bf16.mxu0 0
  %231 = vmatpush1.bf16.msra.mxu0 0
  %232 = vmatprep.subr.bf16.mxu0 0
  %233 = vmatpush1.bf16.msra.mxu0 0
  %234 = vmatprep.subr.bf16.mxu0 0
  %235 = vmatpush1.bf16.msra.mxu0 0
  %236 = vmatprep.subr.bf16.mxu0 0
  %237 = vmatpush1.bf16.msra.mxu0 0
  %238 = vmatprep.subr.bf16.mxu0 0
  %239 = vmatpush1.bf16.msra.mxu0 0
  %240 = vmatprep.subr.bf16.mxu0 0
  %241 = vmatpush1.bf16.msra.mxu0 0
  %242 = vmatprep.subr.bf16.mxu0 0
  %243 = vmatpush1.bf16.msra.mxu0 0
  %244 = vmatprep.mubr.bf16.mxu0 0
  %245 = vmatmul.mubr.bf16.gmra.mrb[0].mxu0 %v210
  %v246 = vpop.f32.mrb[0].mxu0
  %v247 = vadd.f32 0.0, %v246
  %v248 = vpop.f32.mrb[0].mxu0
  %v249 = vpop.f32.mrb[0].mxu0
  %v250 = vpop.f32.mrb[0].mxu0
  %251 = vdwg.mxu0
  %v252 = vadd.f32 %v198, %v247
  %v253 = vld [vmem:[%s4] sm:$0xf]
  %s254 = scalar_lea.vmem %s9, 32
  %v255 = vld [vmem:[%s254] sm:$0xf]
  %v256 = vld [vmem:[%s254 + $0x4] sm:$0xf]
  %v259 = vunpack.c.l.b16 %v255
  %v260 = vunpack.c.l.b16 %v256
  %v261 = vpack.c.b16 %v260, %v259
  %v264 = vsel %vm52, %v253, 0
  %266 = vmatprep.subr.bf16.mxu0 0
  %267 = vmatpush1.bf16.msra.mxu0 %v261
  %268 = vmatprep.subr.bf16.mxu0 0
  %269 = vmatpush1.bf16.msra.mxu0 0
  %270 = vmatprep.subr.bf16.mxu0 0
  %271 = vmatpush1.bf16.msra.mxu0 0
  %272 = vmatprep.subr.bf16.mxu0 0
  %273 = vmatpush1.bf16.msra.mxu0 0
  %274 = vmatprep.subr.bf16.mxu0 0
  %275 = vmatpush1.bf16.msra.mxu0 0
  %276 = vmatprep.subr.bf16.mxu0 0
  %277 = vmatpush1.bf16.msra.mxu0 0
  %278 = vmatprep.subr.bf16.mxu0 0
  %279 = vmatpush1.bf16.msra.mxu0 0
  %280 = vmatprep.subr.bf16.mxu0 0
  %281 = vmatpush1.bf16.msra.mxu0 0
  %282 = vmatprep.subr.bf16.mxu0 0
  %283 = vmatpush1.bf16.msra.mxu0 0
  %284 = vmatprep.subr.bf16.mxu0 0
  %285 = vmatpush1.bf16.msra.mxu0 0
  %286 = vmatprep.subr.bf16.mxu0 0
  %287 = vmatpush1.bf16.msra.mxu0 0
  %288 = vmatprep.subr.bf16.mxu0 0
  %289 = vmatpush1.bf16.msra.mxu0 0
  %290 = vmatprep.subr.bf16.mxu0 0
  %291 = vmatpush1.bf16.msra.mxu0 0
  %292 = vmatprep.subr.bf16.mxu0 0
  %293 = vmatpush1.bf16.msra.mxu0 0
  %294 = vmatprep.subr.bf16.mxu0 0
  %295 = vmatpush1.bf16.msra.mxu0 0
  %296 = vmatprep.subr.bf16.mxu0 0
  %297 = vmatpush1.bf16.msra.mxu0 0
  %298 = vmatprep.mubr.bf16.mxu0 0
  %299 = vmatmul.mubr.bf16.gmra.mrb[0].mxu0 %v264
  %v300 = vpop.f32.mrb[0].mxu0
  %v301 = vadd.f32 0.0, %v300
  %v302 = vpop.f32.mrb[0].mxu0
  %v303 = vpop.f32.mrb[0].mxu0
  %v304 = vpop.f32.mrb[0].mxu0
  %305 = vdwg.mxu0
  %v306 = vadd.f32 %v252, %v301
  %v307 = vld [vmem:[%s5] sm:$0xf]
  %s308 = scalar_lea.vmem %s9, 40
  %v309 = vld [vmem:[%s308] sm:$0xf]
  %v310 = vld [vmem:[%s308 + $0x4] sm:$0xf]
  %v313 = vunpack.c.l.b16 %v309
  %v314 = vunpack.c.l.b16 %v310
  %v315 = vpack.c.b16 %v314, %v313
  %v318 = vsel %vm52, %v307, 0
  %320 = vmatprep.subr.bf16.mxu0 0
  %321 = vmatpush1.bf16.msra.mxu0 %v315
  %322 = vmatprep.subr.bf16.mxu0 0
  %323 = vmatpush1.bf16.msra.mxu0 0
  %324 = vmatprep.subr.bf16.mxu0 0
  %325 = vmatpush1.bf16.msra.mxu0 0
  %326 = vmatprep.subr.bf16.mxu0 0
  %327 = vmatpush1.bf16.msra.mxu0 0
  %328 = vmatprep.subr.bf16.mxu0 0
  %329 = vmatpush1.bf16.msra.mxu0 0
  %330 = vmatprep.subr.bf16.mxu0 0
  %331 = vmatpush1.bf16.msra.mxu0 0
  %332 = vmatprep.subr.bf16.mxu0 0
  %333 = vmatpush1.bf16.msra.mxu0 0
  %334 = vmatprep.subr.bf16.mxu0 0
  %335 = vmatpush1.bf16.msra.mxu0 0
  %336 = vmatprep.subr.bf16.mxu0 0
  %337 = vmatpush1.bf16.msra.mxu0 0
  %338 = vmatprep.subr.bf16.mxu0 0
  %339 = vmatpush1.bf16.msra.mxu0 0
  %340 = vmatprep.subr.bf16.mxu0 0
  %341 = vmatpush1.bf16.msra.mxu0 0
  %342 = vmatprep.subr.bf16.mxu0 0
  %343 = vmatpush1.bf16.msra.mxu0 0
  %344 = vmatprep.subr.bf16.mxu0 0
  %345 = vmatpush1.bf16.msra.mxu0 0
  %346 = vmatprep.subr.bf16.mxu0 0
  %347 = vmatpush1.bf16.msra.mxu0 0
  %348 = vmatprep.subr.bf16.mxu0 0
  %349 = vmatpush1.bf16.msra.mxu0 0
  %350 = vmatprep.subr.bf16.mxu0 0
  %351 = vmatpush1.bf16.msra.mxu0 0
  %352 = vmatprep.mubr.bf16.mxu0 0
  %353 = vmatmul.mubr.bf16.gmra.mrb[0].mxu0 %v318
  %v354 = vpop.f32.mrb[0].mxu0
  %v355 = vadd.f32 0.0, %v354
  %v356 = vpop.f32.mrb[0].mxu0
  %v357 = vpop.f32.mrb[0].mxu0
  %v358 = vpop.f32.mrb[0].mxu0
  %359 = vdwg.mxu0
  %v360 = vadd.f32 %v306, %v355
  %v361 = vld [vmem:[%s6] sm:$0xf]
  %s362 = scalar_lea.vmem %s9, 48
  %v363 = vld [vmem:[%s362] sm:$0xf]
  %v364 = vld [vmem:[%s362 + $0x4] sm:$0xf]
  %v367 = vunpack.c.l.b16 %v363
  %v368 = vunpack.c.l.b16 %v364
  %v369 = vpack.c.b16 %v368, %v367
  %v372 = vsel %vm52, %v361, 0
  %374 = vmatprep.subr.bf16.mxu0 0
  %375 = vmatpush1.bf16.msra.mxu0 %v369
  %376 = vmatprep.subr.bf16.mxu0 0
  %377 = vmatpush1.bf16.msra.mxu0 0
  %378 = vmatprep.subr.bf16.mxu0 0
  %379 = vmatpush1.bf16.msra.mxu0 0
  %380 = vmatprep.subr.bf16.mxu0 0
  %381 = vmatpush1.bf16.msra.mxu0 0
  %382 = vmatprep.subr.bf16.mxu0 0
  %383 = vmatpush1.bf16.msra.mxu0 0
  %384 = vmatprep.subr.bf16.mxu0 0
  %385 = vmatpush1.bf16.msra.mxu0 0
  %386 = vmatprep.subr.bf16.mxu0 0
  %387 = vmatpush1.bf16.msra.mxu0 0
  %388 = vmatprep.subr.bf16.mxu0 0
  %389 = vmatpush1.bf16.msra.mxu0 0
  %390 = vmatprep.subr.bf16.mxu0 0
  %391 = vmatpush1.bf16.msra.mxu0 0
  %392 = vmatprep.subr.bf16.mxu0 0
  %393 = vmatpush1.bf16.msra.mxu0 0
  %394 = vmatprep.subr.bf16.mxu0 0
  %395 = vmatpush1.bf16.msra.mxu0 0
  %396 = vmatprep.subr.bf16.mxu0 0
  %397 = vmatpush1.bf16.msra.mxu0 0
  %398 = vmatprep.subr.bf16.mxu0 0
  %399 = vmatpush1.bf16.msra.mxu0 0
  %400 = vmatprep.subr.bf16.mxu0 0
  %401 = vmatpush1.bf16.msra.mxu0 0
  %402 = vmatprep.subr.bf16.mxu0 0
  %403 = vmatpush1.bf16.msra.mxu0 0
  %404 = vmatprep.subr.bf16.mxu0 0
  %405 = vmatpush1.bf16.msra.mxu0 0
  %406 = vmatprep.mubr.bf16.mxu0 0
  %407 = vmatmul.mubr.bf16.gmra.mrb[0].mxu0 %v372
  %v408 = vpop.f32.mrb[0].mxu0
  %v409 = vadd.f32 0.0, %v408
  %v410 = vpop.f32.mrb[0].mxu0
  %v411 = vpop.f32.mrb[0].mxu0
  %v412 = vpop.f32.mrb[0].mxu0
  %413 = vdwg.mxu0
  %v414 = vadd.f32 %v360, %v409
  %v415 = vld [vmem:[%s7] sm:$0xf]
  %s416 = scalar_lea.vmem %s9, 56
  %v417 = vld [vmem:[%s416] sm:$0xf]
  %v418 = vld [vmem:[%s416 + $0x4] sm:$0xf]
  %v421 = vunpack.c.l.b16 %v417
  %v422 = vunpack.c.l.b16 %v418
  %v423 = vpack.c.b16 %v422, %v421
  %v426 = vsel %vm52, %v415, 0
  %428 = vmatprep.subr.bf16.mxu0 0
  %429 = vmatpush1.bf16.msra.mxu0 %v423
  %430 = vmatprep.subr.bf16.mxu0 0
  %431 = vmatpush1.bf16.msra.mxu0 0
  %432 = vmatprep.subr.bf16.mxu0 0
  %433 = vmatpush1.bf16.msra.mxu0 0
  %434 = vmatprep.subr.bf16.mxu0 0
  %435 = vmatpush1.bf16.msra.mxu0 0
  %436 = vmatprep.subr.bf16.mxu0 0
  %437 = vmatpush1.bf16.msra.mxu0 0
  %438 = vmatprep.subr.bf16.mxu0 0
  %439 = vmatpush1.bf16.msra.mxu0 0
  %440 = vmatprep.subr.bf16.mxu0 0
  %441 = vmatpush1.bf16.msra.mxu0 0
  %442 = vmatprep.subr.bf16.mxu0 0
  %443 = vmatpush1.bf16.msra.mxu0 0
  %444 = vmatprep.subr.bf16.mxu0 0
  %445 = vmatpush1.bf16.msra.mxu0 0
  %446 = vmatprep.subr.bf16.mxu0 0
  %447 = vmatpush1.bf16.msra.mxu0 0
  %448 = vmatprep.subr.bf16.mxu0 0
  %449 = vmatpush1.bf16.msra.mxu0 0
  %450 = vmatprep.subr.bf16.mxu0 0
  %451 = vmatpush1.bf16.msra.mxu0 0
  %452 = vmatprep.subr.bf16.mxu0 0
  %453 = vmatpush1.bf16.msra.mxu0 0
  %454 = vmatprep.subr.bf16.mxu0 0
  %455 = vmatpush1.bf16.msra.mxu0 0
  %456 = vmatprep.subr.bf16.mxu0 0
  %457 = vmatpush1.bf16.msra.mxu0 0
  %458 = vmatprep.subr.bf16.mxu0 0
  %459 = vmatpush1.bf16.msra.mxu0 0
  %460 = vmatprep.mubr.bf16.mxu0 0
  %461 = vmatmul.mubr.bf16.gmra.mrb[0].mxu0 %v426
  %v462 = vpop.f32.mrb[0].mxu0
  %v463 = vadd.f32 0.0, %v462
  %v464 = vpop.f32.mrb[0].mxu0
  %v465 = vpop.f32.mrb[0].mxu0
  %v466 = vpop.f32.mrb[0].mxu0
  %467 = vdwg.mxu0
  %v468 = vadd.f32 %v414, %v463
  %v469 = vld [vmem:[%s8] sm:$0xf]
  %s470 = scalar_lea.vmem %s9, 64
  %v471 = vld [vmem:[%s470] sm:$0xf]
  %v472 = vld [vmem:[%s470 + $0x4] sm:$0xf]
  %v475 = vunpack.c.l.b16 %v471
  %v476 = vunpack.c.l.b16 %v472
  %v477 = vpack.c.b16 %v476, %v475
  %v480 = vsel %vm52, %v469, 0
  %482 = vmatprep.subr.bf16.mxu0 0
  %483 = vmatpush1.bf16.msra.mxu0 %v477
  %484 = vmatprep.subr.bf16.mxu0 0
  %485 = vmatpush1.bf16.msra.mxu0 0
  %486 = vmatprep.subr.bf16.mxu0 0
  %487 = vmatpush1.bf16.msra.mxu0 0
  %488 = vmatprep.subr.bf16.mxu0 0
  %489 = vmatpush1.bf16.msra.mxu0 0
  %490 = vmatprep.subr.bf16.mxu0 0
  %491 = vmatpush1.bf16.msra.mxu0 0
  %492 = vmatprep.subr.bf16.mxu0 0
  %493 = vmatpush1.bf16.msra.mxu0 0
  %494 = vmatprep.subr.bf16.mxu0 0
  %495 = vmatpush1.bf16.msra.mxu0 0
  %496 = vmatprep.subr.bf16.mxu0 0
  %497 = vmatpush1.bf16.msra.mxu0 0
  %498 = vmatprep.subr.bf16.mxu0 0
  %499 = vmatpush1.bf16.msra.mxu0 0
  %500 = vmatprep.subr.bf16.mxu0 0
  %501 = vmatpush1.bf16.msra.mxu0 0
  %502 = vmatprep.subr.bf16.mxu0 0
  %503 = vmatpush1.bf16.msra.mxu0 0
  %504 = vmatprep.subr.bf16.mxu0 0
  %505 = vmatpush1.bf16.msra.mxu0 0
  %506 = vmatprep.subr.bf16.mxu0 0
  %507 = vmatpush1.bf16.msra.mxu0 0
  %508 = vmatprep.subr.bf16.mxu0 0
  %509 = vmatpush1.bf16.msra.mxu0 0
  %510 = vmatprep.subr.bf16.mxu0 0
  %511 = vmatpush1.bf16.msra.mxu0 0
  %512 = vmatprep.subr.bf16.mxu0 0
  %513 = vmatpush1.bf16.msra.mxu0 0
  %514 = vmatprep.mubr.bf16.mxu0 0
  %515 = vmatmul.mubr.bf16.gmra.mrb[0].mxu0 %v480
  %v516 = vpop.f32.mrb[0].mxu0
  %v517 = vadd.f32 0.0, %v516
  %v518 = vpop.f32.mrb[0].mxu0
  %v519 = vpop.f32.mrb[0].mxu0
  %v520 = vpop.f32.mrb[0].mxu0
  %521 = vdwg.mxu0
  %v522 = vadd.f32 %v468, %v517
  %v523 = vld [vmem:[%s10] sm:$0x1]
  %v525 = vlaneseq
  %v526 = vshrl.u32 %v525, 7
  %v527 = vsub.s32 0, %v526
  %v528 = vrot.slane %v523, %v527
  %v530 = vadd.f32 %v522, %v528
  %v531 = vmax.f32 %v530, 0.0
  %v532 = vpack.c.bf16 %v531, %v531
  %vm533 = vcmask 125952
  %534 = vst.msk [vmem:[%s11] sm:$0xf] %vm533, %v532
  // Predicated region
  $region46: #{_lambda_.33} parent=0 // pred_check
    _
  $region47: #{_lambda_.33} parent=0 // pred_check_branch
    %536 = sbr.rel (0) target = $region49
  $region48: #{_lambda_.33} parent=0 // pred_region
    _
  $region49: #{_lambda_.33} parent=0 // pred_fallthru
    _
  // Predicated region
  $region50: #{_lambda_.33} parent=0 // pred_check
    _
  $region51: #{_lambda_.33} parent=0 // pred_check_branch
    %538 = sbr.rel (0) target = $region53
  $region52: #{_lambda_.33} parent=0 // pred_region
    _
  $region53: #{_lambda_.33} parent=0 // pred_fallthru
    _

// kernel: _lambda_.36
$region0: #{_lambda_.36}
  #allocation0 [shape = 'u32[]', space=smem, size = 0x4, offset = 0x4, fixed_abs, tag = 'smem constant byte address 0x4 - core index']
  #allocation1 [shape = 'u32[144,128]{1,0:T(1,128)}', space=vmem, size = 0x12000, scoped, tag = 'internal scratch']
  %s0 = inlined_call_operand.vmem [shape: bf16[8,64], index: 0, kind: input, shape index: {}]
  %s1 = inlined_call_operand.vmem [shape: bf16[1,64,16], index: 1, kind: input, shape index: {}]
  %s2 = inlined_call_operand.vmem [shape: f32[1,16], index: 2, kind: input, shape index: {}]
  %s3 = inlined_call_operand.vmem [shape: bf16[8,16], index: 3, kind: output, shape index: {}]
  %s4 = sld [smem:[#allocation0]]
  $region22: #{_lambda_.36} parent=0
    _
  %s6 = ssub.s32 1, %s4
  %s7 = scalar_select 0, %s6, %s4
  // Predicated region
  $region2: #{_lambda_.36} parent=0 // pred_check
    _
  $region3: #{_lambda_.36} parent=0 // pred_check_branch
    %9 = sbr.rel (0) target = $region5
  $region4: #{_lambda_.36} parent=0 // pred_region
    _
  $region5: #{_lambda_.36} parent=0 // pred_fallthru
    _
  // Predicated region
  $region6: #{_lambda_.36} parent=0 // pred_check
    _
  $region7: #{_lambda_.36} parent=0 // pred_check_branch
    %11 = sbr.rel (0) target = $region9
  $region8: #{_lambda_.36} parent=0 // pred_region
    _
  $region9: #{_lambda_.36} parent=0 // pred_fallthru
    _
  // Predicated region
  $region10: #{_lambda_.36} parent=0 // pred_check
    _
  $region11: #{_lambda_.36} parent=0 // pred_check_branch
    %13 = sbr.rel (0) target = $region13
  $region12: #{_lambda_.36} parent=0 // pred_region
    _
  $region13: #{_lambda_.36} parent=0 // pred_fallthru
    _
  %v15 = vld [vmem:[%s0] sm:$0xf]
  %v16 = vld [vmem:[%s1] sm:$0xf]
  %v17 = vld [vmem:[%s1 + $0x4] sm:$0xf]
  %v18 = vld [vmem:[%s1 + $0x8] sm:$0xf]
  %v19 = vld [vmem:[%s1 + $0xc] sm:$0xf]
  %v20 = vld [vmem:[%s1 + $0x10] sm:$0xf]
  %v21 = vld [vmem:[%s1 + $0x14] sm:$0xf]
  %v22 = vld [vmem:[%s1 + $0x18] sm:$0xf]
  %v23 = vld [vmem:[%s1 + $0x1c] sm:$0xf]
  %v24 = vld [vmem:[%s2] sm:$0x1]
  %v26 = vlaneseq
  %v27 = vshrl.u32 %v26, 7
  %v28 = vsub.s32 0, %v27
  %v29 = vrot.slane %v24, %v28
  %v39 = vunpack.c.l.b16 %v16
  %v40 = vunpack.c.l.b16 %v17
  %v41 = vunpack.c.l.b16 %v18
  %v42 = vunpack.c.l.b16 %v19
  %v43 = vunpack.c.l.b16 %v20
  %v44 = vunpack.c.l.b16 %v21
  %v45 = vunpack.c.l.b16 %v22
  %v46 = vunpack.c.l.b16 %v23
  %v47 = vpack.c.b16 %v40, %v39
  %v48 = vpack.c.b16 %v42, %v41
  %v49 = vpack.c.b16 %v44, %v43
  %v50 = vpack.c.b16 %v46, %v45
  %vm55 = vcmask 523264
  %v57 = vsel %vm55, %v15, 0
  %59 = vmatprep.subr.bf16.mxu0 0
  %60 = vmatpush1.bf16.msra.mxu0 %v47
  %61 = vmatprep.subr.bf16.mxu0 0
  %62 = vmatpush1.bf16.msra.mxu0 %v48
  %63 = vmatprep.subr.bf16.mxu0 0
  %64 = vmatpush1.bf16.msra.mxu0 %v49
  %65 = vmatprep.subr.bf16.mxu0 0
  %66 = vmatpush1.bf16.msra.mxu0 %v50
  %67 = vmatprep.subr.bf16.mxu0 0
  %68 = vmatpush1.bf16.msra.mxu0 0
  %69 = vmatprep.subr.bf16.mxu0 0
  %70 = vmatpush1.bf16.msra.mxu0 0
  %71 = vmatprep.subr.bf16.mxu0 0
  %72 = vmatpush1.bf16.msra.mxu0 0
  %73 = vmatprep.subr.bf16.mxu0 0
  %74 = vmatpush1.bf16.msra.mxu0 0
  %75 = vmatprep.subr.bf16.mxu0 0
  %76 = vmatpush1.bf16.msra.mxu0 0
  %77 = vmatprep.subr.bf16.mxu0 0
  %78 = vmatpush1.bf16.msra.mxu0 0
  %79 = vmatprep.subr.bf16.mxu0 0
  %80 = vmatpush1.bf16.msra.mxu0 0
  %81 = vmatprep.subr.bf16.mxu0 0
  %82 = vmatpush1.bf16.msra.mxu0 0
  %83 = vmatprep.subr.bf16.mxu0 0
  %84 = vmatpush1.bf16.msra.mxu0 0
  %85 = vmatprep.subr.bf16.mxu0 0
  %86 = vmatpush1.bf16.msra.mxu0 0
  %87 = vmatprep.subr.bf16.mxu0 0
  %88 = vmatpush1.bf16.msra.mxu0 0
  %89 = vmatprep.subr.bf16.mxu0 0
  %90 = vmatpush1.bf16.msra.mxu0 0
  %91 = vmatprep.mubr.bf16.mxu0 0
  %92 = vmatmul.mubr.bf16.gmra.mrb[0].mxu0 %v57
  %v93 = vpop.f32.mrb[0].mxu0
  %v94 = vadd.f32 %v29, %v93
  %v95 = vpop.f32.mrb[0].mxu0
  %v96 = vpop.f32.mrb[0].mxu0
  %v97 = vpop.f32.mrb[0].mxu0
  %98 = vdwg.mxu0
  %v99 = vmax.f32 %v94, 0.0
  %v100 = vpack.c.bf16 %v99, %v99
  %vm101 = vcmask 125952
  %102 = vst.msk [vmem:[%s3] sm:$0xf] %vm101, %v100
  // Predicated region
  $region14: #{_lambda_.36} parent=0 // pred_check
    _
  $region15: #{_lambda_.36} parent=0 // pred_check_branch
    %104 = sbr.rel (0) target = $region17
  $region16: #{_lambda_.36} parent=0 // pred_region
    _
  $region17: #{_lambda_.36} parent=0 // pred_fallthru
    _
  // Predicated region
  $region18: #{_lambda_.36} parent=0 // pred_check
    _
  $region19: #{_lambda_.36} parent=0 // pred_check_branch
    %106 = sbr.rel (0) target = $region21
  $region20: #{_lambda_.36} parent=0 // pred_region
    _
  $region21: #{_lambda_.36} parent=0 // pred_fallthru
    _

// kernel: _lambda_.35
$region0: #{_lambda_.35}
  #allocation0 [shape = 'u32[]', space=smem, size = 0x4, offset = 0x4, fixed_abs, tag = 'smem constant byte address 0x4 - core index']
  #allocation1 [shape = 'u32[144,128]{1,0:T(1,128)}', space=vmem, size = 0x12000, scoped, tag = 'internal scratch']
  %s0 = inlined_call_operand.vmem [shape: bf16[8,16], index: 0, kind: input, shape index: {}]
  %s1 = inlined_call_operand.vmem [shape: bf16[1,16,64], index: 1, kind: input, shape index: {}]
  %s2 = inlined_call_operand.vmem [shape: f32[1,64], index: 2, kind: input, shape index: {}]
  %s3 = inlined_call_operand.vmem [shape: bf16[8,64], index: 3, kind: input, shape index: {}]
  %s4 = inlined_call_operand.vmem [shape: bf16[8,64], index: 4, kind: output, shape index: {}]
  %s5 = sld [smem:[#allocation0]]
  $region26: #{_lambda_.35} parent=0
    _
  %s7 = ssub.s32 1, %s5
  %s8 = scalar_select 0, %s7, %s5
  // Predicated region
  $region2: #{_lambda_.35} parent=0 // pred_check
    _
  $region3: #{_lambda_.35} parent=0 // pred_check_branch
    %10 = sbr.rel (0) target = $region5
  $region4: #{_lambda_.35} parent=0 // pred_region
    _
  $region5: #{_lambda_.35} parent=0 // pred_fallthru
    _
  // Predicated region
  $region6: #{_lambda_.35} parent=0 // pred_check
    _
  $region7: #{_lambda_.35} parent=0 // pred_check_branch
    %12 = sbr.rel (0) target = $region9
  $region8: #{_lambda_.35} parent=0 // pred_region
    _
  $region9: #{_lambda_.35} parent=0 // pred_fallthru
    _
  // Predicated region
  $region10: #{_lambda_.35} parent=0 // pred_check
    _
  $region11: #{_lambda_.35} parent=0 // pred_check_branch
    %14 = sbr.rel (0) target = $region13
  $region12: #{_lambda_.35} parent=0 // pred_region
    _
  $region13: #{_lambda_.35} parent=0 // pred_fallthru
    _
  // Predicated region
  $region14: #{_lambda_.35} parent=0 // pred_check
    _
  $region15: #{_lambda_.35} parent=0 // pred_check_branch
    %16 = sbr.rel (0) target = $region17
  $region16: #{_lambda_.35} parent=0 // pred_region
    _
  $region17: #{_lambda_.35} parent=0 // pred_fallthru
    _
  %v18 = vld [vmem:[%s0] sm:$0xf]
  %v19 = vld [vmem:[%s1] sm:$0xf]
  %v20 = vld [vmem:[%s1 + $0x4] sm:$0xf]
  %v21 = vld [vmem:[%s2] sm:$0x1]
  %v23 = vlaneseq
  %v24 = vshrl.u32 %v23, 7
  %v25 = vsub.s32 0, %v24
  %v26 = vrot.slane %v21, %v25
  %v30 = vunpack.c.l.b16 %v19
  %v31 = vunpack.c.l.b16 %v20
  %v32 = vpack.c.b16 %v31, %v30
  %vm34 = vcmask 130048
  %v36 = vsel %vm34, %v18, 0
  %38 = vmatprep.subr.bf16.mxu0 0
  %39 = vmatpush1.bf16.msra.mxu0 %v32
  %40 = vmatprep.subr.bf16.mxu0 0
  %41 = vmatpush1.bf16.msra.mxu0 0
  %42 = vmatprep.subr.bf16.mxu0 0
  %43 = vmatpush1.bf16.msra.mxu0 0
  %44 = vmatprep.subr.bf16.mxu0 0
  %45 = vmatpush1.bf16.msra.mxu0 0
  %46 = vmatprep.subr.bf16.mxu0 0
  %47 = vmatpush1.bf16.msra.mxu0 0
  %48 = vmatprep.subr.bf16.mxu0 0
  %49 = vmatpush1.bf16.msra.mxu0 0
  %50 = vmatprep.subr.bf16.mxu0 0
  %51 = vmatpush1.bf16.msra.mxu0 0
  %52 = vmatprep.subr.bf16.mxu0 0
  %53 = vmatpush1.bf16.msra.mxu0 0
  %54 = vmatprep.subr.bf16.mxu0 0
  %55 = vmatpush1.bf16.msra.mxu0 0
  %56 = vmatprep.subr.bf16.mxu0 0
  %57 = vmatpush1.bf16.msra.mxu0 0
  %58 = vmatprep.subr.bf16.mxu0 0
  %59 = vmatpush1.bf16.msra.mxu0 0
  %60 = vmatprep.subr.bf16.mxu0 0
  %61 = vmatpush1.bf16.msra.mxu0 0
  %62 = vmatprep.subr.bf16.mxu0 0
  %63 = vmatpush1.bf16.msra.mxu0 0
  %64 = vmatprep.subr.bf16.mxu0 0
  %65 = vmatpush1.bf16.msra.mxu0 0
  %66 = vmatprep.subr.bf16.mxu0 0
  %67 = vmatpush1.bf16.msra.mxu0 0
  %68 = vmatprep.subr.bf16.mxu0 0
  %69 = vmatpush1.bf16.msra.mxu0 0
  %70 = vmatprep.mubr.bf16.mxu0 0
  %71 = vmatmul.mubr.bf16.gmra.mrb[0].mxu0 %v36
  %v72 = vpop.f32.mrb[0].mxu0
  %v73 = vadd.f32 %v26, %v72
  %v74 = vpop.f32.mrb[0].mxu0
  %v75 = vpop.f32.mrb[0].mxu0
  %v76 = vpop.f32.mrb[0].mxu0
  %77 = vdwg.mxu0
  %v78 = vld [vmem:[%s3] sm:$0xf]
  %v79 = vunpack.c.l.bf16 %v78
  %v80 = vadd.f32 %v73, %v79
  %v81 = vmax.f32 %v80, 0.0
  %v82 = vpack.c.bf16 %v81, %v81
  %vm83 = vcmask 519168
  %84 = vst.msk [vmem:[%s4] sm:$0xf] %vm83, %v82
  // Predicated region
  $region18: #{_lambda_.35} parent=0 // pred_check
    _
  $region19: #{_lambda_.35} parent=0 // pred_check_branch
    %86 = sbr.rel (0) target = $region21
  $region20: #{_lambda_.35} parent=0 // pred_region
    _
  $region21: #{_lambda_.35} parent=0 // pred_fallthru
    _
  // Predicated region
  $region22: #{_lambda_.35} parent=0 // pred_check
    _
  $region23: #{_lambda_.35} parent=0 // pred_check_branch
    %88 = sbr.rel (0) target = $region25
  $region24: #{_lambda_.35} parent=0 // pred_region
    _
  $region25: #{_lambda_.35} parent=0 // pred_fallthru
    _

// kernel: _lambda_.39
$region0: #{_lambda_.39}
  #allocation0 [shape = 'u32[]', space=smem, size = 0x4, offset = 0x4, fixed_abs, tag = 'smem constant byte address 0x4 - core index']
  #allocation1 [shape = 'u32[144,128]{1,0:T(1,128)}', space=vmem, size = 0x12000, scoped, tag = 'internal scratch']
  %s0 = inlined_call_operand.vmem [shape: bf16[8,64], index: 0, kind: input, shape index: {}]
  %s1 = inlined_call_operand.vmem [shape: bf16[1,64,32], index: 1, kind: input, shape index: {}]
  %s2 = inlined_call_operand.vmem [shape: f32[1,32], index: 2, kind: input, shape index: {}]
  %s3 = inlined_call_operand.vmem [shape: bf16[8,32], index: 3, kind: output, shape index: {}]
  %s4 = sld [smem:[#allocation0]]
  $region22: #{_lambda_.39} parent=0
    _
  %s6 = ssub.s32 1, %s4
  %s7 = scalar_select 0, %s6, %s4
  // Predicated region
  $region2: #{_lambda_.39} parent=0 // pred_check
    _
  $region3: #{_lambda_.39} parent=0 // pred_check_branch
    %9 = sbr.rel (0) target = $region5
  $region4: #{_lambda_.39} parent=0 // pred_region
    _
  $region5: #{_lambda_.39} parent=0 // pred_fallthru
    _
  // Predicated region
  $region6: #{_lambda_.39} parent=0 // pred_check
    _
  $region7: #{_lambda_.39} parent=0 // pred_check_branch
    %11 = sbr.rel (0) target = $region9
  $region8: #{_lambda_.39} parent=0 // pred_region
    _
  $region9: #{_lambda_.39} parent=0 // pred_fallthru
    _
  // Predicated region
  $region10: #{_lambda_.39} parent=0 // pred_check
    _
  $region11: #{_lambda_.39} parent=0 // pred_check_branch
    %13 = sbr.rel (0) target = $region13
  $region12: #{_lambda_.39} parent=0 // pred_region
    _
  $region13: #{_lambda_.39} parent=0 // pred_fallthru
    _
  %v15 = vld [vmem:[%s0] sm:$0xf]
  %v16 = vld [vmem:[%s1] sm:$0xf]
  %v17 = vld [vmem:[%s1 + $0x4] sm:$0xf]
  %v18 = vld [vmem:[%s1 + $0x8] sm:$0xf]
  %v19 = vld [vmem:[%s1 + $0xc] sm:$0xf]
  %v20 = vld [vmem:[%s1 + $0x10] sm:$0xf]
  %v21 = vld [vmem:[%s1 + $0x14] sm:$0xf]
  %v22 = vld [vmem:[%s1 + $0x18] sm:$0xf]
  %v23 = vld [vmem:[%s1 + $0x1c] sm:$0xf]
  %v24 = vld [vmem:[%s2] sm:$0x1]
  %v26 = vlaneseq
  %v27 = vshrl.u32 %v26, 7
  %v28 = vsub.s32 0, %v27
  %v29 = vrot.slane %v24, %v28
  %v39 = vunpack.c.l.b16 %v16
  %v40 = vunpack.c.l.b16 %v17
  %v41 = vunpack.c.l.b16 %v18
  %v42 = vunpack.c.l.b16 %v19
  %v43 = vunpack.c.l.b16 %v20
  %v44 = vunpack.c.l.b16 %v21
  %v45 = vunpack.c.l.b16 %v22
  %v46 = vunpack.c.l.b16 %v23
  %v47 = vpack.c.b16 %v40, %v39
  %v48 = vpack.c.b16 %v42, %v41
  %v49 = vpack.c.b16 %v44, %v43
  %v50 = vpack.c.b16 %v46, %v45
  %vm55 = vcmask 523264
  %v57 = vsel %vm55, %v15, 0
  %59 = vmatprep.subr.bf16.mxu0 0
  %60 = vmatpush1.bf16.msra.mxu0 %v47
  %61 = vmatprep.subr.bf16.mxu0 0
  %62 = vmatpush1.bf16.msra.mxu0 %v48
  %63 = vmatprep.subr.bf16.mxu0 0
  %64 = vmatpush1.bf16.msra.mxu0 %v49
  %65 = vmatprep.subr.bf16.mxu0 0
  %66 = vmatpush1.bf16.msra.mxu0 %v50
  %67 = vmatprep.subr.bf16.mxu0 0
  %68 = vmatpush1.bf16.msra.mxu0 0
  %69 = vmatprep.subr.bf16.mxu0 0
  %70 = vmatpush1.bf16.msra.mxu0 0
  %71 = vmatprep.subr.bf16.mxu0 0
  %72 = vmatpush1.bf16.msra.mxu0 0
  %73 = vmatprep.subr.bf16.mxu0 0
  %74 = vmatpush1.bf16.msra.mxu0 0
  %75 = vmatprep.subr.bf16.mxu0 0
  %76 = vmatpush1.bf16.msra.mxu0 0
  %77 = vmatprep.subr.bf16.mxu0 0
  %78 = vmatpush1.bf16.msra.mxu0 0
  %79 = vmatprep.subr.bf16.mxu0 0
  %80 = vmatpush1.bf16.msra.mxu0 0
  %81 = vmatprep.subr.bf16.mxu0 0
  %82 = vmatpush1.bf16.msra.mxu0 0
  %83 = vmatprep.subr.bf16.mxu0 0
  %84 = vmatpush1.bf16.msra.mxu0 0
  %85 = vmatprep.subr.bf16.mxu0 0
  %86 = vmatpush1.bf16.msra.mxu0 0
  %87 = vmatprep.subr.bf16.mxu0 0
  %88 = vmatpush1.bf16.msra.mxu0 0
  %89 = vmatprep.subr.bf16.mxu0 0
  %90 = vmatpush1.bf16.msra.mxu0 0
  %91 = vmatprep.mubr.bf16.mxu0 0
  %92 = vmatmul.mubr.bf16.gmra.mrb[0].mxu0 %v57
  %v93 = vpop.f32.mrb[0].mxu0
  %v94 = vadd.f32 %v29, %v93
  %v95 = vpop.f32.mrb[0].mxu0
  %v96 = vpop.f32.mrb[0].mxu0
  %v97 = vpop.f32.mrb[0].mxu0
  %98 = vdwg.mxu0
  %v99 = vmax.f32 %v94, 0.0
  %v100 = vpack.c.bf16 %v99, %v99
  %vm101 = vcmask 257024
  %102 = vst.msk [vmem:[%s3] sm:$0xf] %vm101, %v100
  // Predicated region
  $region14: #{_lambda_.39} parent=0 // pred_check
    _
  $region15: #{_lambda_.39} parent=0 // pred_check_branch
    %104 = sbr.rel (0) target = $region17
  $region16: #{_lambda_.39} parent=0 // pred_region
    _
  $region17: #{_lambda_.39} parent=0 // pred_fallthru
    _
  // Predicated region
  $region18: #{_lambda_.39} parent=0 // pred_check
    _
  $region19: #{_lambda_.39} parent=0 // pred_check_branch
    %106 = sbr.rel (0) target = $region21
  $region20: #{_lambda_.39} parent=0 // pred_region
    _
  $region21: #{_lambda_.39} parent=0 // pred_fallthru
    _

// kernel: _lambda_.41
$region0: #{_lambda_.41}
  #allocation0 [shape = 'u32[]', space=smem, size = 0x4, offset = 0x4, fixed_abs, tag = 'smem constant byte address 0x4 - core index']
  #allocation1 [shape = 'u32[144,128]{1,0:T(1,128)}', space=vmem, size = 0x12000, scoped, tag = 'internal scratch']
  %s0 = inlined_call_operand.vmem [shape: bf16[2,64], index: 0, kind: input, shape index: {}]
  %s1 = inlined_call_operand.vmem [shape: bf16[1,64,128], index: 1, kind: input, shape index: {}]
  %s2 = inlined_call_operand.vmem [shape: f32[1,128], index: 2, kind: input, shape index: {}]
  %s3 = inlined_call_operand.vmem [shape: bf16[2,128], index: 3, kind: output, shape index: {}]
  %s4 = sld [smem:[#allocation0]]
  $region22: #{_lambda_.41} parent=0
    _
  %s6 = ssub.s32 1, %s4
  %s7 = scalar_select 0, %s6, %s4
  // Predicated region
  $region2: #{_lambda_.41} parent=0 // pred_check
    _
  $region3: #{_lambda_.41} parent=0 // pred_check_branch
    %9 = sbr.rel (0) target = $region5
  $region4: #{_lambda_.41} parent=0 // pred_region
    _
  $region5: #{_lambda_.41} parent=0 // pred_fallthru
    _
  // Predicated region
  $region6: #{_lambda_.41} parent=0 // pred_check
    _
  $region7: #{_lambda_.41} parent=0 // pred_check_branch
    %11 = sbr.rel (0) target = $region9
  $region8: #{_lambda_.41} parent=0 // pred_region
    _
  $region9: #{_lambda_.41} parent=0 // pred_fallthru
    _
  // Predicated region
  $region10: #{_lambda_.41} parent=0 // pred_check
    _
  $region11: #{_lambda_.41} parent=0 // pred_check_branch
    %13 = sbr.rel (0) target = $region13
  $region12: #{_lambda_.41} parent=0 // pred_region
    _
  $region13: #{_lambda_.41} parent=0 // pred_fallthru
    _
  %v15 = vld [vmem:[%s0] sm:$0x1]
  %v16 = vld [vmem:[%s1] sm:$0xf]
  %v17 = vld [vmem:[%s1 + $0x4] sm:$0xf]
  %v18 = vld [vmem:[%s1 + $0x8] sm:$0xf]
  %v19 = vld [vmem:[%s1 + $0xc] sm:$0xf]
  %v20 = vld [vmem:[%s1 + $0x10] sm:$0xf]
  %v21 = vld [vmem:[%s1 + $0x14] sm:$0xf]
  %v22 = vld [vmem:[%s1 + $0x18] sm:$0xf]
  %v23 = vld [vmem:[%s1 + $0x1c] sm:$0xf]
  %v24 = vld [vmem:[%s2] sm:$0x1]
  %v26 = vlaneseq
  %v27 = vshrl.u32 %v26, 7
  %v28 = vsub.s32 0, %v27
  %v29 = vrot.slane %v24, %v28
  %v39 = vunpack.c.l.b16 %v16
  %v40 = vunpack.c.l.b16 %v17
  %v41 = vunpack.c.l.b16 %v18
  %v42 = vunpack.c.l.b16 %v19
  %v43 = vunpack.c.l.b16 %v20
  %v44 = vunpack.c.l.b16 %v21
  %v45 = vunpack.c.l.b16 %v22
  %v46 = vunpack.c.l.b16 %v23
  %v47 = vpack.c.b16 %v40, %v39
  %v48 = vpack.c.b16 %v42, %v41
  %v49 = vpack.c.b16 %v44, %v43
  %v50 = vpack.c.b16 %v46, %v45
  %vm55 = vcmask 523264
  %v57 = vsel %vm55, %v15, 0
  %59 = vmatprep.subr.bf16.mxu0 0
  %60 = vmatpush1.bf16.msra.mxu0 %v47
  %61 = vmatprep.subr.bf16.mxu0 0
  %62 = vmatpush1.bf16.msra.mxu0 %v48
  %63 = vmatprep.subr.bf16.mxu0 0
  %64 = vmatpush1.bf16.msra.mxu0 %v49
  %65 = vmatprep.subr.bf16.mxu0 0
  %66 = vmatpush1.bf16.msra.mxu0 %v50
  %67 = vmatprep.subr.bf16.mxu0 0
  %68 = vmatpush1.bf16.msra.mxu0 0
  %69 = vmatprep.subr.bf16.mxu0 0
  %70 = vmatpush1.bf16.msra.mxu0 0
  %71 = vmatprep.subr.bf16.mxu0 0
  %72 = vmatpush1.bf16.msra.mxu0 0
  %73 = vmatprep.subr.bf16.mxu0 0
  %74 = vmatpush1.bf16.msra.mxu0 0
  %75 = vmatprep.subr.bf16.mxu0 0
  %76 = vmatpush1.bf16.msra.mxu0 0
  %77 = vmatprep.subr.bf16.mxu0 0
  %78 = vmatpush1.bf16.msra.mxu0 0
  %79 = vmatprep.subr.bf16.mxu0 0
  %80 = vmatpush1.bf16.msra.mxu0 0
  %81 = vmatprep.subr.bf16.mxu0 0
  %82 = vmatpush1.bf16.msra.mxu0 0
  %83 = vmatprep.subr.bf16.mxu0 0
  %84 = vmatpush1.bf16.msra.mxu0 0
  %85 = vmatprep.subr.bf16.mxu0 0
  %86 = vmatpush1.bf16.msra.mxu0 0
  %87 = vmatprep.subr.bf16.mxu0 0
  %88 = vmatpush1.bf16.msra.mxu0 0
  %89 = vmatprep.subr.bf16.mxu0 0
  %90 = vmatpush1.bf16.msra.mxu0 0
  %91 = vmatprep.mubr.bf16.mxu0 0
  %92 = vmatmul.mubr.bf16.gmra.mrb[0].mxu0 %v57
  %v93 = vpop.f32.mrb[0].mxu0
  %v94 = vadd.f32 %v29, %v93
  %v95 = vpop.f32.mrb[0].mxu0
  %v96 = vpop.f32.mrb[0].mxu0
  %v97 = vpop.f32.mrb[0].mxu0
  %98 = vdwg.mxu0
  %v99 = vpack.c.bf16 %v94, %v94
  %100 = vst [vmem:[%s3] sm:$0x1] %v99
  // Predicated region
  $region14: #{_lambda_.41} parent=0 // pred_check
    _
  $region15: #{_lambda_.41} parent=0 // pred_check_branch
    %102 = sbr.rel (0) target = $region17
  $region16: #{_lambda_.41} parent=0 // pred_region
    _
  $region17: #{_lambda_.41} parent=0 // pred_fallthru
    _
  // Predicated region
  $region18: #{_lambda_.41} parent=0 // pred_check
    _
  $region19: #{_lambda_.41} parent=0 // pred_check_branch
    %104 = sbr.rel (0) target = $region21
  $region20: #{_lambda_.41} parent=0 // pred_region
    _
  $region21: #{_lambda_.41} parent=0 // pred_fallthru
    _

// kernel: _lambda_.42
$region0: #{_lambda_.42}
  #allocation0 [shape = 'u32[]', space=smem, size = 0x4, offset = 0x4, fixed_abs, tag = 'smem constant byte address 0x4 - core index']
  #allocation1 [shape = 'u32[144,128]{1,0:T(1,128)}', space=vmem, size = 0x12000, scoped, tag = 'internal scratch']
  %s0 = inlined_call_operand.vmem [shape: bf16[2,32], index: 0, kind: input, shape index: {}]
  %s1 = inlined_call_operand.vmem [shape: bf16[1,32,128], index: 1, kind: input, shape index: {}]
  %s2 = inlined_call_operand.vmem [shape: f32[1,128], index: 2, kind: input, shape index: {}]
  %s3 = inlined_call_operand.vmem [shape: bf16[2,128], index: 3, kind: input, shape index: {}]
  %s4 = inlined_call_operand.vmem [shape: bf16[2,128], index: 4, kind: output, shape index: {}]
  %s5 = sld [smem:[#allocation0]]
  $region26: #{_lambda_.42} parent=0
    _
  %s7 = ssub.s32 1, %s5
  %s8 = scalar_select 0, %s7, %s5
  // Predicated region
  $region2: #{_lambda_.42} parent=0 // pred_check
    _
  $region3: #{_lambda_.42} parent=0 // pred_check_branch
    %10 = sbr.rel (0) target = $region5
  $region4: #{_lambda_.42} parent=0 // pred_region
    _
  $region5: #{_lambda_.42} parent=0 // pred_fallthru
    _
  // Predicated region
  $region6: #{_lambda_.42} parent=0 // pred_check
    _
  $region7: #{_lambda_.42} parent=0 // pred_check_branch
    %12 = sbr.rel (0) target = $region9
  $region8: #{_lambda_.42} parent=0 // pred_region
    _
  $region9: #{_lambda_.42} parent=0 // pred_fallthru
    _
  // Predicated region
  $region10: #{_lambda_.42} parent=0 // pred_check
    _
  $region11: #{_lambda_.42} parent=0 // pred_check_branch
    %14 = sbr.rel (0) target = $region13
  $region12: #{_lambda_.42} parent=0 // pred_region
    _
  $region13: #{_lambda_.42} parent=0 // pred_fallthru
    _
  // Predicated region
  $region14: #{_lambda_.42} parent=0 // pred_check
    _
  $region15: #{_lambda_.42} parent=0 // pred_check_branch
    %16 = sbr.rel (0) target = $region17
  $region16: #{_lambda_.42} parent=0 // pred_region
    _
  $region17: #{_lambda_.42} parent=0 // pred_fallthru
    _
  %v18 = vld [vmem:[%s0] sm:$0x1]
  %v19 = vld [vmem:[%s1] sm:$0xf]
  %v20 = vld [vmem:[%s1 + $0x4] sm:$0xf]
  %v21 = vld [vmem:[%s1 + $0x8] sm:$0xf]
  %v22 = vld [vmem:[%s1 + $0xc] sm:$0xf]
  %v23 = vld [vmem:[%s2] sm:$0x1]
  %v25 = vlaneseq
  %v26 = vshrl.u32 %v25, 7
  %v27 = vsub.s32 0, %v26
  %v28 = vrot.slane %v23, %v27
  %v34 = vunpack.c.l.b16 %v19
  %v35 = vunpack.c.l.b16 %v20
  %v36 = vunpack.c.l.b16 %v21
  %v37 = vunpack.c.l.b16 %v22
  %v38 = vpack.c.b16 %v35, %v34
  %v39 = vpack.c.b16 %v37, %v36
  %vm42 = vcmask 261120
  %v44 = vsel %vm42, %v18, 0
  %46 = vmatprep.subr.bf16.mxu0 0
  %47 = vmatpush1.bf16.msra.mxu0 %v38
  %48 = vmatprep.subr.bf16.mxu0 0
  %49 = vmatpush1.bf16.msra.mxu0 %v39
  %50 = vmatprep.subr.bf16.mxu0 0
  %51 = vmatpush1.bf16.msra.mxu0 0
  %52 = vmatprep.subr.bf16.mxu0 0
  %53 = vmatpush1.bf16.msra.mxu0 0
  %54 = vmatprep.subr.bf16.mxu0 0
  %55 = vmatpush1.bf16.msra.mxu0 0
  %56 = vmatprep.subr.bf16.mxu0 0
  %57 = vmatpush1.bf16.msra.mxu0 0
  %58 = vmatprep.subr.bf16.mxu0 0
  %59 = vmatpush1.bf16.msra.mxu0 0
  %60 = vmatprep.subr.bf16.mxu0 0
  %61 = vmatpush1.bf16.msra.mxu0 0
  %62 = vmatprep.subr.bf16.mxu0 0
  %63 = vmatpush1.bf16.msra.mxu0 0
  %64 = vmatprep.subr.bf16.mxu0 0
  %65 = vmatpush1.bf16.msra.mxu0 0
  %66 = vmatprep.subr.bf16.mxu0 0
  %67 = vmatpush1.bf16.msra.mxu0 0
  %68 = vmatprep.subr.bf16.mxu0 0
  %69 = vmatpush1.bf16.msra.mxu0 0
  %70 = vmatprep.subr.bf16.mxu0 0
  %71 = vmatpush1.bf16.msra.mxu0 0
  %72 = vmatprep.subr.bf16.mxu0 0
  %73 = vmatpush1.bf16.msra.mxu0 0
  %74 = vmatprep.subr.bf16.mxu0 0
  %75 = vmatpush1.bf16.msra.mxu0 0
  %76 = vmatprep.subr.bf16.mxu0 0
  %77 = vmatpush1.bf16.msra.mxu0 0
  %78 = vmatprep.mubr.bf16.mxu0 0
  %79 = vmatmul.mubr.bf16.gmra.mrb[0].mxu0 %v44
  %v80 = vpop.f32.mrb[0].mxu0
  %v81 = vadd.f32 %v28, %v80
  %v82 = vpop.f32.mrb[0].mxu0
  %v83 = vpop.f32.mrb[0].mxu0
  %v84 = vpop.f32.mrb[0].mxu0
  %85 = vdwg.mxu0
  %v86 = vld [vmem:[%s3] sm:$0x1]
  %v87 = vunpack.c.l.bf16 %v86
  %v88 = vadd.f32 %v81, %v87
  %v89 = vmax.f32 %v88, 0.0
  %v90 = vpack.c.bf16 %v89, %v89
  %91 = vst [vmem:[%s4] sm:$0x1] %v90
  // Predicated region
  $region18: #{_lambda_.42} parent=0 // pred_check
    _
  $region19: #{_lambda_.42} parent=0 // pred_check_branch
    %93 = sbr.rel (0) target = $region21
  $region20: #{_lambda_.42} parent=0 // pred_region
    _
  $region21: #{_lambda_.42} parent=0 // pred_fallthru
    _
  // Predicated region
  $region22: #{_lambda_.42} parent=0 // pred_check
    _
  $region23: #{_lambda_.42} parent=0 // pred_check_branch
    %95 = sbr.rel (0) target = $region25
  $region24: #{_lambda_.42} parent=0 // pred_region
    _
  $region25: #{_lambda_.42} parent=0 // pred_fallthru
    _

// kernel: _lambda_.43
$region0: #{_lambda_.43}
  #allocation0 [shape = 'u32[]', space=smem, size = 0x4, offset = 0x4, fixed_abs, tag = 'smem constant byte address 0x4 - core index']
  #allocation1 [shape = 'u32[144,128]{1,0:T(1,128)}', space=vmem, size = 0x12000, scoped, tag = 'internal scratch']
  %s0 = inlined_call_operand.vmem [shape: bf16[2,128], index: 0, kind: input, shape index: {}]
  %s1 = inlined_call_operand.vmem [shape: bf16[1,128,32], index: 1, kind: input, shape index: {}]
  %s2 = inlined_call_operand.vmem [shape: f32[1,32], index: 2, kind: input, shape index: {}]
  %s3 = inlined_call_operand.vmem [shape: bf16[2,32], index: 3, kind: output, shape index: {}]
  %s4 = sld [smem:[#allocation0]]
  $region22: #{_lambda_.43} parent=0
    _
  %s6 = ssub.s32 1, %s4
  %s7 = scalar_select 0, %s6, %s4
  // Predicated region
  $region2: #{_lambda_.43} parent=0 // pred_check
    _
  $region3: #{_lambda_.43} parent=0 // pred_check_branch
    %9 = sbr.rel (0) target = $region5
  $region4: #{_lambda_.43} parent=0 // pred_region
    _
  $region5: #{_lambda_.43} parent=0 // pred_fallthru
    _
  // Predicated region
  $region6: #{_lambda_.43} parent=0 // pred_check
    _
  $region7: #{_lambda_.43} parent=0 // pred_check_branch
    %11 = sbr.rel (0) target = $region9
  $region8: #{_lambda_.43} parent=0 // pred_region
    _
  $region9: #{_lambda_.43} parent=0 // pred_fallthru
    _
  // Predicated region
  $region10: #{_lambda_.43} parent=0 // pred_check
    _
  $region11: #{_lambda_.43} parent=0 // pred_check_branch
    %13 = sbr.rel (0) target = $region13
  $region12: #{_lambda_.43} parent=0 // pred_region
    _
  $region13: #{_lambda_.43} parent=0 // pred_fallthru
    _
  %v15 = vld [vmem:[%s0] sm:$0x1]
  %v16 = vld [vmem:[%s1] sm:$0xf]
  %v17 = vld [vmem:[%s1 + $0x4] sm:$0xf]
  %v18 = vld [vmem:[%s1 + $0x8] sm:$0xf]
  %v19 = vld [vmem:[%s1 + $0xc] sm:$0xf]
  %v20 = vld [vmem:[%s1 + $0x10] sm:$0xf]
  %v21 = vld [vmem:[%s1 + $0x14] sm:$0xf]
  %v22 = vld [vmem:[%s1 + $0x18] sm:$0xf]
  %v23 = vld [vmem:[%s1 + $0x1c] sm:$0xf]
  %v24 = vld [vmem:[%s1 + $0x20] sm:$0xf]
  %v25 = vld [vmem:[%s1 + $0x24] sm:$0xf]
  %v26 = vld [vmem:[%s1 + $0x28] sm:$0xf]
  %v27 = vld [vmem:[%s1 + $0x2c] sm:$0xf]
  %v28 = vld [vmem:[%s1 + $0x30] sm:$0xf]
  %v29 = vld [vmem:[%s1 + $0x34] sm:$0xf]
  %v30 = vld [vmem:[%s1 + $0x38] sm:$0xf]
  %v31 = vld [vmem:[%s1 + $0x3c] sm:$0xf]
  %v32 = vld [vmem:[%s2] sm:$0x1]
  %v34 = vlaneseq
  %v35 = vshrl.u32 %v34, 7
  %v36 = vsub.s32 0, %v35
  %v37 = vrot.slane %v32, %v36
  %v55 = vunpack.c.l.b16 %v16
  %v56 = vunpack.c.l.b16 %v17
  %v57 = vunpack.c.l.b16 %v18
  %v58 = vunpack.c.l.b16 %v19
  %v59 = vunpack.c.l.b16 %v20
  %v60 = vunpack.c.l.b16 %v21
  %v61 = vunpack.c.l.b16 %v22
  %v62 = vunpack.c.l.b16 %v23
  %v63 = vunpack.c.l.b16 %v24
  %v64 = vunpack.c.l.b16 %v25
  %v65 = vunpack.c.l.b16 %v26
  %v66 = vunpack.c.l.b16 %v27
  %v67 = vunpack.c.l.b16 %v28
  %v68 = vunpack.c.l.b16 %v29
  %v69 = vunpack.c.l.b16 %v30
  %v70 = vunpack.c.l.b16 %v31
  %v71 = vpack.c.b16 %v56, %v55
  %v72 = vpack.c.b16 %v58, %v57
  %v73 = vpack.c.b16 %v60, %v59
  %v74 = vpack.c.b16 %v62, %v61
  %v75 = vpack.c.b16 %v64, %v63
  %v76 = vpack.c.b16 %v66, %v65
  %v77 = vpack.c.b16 %v68, %v67
  %v78 = vpack.c.b16 %v70, %v69
  %87 = vmatprep.subr.bf16.mxu0 0
  %88 = vmatpush1.bf16.msra.mxu0 %v71
  %89 = vmatprep.subr.bf16.mxu0 0
  %90 = vmatpush1.bf16.msra.mxu0 %v72
  %91 = vmatprep.subr.bf16.mxu0 0
  %92 = vmatpush1.bf16.msra.mxu0 %v73
  %93 = vmatprep.subr.bf16.mxu0 0
  %94 = vmatpush1.bf16.msra.mxu0 %v74
  %95 = vmatprep.subr.bf16.mxu0 0
  %96 = vmatpush1.bf16.msra.mxu0 %v75
  %97 = vmatprep.subr.bf16.mxu0 0
  %98 = vmatpush1.bf16.msra.mxu0 %v76
  %99 = vmatprep.subr.bf16.mxu0 0
  %100 = vmatpush1.bf16.msra.mxu0 %v77
  %101 = vmatprep.subr.bf16.mxu0 0
  %102 = vmatpush1.bf16.msra.mxu0 %v78
  %103 = vmatprep.subr.bf16.mxu0 0
  %104 = vmatpush1.bf16.msra.mxu0 0
  %105 = vmatprep.subr.bf16.mxu0 0
  %106 = vmatpush1.bf16.msra.mxu0 0
  %107 = vmatprep.subr.bf16.mxu0 0
  %108 = vmatpush1.bf16.msra.mxu0 0
  %109 = vmatprep.subr.bf16.mxu0 0
  %110 = vmatpush1.bf16.msra.mxu0 0
  %111 = vmatprep.subr.bf16.mxu0 0
  %112 = vmatpush1.bf16.msra.mxu0 0
  %113 = vmatprep.subr.bf16.mxu0 0
  %114 = vmatpush1.bf16.msra.mxu0 0
  %115 = vmatprep.subr.bf16.mxu0 0
  %116 = vmatpush1.bf16.msra.mxu0 0
  %117 = vmatprep.subr.bf16.mxu0 0
  %118 = vmatpush1.bf16.msra.mxu0 0
  %119 = vmatprep.mubr.bf16.mxu0 0
  %120 = vmatmul.mubr.bf16.gmra.mrb[0].mxu0 %v15
  %v121 = vpop.f32.mrb[0].mxu0
  %v122 = vadd.f32 %v37, %v121
  %v123 = vpop.f32.mrb[0].mxu0
  %v124 = vpop.f32.mrb[0].mxu0
  %v125 = vpop.f32.mrb[0].mxu0
  %126 = vdwg.mxu0
  %v127 = vmax.f32 %v122, 0.0
  %v128 = vpack.c.bf16 %v127, %v127
  %vm129 = vcmask 253952
  %130 = vst.msk [vmem:[%s3] sm:$0x1] %vm129, %v128
  // Predicated region
  $region14: #{_lambda_.43} parent=0 // pred_check
    _
  $region15: #{_lambda_.43} parent=0 // pred_check_branch
    %132 = sbr.rel (0) target = $region17
  $region16: #{_lambda_.43} parent=0 // pred_region
    _
  $region17: #{_lambda_.43} parent=0 // pred_fallthru
    _
  // Predicated region
  $region18: #{_lambda_.43} parent=0 // pred_check
    _
  $region19: #{_lambda_.43} parent=0 // pred_check_branch
    %134 = sbr.rel (0) target = $region21
  $region20: #{_lambda_.43} parent=0 // pred_region
    _
  $region21: #{_lambda_.43} parent=0 // pred_fallthru
    _

// kernel: _lambda_.40
$region0: #{_lambda_.40}
  #allocation0 [shape = 'u32[]', space=smem, size = 0x4, offset = 0x4, fixed_abs, tag = 'smem constant byte address 0x4 - core index']
  #allocation1 [shape = 'u32[144,128]{1,0:T(1,128)}', space=vmem, size = 0x12000, scoped, tag = 'internal scratch']
  %s0 = inlined_call_operand.vmem [shape: bf16[2,32], index: 0, kind: input, shape index: {}, may-alias: {0,1,2,3,5,6,7,8}]
  %s1 = inlined_call_operand.vmem [shape: bf16[2,32], index: 1, kind: input, shape index: {}, may-alias: {0,1,2,3,5,6,7,8}]
  %s2 = inlined_call_operand.vmem [shape: bf16[2,32], index: 2, kind: input, shape index: {}, may-alias: {0,1,2,3,5,6,7,8}]
  %s3 = inlined_call_operand.vmem [shape: bf16[2,32], index: 3, kind: input, shape index: {}, may-alias: {0,1,2,3,5,6,7,8}]
  %s4 = inlined_call_operand.vmem [shape: bf16[2,32], index: 4, kind: input, shape index: {}]
  %s5 = inlined_call_operand.vmem [shape: bf16[2,32], index: 5, kind: input, shape index: {}, may-alias: {0,1,2,3,5,6,7,8}]
  %s6 = inlined_call_operand.vmem [shape: bf16[2,32], index: 6, kind: input, shape index: {}, may-alias: {0,1,2,3,5,6,7,8}]
  %s7 = inlined_call_operand.vmem [shape: bf16[2,32], index: 7, kind: input, shape index: {}, may-alias: {0,1,2,3,5,6,7,8}]
  %s8 = inlined_call_operand.vmem [shape: bf16[2,32], index: 8, kind: input, shape index: {}, may-alias: {0,1,2,3,5,6,7,8}]
  %s9 = inlined_call_operand.vmem [shape: bf16[9,32,32], index: 9, kind: input, shape index: {}]
  %s10 = inlined_call_operand.vmem [shape: f32[1,32], index: 10, kind: input, shape index: {}]
  %s11 = inlined_call_operand.vmem [shape: bf16[2,32], index: 11, kind: output, shape index: {}]
  %s12 = sld [smem:[#allocation0]]
  $region54: #{_lambda_.40} parent=0
    _
  %s14 = ssub.s32 1, %s12
  %s15 = scalar_select 0, %s14, %s12
  // Predicated region
  $region2: #{_lambda_.40} parent=0 // pred_check
    _
  $region3: #{_lambda_.40} parent=0 // pred_check_branch
    %17 = sbr.rel (0) target = $region5
  $region4: #{_lambda_.40} parent=0 // pred_region
    _
  $region5: #{_lambda_.40} parent=0 // pred_fallthru
    _
  // Predicated region
  $region6: #{_lambda_.40} parent=0 // pred_check
    _
  $region7: #{_lambda_.40} parent=0 // pred_check_branch
    %19 = sbr.rel (0) target = $region9
  $region8: #{_lambda_.40} parent=0 // pred_region
    _
  $region9: #{_lambda_.40} parent=0 // pred_fallthru
    _
  // Predicated region
  $region10: #{_lambda_.40} parent=0 // pred_check
    _
  $region11: #{_lambda_.40} parent=0 // pred_check_branch
    %21 = sbr.rel (0) target = $region13
  $region12: #{_lambda_.40} parent=0 // pred_region
    _
  $region13: #{_lambda_.40} parent=0 // pred_fallthru
    _
  // Predicated region
  $region14: #{_lambda_.40} parent=0 // pred_check
    _
  $region15: #{_lambda_.40} parent=0 // pred_check_branch
    %23 = sbr.rel (0) target = $region17
  $region16: #{_lambda_.40} parent=0 // pred_region
    _
  $region17: #{_lambda_.40} parent=0 // pred_fallthru
    _
  // Predicated region
  $region18: #{_lambda_.40} parent=0 // pred_check
    _
  $region19: #{_lambda_.40} parent=0 // pred_check_branch
    %25 = sbr.rel (0) target = $region21
  $region20: #{_lambda_.40} parent=0 // pred_region
    _
  $region21: #{_lambda_.40} parent=0 // pred_fallthru
    _
  // Predicated region
  $region22: #{_lambda_.40} parent=0 // pred_check
    _
  $region23: #{_lambda_.40} parent=0 // pred_check_branch
    %27 = sbr.rel (0) target = $region25
  $region24: #{_lambda_.40} parent=0 // pred_region
    _
  $region25: #{_lambda_.40} parent=0 // pred_fallthru
    _
  // Predicated region
  $region26: #{_lambda_.40} parent=0 // pred_check
    _
  $region27: #{_lambda_.40} parent=0 // pred_check_branch
    %29 = sbr.rel (0) target = $region29
  $region28: #{_lambda_.40} parent=0 // pred_region
    _
  $region29: #{_lambda_.40} parent=0 // pred_fallthru
    _
  // Predicated region
  $region30: #{_lambda_.40} parent=0 // pred_check
    _
  $region31: #{_lambda_.40} parent=0 // pred_check_branch
    %31 = sbr.rel (0) target = $region33
  $region32: #{_lambda_.40} parent=0 // pred_region
    _
  $region33: #{_lambda_.40} parent=0 // pred_fallthru
    _
  // Predicated region
  $region34: #{_lambda_.40} parent=0 // pred_check
    _
  $region35: #{_lambda_.40} parent=0 // pred_check_branch
    %33 = sbr.rel (0) target = $region37
  $region36: #{_lambda_.40} parent=0 // pred_region
    _
  $region37: #{_lambda_.40} parent=0 // pred_fallthru
    _
  // Predicated region
  $region38: #{_lambda_.40} parent=0 // pred_check
    _
  $region39: #{_lambda_.40} parent=0 // pred_check_branch
    %35 = sbr.rel (0) target = $region41
  $region40: #{_lambda_.40} parent=0 // pred_region
    _
  $region41: #{_lambda_.40} parent=0 // pred_fallthru
    _
  // Predicated region
  $region42: #{_lambda_.40} parent=0 // pred_check
    _
  $region43: #{_lambda_.40} parent=0 // pred_check_branch
    %37 = sbr.rel (0) target = $region45
  $region44: #{_lambda_.40} parent=0 // pred_region
    _
  $region45: #{_lambda_.40} parent=0 // pred_fallthru
    _
  %v39 = vld [vmem:[%s0] sm:$0x1]
  %v40 = vld [vmem:[%s9] sm:$0xf]
  %v41 = vld [vmem:[%s9 + $0x4] sm:$0xf]
  %v42 = vld [vmem:[%s9 + $0x8] sm:$0xf]
  %v43 = vld [vmem:[%s9 + $0xc] sm:$0xf]
  %v44 = vld [vmem:[%s1] sm:$0x1]
  %s45 = scalar_lea.vmem %s9, 16
  %v46 = vld [vmem:[%s45] sm:$0xf]
  %v47 = vld [vmem:[%s45 + $0x4] sm:$0xf]
  %v48 = vld [vmem:[%s45 + $0x8] sm:$0xf]
  %v49 = vld [vmem:[%s45 + $0xc] sm:$0xf]
  %v54 = vunpack.c.l.b16 %v46
  %v55 = vunpack.c.l.b16 %v47
  %v56 = vunpack.c.l.b16 %v48
  %v57 = vunpack.c.l.b16 %v49
  %v58 = vpack.c.b16 %v55, %v54
  %v59 = vpack.c.b16 %v57, %v56
  %vm62 = vcmask 261120
  %v64 = vsel %vm62, %v44, 0
  %66 = vmatprep.subr.bf16.mxu0 0
  %67 = vmatpush1.bf16.msra.mxu0 %v58
  %68 = vmatprep.subr.bf16.mxu0 0
  %69 = vmatpush1.bf16.msra.mxu0 %v59
  %70 = vmatprep.subr.bf16.mxu0 0
  %71 = vmatpush1.bf16.msra.mxu0 0
  %72 = vmatprep.subr.bf16.mxu0 0
  %73 = vmatpush1.bf16.msra.mxu0 0
  %74 = vmatprep.subr.bf16.mxu0 0
  %75 = vmatpush1.bf16.msra.mxu0 0
  %76 = vmatprep.subr.bf16.mxu0 0
  %77 = vmatpush1.bf16.msra.mxu0 0
  %78 = vmatprep.subr.bf16.mxu0 0
  %79 = vmatpush1.bf16.msra.mxu0 0
  %80 = vmatprep.subr.bf16.mxu0 0
  %81 = vmatpush1.bf16.msra.mxu0 0
  %82 = vmatprep.subr.bf16.mxu0 0
  %83 = vmatpush1.bf16.msra.mxu0 0
  %84 = vmatprep.subr.bf16.mxu0 0
  %85 = vmatpush1.bf16.msra.mxu0 0
  %86 = vmatprep.subr.bf16.mxu0 0
  %87 = vmatpush1.bf16.msra.mxu0 0
  %88 = vmatprep.subr.bf16.mxu0 0
  %89 = vmatpush1.bf16.msra.mxu0 0
  %90 = vmatprep.subr.bf16.mxu0 0
  %91 = vmatpush1.bf16.msra.mxu0 0
  %92 = vmatprep.subr.bf16.mxu0 0
  %93 = vmatpush1.bf16.msra.mxu0 0
  %94 = vmatprep.subr.bf16.mxu0 0
  %95 = vmatpush1.bf16.msra.mxu0 0
  %96 = vmatprep.subr.bf16.mxu0 0
  %97 = vmatpush1.bf16.msra.mxu0 0
  %98 = vmatprep.mubr.bf16.mxu0 0
  %99 = vmatmul.mubr.bf16.gmra.mrb[0].mxu0 %v64
  %v100 = vpop.f32.mrb[0].mxu0
  %v101 = vadd.f32 0.0, %v100
  %v102 = vpop.f32.mrb[0].mxu0
  %v103 = vpop.f32.mrb[0].mxu0
  %v104 = vpop.f32.mrb[0].mxu0
  %105 = vdwg.mxu0
  %v110 = vunpack.c.l.b16 %v40
  %v111 = vunpack.c.l.b16 %v41
  %v112 = vunpack.c.l.b16 %v42
  %v113 = vunpack.c.l.b16 %v43
  %v114 = vpack.c.b16 %v111, %v110
  %v115 = vpack.c.b16 %v113, %v112
  %v119 = vsel %vm62, %v39, 0
  %121 = vmatprep.subr.bf16.mxu0 0
  %122 = vmatpush1.bf16.msra.mxu0 %v114
  %123 = vmatprep.subr.bf16.mxu0 0
  %124 = vmatpush1.bf16.msra.mxu0 %v115
  %125 = vmatprep.subr.bf16.mxu0 0
  %126 = vmatpush1.bf16.msra.mxu0 0
  %127 = vmatprep.subr.bf16.mxu0 0
  %128 = vmatpush1.bf16.msra.mxu0 0
  %129 = vmatprep.subr.bf16.mxu0 0
  %130 = vmatpush1.bf16.msra.mxu0 0
  %131 = vmatprep.subr.bf16.mxu0 0
  %132 = vmatpush1.bf16.msra.mxu0 0
  %133 = vmatprep.subr.bf16.mxu0 0
  %134 = vmatpush1.bf16.msra.mxu0 0
  %135 = vmatprep.subr.bf16.mxu0 0
  %136 = vmatpush1.bf16.msra.mxu0 0
  %137 = vmatprep.subr.bf16.mxu0 0
  %138 = vmatpush1.bf16.msra.mxu0 0
  %139 = vmatprep.subr.bf16.mxu0 0
  %140 = vmatpush1.bf16.msra.mxu0 0
  %141 = vmatprep.subr.bf16.mxu0 0
  %142 = vmatpush1.bf16.msra.mxu0 0
  %143 = vmatprep.subr.bf16.mxu0 0
  %144 = vmatpush1.bf16.msra.mxu0 0
  %145 = vmatprep.subr.bf16.mxu0 0
  %146 = vmatpush1.bf16.msra.mxu0 0
  %147 = vmatprep.subr.bf16.mxu0 0
  %148 = vmatpush1.bf16.msra.mxu0 0
  %149 = vmatprep.subr.bf16.mxu0 0
  %150 = vmatpush1.bf16.msra.mxu0 0
  %151 = vmatprep.subr.bf16.mxu0 0
  %152 = vmatpush1.bf16.msra.mxu0 0
  %153 = vmatprep.mubr.bf16.mxu0 0
  %154 = vmatmul.mubr.bf16.gmra.mrb[0].mxu0 %v119
  %v155 = vpop.f32.mrb[0].mxu0
  %v156 = vadd.f32 %v101, %v155
  %v157 = vpop.f32.mrb[0].mxu0
  %v158 = vpop.f32.mrb[0].mxu0
  %v159 = vpop.f32.mrb[0].mxu0
  %160 = vdwg.mxu0
  %v161 = vld [vmem:[%s2] sm:$0x1]
  %s162 = scalar_lea.vmem %s9, 32
  %v163 = vld [vmem:[%s162] sm:$0xf]
  %v164 = vld [vmem:[%s162 + $0x4] sm:$0xf]
  %v165 = vld [vmem:[%s162 + $0x8] sm:$0xf]
  %v166 = vld [vmem:[%s162 + $0xc] sm:$0xf]
  %v171 = vunpack.c.l.b16 %v163
  %v172 = vunpack.c.l.b16 %v164
  %v173 = vunpack.c.l.b16 %v165
  %v174 = vunpack.c.l.b16 %v166
  %v175 = vpack.c.b16 %v172, %v171
  %v176 = vpack.c.b16 %v174, %v173
  %v180 = vsel %vm62, %v161, 0
  %182 = vmatprep.subr.bf16.mxu0 0
  %183 = vmatpush1.bf16.msra.mxu0 %v175
  %184 = vmatprep.subr.bf16.mxu0 0
  %185 = vmatpush1.bf16.msra.mxu0 %v176
  %186 = vmatprep.subr.bf16.mxu0 0
  %187 = vmatpush1.bf16.msra.mxu0 0
  %188 = vmatprep.subr.bf16.mxu0 0
  %189 = vmatpush1.bf16.msra.mxu0 0
  %190 = vmatprep.subr.bf16.mxu0 0
  %191 = vmatpush1.bf16.msra.mxu0 0
  %192 = vmatprep.subr.bf16.mxu0 0
  %193 = vmatpush1.bf16.msra.mxu0 0
  %194 = vmatprep.subr.bf16.mxu0 0
  %195 = vmatpush1.bf16.msra.mxu0 0
  %196 = vmatprep.subr.bf16.mxu0 0
  %197 = vmatpush1.bf16.msra.mxu0 0
  %198 = vmatprep.subr.bf16.mxu0 0
  %199 = vmatpush1.bf16.msra.mxu0 0
  %200 = vmatprep.subr.bf16.mxu0 0
  %201 = vmatpush1.bf16.msra.mxu0 0
  %202 = vmatprep.subr.bf16.mxu0 0
  %203 = vmatpush1.bf16.msra.mxu0 0
  %204 = vmatprep.subr.bf16.mxu0 0
  %205 = vmatpush1.bf16.msra.mxu0 0
  %206 = vmatprep.subr.bf16.mxu0 0
  %207 = vmatpush1.bf16.msra.mxu0 0
  %208 = vmatprep.subr.bf16.mxu0 0
  %209 = vmatpush1.bf16.msra.mxu0 0
  %210 = vmatprep.subr.bf16.mxu0 0
  %211 = vmatpush1.bf16.msra.mxu0 0
  %212 = vmatprep.subr.bf16.mxu0 0
  %213 = vmatpush1.bf16.msra.mxu0 0
  %214 = vmatprep.mubr.bf16.mxu0 0
  %215 = vmatmul.mubr.bf16.gmra.mrb[0].mxu0 %v180
  %v216 = vpop.f32.mrb[0].mxu0
  %v217 = vadd.f32 0.0, %v216
  %v218 = vpop.f32.mrb[0].mxu0
  %v219 = vpop.f32.mrb[0].mxu0
  %v220 = vpop.f32.mrb[0].mxu0
  %221 = vdwg.mxu0
  %v222 = vadd.f32 %v156, %v217
  %v223 = vld [vmem:[%s3] sm:$0x1]
  %s224 = scalar_lea.vmem %s9, 48
  %v225 = vld [vmem:[%s224] sm:$0xf]
  %v226 = vld [vmem:[%s224 + $0x4] sm:$0xf]
  %v227 = vld [vmem:[%s224 + $0x8] sm:$0xf]
  %v228 = vld [vmem:[%s224 + $0xc] sm:$0xf]
  %v233 = vunpack.c.l.b16 %v225
  %v234 = vunpack.c.l.b16 %v226
  %v235 = vunpack.c.l.b16 %v227
  %v236 = vunpack.c.l.b16 %v228
  %v237 = vpack.c.b16 %v234, %v233
  %v238 = vpack.c.b16 %v236, %v235
  %v242 = vsel %vm62, %v223, 0
  %244 = vmatprep.subr.bf16.mxu0 0
  %245 = vmatpush1.bf16.msra.mxu0 %v237
  %246 = vmatprep.subr.bf16.mxu0 0
  %247 = vmatpush1.bf16.msra.mxu0 %v238
  %248 = vmatprep.subr.bf16.mxu0 0
  %249 = vmatpush1.bf16.msra.mxu0 0
  %250 = vmatprep.subr.bf16.mxu0 0
  %251 = vmatpush1.bf16.msra.mxu0 0
  %252 = vmatprep.subr.bf16.mxu0 0
  %253 = vmatpush1.bf16.msra.mxu0 0
  %254 = vmatprep.subr.bf16.mxu0 0
  %255 = vmatpush1.bf16.msra.mxu0 0
  %256 = vmatprep.subr.bf16.mxu0 0
  %257 = vmatpush1.bf16.msra.mxu0 0
  %258 = vmatprep.subr.bf16.mxu0 0
  %259 = vmatpush1.bf16.msra.mxu0 0
  %260 = vmatprep.subr.bf16.mxu0 0
  %261 = vmatpush1.bf16.msra.mxu0 0
  %262 = vmatprep.subr.bf16.mxu0 0
  %263 = vmatpush1.bf16.msra.mxu0 0
  %264 = vmatprep.subr.bf16.mxu0 0
  %265 = vmatpush1.bf16.msra.mxu0 0
  %266 = vmatprep.subr.bf16.mxu0 0
  %267 = vmatpush1.bf16.msra.mxu0 0
  %268 = vmatprep.subr.bf16.mxu0 0
  %269 = vmatpush1.bf16.msra.mxu0 0
  %270 = vmatprep.subr.bf16.mxu0 0
  %271 = vmatpush1.bf16.msra.mxu0 0
  %272 = vmatprep.subr.bf16.mxu0 0
  %273 = vmatpush1.bf16.msra.mxu0 0
  %274 = vmatprep.subr.bf16.mxu0 0
  %275 = vmatpush1.bf16.msra.mxu0 0
  %276 = vmatprep.mubr.bf16.mxu0 0
  %277 = vmatmul.mubr.bf16.gmra.mrb[0].mxu0 %v242
  %v278 = vpop.f32.mrb[0].mxu0
  %v279 = vadd.f32 0.0, %v278
  %v280 = vpop.f32.mrb[0].mxu0
  %v281 = vpop.f32.mrb[0].mxu0
  %v282 = vpop.f32.mrb[0].mxu0
  %283 = vdwg.mxu0
  %v284 = vadd.f32 %v222, %v279
  %v285 = vld [vmem:[%s4] sm:$0x1]
  %s286 = scalar_lea.vmem %s9, 64
  %v287 = vld [vmem:[%s286] sm:$0xf]
  %v288 = vld [vmem:[%s286 + $0x4] sm:$0xf]
  %v289 = vld [vmem:[%s286 + $0x8] sm:$0xf]
  %v290 = vld [vmem:[%s286 + $0xc] sm:$0xf]
  %v295 = vunpack.c.l.b16 %v287
  %v296 = vunpack.c.l.b16 %v288
  %v297 = vunpack.c.l.b16 %v289
  %v298 = vunpack.c.l.b16 %v290
  %v299 = vpack.c.b16 %v296, %v295
  %v300 = vpack.c.b16 %v298, %v297
  %v304 = vsel %vm62, %v285, 0
  %306 = vmatprep.subr.bf16.mxu0 0
  %307 = vmatpush1.bf16.msra.mxu0 %v299
  %308 = vmatprep.subr.bf16.mxu0 0
  %309 = vmatpush1.bf16.msra.mxu0 %v300
  %310 = vmatprep.subr.bf16.mxu0 0
  %311 = vmatpush1.bf16.msra.mxu0 0
  %312 = vmatprep.subr.bf16.mxu0 0
  %313 = vmatpush1.bf16.msra.mxu0 0
  %314 = vmatprep.subr.bf16.mxu0 0
  %315 = vmatpush1.bf16.msra.mxu0 0
  %316 = vmatprep.subr.bf16.mxu0 0
  %317 = vmatpush1.bf16.msra.mxu0 0
  %318 = vmatprep.subr.bf16.mxu0 0
  %319 = vmatpush1.bf16.msra.mxu0 0
  %320 = vmatprep.subr.bf16.mxu0 0
  %321 = vmatpush1.bf16.msra.mxu0 0
  %322 = vmatprep.subr.bf16.mxu0 0
  %323 = vmatpush1.bf16.msra.mxu0 0
  %324 = vmatprep.subr.bf16.mxu0 0
  %325 = vmatpush1.bf16.msra.mxu0 0
  %326 = vmatprep.subr.bf16.mxu0 0
  %327 = vmatpush1.bf16.msra.mxu0 0
  %328 = vmatprep.subr.bf16.mxu0 0
  %329 = vmatpush1.bf16.msra.mxu0 0
  %330 = vmatprep.subr.bf16.mxu0 0
  %331 = vmatpush1.bf16.msra.mxu0 0
  %332 = vmatprep.subr.bf16.mxu0 0
  %333 = vmatpush1.bf16.msra.mxu0 0
  %334 = vmatprep.subr.bf16.mxu0 0
  %335 = vmatpush1.bf16.msra.mxu0 0
  %336 = vmatprep.subr.bf16.mxu0 0
  %337 = vmatpush1.bf16.msra.mxu0 0
  %338 = vmatprep.mubr.bf16.mxu0 0
  %339 = vmatmul.mubr.bf16.gmra.mrb[0].mxu0 %v304
  %v340 = vpop.f32.mrb[0].mxu0
  %v341 = vadd.f32 0.0, %v340
  %v342 = vpop.f32.mrb[0].mxu0
  %v343 = vpop.f32.mrb[0].mxu0
  %v344 = vpop.f32.mrb[0].mxu0
  %345 = vdwg.mxu0
  %v346 = vadd.f32 %v284, %v341
  %v347 = vld [vmem:[%s5] sm:$0x1]
  %s348 = scalar_lea.vmem %s9, 80
  %v349 = vld [vmem:[%s348] sm:$0xf]
  %v350 = vld [vmem:[%s348 + $0x4] sm:$0xf]
  %v351 = vld [vmem:[%s348 + $0x8] sm:$0xf]
  %v352 = vld [vmem:[%s348 + $0xc] sm:$0xf]
  %v357 = vunpack.c.l.b16 %v349
  %v358 = vunpack.c.l.b16 %v350
  %v359 = vunpack.c.l.b16 %v351
  %v360 = vunpack.c.l.b16 %v352
  %v361 = vpack.c.b16 %v358, %v357
  %v362 = vpack.c.b16 %v360, %v359
  %v366 = vsel %vm62, %v347, 0
  %368 = vmatprep.subr.bf16.mxu0 0
  %369 = vmatpush1.bf16.msra.mxu0 %v361
  %370 = vmatprep.subr.bf16.mxu0 0
  %371 = vmatpush1.bf16.msra.mxu0 %v362
  %372 = vmatprep.subr.bf16.mxu0 0
  %373 = vmatpush1.bf16.msra.mxu0 0
  %374 = vmatprep.subr.bf16.mxu0 0
  %375 = vmatpush1.bf16.msra.mxu0 0
  %376 = vmatprep.subr.bf16.mxu0 0
  %377 = vmatpush1.bf16.msra.mxu0 0
  %378 = vmatprep.subr.bf16.mxu0 0
  %379 = vmatpush1.bf16.msra.mxu0 0
  %380 = vmatprep.subr.bf16.mxu0 0
  %381 = vmatpush1.bf16.msra.mxu0 0
  %382 = vmatprep.subr.bf16.mxu0 0
  %383 = vmatpush1.bf16.msra.mxu0 0
  %384 = vmatprep.subr.bf16.mxu0 0
  %385 = vmatpush1.bf16.msra.mxu0 0
  %386 = vmatprep.subr.bf16.mxu0 0
  %387 = vmatpush1.bf16.msra.mxu0 0
  %388 = vmatprep.subr.bf16.mxu0 0
  %389 = vmatpush1.bf16.msra.mxu0 0
  %390 = vmatprep.subr.bf16.mxu0 0
  %391 = vmatpush1.bf16.msra.mxu0 0
  %392 = vmatprep.subr.bf16.mxu0 0
  %393 = vmatpush1.bf16.msra.mxu0 0
  %394 = vmatprep.subr.bf16.mxu0 0
  %395 = vmatpush1.bf16.msra.mxu0 0
  %396 = vmatprep.subr.bf16.mxu0 0
  %397 = vmatpush1.bf16.msra.mxu0 0
  %398 = vmatprep.subr.bf16.mxu0 0
  %399 = vmatpush1.bf16.msra.mxu0 0
  %400 = vmatprep.mubr.bf16.mxu0 0
  %401 = vmatmul.mubr.bf16.gmra.mrb[0].mxu0 %v366
  %v402 = vpop.f32.mrb[0].mxu0
  %v403 = vadd.f32 0.0, %v402
  %v404 = vpop.f32.mrb[0].mxu0
  %v405 = vpop.f32.mrb[0].mxu0
  %v406 = vpop.f32.mrb[0].mxu0
  %407 = vdwg.mxu0
  %v408 = vadd.f32 %v346, %v403
  %v409 = vld [vmem:[%s6] sm:$0x1]
  %s410 = scalar_lea.vmem %s9, 96
  %v411 = vld [vmem:[%s410] sm:$0xf]
  %v412 = vld [vmem:[%s410 + $0x4] sm:$0xf]
  %v413 = vld [vmem:[%s410 + $0x8] sm:$0xf]
  %v414 = vld [vmem:[%s410 + $0xc] sm:$0xf]
  %v419 = vunpack.c.l.b16 %v411
  %v420 = vunpack.c.l.b16 %v412
  %v421 = vunpack.c.l.b16 %v413
  %v422 = vunpack.c.l.b16 %v414
  %v423 = vpack.c.b16 %v420, %v419
  %v424 = vpack.c.b16 %v422, %v421
  %v428 = vsel %vm62, %v409, 0
  %430 = vmatprep.subr.bf16.mxu0 0
  %431 = vmatpush1.bf16.msra.mxu0 %v423
  %432 = vmatprep.subr.bf16.mxu0 0
  %433 = vmatpush1.bf16.msra.mxu0 %v424
  %434 = vmatprep.subr.bf16.mxu0 0
  %435 = vmatpush1.bf16.msra.mxu0 0
  %436 = vmatprep.subr.bf16.mxu0 0
  %437 = vmatpush1.bf16.msra.mxu0 0
  %438 = vmatprep.subr.bf16.mxu0 0
  %439 = vmatpush1.bf16.msra.mxu0 0
  %440 = vmatprep.subr.bf16.mxu0 0
  %441 = vmatpush1.bf16.msra.mxu0 0
  %442 = vmatprep.subr.bf16.mxu0 0
  %443 = vmatpush1.bf16.msra.mxu0 0
  %444 = vmatprep.subr.bf16.mxu0 0
  %445 = vmatpush1.bf16.msra.mxu0 0
  %446 = vmatprep.subr.bf16.mxu0 0
  %447 = vmatpush1.bf16.msra.mxu0 0
  %448 = vmatprep.subr.bf16.mxu0 0
  %449 = vmatpush1.bf16.msra.mxu0 0
  %450 = vmatprep.subr.bf16.mxu0 0
  %451 = vmatpush1.bf16.msra.mxu0 0
  %452 = vmatprep.subr.bf16.mxu0 0
  %453 = vmatpush1.bf16.msra.mxu0 0
  %454 = vmatprep.subr.bf16.mxu0 0
  %455 = vmatpush1.bf16.msra.mxu0 0
  %456 = vmatprep.subr.bf16.mxu0 0
  %457 = vmatpush1.bf16.msra.mxu0 0
  %458 = vmatprep.subr.bf16.mxu0 0
  %459 = vmatpush1.bf16.msra.mxu0 0
  %460 = vmatprep.subr.bf16.mxu0 0
  %461 = vmatpush1.bf16.msra.mxu0 0
  %462 = vmatprep.mubr.bf16.mxu0 0
  %463 = vmatmul.mubr.bf16.gmra.mrb[0].mxu0 %v428
  %v464 = vpop.f32.mrb[0].mxu0
  %v465 = vadd.f32 0.0, %v464
  %v466 = vpop.f32.mrb[0].mxu0
  %v467 = vpop.f32.mrb[0].mxu0
  %v468 = vpop.f32.mrb[0].mxu0
  %469 = vdwg.mxu0
  %v470 = vadd.f32 %v408, %v465
  %v471 = vld [vmem:[%s7] sm:$0x1]
  %s472 = scalar_lea.vmem %s9, 112
  %v473 = vld [vmem:[%s472] sm:$0xf]
  %v474 = vld [vmem:[%s472 + $0x4] sm:$0xf]
  %v475 = vld [vmem:[%s472 + $0x8] sm:$0xf]
  %v476 = vld [vmem:[%s472 + $0xc] sm:$0xf]
  %v481 = vunpack.c.l.b16 %v473
  %v482 = vunpack.c.l.b16 %v474
  %v483 = vunpack.c.l.b16 %v475
  %v484 = vunpack.c.l.b16 %v476
  %v485 = vpack.c.b16 %v482, %v481
  %v486 = vpack.c.b16 %v484, %v483
  %v490 = vsel %vm62, %v471, 0
  %492 = vmatprep.subr.bf16.mxu0 0
  %493 = vmatpush1.bf16.msra.mxu0 %v485
  %494 = vmatprep.subr.bf16.mxu0 0
  %495 = vmatpush1.bf16.msra.mxu0 %v486
  %496 = vmatprep.subr.bf16.mxu0 0
  %497 = vmatpush1.bf16.msra.mxu0 0
  %498 = vmatprep.subr.bf16.mxu0 0
  %499 = vmatpush1.bf16.msra.mxu0 0
  %500 = vmatprep.subr.bf16.mxu0 0
  %501 = vmatpush1.bf16.msra.mxu0 0
  %502 = vmatprep.subr.bf16.mxu0 0
  %503 = vmatpush1.bf16.msra.mxu0 0
  %504 = vmatprep.subr.bf16.mxu0 0
  %505 = vmatpush1.bf16.msra.mxu0 0
  %506 = vmatprep.subr.bf16.mxu0 0
  %507 = vmatpush1.bf16.msra.mxu0 0
  %508 = vmatprep.subr.bf16.mxu0 0
  %509 = vmatpush1.bf16.msra.mxu0 0
  %510 = vmatprep.subr.bf16.mxu0 0
  %511 = vmatpush1.bf16.msra.mxu0 0
  %512 = vmatprep.subr.bf16.mxu0 0
  %513 = vmatpush1.bf16.msra.mxu0 0
  %514 = vmatprep.subr.bf16.mxu0 0
  %515 = vmatpush1.bf16.msra.mxu0 0
  %516 = vmatprep.subr.bf16.mxu0 0
  %517 = vmatpush1.bf16.msra.mxu0 0
  %518 = vmatprep.subr.bf16.mxu0 0
  %519 = vmatpush1.bf16.msra.mxu0 0
  %520 = vmatprep.subr.bf16.mxu0 0
  %521 = vmatpush1.bf16.msra.mxu0 0
  %522 = vmatprep.subr.bf16.mxu0 0
  %523 = vmatpush1.bf16.msra.mxu0 0
  %524 = vmatprep.mubr.bf16.mxu0 0
  %525 = vmatmul.mubr.bf16.gmra.mrb[0].mxu0 %v490
  %v526 = vpop.f32.mrb[0].mxu0
  %v527 = vadd.f32 0.0, %v526
  %v528 = vpop.f32.mrb[0].mxu0
  %v529 = vpop.f32.mrb[0].mxu0
  %v530 = vpop.f32.mrb[0].mxu0
  %531 = vdwg.mxu0
  %v532 = vadd.f32 %v470, %v527
  %v533 = vld [vmem:[%s8] sm:$0x1]
  %s534 = scalar_lea.vmem %s9, 128
  %v535 = vld [vmem:[%s534] sm:$0xf]
  %v536 = vld [vmem:[%s534 + $0x4] sm:$0xf]
  %v537 = vld [vmem:[%s534 + $0x8] sm:$0xf]
  %v538 = vld [vmem:[%s534 + $0xc] sm:$0xf]
  %v543 = vunpack.c.l.b16 %v535
  %v544 = vunpack.c.l.b16 %v536
  %v545 = vunpack.c.l.b16 %v537
  %v546 = vunpack.c.l.b16 %v538
  %v547 = vpack.c.b16 %v544, %v543
  %v548 = vpack.c.b16 %v546, %v545
  %v552 = vsel %vm62, %v533, 0
  %554 = vmatprep.subr.bf16.mxu0 0
  %555 = vmatpush1.bf16.msra.mxu0 %v547
  %556 = vmatprep.subr.bf16.mxu0 0
  %557 = vmatpush1.bf16.msra.mxu0 %v548
  %558 = vmatprep.subr.bf16.mxu0 0
  %559 = vmatpush1.bf16.msra.mxu0 0
  %560 = vmatprep.subr.bf16.mxu0 0
  %561 = vmatpush1.bf16.msra.mxu0 0
  %562 = vmatprep.subr.bf16.mxu0 0
  %563 = vmatpush1.bf16.msra.mxu0 0
  %564 = vmatprep.subr.bf16.mxu0 0
  %565 = vmatpush1.bf16.msra.mxu0 0
  %566 = vmatprep.subr.bf16.mxu0 0
  %567 = vmatpush1.bf16.msra.mxu0 0
  %568 = vmatprep.subr.bf16.mxu0 0
  %569 = vmatpush1.bf16.msra.mxu0 0
  %570 = vmatprep.subr.bf16.mxu0 0
  %571 = vmatpush1.bf16.msra.mxu0 0
  %572 = vmatprep.subr.bf16.mxu0 0
  %573 = vmatpush1.bf16.msra.mxu0 0
  %574 = vmatprep.subr.bf16.mxu0 0
  %575 = vmatpush1.bf16.msra.mxu0 0
  %576 = vmatprep.subr.bf16.mxu0 0
  %577 = vmatpush1.bf16.msra.mxu0 0
  %578 = vmatprep.subr.bf16.mxu0 0
  %579 = vmatpush1.bf16.msra.mxu0 0
  %580 = vmatprep.subr.bf16.mxu0 0
  %581 = vmatpush1.bf16.msra.mxu0 0
  %582 = vmatprep.subr.bf16.mxu0 0
  %583 = vmatpush1.bf16.msra.mxu0 0
  %584 = vmatprep.subr.bf16.mxu0 0
  %585 = vmatpush1.bf16.msra.mxu0 0
  %586 = vmatprep.mubr.bf16.mxu0 0
  %587 = vmatmul.mubr.bf16.gmra.mrb[0].mxu0 %v552
  %v588 = vpop.f32.mrb[0].mxu0
  %v589 = vadd.f32 0.0, %v588
  %v590 = vpop.f32.mrb[0].mxu0
  %v591 = vpop.f32.mrb[0].mxu0
  %v592 = vpop.f32.mrb[0].mxu0
  %593 = vdwg.mxu0
  %v594 = vadd.f32 %v532, %v589
  %v595 = vld [vmem:[%s10] sm:$0x1]
  %v597 = vlaneseq
  %v598 = vshrl.u32 %v597, 7
  %v599 = vsub.s32 0, %v598
  %v600 = vrot.slane %v595, %v599
  %v602 = vadd.f32 %v594, %v600
  %v603 = vmax.f32 %v602, 0.0
  %v604 = vpack.c.bf16 %v603, %v603
  %vm605 = vcmask 253952
  %606 = vst.msk [vmem:[%s11] sm:$0x1] %vm605, %v604
  // Predicated region
  $region46: #{_lambda_.40} parent=0 // pred_check
    _
  $region47: #{_lambda_.40} parent=0 // pred_check_branch
    %608 = sbr.rel (0) target = $region49
  $region48: #{_lambda_.40} parent=0 // pred_region
    _
  $region49: #{_lambda_.40} parent=0 // pred_fallthru
    _
  // Predicated region
  $region50: #{_lambda_.40} parent=0 // pred_check
    _
  $region51: #{_lambda_.40} parent=0 // pred_check_branch
    %610 = sbr.rel (0) target = $region53
  $region52: #{_lambda_.40} parent=0 // pred_region
    _
  $region53: #{_lambda_.40} parent=0 // pred_fallthru
    _

</llo_original>
